<compile_context>
chip_gen: v7x
topology: tpu7x:2x2x1
jax: 0.10.0
libtpu: 0.0.40
codegen_flags: <defaults>
</compile_context>

<pallas_src>
import functools
import math

import jax
import jax.numpy as jnp
from jax import lax
from jax.experimental import pallas as pl
from jax.experimental.pallas import tpu as pltpu


F_IN = 2346          # hardcoded in HGNN_conv_circ_sim
F_HID = 256          # hardcoded out_features of the hypergraph conv
LEAKY_SLOPE = 0.25
_VMEM_LIMIT = 48 * 1024 * 1024   # leave headroom below v7x's 64 MiB physical VMEM


# ---------------------------------------------------------------- helpers ----
def _round_up(x, m):
    return (x + m - 1) // m * m


def _pad_to(a, shape):
    pads = [(0, t - s) for s, t in zip(a.shape, shape)]
    if all(p == (0, 0) for p in pads):
        return a
    return jnp.pad(a, pads)


def _row_tiling(m, max_tile=512):
    """(padded_rows, tile) — single block for small M, 512-row tiles otherwise."""
    m8 = _round_up(m, 8)
    if m8 <= max_tile:
        return m8, m8
    return _round_up(m, max_tile), max_tile


# -------------------- fused HGCN branch + projection head (both branches) ----
def _fused_branch_kernel(x_ref, w_ref, b_ref, g_ref, w1_ref, b1_ref, w2_ref, b2_ref,
                         z_ref, h_ref, xw_ref):
    # Stage A, once per branch (row axis is innermost so row==0 marks a new branch):
    #   xw = x @ W + b   (bf16 MXU operands, f32 accumulate, f32 bias add)
    @pl.when(pl.program_id(1) == 0)
    def _():
        xw = jnp.dot(x_ref[...], w_ref[...], preferred_element_type=jnp.float32)
        xw_ref[...] = (xw + b_ref[...]).astype(xw_ref.dtype)

    # Stage B per row tile: z = leaky_relu(G_tile @ xw, 0.25)  (slope<1 -> max form).
    z = jnp.dot(g_ref[...], xw_ref[...], preferred_element_type=jnp.float32)
    z = jnp.maximum(z, LEAKY_SLOPE * z)
    z_ref[...] = z.astype(z_ref.dtype)

    # Projection head fused into the same row tile: h = fc2(elu(fc1(z))).
    t = jnp.dot(z.astype(jnp.bfloat16), w1_ref[...],
                preferred_element_type=jnp.float32) + b1_ref[...]
    t = jnp.where(t > 0, t, jnp.exp(jnp.minimum(t, 0.0)) - 1.0)     # ELU, f32
    h = jnp.dot(t.astype(jnp.bfloat16), w2_ref[...],
                preferred_element_type=jnp.float32) + b2_ref[...]
    h_ref[...] = h.astype(h_ref.dtype)


def _call_fused(x_s, w_s, b_s, g_s, w1p, b1p, w2p, b2p, *,
                np_, tm, kp, fhp, pp, single_buffer):
    if single_buffer:
        # Resident / rarely-refetched blocks: no need for the default 2-deep buffers.
        def resident(shape, idx):
            return pl.BlockSpec(shape, idx, pipeline_mode=pl.Buffered(1))
    else:
        def resident(shape, idx):
            return pl.BlockSpec(shape, idx)

    in_specs = [
        resident((None, np_, kp), lambda b, r: (b, 0, 0)),      # x   (per-branch resident)
        resident((None, kp, fhp), lambda b, r: (b, 0, 0)),      # W   (per-branch resident)
        resident((None, 1, fhp), lambda b, r: (b, 0, 0)),       # bias
        pl.BlockSpec((None, tm, np_), lambda b, r: (b, r, 0)),  # adj row tile (streamed)
        resident((fhp, pp), lambda b, r: (0, 0)),               # fc1_w (shared, resident)
        resident((1, pp), lambda b, r: (0, 0)),                 # fc1_b
        resident((pp, fhp), lambda b, r: (0, 0)),               # fc2_w
        resident((1, fhp), lambda b, r: (0, 0)),                # fc2_b
    ]
    out_specs = (pl.BlockSpec((None, tm, fhp), lambda b, r: (b, r, 0)),   # z
                 pl.BlockSpec((None, tm, fhp), lambda b, r: (b, r, 0)))   # h

    return pl.pallas_call(
        _fused_branch_kernel,
        out_shape=(jax.ShapeDtypeStruct((2, np_, fhp), jnp.float32),
                   jax.ShapeDtypeStruct((2, np_, fhp), jnp.float32)),
        grid_spec=pltpu.PrefetchScalarGridSpec(
            num_scalar_prefetch=0,
            grid=(2, np_ // tm),                         # (branch, row tile)
            in_specs=in_specs,
            out_specs=out_specs,
            scratch_shapes=[pltpu.VMEM((np_, fhp), jnp.bfloat16)],   # xw, per branch
        ),
        compiler_params=pltpu.CompilerParams(
            # branch axis "parallel" -> one branch per TensorCore on v7x;
            # row axis "arbitrary"   -> xw scratch is carried across row tiles.
            dimension_semantics=("parallel", "arbitrary"),
            vmem_limit_bytes=_VMEM_LIMIT,
        ),
    )(x_s, w_s, b_s, g_s, w1p, b1p, w2p, b2p)


def fused_hgcn_project(params, x1, adj1, x2, adj2):
    """Both HGCN branches + projection head in a single pallas_call.

    Returns (z1, z2, h1, h2), each (N, F_HID) f32.
    """
    n, k = x1.shape
    fh = params["w1"].shape[1]
    p = params["fc1_w"].shape[1]
    kp = _round_up(k, 128)        # 2346 -> 2432 (not 2560)
    fhp = _round_up(fh, 128)
    pp = _round_up(p, 128)
    np_, tm = _row_tiling(n)

    x_s = jnp.stack([_pad_to(x1, (np_, kp)),
                     _pad_to(x2, (np_, kp))]).astype(jnp.bfloat16)
    w_s = jnp.stack([_pad_to(params["w1"], (kp, fhp)),
                     _pad_to(params["w2"], (kp, fhp))]).astype(jnp.bfloat16)
    b_s = jnp.stack([_pad_to(params["b1"].reshape(1, fh), (1, fhp)),
                     _pad_to(params["b2"].reshape(1, fh), (1, fhp))]).astype(jnp.float32)
    g_s = jnp.stack([_pad_to(adj1, (np_, np_)),
                     _pad_to(adj2, (np_, np_))]).astype(jnp.bfloat16)
    w1p = _pad_to(params["fc1_w"], (fhp, pp)).astype(jnp.bfloat16)
    b1p = _pad_to(params["fc1_b"].reshape(1, p), (1, pp)).astype(jnp.float32)
    w2p = _pad_to(params["fc2_w"], (pp, fhp)).astype(jnp.bfloat16)
    b2p = _pad_to(params["fc2_b"].reshape(1, fh), (1, fhp)).astype(jnp.float32)

    kwargs = dict(np_=np_, tm=tm, kp=kp, fhp=fhp, pp=pp)
    try:
        z_s, h_s = _call_fused(x_s, w_s, b_s, g_s, w1p, b1p, w2p, b2p,
                               single_buffer=True, **kwargs)
    except Exception:
        # pl.Buffered(1) not supported by this jax/libtpu combo: fall back to the
        # default double-buffered pipeline (identical results, larger VMEM footprint).
        z_s, h_s = _call_fused(x_s, w_s, b_s, g_s, w1p, b1p, w2p, b2p,
                               single_buffer=False, **kwargs)

    z1 = z_s[0, :n, :fh]
    z2 = z_s[1, :n, :fh]
    h1 = h_s[0, :n, :fh]
    h2 = h_s[1, :n, :fh]
    return z1, z2, h1, h2


# ------------------------------- contrastive InfoNCE-style similarity loss ---
def _sim_loss_kernel(h1_ref, h2_ref, o_ref, *, tau, alpha):
    h1 = h1_ref[...]
    h2 = h2_ref[...]
    inv_tau = 1.0 / tau
    # F.normalize (p=2, dim=1, eps=1e-12); rsqrt runs on the EUP.
    z1 = h1 * lax.rsqrt(jnp.maximum(jnp.sum(h1 * h1, axis=1, keepdims=True), 1e-24))
    z2 = h2 * lax.rsqrt(jnp.maximum(jnp.sum(h2 * h2, axis=1, keepdims=True), 1e-24))
    z1b = z1.astype(jnp.bfloat16)
    z2b = z2.astype(jnp.bfloat16)

    dn = (((1,), (1,)), ((), ()))     # contract last dims: A @ B.T on the MXU
    e11 = jnp.exp(lax.dot_general(z1b, z1b, dn,
                                  preferred_element_type=jnp.float32) * inv_tau)
    e22 = jnp.exp(lax.dot_general(z2b, z2b, dn,
                                  preferred_element_type=jnp.float32) * inv_tau)
    e12 = jnp.exp(lax.dot_general(z1b, z2b, dn,
                                  preferred_element_type=jnp.float32) * inv_tau)
    # e21 == e12.T : reuse e12's column sums instead of a 4th matmul + N^2 exp.
    s11 = jnp.sum(e11, axis=1, keepdims=True)         # (N, 1)
    s12 = jnp.sum(e12, axis=1, keepdims=True)         # (N, 1)
    s22 = jnp.sum(e22, axis=0, keepdims=True)         # (1, N)  (e22 is symmetric)
    s21 = jnp.sum(e12, axis=0, keepdims=True)         # (1, N)  == e21.sum(1)

    # Rows are L2-normalized -> diag of the self-similarity is exp(1/tau) exactly.
    d_self = math.exp(inv_tau)
    # sum_i log diag(between_sim) = inv_tau * sum(z1 * z2) — no exp / divide needed.
    log_d12_sum = inv_tau * jnp.sum(z1 * z2)

    loss12 = jnp.sum(jnp.log(s11 + s12 - d_self)) - log_d12_sum
    loss21 = jnp.sum(jnp.log(s22 + s21 - d_self)) - log_d12_sum
    total = alpha * loss12 + (1.0 - alpha) * loss21
    o_ref[...] = jnp.broadcast_to(total, o_ref.shape).astype(o_ref.dtype)


def contrastive_sim_loss(h1, h2, *, tau, alpha):
    # Single-shot kernel: the NxN similarity matrices live in VMEM (fine for N up to
    # roughly 2k on v7x / ~3k on v5e/v6e).
    # TODO(synk): for larger N, tile this flash-style over row blocks of z1 so peak
    # VMEM is O(N*F_HID) instead of O(N^2).
    out = pl.pallas_call(
        functools.partial(_sim_loss_kernel, tau=tau, alpha=alpha),
        out_shape=jax.ShapeDtypeStruct((1, 128), jnp.float32),
        in_specs=[pl.BlockSpec(memory_space=pltpu.MemorySpace.VMEM),
                  pl.BlockSpec(memory_space=pltpu.MemorySpace.VMEM)],
        out_specs=pl.BlockSpec(memory_space=pltpu.MemorySpace.VMEM),
        compiler_params=pltpu.CompilerParams(vmem_limit_bytes=_VMEM_LIMIT),
    )(h1.astype(jnp.float32), h2.astype(jnp.float32))
    return out[0, 0]


# ------------------------------------------------------------- full forward --
def cl_hgcn_circ_sim_forward(params, x1, adj1, x2, adj2, *, tau=0.5, alpha=0.5):
    z1, z2, h1, h2 = fused_hgcn_project(params, x1, adj1, x2, adj2)
    loss = contrastive_sim_loss(h1, h2, tau=tau, alpha=alpha)
    return z1, z2, loss


# ---------------------------------------------------------------------- main --
if __name__ == "__main__":
    N = 64                 # number of nodes (kept small)
    P = 128                # num_proj_hidden
    TAU, ALPHA = 0.5, 0.5

    key = jax.random.PRNGKey(0)
    ks = jax.random.split(key, 12)

    # reset_parameters(): uniform(-stdv, stdv), stdv = 1/sqrt(out_features=256)
    stdv = 1.0 / math.sqrt(F_HID)
    w1 = jax.random.uniform(ks[0], (F_IN, F_HID), jnp.float32, -stdv, stdv)
    b1 = jax.random.uniform(ks[1], (F_HID,), jnp.float32, -stdv, stdv)
    w2 = jax.random.uniform(ks[2], (F_IN, F_HID), jnp.float32, -stdv, stdv)
    b2 = jax.random.uniform(ks[3], (F_HID,), jnp.float32, -stdv, stdv)
    bnd1 = 1.0 / math.sqrt(F_HID)
    fc1_w = jax.random.uniform(ks[4], (F_HID, P), jnp.float32, -bnd1, bnd1)
    fc1_b = jax.random.uniform(ks[5], (P,), jnp.float32, -bnd1, bnd1)
    bnd2 = 1.0 / math.sqrt(P)
    fc2_w = jax.random.uniform(ks[6], (P, F_HID), jnp.float32, -bnd2, bnd2)
    fc2_b = jax.random.uniform(ks[7], (F_HID,), jnp.float32, -bnd2, bnd2)
    params = dict(w1=w1, b1=b1, w2=w2, b2=b2,
                  fc1_w=fc1_w, fc1_b=fc1_b, fc2_w=fc2_w, fc2_b=fc2_b)

    # Inputs: two "views" of node features plus two hypergraph propagation matrices.
    x1 = jax.random.normal(ks[8], (N, F_IN), jnp.float32)
    x2 = jax.random.normal(ks[9], (N, F_IN), jnp.float32)
    adj1 = jax.random.normal(ks[10], (N, N), jnp.float32) / math.sqrt(N)
    adj2 = jax.random.normal(ks[11], (N, N), jnp.float32) / math.sqrt(N)

    z1, z2, loss = cl_hgcn_circ_sim_forward(params, x1, adj1, x2, adj2,
                                            tau=TAU, alpha=ALPHA)
    jax.block_until_ready((z1, z2, loss))

    # ---- pure-JAX f32 reference (PyTorch semantics) -------------------------
    def ref_forward(params, x1, adj1, x2, adj2, tau, alpha):
        hp = jax.lax.Precision.HIGHEST

        def hgcn(x, g, w, b):
            h = jnp.dot(x, w, precision=hp) + b
            h = jnp.dot(g, h, precision=hp)
            return jnp.where(h >= 0, h, 0.25 * h)

        def project(z):
            t = jax.nn.elu(jnp.dot(z, params["fc1_w"], precision=hp) + params["fc1_b"])
            return jnp.dot(t, params["fc2_w"], precision=hp) + params["fc2_b"]

        def normalize(z):
            nrm = jnp.linalg.norm(z, axis=1, keepdims=True)
            return z / jnp.maximum(nrm, 1e-12)

        def sim(a, b):
            an, bn = normalize(a), normalize(b)
            refl = jnp.exp(jnp.dot(an, an.T, precision=hp) / tau)
            betw = jnp.exp(jnp.dot(an, bn.T, precision=hp) / tau)
            l = -jnp.log(jnp.diag(betw) / (refl.sum(1) + betw.sum(1) - jnp.diag(refl)))
            return l.sum()

        z1r = hgcn(x1, adj1, params["w1"], params["b1"])
        z2r = hgcn(x2, adj2, params["w2"], params["b2"])
        h1r, h2r = project(z1r), project(z2r)
        lossr = alpha * sim(h1r, h2r) + (1 - alpha) * sim(h2r, h1r)
        return z1r, z2r, lossr

    z1_ref, z2_ref, loss_ref = ref_forward(params, x1, adj1, x2, adj2, TAU, ALPHA)

    def rel_err(a, b):
        return float(jnp.linalg.norm(a - b) / jnp.maximum(jnp.linalg.norm(b), 1e-12))

    assert z1.shape == (N, F_HID) and z2.shape == (N, F_HID)
    assert rel_err(z1, z1_ref) < 2e-2, rel_err(z1, z1_ref)        # bf16 matmul tolerance
    assert rel_err(z2, z2_ref) < 2e-2, rel_err(z2, z2_ref)
    loss_rel = abs(float(loss) - float(loss_ref)) / max(abs(float(loss_ref)), 1e-6)
    assert loss_rel < 2e-2, loss_rel

    print("KERNEL_OK")
</pallas_src>

<mosaic_0001>
module attributes {stable_mosaic.version = 11 : i64} {
  func.func @_fused_branch_kernel(%arg0: i32, %arg1: i32, %arg2: memref<1x64x2432xbf16, #tpu.memory_space<vmem>>, %arg3: memref<1x2432x256xbf16, #tpu.memory_space<vmem>>, %arg4: memref<1x1x256xf32, #tpu.memory_space<vmem>>, %arg5: memref<1x64x64xbf16, #tpu.memory_space<vmem>>, %arg6: memref<256x128xbf16, #tpu.memory_space<vmem>>, %arg7: memref<1x128xf32, #tpu.memory_space<vmem>>, %arg8: memref<128x256xbf16, #tpu.memory_space<vmem>>, %arg9: memref<1x256xf32, #tpu.memory_space<vmem>>, %arg10: memref<1x64x256xf32, #tpu.memory_space<vmem>>, %arg11: memref<1x64x256xf32, #tpu.memory_space<vmem>>, %arg12: memref<64x256xbf16, #tpu.memory_space<vmem>>) attributes {dimension_semantics = [#tpu.dimension_semantics<parallel>, #tpu.dimension_semantics<arbitrary>], iteration_bounds = array<i64: 2, 1>, scalar_prefetch = 0 : i64, scratch_operands = 1 : i64, tpu.core_type = #tpu.core_type<tc>, window_params = [{pipeline_mode = #tpu.pipeline_mode<synchronous>, transform_indices = @transform_0, window_bounds = array<i64: 1, 64, 2432>}, {pipeline_mode = #tpu.pipeline_mode<synchronous>, transform_indices = @transform_1, window_bounds = array<i64: 1, 2432, 256>}, {pipeline_mode = #tpu.pipeline_mode<synchronous>, transform_indices = @transform_2, window_bounds = array<i64: 1, 1, 256>}, {transform_indices = @transform_3, window_bounds = array<i64: 1, 64, 64>}, {pipeline_mode = #tpu.pipeline_mode<synchronous>, transform_indices = @transform_4, window_bounds = array<i64: 256, 128>}, {pipeline_mode = #tpu.pipeline_mode<synchronous>, transform_indices = @transform_5, window_bounds = array<i64: 1, 128>}, {pipeline_mode = #tpu.pipeline_mode<synchronous>, transform_indices = @transform_6, window_bounds = array<i64: 128, 256>}, {pipeline_mode = #tpu.pipeline_mode<synchronous>, transform_indices = @transform_7, window_bounds = array<i64: 1, 256>}, {transform_indices = @transform_8, window_bounds = array<i64: 1, 64, 256>}, {transform_indices = @transform_9, window_bounds = array<i64: 1, 64, 256>}]} {
    %c0_i32 = arith.constant 0 : i32
    %0 = arith.cmpi eq, %arg1, %c0_i32 : i32
    %1 = arith.extui %0 : i1 to i32
    %c0_i32_0 = arith.constant 0 : i32
    %2 = arith.cmpi ne, %1, %c0_i32_0 : i32
    scf.if %2 {
      %c0_25 = arith.constant 0 : index
      %c0_26 = arith.constant 0 : index
      %c0_27 = arith.constant 0 : index
      %36 = vector.load %arg2[%c0_25, %c0_26, %c0_27] : memref<1x64x2432xbf16, #tpu.memory_space<vmem>>, vector<1x64x2432xbf16>
      %37 = vector.shape_cast %36 : vector<1x64x2432xbf16> to vector<64x2432xbf16>
      %c0_28 = arith.constant 0 : index
      %c0_29 = arith.constant 0 : index
      %c0_30 = arith.constant 0 : index
      %38 = vector.load %arg3[%c0_28, %c0_29, %c0_30] : memref<1x2432x256xbf16, #tpu.memory_space<vmem>>, vector<1x2432x256xbf16>
      %39 = vector.shape_cast %38 : vector<1x2432x256xbf16> to vector<2432x256xbf16>
      %cst_31 = arith.constant dense<0.000000e+00> : vector<64x256xf32>
      %40 = tpu.matmul %37, %39, %cst_31 {dimension_numbers = #tpu.dot_dimension_numbers<[1], [0], [0], [1], [0, 0, 1, 1], [], []>} : vector<64x2432xbf16>, vector<2432x256xbf16>, vector<64x256xf32> -> vector<64x256xf32>
      %c0_32 = arith.constant 0 : index
      %c0_33 = arith.constant 0 : index
      %c0_34 = arith.constant 0 : index
      %41 = vector.load %arg4[%c0_32, %c0_33, %c0_34] : memref<1x1x256xf32, #tpu.memory_space<vmem>>, vector<1x1x256xf32>
      %42 = vector.shape_cast %41 : vector<1x1x256xf32> to vector<1x256xf32>
      %43 = vector.broadcast %42 : vector<1x256xf32> to vector<64x256xf32>
      %44 = arith.addf %40, %43 : vector<64x256xf32>
      %45 = arith.truncf %44 : vector<64x256xf32> to vector<64x256xbf16>
      %c0_35 = arith.constant 0 : index
      %c0_36 = arith.constant 0 : index
      %46 = vector.load %arg12[%c0_35, %c0_36] : memref<64x256xbf16, #tpu.memory_space<vmem>>, vector<64x256xbf16>
      tpu.vector_store %arg12[%c0_35, %c0_36], %45 {strides = array<i32>} : memref<64x256xbf16, #tpu.memory_space<vmem>>, vector<64x256xbf16>,
    } else {
    }
    %c0 = arith.constant 0 : index
    %c0_1 = arith.constant 0 : index
    %c0_2 = arith.constant 0 : index
    %3 = vector.load %arg5[%c0, %c0_1, %c0_2] : memref<1x64x64xbf16, #tpu.memory_space<vmem>>, vector<1x64x64xbf16>
    %4 = vector.shape_cast %3 : vector<1x64x64xbf16> to vector<64x64xbf16>
    %c0_3 = arith.constant 0 : index
    %c0_4 = arith.constant 0 : index
    %5 = vector.load %arg12[%c0_3, %c0_4] : memref<64x256xbf16, #tpu.memory_space<vmem>>, vector<64x256xbf16>
    %cst = arith.constant dense<0.000000e+00> : vector<64x256xf32>
    %6 = tpu.matmul %4, %5, %cst {dimension_numbers = #tpu.dot_dimension_numbers<[1], [0], [0], [1], [0, 0, 1, 1], [], []>} : vector<64x64xbf16>, vector<64x256xbf16>, vector<64x256xf32> -> vector<64x256xf32>
    %cst_5 = arith.constant 2.500000e-01 : f32
    %7 = vector.broadcast %cst_5 : f32 to vector<64x256xf32>
    %8 = arith.mulf %7, %6 : vector<64x256xf32>
    %9 = arith.maximumf %6, %8 : vector<64x256xf32>
    %c0_6 = arith.constant 0 : index
    %c0_7 = arith.constant 0 : index
    %c0_8 = arith.constant 0 : index
    %10 = vector.load %arg10[%c0_6, %c0_7, %c0_8] : memref<1x64x256xf32, #tpu.memory_space<vmem>>, vector<1x64x256xf32>
    %11 = vector.shape_cast %10 : vector<1x64x256xf32> to vector<64x256xf32>
    %12 = vector.shape_cast %9 : vector<64x256xf32> to vector<1x64x256xf32>
    tpu.vector_store %arg10[%c0_6, %c0_7, %c0_8], %12 {strides = array<i32>} : memref<1x64x256xf32, #tpu.memory_space<vmem>>, vector<1x64x256xf32>,
    %13 = arith.truncf %9 : vector<64x256xf32> to vector<64x256xbf16>
    %c0_9 = arith.constant 0 : index
    %c0_10 = arith.constant 0 : index
    %14 = vector.load %arg6[%c0_9, %c0_10] : memref<256x128xbf16, #tpu.memory_space<vmem>>, vector<256x128xbf16>
    %cst_11 = arith.constant dense<0.000000e+00> : vector<64x128xf32>
    %15 = tpu.matmul %13, %14, %cst_11 {dimension_numbers = #tpu.dot_dimension_numbers<[1], [0], [0], [1], [0, 0, 1, 1], [], []>} : vector<64x256xbf16>, vector<256x128xbf16>, vector<64x128xf32> -> vector<64x128xf32>
    %c0_12 = arith.constant 0 : index
    %c0_13 = arith.constant 0 : index
    %16 = vector.load %arg7[%c0_12, %c0_13] : memref<1x128xf32, #tpu.memory_space<vmem>>, vector<1x128xf32>
    %17 = vector.broadcast %16 : vector<1x128xf32> to vector<64x128xf32>
    %18 = arith.addf %15, %17 : vector<64x128xf32>
    %cst_14 = arith.constant 0.000000e+00 : f32
    %19 = vector.broadcast %cst_14 : f32 to vector<64x128xf32>
    %20 = arith.cmpf ogt, %18, %19 : vector<64x128xf32>
    %cst_15 = arith.constant 0.000000e+00 : f32
    %21 = vector.broadcast %cst_15 : f32 to vector<64x128xf32>
    %22 = arith.minimumf %18, %21 : vector<64x128xf32>
    %23 = math.exp %22 : vector<64x128xf32>
    %cst_16 = arith.constant 1.000000e+00 : f32
    %24 = vector.broadcast %cst_16 : f32 to vector<64x128xf32>
    %25 = arith.subf %23, %24 : vector<64x128xf32>
    %26 = arith.select %20, %18, %25 : vector<64x128xi1>, vector<64x128xf32>
    %27 = arith.truncf %26 : vector<64x128xf32> to vector<64x128xbf16>
    %c0_17 = arith.constant 0 : index
    %c0_18 = arith.constant 0 : index
    %28 = vector.load %arg8[%c0_17, %c0_18] : memref<128x256xbf16, #tpu.memory_space<vmem>>, vector<128x256xbf16>
    %cst_19 = arith.constant dense<0.000000e+00> : vector<64x256xf32>
    %29 = tpu.matmul %27, %28, %cst_19 {dimension_numbers = #tpu.dot_dimension_numbers<[1], [0], [0], [1], [0, 0, 1, 1], [], []>} : vector<64x128xbf16>, vector<128x256xbf16>, vector<64x256xf32> -> vector<64x256xf32>
    %c0_20 = arith.constant 0 : index
    %c0_21 = arith.constant 0 : index
    %30 = vector.load %arg9[%c0_20, %c0_21] : memref<1x256xf32, #tpu.memory_space<vmem>>, vector<1x256xf32>
    %31 = vector.broadcast %30 : vector<1x256xf32> to vector<64x256xf32>
    %32 = arith.addf %29, %31 : vector<64x256xf32>
    %c0_22 = arith.constant 0 : index
    %c0_23 = arith.constant 0 : index
    %c0_24 = arith.constant 0 : index
    %33 = vector.load %arg11[%c0_22, %c0_23, %c0_24] : memref<1x64x256xf32, #tpu.memory_space<vmem>>, vector<1x64x256xf32>
    %34 = vector.shape_cast %33 : vector<1x64x256xf32> to vector<64x256xf32>
    %35 = vector.shape_cast %32 : vector<64x256xf32> to vector<1x64x256xf32>
    tpu.vector_store %arg11[%c0_22, %c0_23, %c0_24], %35 {strides = array<i32>} : memref<1x64x256xf32, #tpu.memory_space<vmem>>, vector<1x64x256xf32>,
    return
  }
  func.func @transform_0(%arg0: i32, %arg1: i32) -> (i32, i32, i32) {
    %c0_i32 = arith.constant 0 : i32
    %c0_i32_0 = arith.constant 0 : i32
    %c0_i32_1 = arith.constant 0 : i32
    return %arg0, %c0_i32, %c0_i32_0 : i32, i32, i32
  }
  func.func @transform_1(%arg0: i32, %arg1: i32) -> (i32, i32, i32) {
    %c0_i32 = arith.constant 0 : i32
    %c0_i32_0 = arith.constant 0 : i32
    %c0_i32_1 = arith.constant 0 : i32
    return %arg0, %c0_i32, %c0_i32_0 : i32, i32, i32
  }
  func.func @transform_2(%arg0: i32, %arg1: i32) -> (i32, i32, i32) {
    %c0_i32 = arith.constant 0 : i32
    %c0_i32_0 = arith.constant 0 : i32
    %c0_i32_1 = arith.constant 0 : i32
    return %arg0, %c0_i32, %c0_i32_0 : i32, i32, i32
  }
  func.func @transform_3(%arg0: i32, %arg1: i32) -> (i32, i32, i32) {
    %c0_i32 = arith.constant 0 : i32
    %c0_i32_0 = arith.constant 0 : i32
    return %arg0, %arg1, %c0_i32 : i32, i32, i32
  }
  func.func @transform_4(%arg0: i32, %arg1: i32) -> (i32, i32) {
    %c0_i32 = arith.constant 0 : i32
    %c0_i32_0 = arith.constant 0 : i32
    %c0_i32_1 = arith.constant 0 : i32
    return %c0_i32, %c0_i32_0 : i32, i32
  }
  func.func @transform_5(%arg0: i32, %arg1: i32) -> (i32, i32) {
    %c0_i32 = arith.constant 0 : i32
    %c0_i32_0 = arith.constant 0 : i32
    %c0_i32_1 = arith.constant 0 : i32
    return %c0_i32, %c0_i32_0 : i32, i32
  }
  func.func @transform_6(%arg0: i32, %arg1: i32) -> (i32, i32) {
    %c0_i32 = arith.constant 0 : i32
    %c0_i32_0 = arith.constant 0 : i32
    %c0_i32_1 = arith.constant 0 : i32
    return %c0_i32, %c0_i32_0 : i32, i32
  }
  func.func @transform_7(%arg0: i32, %arg1: i32) -> (i32, i32) {
    %c0_i32 = arith.constant 0 : i32
    %c0_i32_0 = arith.constant 0 : i32
    %c0_i32_1 = arith.constant 0 : i32
    return %c0_i32, %c0_i32_0 : i32, i32
  }
  func.func @transform_8(%arg0: i32, %arg1: i32) -> (i32, i32, i32) {
    %c0_i32 = arith.constant 0 : i32
    %c0_i32_0 = arith.constant 0 : i32
    return %arg0, %arg1, %c0_i32 : i32, i32, i32
  }
  func.func @transform_9(%arg0: i32, %arg1: i32) -> (i32, i32, i32) {
    %c0_i32 = arith.constant 0 : i32
    %c0_i32_0 = arith.constant 0 : i32
    return %arg0, %arg1, %c0_i32 : i32, i32, i32
  }
}

module attributes {stable_mosaic.version = 11 : i64} {
  func.func @_fused_branch_kernel(%arg0: i32, %arg1: i32, %arg2: memref<1x64x2432xbf16, #tpu.memory_space<vmem>>, %arg3: memref<1x2432x256xbf16, #tpu.memory_space<vmem>>, %arg4: memref<1x1x256xf32, #tpu.memory_space<vmem>>, %arg5: memref<1x64x64xbf16, #tpu.memory_space<vmem>>, %arg6: memref<256x128xbf16, #tpu.memory_space<vmem>>, %arg7: memref<1x128xf32, #tpu.memory_space<vmem>>, %arg8: memref<128x256xbf16, #tpu.memory_space<vmem>>, %arg9: memref<1x256xf32, #tpu.memory_space<vmem>>, %arg10: memref<1x64x256xf32, #tpu.memory_space<vmem>>, %arg11: memref<1x64x256xf32, #tpu.memory_space<vmem>>, %arg12: memref<64x256xbf16, #tpu.memory_space<vmem>>) attributes {dimension_semantics = [#tpu.dimension_semantics<parallel>, #tpu.dimension_semantics<arbitrary>], iteration_bounds = array<i64: 2, 1>, scalar_prefetch = 0 : i64, scratch_operands = 1 : i64, tpu.core_type = #tpu.core_type<tc>, window_params = [{transform_indices = @transform_0, window_bounds = array<i64: 1, 64, 2432>}, {transform_indices = @transform_1, window_bounds = array<i64: 1, 2432, 256>}, {transform_indices = @transform_2, window_bounds = array<i64: 1, 1, 256>}, {transform_indices = @transform_3, window_bounds = array<i64: 1, 64, 64>}, {pipeline_mode = #tpu.pipeline_mode<synchronous>, transform_indices = @transform_4, window_bounds = array<i64: 256, 128>}, {pipeline_mode = #tpu.pipeline_mode<synchronous>, transform_indices = @transform_5, window_bounds = array<i64: 1, 128>}, {pipeline_mode = #tpu.pipeline_mode<synchronous>, transform_indices = @transform_6, window_bounds = array<i64: 128, 256>}, {pipeline_mode = #tpu.pipeline_mode<synchronous>, transform_indices = @transform_7, window_bounds = array<i64: 1, 256>}, {transform_indices = @transform_8, window_bounds = array<i64: 1, 64, 256>}, {transform_indices = @transform_9, window_bounds = array<i64: 1, 64, 256>}]} {
    %c0_i32 = arith.constant 0 : i32
    %0 = arith.cmpi eq, %arg1, %c0_i32 : i32
    %1 = arith.extui %0 : i1 to i32
    %c0_i32_0 = arith.constant 0 : i32
    %2 = arith.cmpi ne, %1, %c0_i32_0 : i32
    scf.if %2 {
      %c0_25 = arith.constant 0 : index
      %c0_26 = arith.constant 0 : index
      %c0_27 = arith.constant 0 : index
      %36 = vector.load %arg2[%c0_25, %c0_26, %c0_27] : memref<1x64x2432xbf16, #tpu.memory_space<vmem>>, vector<1x64x2432xbf16>
      %37 = vector.shape_cast %36 : vector<1x64x2432xbf16> to vector<64x2432xbf16>
      %c0_28 = arith.constant 0 : index
      %c0_29 = arith.constant 0 : index
      %c0_30 = arith.constant 0 : index
      %38 = vector.load %arg3[%c0_28, %c0_29, %c0_30] : memref<1x2432x256xbf16, #tpu.memory_space<vmem>>, vector<1x2432x256xbf16>
      %39 = vector.shape_cast %38 : vector<1x2432x256xbf16> to vector<2432x256xbf16>
      %cst_31 = arith.constant dense<0.000000e+00> : vector<64x256xf32>
      %40 = tpu.matmul %37, %39, %cst_31 {dimension_numbers = #tpu.dot_dimension_numbers<[1], [0], [0], [1], [0, 0, 1, 1], [], []>} : vector<64x2432xbf16>, vector<2432x256xbf16>, vector<64x256xf32> -> vector<64x256xf32>
      %c0_32 = arith.constant 0 : index
      %c0_33 = arith.constant 0 : index
      %c0_34 = arith.constant 0 : index
      %41 = vector.load %arg4[%c0_32, %c0_33, %c0_34] : memref<1x1x256xf32, #tpu.memory_space<vmem>>, vector<1x1x256xf32>
      %42 = vector.shape_cast %41 : vector<1x1x256xf32> to vector<1x256xf32>
      %43 = vector.broadcast %42 : vector<1x256xf32> to vector<64x256xf32>
      %44 = arith.addf %40, %43 : vector<64x256xf32>
      %45 = arith.truncf %44 : vector<64x256xf32> to vector<64x256xbf16>
      %c0_35 = arith.constant 0 : index
      %c0_36 = arith.constant 0 : index
      %46 = vector.load %arg12[%c0_35, %c0_36] : memref<64x256xbf16, #tpu.memory_space<vmem>>, vector<64x256xbf16>
      tpu.vector_store %arg12[%c0_35, %c0_36], %45 {strides = array<i32>} : memref<64x256xbf16, #tpu.memory_space<vmem>>, vector<64x256xbf16>,
    } else {
    }
    %c0 = arith.constant 0 : index
    %c0_1 = arith.constant 0 : index
    %c0_2 = arith.constant 0 : index
    %3 = vector.load %arg5[%c0, %c0_1, %c0_2] : memref<1x64x64xbf16, #tpu.memory_space<vmem>>, vector<1x64x64xbf16>
    %4 = vector.shape_cast %3 : vector<1x64x64xbf16> to vector<64x64xbf16>
    %c0_3 = arith.constant 0 : index
    %c0_4 = arith.constant 0 : index
    %5 = vector.load %arg12[%c0_3, %c0_4] : memref<64x256xbf16, #tpu.memory_space<vmem>>, vector<64x256xbf16>
    %cst = arith.constant dense<0.000000e+00> : vector<64x256xf32>
    %6 = tpu.matmul %4, %5, %cst {dimension_numbers = #tpu.dot_dimension_numbers<[1], [0], [0], [1], [0, 0, 1, 1], [], []>} : vector<64x64xbf16>, vector<64x256xbf16>, vector<64x256xf32> -> vector<64x256xf32>
    %cst_5 = arith.constant 2.500000e-01 : f32
    %7 = vector.broadcast %cst_5 : f32 to vector<64x256xf32>
    %8 = arith.mulf %7, %6 : vector<64x256xf32>
    %9 = arith.maximumf %6, %8 : vector<64x256xf32>
    %c0_6 = arith.constant 0 : index
    %c0_7 = arith.constant 0 : index
    %c0_8 = arith.constant 0 : index
    %10 = vector.load %arg10[%c0_6, %c0_7, %c0_8] : memref<1x64x256xf32, #tpu.memory_space<vmem>>, vector<1x64x256xf32>
    %11 = vector.shape_cast %10 : vector<1x64x256xf32> to vector<64x256xf32>
    %12 = vector.shape_cast %9 : vector<64x256xf32> to vector<1x64x256xf32>
    tpu.vector_store %arg10[%c0_6, %c0_7, %c0_8], %12 {strides = array<i32>} : memref<1x64x256xf32, #tpu.memory_space<vmem>>, vector<1x64x256xf32>,
    %13 = arith.truncf %9 : vector<64x256xf32> to vector<64x256xbf16>
    %c0_9 = arith.constant 0 : index
    %c0_10 = arith.constant 0 : index
    %14 = vector.load %arg6[%c0_9, %c0_10] : memref<256x128xbf16, #tpu.memory_space<vmem>>, vector<256x128xbf16>
    %cst_11 = arith.constant dense<0.000000e+00> : vector<64x128xf32>
    %15 = tpu.matmul %13, %14, %cst_11 {dimension_numbers = #tpu.dot_dimension_numbers<[1], [0], [0], [1], [0, 0, 1, 1], [], []>} : vector<64x256xbf16>, vector<256x128xbf16>, vector<64x128xf32> -> vector<64x128xf32>
    %c0_12 = arith.constant 0 : index
    %c0_13 = arith.constant 0 : index
    %16 = vector.load %arg7[%c0_12, %c0_13] : memref<1x128xf32, #tpu.memory_space<vmem>>, vector<1x128xf32>
    %17 = vector.broadcast %16 : vector<1x128xf32> to vector<64x128xf32>
    %18 = arith.addf %15, %17 : vector<64x128xf32>
    %cst_14 = arith.constant 0.000000e+00 : f32
    %19 = vector.broadcast %cst_14 : f32 to vector<64x128xf32>
    %20 = arith.cmpf ogt, %18, %19 : vector<64x128xf32>
    %cst_15 = arith.constant 0.000000e+00 : f32
    %21 = vector.broadcast %cst_15 : f32 to vector<64x128xf32>
    %22 = arith.minimumf %18, %21 : vector<64x128xf32>
    %23 = math.exp %22 : vector<64x128xf32>
    %cst_16 = arith.constant 1.000000e+00 : f32
    %24 = vector.broadcast %cst_16 : f32 to vector<64x128xf32>
    %25 = arith.subf %23, %24 : vector<64x128xf32>
    %26 = arith.select %20, %18, %25 : vector<64x128xi1>, vector<64x128xf32>
    %27 = arith.truncf %26 : vector<64x128xf32> to vector<64x128xbf16>
    %c0_17 = arith.constant 0 : index
    %c0_18 = arith.constant 0 : index
    %28 = vector.load %arg8[%c0_17, %c0_18] : memref<128x256xbf16, #tpu.memory_space<vmem>>, vector<128x256xbf16>
    %cst_19 = arith.constant dense<0.000000e+00> : vector<64x256xf32>
    %29 = tpu.matmul %27, %28, %cst_19 {dimension_numbers = #tpu.dot_dimension_numbers<[1], [0], [0], [1], [0, 0, 1, 1], [], []>} : vector<64x128xbf16>, vector<128x256xbf16>, vector<64x256xf32> -> vector<64x256xf32>
    %c0_20 = arith.constant 0 : index
    %c0_21 = arith.constant 0 : index
    %30 = vector.load %arg9[%c0_20, %c0_21] : memref<1x256xf32, #tpu.memory_space<vmem>>, vector<1x256xf32>
    %31 = vector.broadcast %30 : vector<1x256xf32> to vector<64x256xf32>
    %32 = arith.addf %29, %31 : vector<64x256xf32>
    %c0_22 = arith.constant 0 : index
    %c0_23 = arith.constant 0 : index
    %c0_24 = arith.constant 0 : index
    %33 = vector.load %arg11[%c0_22, %c0_23, %c0_24] : memref<1x64x256xf32, #tpu.memory_space<vmem>>, vector<1x64x256xf32>
    %34 = vector.shape_cast %33 : vector<1x64x256xf32> to vector<64x256xf32>
    %35 = vector.shape_cast %32 : vector<64x256xf32> to vector<1x64x256xf32>
    tpu.vector_store %arg11[%c0_22, %c0_23, %c0_24], %35 {strides = array<i32>} : memref<1x64x256xf32, #tpu.memory_space<vmem>>, vector<1x64x256xf32>,
    return
  }
  func.func @transform_0(%arg0: i32, %arg1: i32) -> (i32, i32, i32) {
    %c0_i32 = arith.constant 0 : i32
    %c0_i32_0 = arith.constant 0 : i32
    %c0_i32_1 = arith.constant 0 : i32
    return %arg0, %c0_i32, %c0_i32_0 : i32, i32, i32
  }
  func.func @transform_1(%arg0: i32, %arg1: i32) -> (i32, i32, i32) {
    %c0_i32 = arith.constant 0 : i32
    %c0_i32_0 = arith.constant 0 : i32
    %c0_i32_1 = arith.constant 0 : i32
    return %arg0, %c0_i32, %c0_i32_0 : i32, i32, i32
  }
  func.func @transform_2(%arg0: i32, %arg1: i32) -> (i32, i32, i32) {
    %c0_i32 = arith.constant 0 : i32
    %c0_i32_0 = arith.constant 0 : i32
    %c0_i32_1 = arith.constant 0 : i32
    return %arg0, %c0_i32, %c0_i32_0 : i32, i32, i32
  }
  func.func @transform_3(%arg0: i32, %arg1: i32) -> (i32, i32, i32) {
    %c0_i32 = arith.constant 0 : i32
    %c0_i32_0 = arith.constant 0 : i32
    return %arg0, %arg1, %c0_i32 : i32, i32, i32
  }
  func.func @transform_4(%arg0: i32, %arg1: i32) -> (i32, i32) {
    %c0_i32 = arith.constant 0 : i32
    %c0_i32_0 = arith.constant 0 : i32
    %c0_i32_1 = arith.constant 0 : i32
    return %c0_i32, %c0_i32_0 : i32, i32
  }
  func.func @transform_5(%arg0: i32, %arg1: i32) -> (i32, i32) {
    %c0_i32 = arith.constant 0 : i32
    %c0_i32_0 = arith.constant 0 : i32
    %c0_i32_1 = arith.constant 0 : i32
    return %c0_i32, %c0_i32_0 : i32, i32
  }
  func.func @transform_6(%arg0: i32, %arg1: i32) -> (i32, i32) {
    %c0_i32 = arith.constant 0 : i32
    %c0_i32_0 = arith.constant 0 : i32
    %c0_i32_1 = arith.constant 0 : i32
    return %c0_i32, %c0_i32_0 : i32, i32
  }
  func.func @transform_7(%arg0: i32, %arg1: i32) -> (i32, i32) {
    %c0_i32 = arith.constant 0 : i32
    %c0_i32_0 = arith.constant 0 : i32
    %c0_i32_1 = arith.constant 0 : i32
    return %c0_i32, %c0_i32_0 : i32, i32
  }
  func.func @transform_8(%arg0: i32, %arg1: i32) -> (i32, i32, i32) {
    %c0_i32 = arith.constant 0 : i32
    %c0_i32_0 = arith.constant 0 : i32
    return %arg0, %arg1, %c0_i32 : i32, i32, i32
  }
  func.func @transform_9(%arg0: i32, %arg1: i32) -> (i32, i32, i32) {
    %c0_i32 = arith.constant 0 : i32
    %c0_i32_0 = arith.constant 0 : i32
    return %arg0, %arg1, %c0_i32 : i32, i32, i32
  }
}

</mosaic_0001>

<llo_original>
// kernel: tpu_custom_call.1
$region0: #{tpu_custom_call.1}
  #allocation0 [shape = 'u32[]', space=smem, size = 0x4, offset = 0x4, fixed_abs, tag = 'smem constant byte address 0x4 - core index']
  #allocation1 [shape = 'u32[144,128]{1,0:T(1,128)}', space=vmem, size = 0x12000, scoped, tag = 'internal scratch']
  #allocation2 [shape = 'bf16[64,256]{1,0:T(16,128)(2,1)}', space=vmem, size = 0x8000, scoped, tag = 'scratch operand']
  %s0 = inlined_call_operand.hbm [shape: bf16[2,64,2432], index: 0, kind: input, shape index: {}]
  %s1 = inlined_call_operand.hbm [shape: bf16[2,2432,256], index: 1, kind: input, shape index: {}]
  %s2 = inlined_call_operand.hbm [shape: f32[2,1,256], index: 2, kind: input, shape index: {}]
  %s3 = inlined_call_operand.hbm [shape: bf16[2,64,64], index: 3, kind: input, shape index: {}]
  %s4 = inlined_call_operand.hbm [shape: bf16[256,128], index: 4, kind: input, shape index: {}]
  %s5 = inlined_call_operand.hbm [shape: f32[1,128], index: 5, kind: input, shape index: {}]
  %s6 = inlined_call_operand.hbm [shape: bf16[128,256], index: 6, kind: input, shape index: {}]
  %s7 = inlined_call_operand.hbm [shape: f32[1,256], index: 7, kind: input, shape index: {}]
  %s8 = inlined_call_operand.hbm [shape: f32[2,64,256], index: 8, kind: output, shape index: {0}]
  %s9 = inlined_call_operand.hbm [shape: f32[2,64,256], index: 9, kind: output, shape index: {1}]
  %10 = xla_tuple %s8, %s9
  %s11 = sld [smem:[#allocation0]]
  $region109: #{tpu_custom_call.1} parent=0
    _
  %s13 = ssub.s32 1, %s11
  %s14 = scalar_select 0, %s13, %s11
  $region1: #{tpu_custom_call.1} parent=0
    #allocation3 [shape = 'u8[311296]{0}', space=vmem, size = 0x4c000, scoped, tag = 'input window, operand 0, single buffered']
    #allocation4 [shape = 's32[2]{0}', space=sflag, size = 0x8, scoped, tag = 'scoped memory for tpu_custom_call.1']
    #allocation5 [shape = 's32[2]{0}', space=sflag, size = 0x8, scoped, tag = 'scoped memory for tpu_custom_call.1']
    #allocation6 [shape = 'u8[1245184]{0}', space=vmem, size = 0x130000, scoped, tag = 'input window, operand 1, single buffered']
    #allocation7 [shape = 's32[1]{0}', space=sflag, size = 0x4, scoped, tag = 'scoped memory for tpu_custom_call.1']
    #allocation8 [shape = 'u8[1024]{0}', space=vmem, size = 0x400, scoped, tag = 'input window, operand 2, single buffered']
    #allocation9 [shape = 'u8[32768]{0}', space=vmem, size = 0x8000, scoped, tag = 'input window, operand 3']
    #allocation10 [shape = 's32[2]{0}', space=sflag, size = 0x8, scoped, tag = 'scoped memory for tpu_custom_call.1']
    #allocation11 [shape = 'u8[65536]{0}', space=vmem, size = 0x10000, scoped, tag = 'input window, operand 4, single buffered']
    #allocation12 [shape = 'u8[512]{0}', space=vmem, size = 0x400, scoped, tag = 'input window, operand 5, single buffered']
    #allocation13 [shape = 's32[1]{0}', space=sflag, size = 0x4, scoped, tag = 'scoped memory for tpu_custom_call.1']
    #allocation14 [shape = 'u8[65536]{0}', space=vmem, size = 0x10000, scoped, tag = 'input window, operand 6, single buffered']
    #allocation15 [shape = 'u8[1024]{0}', space=vmem, size = 0x400, scoped, tag = 'input window, operand 7, single buffered']
    #allocation16 [shape = 's32[1]{0}', space=sflag, size = 0x4, scoped, tag = 'scoped memory for tpu_custom_call.1']
    #allocation17 [shape = 'u8[131072]{0}', space=vmem, size = 0x20000, scoped, tag = 'output window, operand 0']
    #allocation18 [shape = 'u8[131072]{0}', space=vmem, size = 0x20000, scoped, tag = 'output window, operand 1']
    #allocation19 [shape = 's32[2]{0}', space=sflag, size = 0x8, scoped, tag = 'scoped memory for tpu_custom_call.1']
    %15 = vsyncpa [#allocation4], 0
    %16 = vsyncpa [#allocation7], 0
    %17 = vsyncpa [#allocation10], 0
    %s18 = scalar_lea.sflag [#allocation10], 1
    %19 = vsyncpa %s18, 0
    %20 = vsyncpa [#allocation13], 0
    %21 = vsyncpa [#allocation16], 0
    %22 = vsyncpa [#allocation5], 0
    %s23 = scalar_lea.sflag [#allocation5], 1
    %24 = vsyncpa %s23, 0
    %25 = vsyncpa [#allocation19], 0
    %s26 = scalar_lea.sflag [#allocation19], 1
    %27 = vsyncpa %s26, 0
    loop: start=0, step=1, limit=4
    $region2: #{tpu_custom_call.1} parent=1 // loop_pre_header
      _
    $region3: #{tpu_custom_call.1} parent=1 // loop_header
      %s29 = sphi 0, %s33
      %p30 = scmp.ge.s32.totalorder %s29, 4
      %s36 = sphi 0, %s48
      %s37 = sphi 0, %s44
      %s38 = sphi 0, %s36
      %s39 = sphi 0, %s37
      %s40 = sphi 0, %s38
      %s41 = sphi 0, %s39
      %s51 = sphi 0, %s53
      %s54 = sphi 0, %s51
      %s55 = sphi 0, %s54
      %s71 = sphi 0, %s55
      %s77 = sphi 0, %s79
      %s80 = sphi 0, %s77
      %s81 = sphi 0, %s80
      %s97 = sphi 0, %s81
      %s103 = sphi 0, %s105
      %s106 = sphi 0, %s103
      %s107 = sphi 0, %s106
      %s123 = sphi 0, %s107
      %s131 = sphi 0, %s133
      %s134 = sphi 0, %s131
      %s135 = sphi 0, %s134
      %s151 = sphi 0, %s135
      %s155 = sphi 0, %s155
      %s157 = sphi 0, %s155
      %s158 = sphi 0, %s157
      %s172 = sphi 0, %s158
      %s176 = sphi 0, %s176
      %s178 = sphi 0, %s176
      %s179 = sphi 0, %s178
      %s193 = sphi 0, %s179
      %s197 = sphi 0, %s197
      %s199 = sphi 0, %s197
      %s200 = sphi 0, %s199
      %s214 = sphi 0, %s200
      %s218 = sphi 0, %s218
      %s220 = sphi 0, %s218
      %s221 = sphi 0, %s220
      %s235 = sphi 0, %s221
      %s243 = sphi 0, %s245
      %s246 = sphi 0, %s243
      %s247 = sphi 0, %s246
      %s263 = sphi 0, %s247
      %s271 = sphi 0, %s273
      %s274 = sphi 0, %s271
      %s275 = sphi 0, %s274
      %s291 = sphi 0, %s275
    $region4: #{tpu_custom_call.1} parent=1 // loop_header_branch
      %32 = sbr.rel (%p30) target = $region8
    $region5: #{tpu_custom_call.1} parent=1 // loop_body
      %s34 = ssub.s32 %s29, 1
      %s35 = ssub.s32 %s29, 2
      %s42 = sadd.s32 1, %s37
      %p43 = scmp.ge.s32.totalorder %s42, 1
      %s44 = scalar_select %p43, 0, %s42
      %s45 = sadd.s32 1, %s36
      %s46 = scalar_select %p43, %s45, %s36
      %p47 = scmp.ge.s32.totalorder %s46, 2
      %s48 = scalar_select %p47, 0, %s46
      %s49 = ssub.s32 %s36, %s48
      %p50 = scmp.eq.s32.totalorder %s49, 0
      %s52 = sadd.s32 %s51, 1
      %s53 = scalar_select %p50, %s51, %s52
      %p56 = pneg %p50
      %p57 = scmp.eq.s32.totalorder %s29, 1
      %p58 = por %p56, %p57
      %p59 = scmp.ne.s32.totalorder %s51, %s54
      %p60 = scmp.eq.s32.totalorder %s29, 0
      %p61 = por %p59, %p60
      %p62 = scmp.ne.s32.totalorder %s51, %s54
      %p63 = scmp.eq.s32.totalorder %s34, 1
      %p64 = por %p62, %p63
      %p65 = scmp.ne.s32.totalorder %s54, %s55
      %p66 = scmp.eq.s32.totalorder %s34, 0
      %p67 = por %p65, %p66
      %p68 = scmp.ne.s32.totalorder %s54, %s55
      %p69 = scmp.eq.s32.totalorder %s35, 1
      %p70 = por %p68, %p69
      %p72 = scmp.ne.s32.totalorder %s55, %s71
      %p73 = scmp.eq.s32.totalorder %s35, 0
      %p74 = por %p72, %p73
      %s75 = ssub.s32 %s36, %s48
      %p76 = scmp.eq.s32.totalorder %s75, 0
      %s78 = sadd.s32 %s77, 1
      %s79 = scalar_select %p76, %s77, %s78
      %p82 = pneg %p76
      %p83 = scmp.eq.s32.totalorder %s29, 1
      %p84 = por %p82, %p83
      %p85 = scmp.ne.s32.totalorder %s77, %s80
      %p86 = scmp.eq.s32.totalorder %s29, 0
      %p87 = por %p85, %p86
      %p88 = scmp.ne.s32.totalorder %s77, %s80
      %p89 = scmp.eq.s32.totalorder %s34, 1
      %p90 = por %p88, %p89
      %p91 = scmp.ne.s32.totalorder %s80, %s81
      %p92 = scmp.eq.s32.totalorder %s34, 0
      %p93 = por %p91, %p92
      %p94 = scmp.ne.s32.totalorder %s80, %s81
      %p95 = scmp.eq.s32.totalorder %s35, 1
      %p96 = por %p94, %p95
      %p98 = scmp.ne.s32.totalorder %s81, %s97
      %p99 = scmp.eq.s32.totalorder %s35, 0
      %p100 = por %p98, %p99
      %s101 = ssub.s32 %s36, %s48
      %p102 = scmp.eq.s32.totalorder %s101, 0
      %s104 = sadd.s32 %s103, 1
      %s105 = scalar_select %p102, %s103, %s104
      %p108 = pneg %p102
      %p109 = scmp.eq.s32.totalorder %s29, 1
      %p110 = por %p108, %p109
      %p111 = scmp.ne.s32.totalorder %s103, %s106
      %p112 = scmp.eq.s32.totalorder %s29, 0
      %p113 = por %p111, %p112
      %p114 = scmp.ne.s32.totalorder %s103, %s106
      %p115 = scmp.eq.s32.totalorder %s34, 1
      %p116 = por %p114, %p115
      %p117 = scmp.ne.s32.totalorder %s106, %s107
      %p118 = scmp.eq.s32.totalorder %s34, 0
      %p119 = por %p117, %p118
      %p120 = scmp.ne.s32.totalorder %s106, %s107
      %p121 = scmp.eq.s32.totalorder %s35, 1
      %p122 = por %p120, %p121
      %p124 = scmp.ne.s32.totalorder %s107, %s123
      %p125 = scmp.eq.s32.totalorder %s35, 0
      %p126 = por %p124, %p125
      %s127 = ssub.s32 %s36, %s48
      %s128 = ssub.s32 %s37, %s44
      %s129 = sor.u32 %s127, %s128
      %p130 = scmp.eq.s32.totalorder %s129, 0
      %s132 = sadd.s32 %s131, 1
      %s133 = scalar_select %p130, %s131, %s132
      %p136 = pneg %p130
      %p137 = scmp.eq.s32.totalorder %s29, 1
      %p138 = por %p136, %p137
      %p139 = scmp.ne.s32.totalorder %s131, %s134
      %p140 = scmp.eq.s32.totalorder %s29, 0
      %p141 = por %p139, %p140
      %p142 = scmp.ne.s32.totalorder %s131, %s134
      %p143 = scmp.eq.s32.totalorder %s34, 1
      %p144 = por %p142, %p143
      %p145 = scmp.ne.s32.totalorder %s134, %s135
      %p146 = scmp.eq.s32.totalorder %s34, 0
      %p147 = por %p145, %p146
      %p148 = scmp.ne.s32.totalorder %s134, %s135
      %p149 = scmp.eq.s32.totalorder %s35, 1
      %p150 = por %p148, %p149
      %p152 = scmp.ne.s32.totalorder %s135, %s151
      %p153 = scmp.eq.s32.totalorder %s35, 0
      %p154 = por %p152, %p153
      %s156 = sadd.s32 %s155, 1
      %p159 = scmp.eq.s32.totalorder %s29, 1
      %p160 = scmp.ne.s32.totalorder %s155, %s157
      %p161 = scmp.eq.s32.totalorder %s29, 0
      %p162 = por %p160, %p161
      %p163 = scmp.ne.s32.totalorder %s155, %s157
      %p164 = scmp.eq.s32.totalorder %s34, 1
      %p165 = por %p163, %p164
      %p166 = scmp.ne.s32.totalorder %s157, %s158
      %p167 = scmp.eq.s32.totalorder %s34, 0
      %p168 = por %p166, %p167
      %p169 = scmp.ne.s32.totalorder %s157, %s158
      %p170 = scmp.eq.s32.totalorder %s35, 1
      %p171 = por %p169, %p170
      %p173 = scmp.ne.s32.totalorder %s158, %s172
      %p174 = scmp.eq.s32.totalorder %s35, 0
      %p175 = por %p173, %p174
      %s177 = sadd.s32 %s176, 1
      %p180 = scmp.eq.s32.totalorder %s29, 1
      %p181 = scmp.ne.s32.totalorder %s176, %s178
      %p182 = scmp.eq.s32.totalorder %s29, 0
      %p183 = por %p181, %p182
      %p184 = scmp.ne.s32.totalorder %s176, %s178
      %p185 = scmp.eq.s32.totalorder %s34, 1
      %p186 = por %p184, %p185
      %p187 = scmp.ne.s32.totalorder %s178, %s179
      %p188 = scmp.eq.s32.totalorder %s34, 0
      %p189 = por %p187, %p188
      %p190 = scmp.ne.s32.totalorder %s178, %s179
      %p191 = scmp.eq.s32.totalorder %s35, 1
      %p192 = por %p190, %p191
      %p194 = scmp.ne.s32.totalorder %s179, %s193
      %p195 = scmp.eq.s32.totalorder %s35, 0
      %p196 = por %p194, %p195
      %s198 = sadd.s32 %s197, 1
      %p201 = scmp.eq.s32.totalorder %s29, 1
      %p202 = scmp.ne.s32.totalorder %s197, %s199
      %p203 = scmp.eq.s32.totalorder %s29, 0
      %p204 = por %p202, %p203
      %p205 = scmp.ne.s32.totalorder %s197, %s199
      %p206 = scmp.eq.s32.totalorder %s34, 1
      %p207 = por %p205, %p206
      %p208 = scmp.ne.s32.totalorder %s199, %s200
      %p209 = scmp.eq.s32.totalorder %s34, 0
      %p210 = por %p208, %p209
      %p211 = scmp.ne.s32.totalorder %s199, %s200
      %p212 = scmp.eq.s32.totalorder %s35, 1
      %p213 = por %p211, %p212
      %p215 = scmp.ne.s32.totalorder %s200, %s214
      %p216 = scmp.eq.s32.totalorder %s35, 0
      %p217 = por %p215, %p216
      %s219 = sadd.s32 %s218, 1
      %p222 = scmp.eq.s32.totalorder %s29, 1
      %p223 = scmp.ne.s32.totalorder %s218, %s220
      %p224 = scmp.eq.s32.totalorder %s29, 0
      %p225 = por %p223, %p224
      %p226 = scmp.ne.s32.totalorder %s218, %s220
      %p227 = scmp.eq.s32.totalorder %s34, 1
      %p228 = por %p226, %p227
      %p229 = scmp.ne.s32.totalorder %s220, %s221
      %p230 = scmp.eq.s32.totalorder %s34, 0
      %p231 = por %p229, %p230
      %p232 = scmp.ne.s32.totalorder %s220, %s221
      %p233 = scmp.eq.s32.totalorder %s35, 1
      %p234 = por %p232, %p233
      %p236 = scmp.ne.s32.totalorder %s221, %s235
      %p237 = scmp.eq.s32.totalorder %s35, 0
      %p238 = por %p236, %p237
      %s239 = ssub.s32 %s36, %s48
      %s240 = ssub.s32 %s37, %s44
      %s241 = sor.u32 %s239, %s240
      %p242 = scmp.eq.s32.totalorder %s241, 0
      %s244 = sadd.s32 %s243, 1
      %s245 = scalar_select %p242, %s243, %s244
      %p248 = pneg %p242
      %p249 = scmp.eq.s32.totalorder %s29, 1
      %p250 = por %p248, %p249
      %p251 = scmp.ne.s32.totalorder %s243, %s246
      %p252 = scmp.eq.s32.totalorder %s29, 0
      %p253 = por %p251, %p252
      %p254 = scmp.ne.s32.totalorder %s243, %s246
      %p255 = scmp.eq.s32.totalorder %s34, 1
      %p256 = por %p254, %p255
      %p257 = scmp.ne.s32.totalorder %s246, %s247
      %p258 = scmp.eq.s32.totalorder %s34, 0
      %p259 = por %p257, %p258
      %p260 = scmp.ne.s32.totalorder %s246, %s247
      %p261 = scmp.eq.s32.totalorder %s35, 1
      %p262 = por %p260, %p261
      %p264 = scmp.ne.s32.totalorder %s247, %s263
      %p265 = scmp.eq.s32.totalorder %s35, 0
      %p266 = por %p264, %p265
      %s267 = ssub.s32 %s36, %s48
      %s268 = ssub.s32 %s37, %s44
      %s269 = sor.u32 %s267, %s268
      %p270 = scmp.eq.s32.totalorder %s269, 0
      %s272 = sadd.s32 %s271, 1
      %s273 = scalar_select %p270, %s271, %s272
      %p276 = pneg %p270
      %p277 = scmp.eq.s32.totalorder %s29, 1
      %p278 = por %p276, %p277
      %p279 = scmp.ne.s32.totalorder %s271, %s274
      %p280 = scmp.eq.s32.totalorder %s29, 0
      %p281 = por %p279, %p280
      %p282 = scmp.ne.s32.totalorder %s271, %s274
      %p283 = scmp.eq.s32.totalorder %s34, 1
      %p284 = por %p282, %p283
      %p285 = scmp.ne.s32.totalorder %s274, %s275
      %p286 = scmp.eq.s32.totalorder %s34, 0
      %p287 = por %p285, %p286
      %p288 = scmp.ne.s32.totalorder %s274, %s275
      %p289 = scmp.eq.s32.totalorder %s35, 1
      %p290 = por %p288, %p289
      %p292 = scmp.ne.s32.totalorder %s275, %s291
      %p293 = scmp.eq.s32.totalorder %s35, 0
      %p294 = por %p292, %p293
      %p295 = scmp.le.s32.totalorder 1, %s29
      %p296 = scmp.lt.s32.totalorder %s29, 3
      %p297 = pnand %p295, %p296
      %p298 = pneg %p297
      // Predicated region
      $region9: #{tpu_custom_call.1} parent=5 // pred_check
        _
      $region10: #{tpu_custom_call.1} parent=5 // pred_check_branch
        %300 = sbr.rel (%p297) target = $region12
      $region11: #{tpu_custom_call.1} parent=5 // pred_region
        %s301 = ssub.s32 %s29, 1
        // Predicated region
        $region13: #{tpu_custom_call.1} parent=11 // pred_check
          %p302 = pneg %p67
        $region14: #{tpu_custom_call.1} parent=11 // pred_check_branch
          %304 = sbr.rel (%p302) target = $region16
        $region15: #{tpu_custom_call.1} parent=11 // pred_region
          %s306 = ssub.s32 9728, 9728
          %307 = vsyncadd [#allocation4], %s306
          %s308 = smul.addr %s38, 152
          %s309 = smul.addr %s308, 64
          %s310 = scalar_lea.hbm %s0, %s309
          %s311 = sshll.u32 [#allocation3], 4
          %s312 = int_to_ptr.vmem [resolvable:$true] %s311
          %317 = dma.hbm_to_vmem [thread:$0]  %s310, 9728, %s312, [#allocation4], 1216, 1216, 76
        $region16: #{tpu_custom_call.1} parent=11 // pred_fallthru
          _
        // Predicated region
        $region17: #{tpu_custom_call.1} parent=11 // pred_check
          %p318 = pneg %p93
        $region18: #{tpu_custom_call.1} parent=11 // pred_check_branch
          %320 = sbr.rel (%p318) target = $region20
        $region19: #{tpu_custom_call.1} parent=11 // pred_region
          %s322 = ssub.s32 38912, 38912
          %323 = vsyncadd [#allocation7], %s322
          %s324 = smul.addr %s38, 608
          %s325 = smul.addr %s324, 64
          %s326 = scalar_lea.hbm %s1, %s325
          %s327 = sshll.u32 [#allocation6], 4
          %s328 = int_to_ptr.vmem [resolvable:$true] %s327
          %333 = dma.hbm_to_vmem [thread:$0]  %s326, 38912, %s328, [#allocation7], 128, 128, 8
        $region20: #{tpu_custom_call.1} parent=11 // pred_fallthru
          _
        // Predicated region
        $region21: #{tpu_custom_call.1} parent=11 // pred_check
          %p334 = pneg %p119
        $region22: #{tpu_custom_call.1} parent=11 // pred_check_branch
          %336 = sbr.rel (%p334) target = $region24
        $region23: #{tpu_custom_call.1} parent=11 // pred_region
          %s338 = ssub.s32 32, 32
          %339 = vsyncadd [#allocation7], %s338
          %s340 = smul.addr %s38, 2
          %s341 = smul.addr %s340, 16
          %s342 = scalar_lea.hbm %s2, %s341
          %s344 = sshll.u32 [#allocation8], 4
          %s345 = int_to_ptr.vmem [resolvable:$true] %s344
          %347 = dma.hbm_to_vmem [thread:$0]  %s342, 32, %s345, [#allocation7]
        $region24: #{tpu_custom_call.1} parent=11 // pred_fallthru
          _
        // Predicated region
        $region25: #{tpu_custom_call.1} parent=11 // pred_check
          %p348 = pneg %p168
        $region26: #{tpu_custom_call.1} parent=11 // pred_check_branch
          %350 = sbr.rel (%p348) target = $region28
        $region27: #{tpu_custom_call.1} parent=11 // pred_region
          %s352 = ssub.s32 2048, 2048
          %353 = vsyncadd [#allocation10], %s352
          %s354 = sshll.u32 [#allocation11], 4
          %s355 = int_to_ptr.vmem [resolvable:$true] %s354
          %360 = dma.hbm_to_vmem [thread:$0]  %s4, 2048, %s355, [#allocation10], 64, 64, 4
        $region28: #{tpu_custom_call.1} parent=11 // pred_fallthru
          _
        // Predicated region
        $region29: #{tpu_custom_call.1} parent=11 // pred_check
          %p361 = pneg %p189
        $region30: #{tpu_custom_call.1} parent=11 // pred_check_branch
          %363 = sbr.rel (%p361) target = $region32
        $region31: #{tpu_custom_call.1} parent=11 // pred_region
          %s365 = ssub.s32 16, 16
          %366 = vsyncadd [#allocation13], %s365
          %s368 = sshll.u32 [#allocation12], 4
          %s369 = int_to_ptr.vmem [resolvable:$true] %s368
          %371 = dma.hbm_to_vmem [thread:$0]  %s5, 16, %s369, [#allocation13]
        $region32: #{tpu_custom_call.1} parent=11 // pred_fallthru
          _
        // Predicated region
        $region33: #{tpu_custom_call.1} parent=11 // pred_check
          %p372 = pneg %p210
        $region34: #{tpu_custom_call.1} parent=11 // pred_check_branch
          %374 = sbr.rel (%p372) target = $region36
        $region35: #{tpu_custom_call.1} parent=11 // pred_region
          %s376 = ssub.s32 2048, 2048
          %377 = vsyncadd [#allocation13], %s376
          %s378 = sshll.u32 [#allocation14], 4
          %s379 = int_to_ptr.vmem [resolvable:$true] %s378
          %384 = dma.hbm_to_vmem [thread:$0]  %s6, 2048, %s379, [#allocation13], 128, 128, 8
        $region36: #{tpu_custom_call.1} parent=11 // pred_fallthru
          _
        // Predicated region
        $region37: #{tpu_custom_call.1} parent=11 // pred_check
          %p385 = pneg %p231
        $region38: #{tpu_custom_call.1} parent=11 // pred_check_branch
          %387 = sbr.rel (%p385) target = $region40
        $region39: #{tpu_custom_call.1} parent=11 // pred_region
          %s389 = ssub.s32 32, 32
          %390 = vsyncadd [#allocation16], %s389
          %s392 = sshll.u32 [#allocation15], 4
          %s393 = int_to_ptr.vmem [resolvable:$true] %s392
          %395 = dma.hbm_to_vmem [thread:$0]  %s7, 32, %s393, [#allocation16]
        $region40: #{tpu_custom_call.1} parent=11 // pred_fallthru
          _
      $region12: #{tpu_custom_call.1} parent=5 // pred_fallthru
        _
      %p396 = scmp.lt.s32.totalorder %s29, 2
      // Predicated region
      $region41: #{tpu_custom_call.1} parent=5 // pred_check
        %p397 = pneg %p396
      $region42: #{tpu_custom_call.1} parent=5 // pred_check_branch
        %399 = sbr.rel (%p397) target = $region44
      $region43: #{tpu_custom_call.1} parent=5 // pred_region
        // Predicated region
        $region45: #{tpu_custom_call.1} parent=43 // pred_check
          %p400 = pneg %p141
        $region46: #{tpu_custom_call.1} parent=43 // pred_check_branch
          %402 = sbr.rel (%p400) target = $region48
        $region47: #{tpu_custom_call.1} parent=43 // pred_region
          %s403 = sand.u32 %s29, 1
          %s404 = scalar_lea.sflag [#allocation10], %s403
          %s405 = sand.u32 %s131, 1
          %s406 = smul.addr %s405, 32
          %s407 = scalar_lea.vmem [#allocation9], %s406
          %s408 = smul.u32 8, %s37
          %s410 = ssub.s32 512, 512
          %411 = vsyncadd %s404, %s410
          %s412 = smul.addr %s36, 8
          %s413 = sadd.s32 %s408, %s412
          %s414 = smul.addr %s413, 64
          %s415 = scalar_lea.hbm %s3, %s414
          %s416 = sshll.u32 %s407, 4
          %s417 = int_to_ptr.vmem [resolvable:$true] %s416
          %422 = dma.hbm_to_vmem [thread:$0]  %s415, 512, %s417, %s404, 64, 64, 4
        $region48: #{tpu_custom_call.1} parent=43 // pred_fallthru
          _
      $region44: #{tpu_custom_call.1} parent=5 // pred_fallthru
        _
      %p423 = scmp.le.s32.totalorder 1, %s29
      %p424 = scmp.lt.s32.totalorder %s29, 3
      %p425 = pnand %p423, %p424
      %p426 = pneg %p425
      // Predicated region
      $region49: #{tpu_custom_call.1} parent=5 // pred_check
        _
      $region50: #{tpu_custom_call.1} parent=5 // pred_check_branch
        %428 = sbr.rel (%p425) target = $region52
      $region51: #{tpu_custom_call.1} parent=5 // pred_region
        %s429 = ssub.s32 %s29, 1
        // Predicated region
        $region53: #{tpu_custom_call.1} parent=51 // pred_check
          %p430 = pneg %p67
        $region54: #{tpu_custom_call.1} parent=51 // pred_check_branch
          %432 = sbr.rel (%p430) target = $region56
        $region55: #{tpu_custom_call.1} parent=51 // pred_region
          %433 = dma.done [#allocation4], 9728
        $region56: #{tpu_custom_call.1} parent=51 // pred_fallthru
          _
        // Predicated region
        $region57: #{tpu_custom_call.1} parent=51 // pred_check
          %p434 = pneg %p93
        $region58: #{tpu_custom_call.1} parent=51 // pred_check_branch
          %436 = sbr.rel (%p434) target = $region60
        $region59: #{tpu_custom_call.1} parent=51 // pred_region
          %437 = dma.done [#allocation7], 38912
        $region60: #{tpu_custom_call.1} parent=51 // pred_fallthru
          _
        // Predicated region
        $region61: #{tpu_custom_call.1} parent=51 // pred_check
          %p438 = pneg %p119
        $region62: #{tpu_custom_call.1} parent=51 // pred_check_branch
          %440 = sbr.rel (%p438) target = $region64
        $region63: #{tpu_custom_call.1} parent=51 // pred_region
          %441 = dma.done [#allocation7], 32
        $region64: #{tpu_custom_call.1} parent=51 // pred_fallthru
          _
        %s442 = sand.u32 %s34, 1
        %s443 = scalar_lea.sflag [#allocation10], %s442
        %s444 = sand.u32 %s134, 1
        %s445 = smul.addr %s444, 32
        %s446 = scalar_lea.vmem [#allocation9], %s445
        // Predicated region
        $region65: #{tpu_custom_call.1} parent=51 // pred_check
          %p447 = pneg %p147
        $region66: #{tpu_custom_call.1} parent=51 // pred_check_branch
          %449 = sbr.rel (%p447) target = $region68
        $region67: #{tpu_custom_call.1} parent=51 // pred_region
          %450 = dma.done %s443, 512
        $region68: #{tpu_custom_call.1} parent=51 // pred_fallthru
          _
        // Predicated region
        $region69: #{tpu_custom_call.1} parent=51 // pred_check
          %p451 = pneg %p168
        $region70: #{tpu_custom_call.1} parent=51 // pred_check_branch
          %453 = sbr.rel (%p451) target = $region72
        $region71: #{tpu_custom_call.1} parent=51 // pred_region
          %454 = dma.done [#allocation10], 2048
        $region72: #{tpu_custom_call.1} parent=51 // pred_fallthru
          _
        // Predicated region
        $region73: #{tpu_custom_call.1} parent=51 // pred_check
          %p455 = pneg %p189
        $region74: #{tpu_custom_call.1} parent=51 // pred_check_branch
          %457 = sbr.rel (%p455) target = $region76
        $region75: #{tpu_custom_call.1} parent=51 // pred_region
          %458 = dma.done [#allocation13], 16
        $region76: #{tpu_custom_call.1} parent=51 // pred_fallthru
          _
        // Predicated region
        $region77: #{tpu_custom_call.1} parent=51 // pred_check
          %p459 = pneg %p210
        $region78: #{tpu_custom_call.1} parent=51 // pred_check_branch
          %461 = sbr.rel (%p459) target = $region80
        $region79: #{tpu_custom_call.1} parent=51 // pred_region
          %462 = dma.done [#allocation13], 2048
        $region80: #{tpu_custom_call.1} parent=51 // pred_fallthru
          _
        // Predicated region
        $region81: #{tpu_custom_call.1} parent=51 // pred_check
          %p463 = pneg %p231
        $region82: #{tpu_custom_call.1} parent=51 // pred_check_branch
          %465 = sbr.rel (%p463) target = $region84
        $region83: #{tpu_custom_call.1} parent=51 // pred_region
          %466 = dma.done [#allocation16], 32
        $region84: #{tpu_custom_call.1} parent=51 // pred_fallthru
          _
        %p467 = pneg %p67
        %p468 = pneg %p64
        %p469 = pneg %p93
        %p470 = pneg %p90
        %p471 = pneg %p119
        %p472 = pneg %p116
        %s473 = sand.u32 %s34, 1
        %s474 = scalar_lea.sflag [#allocation10], %s473
        %s475 = sand.u32 %s134, 1
        %s476 = smul.addr %s475, 32
        %s477 = scalar_lea.vmem [#allocation9], %s476
        %p478 = pneg %p147
        %p479 = pneg %p144
        %p480 = pneg %p168
        %p481 = pneg %p165
        %p482 = pneg %p189
        %p483 = pneg %p186
        %p484 = pneg %p210
        %p485 = pneg %p207
        %p486 = pneg %p231
        %p487 = pneg %p228
        %p488 = pneg %p259
        %p489 = pneg %p256
        %s490 = sand.u32 %s246, 1
        %s491 = scalar_lea.sflag [#allocation5], %s490
        %s492 = sand.u32 %s246, 1
        %s493 = smul.addr %s492, 128
        %s494 = scalar_lea.vmem [#allocation17], %s493
        %p495 = pneg %p287
        %p496 = pneg %p284
        %s497 = sand.u32 %s274, 1
        %s498 = scalar_lea.sflag [#allocation19], %s497
        %s499 = sand.u32 %s274, 1
        %s500 = smul.addr %s499, 128
        %s501 = scalar_lea.vmem [#allocation18], %s500
        %s502 = smul.u32 8, %s39
        %s503 = smul.u32 8, %s39
        %s504 = smul.u32 8, %s39
        %p506 = scmp.eq.s32.totalorder %s39, 0
        // Predicated region
        $region85: #{tpu_custom_call.1} parent=51 // pred_check
          %p507 = pneg %p506
        $region86: #{tpu_custom_call.1} parent=51 // pred_check_branch
          %509 = sbr.rel (%p507) target = $region88
        $region87: #{tpu_custom_call.1} parent=51 // pred_region
          %v510 = vld [vmem:[#allocation3] sm:$0xff]
          %v511 = vld [vmem:[#allocation3 + $0x8] sm:$0xff]
          %v512 = vld [vmem:[#allocation3 + $0x10] sm:$0xff]
          %v513 = vld [vmem:[#allocation3 + $0x18] sm:$0xff]
          %v514 = vld [vmem:[#allocation3 + $0x20] sm:$0xff]
          %v515 = vld [vmem:[#allocation3 + $0x28] sm:$0xff]
          %v516 = vld [vmem:[#allocation3 + $0x30] sm:$0xff]
          %v517 = vld [vmem:[#allocation3 + $0x38] sm:$0xff]
          %v518 = vld [vmem:[#allocation3 + $0x40] sm:$0xff]
          %v519 = vld [vmem:[#allocation3 + $0x48] sm:$0xf]
          %v520 = vld [vmem:[#allocation3 + $0x4c] sm:$0xff]
          %v521 = vld [vmem:[#allocation3 + $0x54] sm:$0xff]
          %v522 = vld [vmem:[#allocation3 + $0x5c] sm:$0xff]
          %v523 = vld [vmem:[#allocation3 + $0x64] sm:$0xff]
          %v524 = vld [vmem:[#allocation3 + $0x6c] sm:$0xff]
          %v525 = vld [vmem:[#allocation3 + $0x74] sm:$0xff]
          %v526 = vld [vmem:[#allocation3 + $0x7c] sm:$0xff]
          %v527 = vld [vmem:[#allocation3 + $0x84] sm:$0xff]
          %v528 = vld [vmem:[#allocation3 + $0x8c] sm:$0xff]
          %v529 = vld [vmem:[#allocation3 + $0x94] sm:$0xf]
          %v530 = vld [vmem:[#allocation3 + $0x98] sm:$0xff]
          %v531 = vld [vmem:[#allocation3 + $0xa0] sm:$0xff]
          %v532 = vld [vmem:[#allocation3 + $0xa8] sm:$0xff]
          %v533 = vld [vmem:[#allocation3 + $0xb0] sm:$0xff]
          %v534 = vld [vmem:[#allocation3 + $0xb8] sm:$0xff]
          %v535 = vld [vmem:[#allocation3 + $0xc0] sm:$0xff]
          %v536 = vld [vmem:[#allocation3 + $0xc8] sm:$0xff]
          %v537 = vld [vmem:[#allocation3 + $0xd0] sm:$0xff]
          %v538 = vld [vmem:[#allocation3 + $0xd8] sm:$0xff]
          %v539 = vld [vmem:[#allocation3 + $0xe0] sm:$0xf]
          %v540 = vld [vmem:[#allocation3 + $0xe4] sm:$0xff]
          %v541 = vld [vmem:[#allocation3 + $0xec] sm:$0xff]
          %v542 = vld [vmem:[#allocation3 + $0xf4] sm:$0xff]
          %v543 = vld [vmem:[#allocation3 + $0xfc] sm:$0xff]
          %v544 = vld [vmem:[#allocation3 + $0x104] sm:$0xff]
          %v545 = vld [vmem:[#allocation3 + $0x10c] sm:$0xff]
          %v546 = vld [vmem:[#allocation3 + $0x114] sm:$0xff]
          %v547 = vld [vmem:[#allocation3 + $0x11c] sm:$0xff]
          %v548 = vld [vmem:[#allocation3 + $0x124] sm:$0xff]
          %v549 = vld [vmem:[#allocation3 + $0x12c] sm:$0xf]
          %v550 = vld [vmem:[#allocation3 + $0x130] sm:$0xff]
          %v551 = vld [vmem:[#allocation3 + $0x138] sm:$0xff]
          %v552 = vld [vmem:[#allocation3 + $0x140] sm:$0xff]
          %v553 = vld [vmem:[#allocation3 + $0x148] sm:$0xff]
          %v554 = vld [vmem:[#allocation3 + $0x150] sm:$0xff]
          %v555 = vld [vmem:[#allocation3 + $0x158] sm:$0xff]
          %v556 = vld [vmem:[#allocation3 + $0x160] sm:$0xff]
          %v557 = vld [vmem:[#allocation3 + $0x168] sm:$0xff]
          %v558 = vld [vmem:[#allocation3 + $0x170] sm:$0xff]
          %v559 = vld [vmem:[#allocation3 + $0x178] sm:$0xf]
          %v560 = vld [vmem:[#allocation3 + $0x17c] sm:$0xff]
          %v561 = vld [vmem:[#allocation3 + $0x184] sm:$0xff]
          %v562 = vld [vmem:[#allocation3 + $0x18c] sm:$0xff]
          %v563 = vld [vmem:[#allocation3 + $0x194] sm:$0xff]
          %v564 = vld [vmem:[#allocation3 + $0x19c] sm:$0xff]
          %v565 = vld [vmem:[#allocation3 + $0x1a4] sm:$0xff]
          %v566 = vld [vmem:[#allocation3 + $0x1ac] sm:$0xff]
          %v567 = vld [vmem:[#allocation3 + $0x1b4] sm:$0xff]
          %v568 = vld [vmem:[#allocation3 + $0x1bc] sm:$0xff]
          %v569 = vld [vmem:[#allocation3 + $0x1c4] sm:$0xf]
          %v570 = vld [vmem:[#allocation3 + $0x1c8] sm:$0xff]
          %v571 = vld [vmem:[#allocation3 + $0x1d0] sm:$0xff]
          %v572 = vld [vmem:[#allocation3 + $0x1d8] sm:$0xff]
          %v573 = vld [vmem:[#allocation3 + $0x1e0] sm:$0xff]
          %v574 = vld [vmem:[#allocation3 + $0x1e8] sm:$0xff]
          %v575 = vld [vmem:[#allocation3 + $0x1f0] sm:$0xff]
          %v576 = vld [vmem:[#allocation3 + $0x1f8] sm:$0xff]
          %v577 = vld [vmem:[#allocation3 + $0x200] sm:$0xff]
          %v578 = vld [vmem:[#allocation3 + $0x208] sm:$0xff]
          %v579 = vld [vmem:[#allocation3 + $0x210] sm:$0xf]
          %v580 = vld [vmem:[#allocation3 + $0x214] sm:$0xff]
          %v581 = vld [vmem:[#allocation3 + $0x21c] sm:$0xff]
          %v582 = vld [vmem:[#allocation3 + $0x224] sm:$0xff]
          %v583 = vld [vmem:[#allocation3 + $0x22c] sm:$0xff]
          %v584 = vld [vmem:[#allocation3 + $0x234] sm:$0xff]
          %v585 = vld [vmem:[#allocation3 + $0x23c] sm:$0xff]
          %v586 = vld [vmem:[#allocation3 + $0x244] sm:$0xff]
          %v587 = vld [vmem:[#allocation3 + $0x24c] sm:$0xff]
          %v588 = vld [vmem:[#allocation3 + $0x254] sm:$0xff]
          %v589 = vld [vmem:[#allocation3 + $0x25c] sm:$0xf]
          %v590 = vld [vmem:[#allocation6] sm:$0xff]
          %v591 = vld [vmem:[#allocation6 + $0x8] sm:$0xff]
          %v592 = vld [vmem:[#allocation6 + $0x10] sm:$0xff]
          %v593 = vld [vmem:[#allocation6 + $0x18] sm:$0xff]
          %v594 = vld [vmem:[#allocation6 + $0x20] sm:$0xff]
          %v595 = vld [vmem:[#allocation6 + $0x28] sm:$0xff]
          %v596 = vld [vmem:[#allocation6 + $0x30] sm:$0xff]
          %v597 = vld [vmem:[#allocation6 + $0x38] sm:$0xff]
          %v598 = vld [vmem:[#allocation6 + $0x40] sm:$0xff]
          %v599 = vld [vmem:[#allocation6 + $0x48] sm:$0xff]
          %v600 = vld [vmem:[#allocation6 + $0x50] sm:$0xff]
          %v601 = vld [vmem:[#allocation6 + $0x58] sm:$0xff]
          %v602 = vld [vmem:[#allocation6 + $0x60] sm:$0xff]
          %v603 = vld [vmem:[#allocation6 + $0x68] sm:$0xff]
          %v604 = vld [vmem:[#allocation6 + $0x70] sm:$0xff]
          %v605 = vld [vmem:[#allocation6 + $0x78] sm:$0xff]
          %v606 = vld [vmem:[#allocation6 + $0x80] sm:$0xff]
          %v607 = vld [vmem:[#allocation6 + $0x88] sm:$0xff]
          %v608 = vld [vmem:[#allocation6 + $0x90] sm:$0xff]
          %v609 = vld [vmem:[#allocation6 + $0x98] sm:$0xff]
          %v610 = vld [vmem:[#allocation6 + $0xa0] sm:$0xff]
          %v611 = vld [vmem:[#allocation6 + $0xa8] sm:$0xff]
          %v612 = vld [vmem:[#allocation6 + $0xb0] sm:$0xff]
          %v613 = vld [vmem:[#allocation6 + $0xb8] sm:$0xff]
          %v614 = vld [vmem:[#allocation6 + $0xc0] sm:$0xff]
          %v615 = vld [vmem:[#allocation6 + $0xc8] sm:$0xff]
          %v616 = vld [vmem:[#allocation6 + $0xd0] sm:$0xff]
          %v617 = vld [vmem:[#allocation6 + $0xd8] sm:$0xff]
          %v618 = vld [vmem:[#allocation6 + $0xe0] sm:$0xff]
          %v619 = vld [vmem:[#allocation6 + $0xe8] sm:$0xff]
          %v620 = vld [vmem:[#allocation6 + $0xf0] sm:$0xff]
          %v621 = vld [vmem:[#allocation6 + $0xf8] sm:$0xff]
          %v622 = vld [vmem:[#allocation6 + $0x100] sm:$0xff]
          %v623 = vld [vmem:[#allocation6 + $0x108] sm:$0xff]
          %v624 = vld [vmem:[#allocation6 + $0x110] sm:$0xff]
          %v625 = vld [vmem:[#allocation6 + $0x118] sm:$0xff]
          %v626 = vld [vmem:[#allocation6 + $0x120] sm:$0xff]
          %v627 = vld [vmem:[#allocation6 + $0x128] sm:$0xff]
          %v628 = vld [vmem:[#allocation6 + $0x130] sm:$0xff]
          %v629 = vld [vmem:[#allocation6 + $0x138] sm:$0xff]
          %v630 = vld [vmem:[#allocation6 + $0x140] sm:$0xff]
          %v631 = vld [vmem:[#allocation6 + $0x148] sm:$0xff]
          %v632 = vld [vmem:[#allocation6 + $0x150] sm:$0xff]
          %v633 = vld [vmem:[#allocation6 + $0x158] sm:$0xff]
          %v634 = vld [vmem:[#allocation6 + $0x160] sm:$0xff]
          %v635 = vld [vmem:[#allocation6 + $0x168] sm:$0xff]
          %v636 = vld [vmem:[#allocation6 + $0x170] sm:$0xff]
          %v637 = vld [vmem:[#allocation6 + $0x178] sm:$0xff]
          %v638 = vld [vmem:[#allocation6 + $0x180] sm:$0xff]
          %v639 = vld [vmem:[#allocation6 + $0x188] sm:$0xff]
          %v640 = vld [vmem:[#allocation6 + $0x190] sm:$0xff]
          %v641 = vld [vmem:[#allocation6 + $0x198] sm:$0xff]
          %v642 = vld [vmem:[#allocation6 + $0x1a0] sm:$0xff]
          %v643 = vld [vmem:[#allocation6 + $0x1a8] sm:$0xff]
          %v644 = vld [vmem:[#allocation6 + $0x1b0] sm:$0xff]
          %v645 = vld [vmem:[#allocation6 + $0x1b8] sm:$0xff]
          %v646 = vld [vmem:[#allocation6 + $0x1c0] sm:$0xff]
          %v647 = vld [vmem:[#allocation6 + $0x1c8] sm:$0xff]
          %v648 = vld [vmem:[#allocation6 + $0x1d0] sm:$0xff]
          %v649 = vld [vmem:[#allocation6 + $0x1d8] sm:$0xff]
          %v650 = vld [vmem:[#allocation6 + $0x1e0] sm:$0xff]
          %v651 = vld [vmem:[#allocation6 + $0x1e8] sm:$0xff]
          %v652 = vld [vmem:[#allocation6 + $0x1f0] sm:$0xff]
          %v653 = vld [vmem:[#allocation6 + $0x1f8] sm:$0xff]
          %v654 = vld [vmem:[#allocation6 + $0x200] sm:$0xff]
          %v655 = vld [vmem:[#allocation6 + $0x208] sm:$0xff]
          %v656 = vld [vmem:[#allocation6 + $0x210] sm:$0xff]
          %v657 = vld [vmem:[#allocation6 + $0x218] sm:$0xff]
          %v658 = vld [vmem:[#allocation6 + $0x220] sm:$0xff]
          %v659 = vld [vmem:[#allocation6 + $0x228] sm:$0xff]
          %v660 = vld [vmem:[#allocation6 + $0x230] sm:$0xff]
          %v661 = vld [vmem:[#allocation6 + $0x238] sm:$0xff]
          %v662 = vld [vmem:[#allocation6 + $0x240] sm:$0xff]
          %v663 = vld [vmem:[#allocation6 + $0x248] sm:$0xff]
          %v664 = vld [vmem:[#allocation6 + $0x250] sm:$0xff]
          %v665 = vld [vmem:[#allocation6 + $0x258] sm:$0xff]
          %v666 = vld [vmem:[#allocation6 + $0x260] sm:$0xff]
          %v667 = vld [vmem:[#allocation6 + $0x268] sm:$0xff]
          %v668 = vld [vmem:[#allocation6 + $0x270] sm:$0xff]
          %v669 = vld [vmem:[#allocation6 + $0x278] sm:$0xff]
          %v670 = vld [vmem:[#allocation6 + $0x280] sm:$0xff]
          %v671 = vld [vmem:[#allocation6 + $0x288] sm:$0xff]
          %v672 = vld [vmem:[#allocation6 + $0x290] sm:$0xff]
          %v673 = vld [vmem:[#allocation6 + $0x298] sm:$0xff]
          %v674 = vld [vmem:[#allocation6 + $0x2a0] sm:$0xff]
          %v675 = vld [vmem:[#allocation6 + $0x2a8] sm:$0xff]
          %v676 = vld [vmem:[#allocation6 + $0x2b0] sm:$0xff]
          %v677 = vld [vmem:[#allocation6 + $0x2b8] sm:$0xff]
          %v678 = vld [vmem:[#allocation6 + $0x2c0] sm:$0xff]
          %v679 = vld [vmem:[#allocation6 + $0x2c8] sm:$0xff]
          %v680 = vld [vmem:[#allocation6 + $0x2d0] sm:$0xff]
          %v681 = vld [vmem:[#allocation6 + $0x2d8] sm:$0xff]
          %v682 = vld [vmem:[#allocation6 + $0x2e0] sm:$0xff]
          %v683 = vld [vmem:[#allocation6 + $0x2e8] sm:$0xff]
          %v684 = vld [vmem:[#allocation6 + $0x2f0] sm:$0xff]
          %v685 = vld [vmem:[#allocation6 + $0x2f8] sm:$0xff]
          %v686 = vld [vmem:[#allocation6 + $0x300] sm:$0xff]
          %v687 = vld [vmem:[#allocation6 + $0x308] sm:$0xff]
          %v688 = vld [vmem:[#allocation6 + $0x310] sm:$0xff]
          %v689 = vld [vmem:[#allocation6 + $0x318] sm:$0xff]
          %v690 = vld [vmem:[#allocation6 + $0x320] sm:$0xff]
          %v691 = vld [vmem:[#allocation6 + $0x328] sm:$0xff]
          %v692 = vld [vmem:[#allocation6 + $0x330] sm:$0xff]
          %v693 = vld [vmem:[#allocation6 + $0x338] sm:$0xff]
          %v694 = vld [vmem:[#allocation6 + $0x340] sm:$0xff]
          %v695 = vld [vmem:[#allocation6 + $0x348] sm:$0xff]
          %v696 = vld [vmem:[#allocation6 + $0x350] sm:$0xff]
          %v697 = vld [vmem:[#allocation6 + $0x358] sm:$0xff]
          %v698 = vld [vmem:[#allocation6 + $0x360] sm:$0xff]
          %v699 = vld [vmem:[#allocation6 + $0x368] sm:$0xff]
          %v700 = vld [vmem:[#allocation6 + $0x370] sm:$0xff]
          %v701 = vld [vmem:[#allocation6 + $0x378] sm:$0xff]
          %v702 = vld [vmem:[#allocation6 + $0x380] sm:$0xff]
          %v703 = vld [vmem:[#allocation6 + $0x388] sm:$0xff]
          %v704 = vld [vmem:[#allocation6 + $0x390] sm:$0xff]
          %v705 = vld [vmem:[#allocation6 + $0x398] sm:$0xff]
          %v706 = vld [vmem:[#allocation6 + $0x3a0] sm:$0xff]
          %v707 = vld [vmem:[#allocation6 + $0x3a8] sm:$0xff]
          %v708 = vld [vmem:[#allocation6 + $0x3b0] sm:$0xff]
          %v709 = vld [vmem:[#allocation6 + $0x3b8] sm:$0xff]
          %v710 = vld [vmem:[#allocation6 + $0x3c0] sm:$0xff]
          %v711 = vld [vmem:[#allocation6 + $0x3c8] sm:$0xff]
          %v712 = vld [vmem:[#allocation6 + $0x3d0] sm:$0xff]
          %v713 = vld [vmem:[#allocation6 + $0x3d8] sm:$0xff]
          %v714 = vld [vmem:[#allocation6 + $0x3e0] sm:$0xff]
          %v715 = vld [vmem:[#allocation6 + $0x3e8] sm:$0xff]
          %v716 = vld [vmem:[#allocation6 + $0x3f0] sm:$0xff]
          %v717 = vld [vmem:[#allocation6 + $0x3f8] sm:$0xff]
          %v718 = vld [vmem:[#allocation6 + $0x400] sm:$0xff]
          %v719 = vld [vmem:[#allocation6 + $0x408] sm:$0xff]
          %v720 = vld [vmem:[#allocation6 + $0x410] sm:$0xff]
          %v721 = vld [vmem:[#allocation6 + $0x418] sm:$0xff]
          %v722 = vld [vmem:[#allocation6 + $0x420] sm:$0xff]
          %v723 = vld [vmem:[#allocation6 + $0x428] sm:$0xff]
          %v724 = vld [vmem:[#allocation6 + $0x430] sm:$0xff]
          %v725 = vld [vmem:[#allocation6 + $0x438] sm:$0xff]
          %v726 = vld [vmem:[#allocation6 + $0x440] sm:$0xff]
          %v727 = vld [vmem:[#allocation6 + $0x448] sm:$0xff]
          %v728 = vld [vmem:[#allocation6 + $0x450] sm:$0xff]
          %v729 = vld [vmem:[#allocation6 + $0x458] sm:$0xff]
          %v730 = vld [vmem:[#allocation6 + $0x460] sm:$0xff]
          %v731 = vld [vmem:[#allocation6 + $0x468] sm:$0xff]
          %v732 = vld [vmem:[#allocation6 + $0x470] sm:$0xff]
          %v733 = vld [vmem:[#allocation6 + $0x478] sm:$0xff]
          %v734 = vld [vmem:[#allocation6 + $0x480] sm:$0xff]
          %v735 = vld [vmem:[#allocation6 + $0x488] sm:$0xff]
          %v736 = vld [vmem:[#allocation6 + $0x490] sm:$0xff]
          %v737 = vld [vmem:[#allocation6 + $0x498] sm:$0xff]
          %v738 = vld [vmem:[#allocation6 + $0x4a0] sm:$0xff]
          %v739 = vld [vmem:[#allocation6 + $0x4a8] sm:$0xff]
          %v740 = vld [vmem:[#allocation6 + $0x4b0] sm:$0xff]
          %v741 = vld [vmem:[#allocation6 + $0x4b8] sm:$0xff]
          %v742 = vld [vmem:[#allocation6 + $0x4c0] sm:$0xff]
          %v743 = vld [vmem:[#allocation6 + $0x4c8] sm:$0xff]
          %v744 = vld [vmem:[#allocation6 + $0x4d0] sm:$0xff]
          %v745 = vld [vmem:[#allocation6 + $0x4d8] sm:$0xff]
          %v746 = vld [vmem:[#allocation6 + $0x4e0] sm:$0xff]
          %v747 = vld [vmem:[#allocation6 + $0x4e8] sm:$0xff]
          %v748 = vld [vmem:[#allocation6 + $0x4f0] sm:$0xff]
          %v749 = vld [vmem:[#allocation6 + $0x4f8] sm:$0xff]
          %v750 = vld [vmem:[#allocation6 + $0x500] sm:$0xff]
          %v751 = vld [vmem:[#allocation6 + $0x508] sm:$0xff]
          %v752 = vld [vmem:[#allocation6 + $0x510] sm:$0xff]
          %v753 = vld [vmem:[#allocation6 + $0x518] sm:$0xff]
          %v754 = vld [vmem:[#allocation6 + $0x520] sm:$0xff]
          %v755 = vld [vmem:[#allocation6 + $0x528] sm:$0xff]
          %v756 = vld [vmem:[#allocation6 + $0x530] sm:$0xff]
          %v757 = vld [vmem:[#allocation6 + $0x538] sm:$0xff]
          %v758 = vld [vmem:[#allocation6 + $0x540] sm:$0xff]
          %v759 = vld [vmem:[#allocation6 + $0x548] sm:$0xff]
          %v760 = vld [vmem:[#allocation6 + $0x550] sm:$0xff]
          %v761 = vld [vmem:[#allocation6 + $0x558] sm:$0xff]
          %v762 = vld [vmem:[#allocation6 + $0x560] sm:$0xff]
          %v763 = vld [vmem:[#allocation6 + $0x568] sm:$0xff]
          %v764 = vld [vmem:[#allocation6 + $0x570] sm:$0xff]
          %v765 = vld [vmem:[#allocation6 + $0x578] sm:$0xff]
          %v766 = vld [vmem:[#allocation6 + $0x580] sm:$0xff]
          %v767 = vld [vmem:[#allocation6 + $0x588] sm:$0xff]
          %v768 = vld [vmem:[#allocation6 + $0x590] sm:$0xff]
          %v769 = vld [vmem:[#allocation6 + $0x598] sm:$0xff]
          %v770 = vld [vmem:[#allocation6 + $0x5a0] sm:$0xff]
          %v771 = vld [vmem:[#allocation6 + $0x5a8] sm:$0xff]
          %v772 = vld [vmem:[#allocation6 + $0x5b0] sm:$0xff]
          %v773 = vld [vmem:[#allocation6 + $0x5b8] sm:$0xff]
          %v774 = vld [vmem:[#allocation6 + $0x5c0] sm:$0xff]
          %v775 = vld [vmem:[#allocation6 + $0x5c8] sm:$0xff]
          %v776 = vld [vmem:[#allocation6 + $0x5d0] sm:$0xff]
          %v777 = vld [vmem:[#allocation6 + $0x5d8] sm:$0xff]
          %v778 = vld [vmem:[#allocation6 + $0x5e0] sm:$0xff]
          %v779 = vld [vmem:[#allocation6 + $0x5e8] sm:$0xff]
          %v780 = vld [vmem:[#allocation6 + $0x5f0] sm:$0xff]
          %v781 = vld [vmem:[#allocation6 + $0x5f8] sm:$0xff]
          %v782 = vld [vmem:[#allocation6 + $0x600] sm:$0xff]
          %v783 = vld [vmem:[#allocation6 + $0x608] sm:$0xff]
          %v784 = vld [vmem:[#allocation6 + $0x610] sm:$0xff]
          %v785 = vld [vmem:[#allocation6 + $0x618] sm:$0xff]
          %v786 = vld [vmem:[#allocation6 + $0x620] sm:$0xff]
          %v787 = vld [vmem:[#allocation6 + $0x628] sm:$0xff]
          %v788 = vld [vmem:[#allocation6 + $0x630] sm:$0xff]
          %v789 = vld [vmem:[#allocation6 + $0x638] sm:$0xff]
          %v790 = vld [vmem:[#allocation6 + $0x640] sm:$0xff]
          %v791 = vld [vmem:[#allocation6 + $0x648] sm:$0xff]
          %v792 = vld [vmem:[#allocation6 + $0x650] sm:$0xff]
          %v793 = vld [vmem:[#allocation6 + $0x658] sm:$0xff]
          %v794 = vld [vmem:[#allocation6 + $0x660] sm:$0xff]
          %v795 = vld [vmem:[#allocation6 + $0x668] sm:$0xff]
          %v796 = vld [vmem:[#allocation6 + $0x670] sm:$0xff]
          %v797 = vld [vmem:[#allocation6 + $0x678] sm:$0xff]
          %v798 = vld [vmem:[#allocation6 + $0x680] sm:$0xff]
          %v799 = vld [vmem:[#allocation6 + $0x688] sm:$0xff]
          %v800 = vld [vmem:[#allocation6 + $0x690] sm:$0xff]
          %v801 = vld [vmem:[#allocation6 + $0x698] sm:$0xff]
          %v802 = vld [vmem:[#allocation6 + $0x6a0] sm:$0xff]
          %v803 = vld [vmem:[#allocation6 + $0x6a8] sm:$0xff]
          %v804 = vld [vmem:[#allocation6 + $0x6b0] sm:$0xff]
          %v805 = vld [vmem:[#allocation6 + $0x6b8] sm:$0xff]
          %v806 = vld [vmem:[#allocation6 + $0x6c0] sm:$0xff]
          %v807 = vld [vmem:[#allocation6 + $0x6c8] sm:$0xff]
          %v808 = vld [vmem:[#allocation6 + $0x6d0] sm:$0xff]
          %v809 = vld [vmem:[#allocation6 + $0x6d8] sm:$0xff]
          %v810 = vld [vmem:[#allocation6 + $0x6e0] sm:$0xff]
          %v811 = vld [vmem:[#allocation6 + $0x6e8] sm:$0xff]
          %v812 = vld [vmem:[#allocation6 + $0x6f0] sm:$0xff]
          %v813 = vld [vmem:[#allocation6 + $0x6f8] sm:$0xff]
          %v814 = vld [vmem:[#allocation6 + $0x700] sm:$0xff]
          %v815 = vld [vmem:[#allocation6 + $0x708] sm:$0xff]
          %v816 = vld [vmem:[#allocation6 + $0x710] sm:$0xff]
          %v817 = vld [vmem:[#allocation6 + $0x718] sm:$0xff]
          %v818 = vld [vmem:[#allocation6 + $0x720] sm:$0xff]
          %v819 = vld [vmem:[#allocation6 + $0x728] sm:$0xff]
          %v820 = vld [vmem:[#allocation6 + $0x730] sm:$0xff]
          %v821 = vld [vmem:[#allocation6 + $0x738] sm:$0xff]
          %v822 = vld [vmem:[#allocation6 + $0x740] sm:$0xff]
          %v823 = vld [vmem:[#allocation6 + $0x748] sm:$0xff]
          %v824 = vld [vmem:[#allocation6 + $0x750] sm:$0xff]
          %v825 = vld [vmem:[#allocation6 + $0x758] sm:$0xff]
          %v826 = vld [vmem:[#allocation6 + $0x760] sm:$0xff]
          %v827 = vld [vmem:[#allocation6 + $0x768] sm:$0xff]
          %v828 = vld [vmem:[#allocation6 + $0x770] sm:$0xff]
          %v829 = vld [vmem:[#allocation6 + $0x778] sm:$0xff]
          %v830 = vld [vmem:[#allocation6 + $0x780] sm:$0xff]
          %v831 = vld [vmem:[#allocation6 + $0x788] sm:$0xff]
          %v832 = vld [vmem:[#allocation6 + $0x790] sm:$0xff]
          %v833 = vld [vmem:[#allocation6 + $0x798] sm:$0xff]
          %v834 = vld [vmem:[#allocation6 + $0x7a0] sm:$0xff]
          %v835 = vld [vmem:[#allocation6 + $0x7a8] sm:$0xff]
          %v836 = vld [vmem:[#allocation6 + $0x7b0] sm:$0xff]
          %v837 = vld [vmem:[#allocation6 + $0x7b8] sm:$0xff]
          %v838 = vld [vmem:[#allocation6 + $0x7c0] sm:$0xff]
          %v839 = vld [vmem:[#allocation6 + $0x7c8] sm:$0xff]
          %v840 = vld [vmem:[#allocation6 + $0x7d0] sm:$0xff]
          %v841 = vld [vmem:[#allocation6 + $0x7d8] sm:$0xff]
          %v842 = vld [vmem:[#allocation6 + $0x7e0] sm:$0xff]
          %v843 = vld [vmem:[#allocation6 + $0x7e8] sm:$0xff]
          %v844 = vld [vmem:[#allocation6 + $0x7f0] sm:$0xff]
          %v845 = vld [vmem:[#allocation6 + $0x7f8] sm:$0xff]
          %v846 = vld [vmem:[#allocation6 + $0x800] sm:$0xff]
          %v847 = vld [vmem:[#allocation6 + $0x808] sm:$0xff]
          %v848 = vld [vmem:[#allocation6 + $0x810] sm:$0xff]
          %v849 = vld [vmem:[#allocation6 + $0x818] sm:$0xff]
          %v850 = vld [vmem:[#allocation6 + $0x820] sm:$0xff]
          %v851 = vld [vmem:[#allocation6 + $0x828] sm:$0xff]
          %v852 = vld [vmem:[#allocation6 + $0x830] sm:$0xff]
          %v853 = vld [vmem:[#allocation6 + $0x838] sm:$0xff]
          %v854 = vld [vmem:[#allocation6 + $0x840] sm:$0xff]
          %v855 = vld [vmem:[#allocation6 + $0x848] sm:$0xff]
          %v856 = vld [vmem:[#allocation6 + $0x850] sm:$0xff]
          %v857 = vld [vmem:[#allocation6 + $0x858] sm:$0xff]
          %v858 = vld [vmem:[#allocation6 + $0x860] sm:$0xff]
          %v859 = vld [vmem:[#allocation6 + $0x868] sm:$0xff]
          %v860 = vld [vmem:[#allocation6 + $0x870] sm:$0xff]
          %v861 = vld [vmem:[#allocation6 + $0x878] sm:$0xff]
          %v862 = vld [vmem:[#allocation6 + $0x880] sm:$0xff]
          %v863 = vld [vmem:[#allocation6 + $0x888] sm:$0xff]
          %v864 = vld [vmem:[#allocation6 + $0x890] sm:$0xff]
          %v865 = vld [vmem:[#allocation6 + $0x898] sm:$0xff]
          %v866 = vld [vmem:[#allocation6 + $0x8a0] sm:$0xff]
          %v867 = vld [vmem:[#allocation6 + $0x8a8] sm:$0xff]
          %v868 = vld [vmem:[#allocation6 + $0x8b0] sm:$0xff]
          %v869 = vld [vmem:[#allocation6 + $0x8b8] sm:$0xff]
          %v870 = vld [vmem:[#allocation6 + $0x8c0] sm:$0xff]
          %v871 = vld [vmem:[#allocation6 + $0x8c8] sm:$0xff]
          %v872 = vld [vmem:[#allocation6 + $0x8d0] sm:$0xff]
          %v873 = vld [vmem:[#allocation6 + $0x8d8] sm:$0xff]
          %v874 = vld [vmem:[#allocation6 + $0x8e0] sm:$0xff]
          %v875 = vld [vmem:[#allocation6 + $0x8e8] sm:$0xff]
          %v876 = vld [vmem:[#allocation6 + $0x8f0] sm:$0xff]
          %v877 = vld [vmem:[#allocation6 + $0x8f8] sm:$0xff]
          %v878 = vld [vmem:[#allocation6 + $0x900] sm:$0xff]
          %v879 = vld [vmem:[#allocation6 + $0x908] sm:$0xff]
          %v880 = vld [vmem:[#allocation6 + $0x910] sm:$0xff]
          %v881 = vld [vmem:[#allocation6 + $0x918] sm:$0xff]
          %v882 = vld [vmem:[#allocation6 + $0x920] sm:$0xff]
          %v883 = vld [vmem:[#allocation6 + $0x928] sm:$0xff]
          %v884 = vld [vmem:[#allocation6 + $0x930] sm:$0xff]
          %v885 = vld [vmem:[#allocation6 + $0x938] sm:$0xff]
          %v886 = vld [vmem:[#allocation6 + $0x940] sm:$0xff]
          %v887 = vld [vmem:[#allocation6 + $0x948] sm:$0xff]
          %v888 = vld [vmem:[#allocation6 + $0x950] sm:$0xff]
          %v889 = vld [vmem:[#allocation6 + $0x958] sm:$0xff]
          %v890 = vld [vmem:[#allocation6 + $0x960] sm:$0xff]
          %v891 = vld [vmem:[#allocation6 + $0x968] sm:$0xff]
          %v892 = vld [vmem:[#allocation6 + $0x970] sm:$0xff]
          %v893 = vld [vmem:[#allocation6 + $0x978] sm:$0xff]
          %v894 = vld [vmem:[#allocation8] sm:$0x3]
          %v896 = vlaneseq
          %v897 = vshrl.u32 %v896, 7
          %v898 = vsub.s32 0, %v897
          %v899 = vrot.slane %v894, %v898
          %v900 = vlaneseq
          %v901 = vshrl.u32 %v900, 7
          %v902 = vsub.s32 1, %v901
          %v903 = vrot.slane %v894, %v902
          %v986 = vunpack.c.l.b16 %v510
          %v987 = vunpack.c.h.b16 %v510
          %v988 = vunpack.c.l.b16 %v511
          %v989 = vunpack.c.h.b16 %v511
          %v990 = vunpack.c.l.b16 %v512
          %v991 = vunpack.c.h.b16 %v512
          %v992 = vunpack.c.l.b16 %v513
          %v993 = vunpack.c.h.b16 %v513
          %v994 = vunpack.c.l.b16 %v514
          %v995 = vunpack.c.h.b16 %v514
          %v996 = vunpack.c.l.b16 %v515
          %v997 = vunpack.c.h.b16 %v515
          %v998 = vunpack.c.l.b16 %v516
          %v999 = vunpack.c.h.b16 %v516
          %v1000 = vunpack.c.l.b16 %v517
          %v1001 = vunpack.c.h.b16 %v517
          %v1002 = vunpack.c.l.b16 %v518
          %v1003 = vunpack.c.h.b16 %v518
          %v1004 = vunpack.c.l.b16 %v519
          %v1005 = vunpack.c.l.b16 %v520
          %v1006 = vunpack.c.h.b16 %v520
          %v1007 = vunpack.c.l.b16 %v521
          %v1008 = vunpack.c.h.b16 %v521
          %v1009 = vunpack.c.l.b16 %v522
          %v1010 = vunpack.c.h.b16 %v522
          %v1011 = vunpack.c.l.b16 %v523
          %v1012 = vunpack.c.h.b16 %v523
          %v1013 = vunpack.c.l.b16 %v524
          %v1014 = vunpack.c.h.b16 %v524
          %v1015 = vunpack.c.l.b16 %v525
          %v1016 = vunpack.c.h.b16 %v525
          %v1017 = vunpack.c.l.b16 %v526
          %v1018 = vunpack.c.h.b16 %v526
          %v1019 = vunpack.c.l.b16 %v527
          %v1020 = vunpack.c.h.b16 %v527
          %v1021 = vunpack.c.l.b16 %v528
          %v1022 = vunpack.c.h.b16 %v528
          %v1023 = vunpack.c.l.b16 %v529
          %v1024 = vunpack.c.l.b16 %v530
          %v1025 = vunpack.c.h.b16 %v530
          %v1026 = vunpack.c.l.b16 %v531
          %v1027 = vunpack.c.h.b16 %v531
          %v1028 = vunpack.c.l.b16 %v532
          %v1029 = vunpack.c.h.b16 %v532
          %v1030 = vunpack.c.l.b16 %v533
          %v1031 = vunpack.c.h.b16 %v533
          %v1032 = vunpack.c.l.b16 %v534
          %v1033 = vunpack.c.h.b16 %v534
          %v1034 = vunpack.c.l.b16 %v535
          %v1035 = vunpack.c.h.b16 %v535
          %v1036 = vunpack.c.l.b16 %v536
          %v1037 = vunpack.c.h.b16 %v536
          %v1038 = vunpack.c.l.b16 %v537
          %v1039 = vunpack.c.h.b16 %v537
          %v1040 = vunpack.c.l.b16 %v538
          %v1041 = vunpack.c.h.b16 %v538
          %v1042 = vunpack.c.l.b16 %v539
          %v1043 = vunpack.c.l.b16 %v540
          %v1044 = vunpack.c.h.b16 %v540
          %v1045 = vunpack.c.l.b16 %v541
          %v1046 = vunpack.c.h.b16 %v541
          %v1047 = vunpack.c.l.b16 %v542
          %v1048 = vunpack.c.h.b16 %v542
          %v1049 = vunpack.c.l.b16 %v543
          %v1050 = vunpack.c.h.b16 %v543
          %v1051 = vunpack.c.l.b16 %v544
          %v1052 = vunpack.c.h.b16 %v544
          %v1053 = vunpack.c.l.b16 %v545
          %v1054 = vunpack.c.h.b16 %v545
          %v1055 = vunpack.c.l.b16 %v546
          %v1056 = vunpack.c.h.b16 %v546
          %v1057 = vunpack.c.l.b16 %v547
          %v1058 = vunpack.c.h.b16 %v547
          %v1059 = vunpack.c.l.b16 %v548
          %v1060 = vunpack.c.h.b16 %v548
          %v1061 = vunpack.c.l.b16 %v549
          %v1062 = vunpack.c.l.b16 %v550
          %v1063 = vunpack.c.h.b16 %v550
          %v1064 = vunpack.c.l.b16 %v551
          %v1065 = vunpack.c.h.b16 %v551
          %v1066 = vunpack.c.l.b16 %v552
          %v1067 = vunpack.c.h.b16 %v552
          %v1068 = vunpack.c.l.b16 %v553
          %v1069 = vunpack.c.h.b16 %v553
          %v1070 = vunpack.c.l.b16 %v554
          %v1071 = vunpack.c.h.b16 %v554
          %v1072 = vunpack.c.l.b16 %v555
          %v1073 = vunpack.c.h.b16 %v555
          %v1074 = vunpack.c.l.b16 %v556
          %v1075 = vunpack.c.h.b16 %v556
          %v1076 = vunpack.c.l.b16 %v557
          %v1077 = vunpack.c.h.b16 %v557
          %v1078 = vunpack.c.l.b16 %v558
          %v1079 = vunpack.c.h.b16 %v558
          %v1080 = vunpack.c.l.b16 %v559
          %v1081 = vunpack.c.l.b16 %v560
          %v1082 = vunpack.c.h.b16 %v560
          %v1083 = vunpack.c.l.b16 %v561
          %v1084 = vunpack.c.h.b16 %v561
          %v1085 = vunpack.c.l.b16 %v562
          %v1086 = vunpack.c.h.b16 %v562
          %v1087 = vunpack.c.l.b16 %v563
          %v1088 = vunpack.c.h.b16 %v563
          %v1089 = vunpack.c.l.b16 %v564
          %v1090 = vunpack.c.h.b16 %v564
          %v1091 = vunpack.c.l.b16 %v565
          %v1092 = vunpack.c.h.b16 %v565
          %v1093 = vunpack.c.l.b16 %v566
          %v1094 = vunpack.c.h.b16 %v566
          %v1095 = vunpack.c.l.b16 %v567
          %v1096 = vunpack.c.h.b16 %v567
          %v1097 = vunpack.c.l.b16 %v568
          %v1098 = vunpack.c.h.b16 %v568
          %v1099 = vunpack.c.l.b16 %v569
          %v1100 = vunpack.c.l.b16 %v570
          %v1101 = vunpack.c.h.b16 %v570
          %v1102 = vunpack.c.l.b16 %v571
          %v1103 = vunpack.c.h.b16 %v571
          %v1104 = vunpack.c.l.b16 %v572
          %v1105 = vunpack.c.h.b16 %v572
          %v1106 = vunpack.c.l.b16 %v573
          %v1107 = vunpack.c.h.b16 %v573
          %v1108 = vunpack.c.l.b16 %v574
          %v1109 = vunpack.c.h.b16 %v574
          %v1110 = vunpack.c.l.b16 %v575
          %v1111 = vunpack.c.h.b16 %v575
          %v1112 = vunpack.c.l.b16 %v576
          %v1113 = vunpack.c.h.b16 %v576
          %v1114 = vunpack.c.l.b16 %v577
          %v1115 = vunpack.c.h.b16 %v577
          %v1116 = vunpack.c.l.b16 %v578
          %v1117 = vunpack.c.h.b16 %v578
          %v1118 = vunpack.c.l.b16 %v579
          %v1119 = vunpack.c.l.b16 %v580
          %v1120 = vunpack.c.h.b16 %v580
          %v1121 = vunpack.c.l.b16 %v581
          %v1122 = vunpack.c.h.b16 %v581
          %v1123 = vunpack.c.l.b16 %v582
          %v1124 = vunpack.c.h.b16 %v582
          %v1125 = vunpack.c.l.b16 %v583
          %v1126 = vunpack.c.h.b16 %v583
          %v1127 = vunpack.c.l.b16 %v584
          %v1128 = vunpack.c.h.b16 %v584
          %v1129 = vunpack.c.l.b16 %v585
          %v1130 = vunpack.c.h.b16 %v585
          %v1131 = vunpack.c.l.b16 %v586
          %v1132 = vunpack.c.h.b16 %v586
          %v1133 = vunpack.c.l.b16 %v587
          %v1134 = vunpack.c.h.b16 %v587
          %v1135 = vunpack.c.l.b16 %v588
          %v1136 = vunpack.c.h.b16 %v588
          %v1137 = vunpack.c.l.b16 %v589
          %v1138 = vpack.c.b16 %v1005, %v986
          %v1139 = vpack.c.b16 %v1006, %v987
          %v1140 = vpack.c.b16 %v1007, %v988
          %v1141 = vpack.c.b16 %v1008, %v989
          %v1142 = vpack.c.b16 %v1009, %v990
          %v1143 = vpack.c.b16 %v1010, %v991
          %v1144 = vpack.c.b16 %v1011, %v992
          %v1145 = vpack.c.b16 %v1012, %v993
          %v1146 = vpack.c.b16 %v1013, %v994
          %v1147 = vpack.c.b16 %v1014, %v995
          %v1148 = vpack.c.b16 %v1015, %v996
          %v1149 = vpack.c.b16 %v1016, %v997
          %v1150 = vpack.c.b16 %v1017, %v998
          %v1151 = vpack.c.b16 %v1018, %v999
          %v1152 = vpack.c.b16 %v1019, %v1000
          %v1153 = vpack.c.b16 %v1020, %v1001
          %v1154 = vpack.c.b16 %v1021, %v1002
          %v1155 = vpack.c.b16 %v1022, %v1003
          %v1156 = vpack.c.b16 %v1023, %v1004
          %v1157 = vpack.c.b16 %v1043, %v1024
          %v1158 = vpack.c.b16 %v1044, %v1025
          %v1159 = vpack.c.b16 %v1045, %v1026
          %v1160 = vpack.c.b16 %v1046, %v1027
          %v1161 = vpack.c.b16 %v1047, %v1028
          %v1162 = vpack.c.b16 %v1048, %v1029
          %v1163 = vpack.c.b16 %v1049, %v1030
          %v1164 = vpack.c.b16 %v1050, %v1031
          %v1165 = vpack.c.b16 %v1051, %v1032
          %v1166 = vpack.c.b16 %v1052, %v1033
          %v1167 = vpack.c.b16 %v1053, %v1034
          %v1168 = vpack.c.b16 %v1054, %v1035
          %v1169 = vpack.c.b16 %v1055, %v1036
          %v1170 = vpack.c.b16 %v1056, %v1037
          %v1171 = vpack.c.b16 %v1057, %v1038
          %v1172 = vpack.c.b16 %v1058, %v1039
          %v1173 = vpack.c.b16 %v1059, %v1040
          %v1174 = vpack.c.b16 %v1060, %v1041
          %v1175 = vpack.c.b16 %v1061, %v1042
          %v1176 = vpack.c.b16 %v1081, %v1062
          %v1177 = vpack.c.b16 %v1082, %v1063
          %v1178 = vpack.c.b16 %v1083, %v1064
          %v1179 = vpack.c.b16 %v1084, %v1065
          %v1180 = vpack.c.b16 %v1085, %v1066
          %v1181 = vpack.c.b16 %v1086, %v1067
          %v1182 = vpack.c.b16 %v1087, %v1068
          %v1183 = vpack.c.b16 %v1088, %v1069
          %v1184 = vpack.c.b16 %v1089, %v1070
          %v1185 = vpack.c.b16 %v1090, %v1071
          %v1186 = vpack.c.b16 %v1091, %v1072
          %v1187 = vpack.c.b16 %v1092, %v1073
          %v1188 = vpack.c.b16 %v1093, %v1074
          %v1189 = vpack.c.b16 %v1094, %v1075
          %v1190 = vpack.c.b16 %v1095, %v1076
          %v1191 = vpack.c.b16 %v1096, %v1077
          %v1192 = vpack.c.b16 %v1097, %v1078
          %v1193 = vpack.c.b16 %v1098, %v1079
          %v1194 = vpack.c.b16 %v1099, %v1080
          %v1195 = vpack.c.b16 %v1119, %v1100
          %v1196 = vpack.c.b16 %v1120, %v1101
          %v1197 = vpack.c.b16 %v1121, %v1102
          %v1198 = vpack.c.b16 %v1122, %v1103
          %v1199 = vpack.c.b16 %v1123, %v1104
          %v1200 = vpack.c.b16 %v1124, %v1105
          %v1201 = vpack.c.b16 %v1125, %v1106
          %v1202 = vpack.c.b16 %v1126, %v1107
          %v1203 = vpack.c.b16 %v1127, %v1108
          %v1204 = vpack.c.b16 %v1128, %v1109
          %v1205 = vpack.c.b16 %v1129, %v1110
          %v1206 = vpack.c.b16 %v1130, %v1111
          %v1207 = vpack.c.b16 %v1131, %v1112
          %v1208 = vpack.c.b16 %v1132, %v1113
          %v1209 = vpack.c.b16 %v1133, %v1114
          %v1210 = vpack.c.b16 %v1134, %v1115
          %v1211 = vpack.c.b16 %v1135, %v1116
          %v1212 = vpack.c.b16 %v1136, %v1117
          %v1213 = vpack.c.b16 %v1137, %v1118
          %v1594 = vunpack.c.l.b16 %v590
          %v1595 = vunpack.c.h.b16 %v590
          %v1596 = vunpack.c.l.b16 %v591
          %v1597 = vunpack.c.h.b16 %v591
          %v1598 = vunpack.c.l.b16 %v592
          %v1599 = vunpack.c.h.b16 %v592
          %v1600 = vunpack.c.l.b16 %v593
          %v1601 = vunpack.c.h.b16 %v593
          %v1602 = vunpack.c.l.b16 %v594
          %v1603 = vunpack.c.h.b16 %v594
          %v1604 = vunpack.c.l.b16 %v595
          %v1605 = vunpack.c.h.b16 %v595
          %v1606 = vunpack.c.l.b16 %v596
          %v1607 = vunpack.c.h.b16 %v596
          %v1608 = vunpack.c.l.b16 %v597
          %v1609 = vunpack.c.h.b16 %v597
          %v1610 = vunpack.c.l.b16 %v598
          %v1611 = vunpack.c.h.b16 %v598
          %v1612 = vunpack.c.l.b16 %v599
          %v1613 = vunpack.c.h.b16 %v599
          %v1614 = vunpack.c.l.b16 %v600
          %v1615 = vunpack.c.h.b16 %v600
          %v1616 = vunpack.c.l.b16 %v601
          %v1617 = vunpack.c.h.b16 %v601
          %v1618 = vunpack.c.l.b16 %v602
          %v1619 = vunpack.c.h.b16 %v602
          %v1620 = vunpack.c.l.b16 %v603
          %v1621 = vunpack.c.h.b16 %v603
          %v1622 = vunpack.c.l.b16 %v604
          %v1623 = vunpack.c.h.b16 %v604
          %v1624 = vunpack.c.l.b16 %v605
          %v1625 = vunpack.c.h.b16 %v605
          %v1626 = vunpack.c.l.b16 %v606
          %v1627 = vunpack.c.h.b16 %v606
          %v1628 = vunpack.c.l.b16 %v607
          %v1629 = vunpack.c.h.b16 %v607
          %v1630 = vunpack.c.l.b16 %v608
          %v1631 = vunpack.c.h.b16 %v608
          %v1632 = vunpack.c.l.b16 %v609
          %v1633 = vunpack.c.h.b16 %v609
          %v1634 = vunpack.c.l.b16 %v610
          %v1635 = vunpack.c.h.b16 %v610
          %v1636 = vunpack.c.l.b16 %v611
          %v1637 = vunpack.c.h.b16 %v611
          %v1638 = vunpack.c.l.b16 %v612
          %v1639 = vunpack.c.h.b16 %v612
          %v1640 = vunpack.c.l.b16 %v613
          %v1641 = vunpack.c.h.b16 %v613
          %v1642 = vunpack.c.l.b16 %v614
          %v1643 = vunpack.c.h.b16 %v614
          %v1644 = vunpack.c.l.b16 %v615
          %v1645 = vunpack.c.h.b16 %v615
          %v1646 = vunpack.c.l.b16 %v616
          %v1647 = vunpack.c.h.b16 %v616
          %v1648 = vunpack.c.l.b16 %v617
          %v1649 = vunpack.c.h.b16 %v617
          %v1650 = vunpack.c.l.b16 %v618
          %v1651 = vunpack.c.h.b16 %v618
          %v1652 = vunpack.c.l.b16 %v619
          %v1653 = vunpack.c.h.b16 %v619
          %v1654 = vunpack.c.l.b16 %v620
          %v1655 = vunpack.c.h.b16 %v620
          %v1656 = vunpack.c.l.b16 %v621
          %v1657 = vunpack.c.h.b16 %v621
          %v1658 = vunpack.c.l.b16 %v622
          %v1659 = vunpack.c.h.b16 %v622
          %v1660 = vunpack.c.l.b16 %v623
          %v1661 = vunpack.c.h.b16 %v623
          %v1662 = vunpack.c.l.b16 %v624
          %v1663 = vunpack.c.h.b16 %v624
          %v1664 = vunpack.c.l.b16 %v625
          %v1665 = vunpack.c.h.b16 %v625
          %v1666 = vunpack.c.l.b16 %v626
          %v1667 = vunpack.c.h.b16 %v626
          %v1668 = vunpack.c.l.b16 %v627
          %v1669 = vunpack.c.h.b16 %v627
          %v1670 = vunpack.c.l.b16 %v628
          %v1671 = vunpack.c.h.b16 %v628
          %v1672 = vunpack.c.l.b16 %v629
          %v1673 = vunpack.c.h.b16 %v629
          %v1674 = vunpack.c.l.b16 %v630
          %v1675 = vunpack.c.h.b16 %v630
          %v1676 = vunpack.c.l.b16 %v631
          %v1677 = vunpack.c.h.b16 %v631
          %v1678 = vunpack.c.l.b16 %v632
          %v1679 = vunpack.c.h.b16 %v632
          %v1680 = vunpack.c.l.b16 %v633
          %v1681 = vunpack.c.h.b16 %v633
          %v1682 = vunpack.c.l.b16 %v634
          %v1683 = vunpack.c.h.b16 %v634
          %v1684 = vunpack.c.l.b16 %v635
          %v1685 = vunpack.c.h.b16 %v635
          %v1686 = vunpack.c.l.b16 %v636
          %v1687 = vunpack.c.h.b16 %v636
          %v1688 = vunpack.c.l.b16 %v637
          %v1689 = vunpack.c.h.b16 %v637
          %v1690 = vunpack.c.l.b16 %v638
          %v1691 = vunpack.c.h.b16 %v638
          %v1692 = vunpack.c.l.b16 %v639
          %v1693 = vunpack.c.h.b16 %v639
          %v1694 = vunpack.c.l.b16 %v640
          %v1695 = vunpack.c.h.b16 %v640
          %v1696 = vunpack.c.l.b16 %v641
          %v1697 = vunpack.c.h.b16 %v641
          %v1698 = vunpack.c.l.b16 %v642
          %v1699 = vunpack.c.h.b16 %v642
          %v1700 = vunpack.c.l.b16 %v643
          %v1701 = vunpack.c.h.b16 %v643
          %v1702 = vunpack.c.l.b16 %v644
          %v1703 = vunpack.c.h.b16 %v644
          %v1704 = vunpack.c.l.b16 %v645
          %v1705 = vunpack.c.h.b16 %v645
          %v1706 = vunpack.c.l.b16 %v646
          %v1707 = vunpack.c.h.b16 %v646
          %v1708 = vunpack.c.l.b16 %v647
          %v1709 = vunpack.c.h.b16 %v647
          %v1710 = vunpack.c.l.b16 %v648
          %v1711 = vunpack.c.h.b16 %v648
          %v1712 = vunpack.c.l.b16 %v649
          %v1713 = vunpack.c.h.b16 %v649
          %v1714 = vunpack.c.l.b16 %v650
          %v1715 = vunpack.c.h.b16 %v650
          %v1716 = vunpack.c.l.b16 %v651
          %v1717 = vunpack.c.h.b16 %v651
          %v1718 = vunpack.c.l.b16 %v652
          %v1719 = vunpack.c.h.b16 %v652
          %v1720 = vunpack.c.l.b16 %v653
          %v1721 = vunpack.c.h.b16 %v653
          %v1722 = vunpack.c.l.b16 %v654
          %v1723 = vunpack.c.h.b16 %v654
          %v1724 = vunpack.c.l.b16 %v655
          %v1725 = vunpack.c.h.b16 %v655
          %v1726 = vunpack.c.l.b16 %v656
          %v1727 = vunpack.c.h.b16 %v656
          %v1728 = vunpack.c.l.b16 %v657
          %v1729 = vunpack.c.h.b16 %v657
          %v1730 = vunpack.c.l.b16 %v658
          %v1731 = vunpack.c.h.b16 %v658
          %v1732 = vunpack.c.l.b16 %v659
          %v1733 = vunpack.c.h.b16 %v659
          %v1734 = vunpack.c.l.b16 %v660
          %v1735 = vunpack.c.h.b16 %v660
          %v1736 = vunpack.c.l.b16 %v661
          %v1737 = vunpack.c.h.b16 %v661
          %v1738 = vunpack.c.l.b16 %v662
          %v1739 = vunpack.c.h.b16 %v662
          %v1740 = vunpack.c.l.b16 %v663
          %v1741 = vunpack.c.h.b16 %v663
          %v1742 = vunpack.c.l.b16 %v664
          %v1743 = vunpack.c.h.b16 %v664
          %v1744 = vunpack.c.l.b16 %v665
          %v1745 = vunpack.c.h.b16 %v665
          %v1746 = vunpack.c.l.b16 %v666
          %v1747 = vunpack.c.h.b16 %v666
          %v1748 = vunpack.c.l.b16 %v667
          %v1749 = vunpack.c.h.b16 %v667
          %v1750 = vunpack.c.l.b16 %v668
          %v1751 = vunpack.c.h.b16 %v668
          %v1752 = vunpack.c.l.b16 %v669
          %v1753 = vunpack.c.h.b16 %v669
          %v1754 = vunpack.c.l.b16 %v670
          %v1755 = vunpack.c.h.b16 %v670
          %v1756 = vunpack.c.l.b16 %v671
          %v1757 = vunpack.c.h.b16 %v671
          %v1758 = vunpack.c.l.b16 %v672
          %v1759 = vunpack.c.h.b16 %v672
          %v1760 = vunpack.c.l.b16 %v673
          %v1761 = vunpack.c.h.b16 %v673
          %v1762 = vunpack.c.l.b16 %v674
          %v1763 = vunpack.c.h.b16 %v674
          %v1764 = vunpack.c.l.b16 %v675
          %v1765 = vunpack.c.h.b16 %v675
          %v1766 = vunpack.c.l.b16 %v676
          %v1767 = vunpack.c.h.b16 %v676
          %v1768 = vunpack.c.l.b16 %v677
          %v1769 = vunpack.c.h.b16 %v677
          %v1770 = vunpack.c.l.b16 %v678
          %v1771 = vunpack.c.h.b16 %v678
          %v1772 = vunpack.c.l.b16 %v679
          %v1773 = vunpack.c.h.b16 %v679
          %v1774 = vunpack.c.l.b16 %v680
          %v1775 = vunpack.c.h.b16 %v680
          %v1776 = vunpack.c.l.b16 %v681
          %v1777 = vunpack.c.h.b16 %v681
          %v1778 = vunpack.c.l.b16 %v682
          %v1779 = vunpack.c.h.b16 %v682
          %v1780 = vunpack.c.l.b16 %v683
          %v1781 = vunpack.c.h.b16 %v683
          %v1782 = vunpack.c.l.b16 %v684
          %v1783 = vunpack.c.h.b16 %v684
          %v1784 = vunpack.c.l.b16 %v685
          %v1785 = vunpack.c.h.b16 %v685
          %v1786 = vunpack.c.l.b16 %v686
          %v1787 = vunpack.c.h.b16 %v686
          %v1788 = vunpack.c.l.b16 %v687
          %v1789 = vunpack.c.h.b16 %v687
          %v1790 = vunpack.c.l.b16 %v688
          %v1791 = vunpack.c.h.b16 %v688
          %v1792 = vunpack.c.l.b16 %v689
          %v1793 = vunpack.c.h.b16 %v689
          %v1794 = vunpack.c.l.b16 %v690
          %v1795 = vunpack.c.h.b16 %v690
          %v1796 = vunpack.c.l.b16 %v691
          %v1797 = vunpack.c.h.b16 %v691
          %v1798 = vunpack.c.l.b16 %v692
          %v1799 = vunpack.c.h.b16 %v692
          %v1800 = vunpack.c.l.b16 %v693
          %v1801 = vunpack.c.h.b16 %v693
          %v1802 = vunpack.c.l.b16 %v694
          %v1803 = vunpack.c.h.b16 %v694
          %v1804 = vunpack.c.l.b16 %v695
          %v1805 = vunpack.c.h.b16 %v695
          %v1806 = vunpack.c.l.b16 %v696
          %v1807 = vunpack.c.h.b16 %v696
          %v1808 = vunpack.c.l.b16 %v697
          %v1809 = vunpack.c.h.b16 %v697
          %v1810 = vunpack.c.l.b16 %v698
          %v1811 = vunpack.c.h.b16 %v698
          %v1812 = vunpack.c.l.b16 %v699
          %v1813 = vunpack.c.h.b16 %v699
          %v1814 = vunpack.c.l.b16 %v700
          %v1815 = vunpack.c.h.b16 %v700
          %v1816 = vunpack.c.l.b16 %v701
          %v1817 = vunpack.c.h.b16 %v701
          %v1818 = vunpack.c.l.b16 %v702
          %v1819 = vunpack.c.h.b16 %v702
          %v1820 = vunpack.c.l.b16 %v703
          %v1821 = vunpack.c.h.b16 %v703
          %v1822 = vunpack.c.l.b16 %v704
          %v1823 = vunpack.c.h.b16 %v704
          %v1824 = vunpack.c.l.b16 %v705
          %v1825 = vunpack.c.h.b16 %v705
          %v1826 = vunpack.c.l.b16 %v706
          %v1827 = vunpack.c.h.b16 %v706
          %v1828 = vunpack.c.l.b16 %v707
          %v1829 = vunpack.c.h.b16 %v707
          %v1830 = vunpack.c.l.b16 %v708
          %v1831 = vunpack.c.h.b16 %v708
          %v1832 = vunpack.c.l.b16 %v709
          %v1833 = vunpack.c.h.b16 %v709
          %v1834 = vunpack.c.l.b16 %v710
          %v1835 = vunpack.c.h.b16 %v710
          %v1836 = vunpack.c.l.b16 %v711
          %v1837 = vunpack.c.h.b16 %v711
          %v1838 = vunpack.c.l.b16 %v712
          %v1839 = vunpack.c.h.b16 %v712
          %v1840 = vunpack.c.l.b16 %v713
          %v1841 = vunpack.c.h.b16 %v713
          %v1842 = vunpack.c.l.b16 %v714
          %v1843 = vunpack.c.h.b16 %v714
          %v1844 = vunpack.c.l.b16 %v715
          %v1845 = vunpack.c.h.b16 %v715
          %v1846 = vunpack.c.l.b16 %v716
          %v1847 = vunpack.c.h.b16 %v716
          %v1848 = vunpack.c.l.b16 %v717
          %v1849 = vunpack.c.h.b16 %v717
          %v1850 = vunpack.c.l.b16 %v718
          %v1851 = vunpack.c.h.b16 %v718
          %v1852 = vunpack.c.l.b16 %v719
          %v1853 = vunpack.c.h.b16 %v719
          %v1854 = vunpack.c.l.b16 %v720
          %v1855 = vunpack.c.h.b16 %v720
          %v1856 = vunpack.c.l.b16 %v721
          %v1857 = vunpack.c.h.b16 %v721
          %v1858 = vunpack.c.l.b16 %v722
          %v1859 = vunpack.c.h.b16 %v722
          %v1860 = vunpack.c.l.b16 %v723
          %v1861 = vunpack.c.h.b16 %v723
          %v1862 = vunpack.c.l.b16 %v724
          %v1863 = vunpack.c.h.b16 %v724
          %v1864 = vunpack.c.l.b16 %v725
          %v1865 = vunpack.c.h.b16 %v725
          %v1866 = vunpack.c.l.b16 %v726
          %v1867 = vunpack.c.h.b16 %v726
          %v1868 = vunpack.c.l.b16 %v727
          %v1869 = vunpack.c.h.b16 %v727
          %v1870 = vunpack.c.l.b16 %v728
          %v1871 = vunpack.c.h.b16 %v728
          %v1872 = vunpack.c.l.b16 %v729
          %v1873 = vunpack.c.h.b16 %v729
          %v1874 = vunpack.c.l.b16 %v730
          %v1875 = vunpack.c.h.b16 %v730
          %v1876 = vunpack.c.l.b16 %v731
          %v1877 = vunpack.c.h.b16 %v731
          %v1878 = vunpack.c.l.b16 %v732
          %v1879 = vunpack.c.h.b16 %v732
          %v1880 = vunpack.c.l.b16 %v733
          %v1881 = vunpack.c.h.b16 %v733
          %v1882 = vunpack.c.l.b16 %v734
          %v1883 = vunpack.c.h.b16 %v734
          %v1884 = vunpack.c.l.b16 %v735
          %v1885 = vunpack.c.h.b16 %v735
          %v1886 = vunpack.c.l.b16 %v736
          %v1887 = vunpack.c.h.b16 %v736
          %v1888 = vunpack.c.l.b16 %v737
          %v1889 = vunpack.c.h.b16 %v737
          %v1890 = vunpack.c.l.b16 %v738
          %v1891 = vunpack.c.h.b16 %v738
          %v1892 = vunpack.c.l.b16 %v739
          %v1893 = vunpack.c.h.b16 %v739
          %v1894 = vunpack.c.l.b16 %v740
          %v1895 = vunpack.c.h.b16 %v740
          %v1896 = vunpack.c.l.b16 %v741
          %v1897 = vunpack.c.h.b16 %v741
          %v1898 = vunpack.c.l.b16 %v742
          %v1899 = vunpack.c.h.b16 %v742
          %v1900 = vunpack.c.l.b16 %v743
          %v1901 = vunpack.c.h.b16 %v743
          %v1902 = vunpack.c.l.b16 %v744
          %v1903 = vunpack.c.h.b16 %v744
          %v1904 = vunpack.c.l.b16 %v745
          %v1905 = vunpack.c.h.b16 %v745
          %v1906 = vunpack.c.l.b16 %v746
          %v1907 = vunpack.c.h.b16 %v746
          %v1908 = vunpack.c.l.b16 %v747
          %v1909 = vunpack.c.h.b16 %v747
          %v1910 = vunpack.c.l.b16 %v748
          %v1911 = vunpack.c.h.b16 %v748
          %v1912 = vunpack.c.l.b16 %v749
          %v1913 = vunpack.c.h.b16 %v749
          %v1914 = vunpack.c.l.b16 %v750
          %v1915 = vunpack.c.h.b16 %v750
          %v1916 = vunpack.c.l.b16 %v751
          %v1917 = vunpack.c.h.b16 %v751
          %v1918 = vunpack.c.l.b16 %v752
          %v1919 = vunpack.c.h.b16 %v752
          %v1920 = vunpack.c.l.b16 %v753
          %v1921 = vunpack.c.h.b16 %v753
          %v1922 = vunpack.c.l.b16 %v754
          %v1923 = vunpack.c.h.b16 %v754
          %v1924 = vunpack.c.l.b16 %v755
          %v1925 = vunpack.c.h.b16 %v755
          %v1926 = vunpack.c.l.b16 %v756
          %v1927 = vunpack.c.h.b16 %v756
          %v1928 = vunpack.c.l.b16 %v757
          %v1929 = vunpack.c.h.b16 %v757
          %v1930 = vunpack.c.l.b16 %v758
          %v1931 = vunpack.c.h.b16 %v758
          %v1932 = vunpack.c.l.b16 %v759
          %v1933 = vunpack.c.h.b16 %v759
          %v1934 = vunpack.c.l.b16 %v760
          %v1935 = vunpack.c.h.b16 %v760
          %v1936 = vunpack.c.l.b16 %v761
          %v1937 = vunpack.c.h.b16 %v761
          %v1938 = vunpack.c.l.b16 %v762
          %v1939 = vunpack.c.h.b16 %v762
          %v1940 = vunpack.c.l.b16 %v763
          %v1941 = vunpack.c.h.b16 %v763
          %v1942 = vunpack.c.l.b16 %v764
          %v1943 = vunpack.c.h.b16 %v764
          %v1944 = vunpack.c.l.b16 %v765
          %v1945 = vunpack.c.h.b16 %v765
          %v1946 = vunpack.c.l.b16 %v766
          %v1947 = vunpack.c.h.b16 %v766
          %v1948 = vunpack.c.l.b16 %v767
          %v1949 = vunpack.c.h.b16 %v767
          %v1950 = vunpack.c.l.b16 %v768
          %v1951 = vunpack.c.h.b16 %v768
          %v1952 = vunpack.c.l.b16 %v769
          %v1953 = vunpack.c.h.b16 %v769
          %v1954 = vunpack.c.l.b16 %v770
          %v1955 = vunpack.c.h.b16 %v770
          %v1956 = vunpack.c.l.b16 %v771
          %v1957 = vunpack.c.h.b16 %v771
          %v1958 = vunpack.c.l.b16 %v772
          %v1959 = vunpack.c.h.b16 %v772
          %v1960 = vunpack.c.l.b16 %v773
          %v1961 = vunpack.c.h.b16 %v773
          %v1962 = vunpack.c.l.b16 %v774
          %v1963 = vunpack.c.h.b16 %v774
          %v1964 = vunpack.c.l.b16 %v775
          %v1965 = vunpack.c.h.b16 %v775
          %v1966 = vunpack.c.l.b16 %v776
          %v1967 = vunpack.c.h.b16 %v776
          %v1968 = vunpack.c.l.b16 %v777
          %v1969 = vunpack.c.h.b16 %v777
          %v1970 = vunpack.c.l.b16 %v778
          %v1971 = vunpack.c.h.b16 %v778
          %v1972 = vunpack.c.l.b16 %v779
          %v1973 = vunpack.c.h.b16 %v779
          %v1974 = vunpack.c.l.b16 %v780
          %v1975 = vunpack.c.h.b16 %v780
          %v1976 = vunpack.c.l.b16 %v781
          %v1977 = vunpack.c.h.b16 %v781
          %v1978 = vunpack.c.l.b16 %v782
          %v1979 = vunpack.c.h.b16 %v782
          %v1980 = vunpack.c.l.b16 %v783
          %v1981 = vunpack.c.h.b16 %v783
          %v1982 = vunpack.c.l.b16 %v784
          %v1983 = vunpack.c.h.b16 %v784
          %v1984 = vunpack.c.l.b16 %v785
          %v1985 = vunpack.c.h.b16 %v785
          %v1986 = vunpack.c.l.b16 %v786
          %v1987 = vunpack.c.h.b16 %v786
          %v1988 = vunpack.c.l.b16 %v787
          %v1989 = vunpack.c.h.b16 %v787
          %v1990 = vunpack.c.l.b16 %v788
          %v1991 = vunpack.c.h.b16 %v788
          %v1992 = vunpack.c.l.b16 %v789
          %v1993 = vunpack.c.h.b16 %v789
          %v1994 = vunpack.c.l.b16 %v790
          %v1995 = vunpack.c.h.b16 %v790
          %v1996 = vunpack.c.l.b16 %v791
          %v1997 = vunpack.c.h.b16 %v791
          %v1998 = vunpack.c.l.b16 %v792
          %v1999 = vunpack.c.h.b16 %v792
          %v2000 = vunpack.c.l.b16 %v793
          %v2001 = vunpack.c.h.b16 %v793
          %v2002 = vunpack.c.l.b16 %v794
          %v2003 = vunpack.c.h.b16 %v794
          %v2004 = vunpack.c.l.b16 %v795
          %v2005 = vunpack.c.h.b16 %v795
          %v2006 = vunpack.c.l.b16 %v796
          %v2007 = vunpack.c.h.b16 %v796
          %v2008 = vunpack.c.l.b16 %v797
          %v2009 = vunpack.c.h.b16 %v797
          %v2010 = vunpack.c.l.b16 %v798
          %v2011 = vunpack.c.h.b16 %v798
          %v2012 = vunpack.c.l.b16 %v799
          %v2013 = vunpack.c.h.b16 %v799
          %v2014 = vunpack.c.l.b16 %v800
          %v2015 = vunpack.c.h.b16 %v800
          %v2016 = vunpack.c.l.b16 %v801
          %v2017 = vunpack.c.h.b16 %v801
          %v2018 = vunpack.c.l.b16 %v802
          %v2019 = vunpack.c.h.b16 %v802
          %v2020 = vunpack.c.l.b16 %v803
          %v2021 = vunpack.c.h.b16 %v803
          %v2022 = vunpack.c.l.b16 %v804
          %v2023 = vunpack.c.h.b16 %v804
          %v2024 = vunpack.c.l.b16 %v805
          %v2025 = vunpack.c.h.b16 %v805
          %v2026 = vunpack.c.l.b16 %v806
          %v2027 = vunpack.c.h.b16 %v806
          %v2028 = vunpack.c.l.b16 %v807
          %v2029 = vunpack.c.h.b16 %v807
          %v2030 = vunpack.c.l.b16 %v808
          %v2031 = vunpack.c.h.b16 %v808
          %v2032 = vunpack.c.l.b16 %v809
          %v2033 = vunpack.c.h.b16 %v809
          %v2034 = vunpack.c.l.b16 %v810
          %v2035 = vunpack.c.h.b16 %v810
          %v2036 = vunpack.c.l.b16 %v811
          %v2037 = vunpack.c.h.b16 %v811
          %v2038 = vunpack.c.l.b16 %v812
          %v2039 = vunpack.c.h.b16 %v812
          %v2040 = vunpack.c.l.b16 %v813
          %v2041 = vunpack.c.h.b16 %v813
          %v2042 = vunpack.c.l.b16 %v814
          %v2043 = vunpack.c.h.b16 %v814
          %v2044 = vunpack.c.l.b16 %v815
          %v2045 = vunpack.c.h.b16 %v815
          %v2046 = vunpack.c.l.b16 %v816
          %v2047 = vunpack.c.h.b16 %v816
          %v2048 = vunpack.c.l.b16 %v817
          %v2049 = vunpack.c.h.b16 %v817
          %v2050 = vunpack.c.l.b16 %v818
          %v2051 = vunpack.c.h.b16 %v818
          %v2052 = vunpack.c.l.b16 %v819
          %v2053 = vunpack.c.h.b16 %v819
          %v2054 = vunpack.c.l.b16 %v820
          %v2055 = vunpack.c.h.b16 %v820
          %v2056 = vunpack.c.l.b16 %v821
          %v2057 = vunpack.c.h.b16 %v821
          %v2058 = vunpack.c.l.b16 %v822
          %v2059 = vunpack.c.h.b16 %v822
          %v2060 = vunpack.c.l.b16 %v823
          %v2061 = vunpack.c.h.b16 %v823
          %v2062 = vunpack.c.l.b16 %v824
          %v2063 = vunpack.c.h.b16 %v824
          %v2064 = vunpack.c.l.b16 %v825
          %v2065 = vunpack.c.h.b16 %v825
          %v2066 = vunpack.c.l.b16 %v826
          %v2067 = vunpack.c.h.b16 %v826
          %v2068 = vunpack.c.l.b16 %v827
          %v2069 = vunpack.c.h.b16 %v827
          %v2070 = vunpack.c.l.b16 %v828
          %v2071 = vunpack.c.h.b16 %v828
          %v2072 = vunpack.c.l.b16 %v829
          %v2073 = vunpack.c.h.b16 %v829
          %v2074 = vunpack.c.l.b16 %v830
          %v2075 = vunpack.c.h.b16 %v830
          %v2076 = vunpack.c.l.b16 %v831
          %v2077 = vunpack.c.h.b16 %v831
          %v2078 = vunpack.c.l.b16 %v832
          %v2079 = vunpack.c.h.b16 %v832
          %v2080 = vunpack.c.l.b16 %v833
          %v2081 = vunpack.c.h.b16 %v833
          %v2082 = vunpack.c.l.b16 %v834
          %v2083 = vunpack.c.h.b16 %v834
          %v2084 = vunpack.c.l.b16 %v835
          %v2085 = vunpack.c.h.b16 %v835
          %v2086 = vunpack.c.l.b16 %v836
          %v2087 = vunpack.c.h.b16 %v836
          %v2088 = vunpack.c.l.b16 %v837
          %v2089 = vunpack.c.h.b16 %v837
          %v2090 = vunpack.c.l.b16 %v838
          %v2091 = vunpack.c.h.b16 %v838
          %v2092 = vunpack.c.l.b16 %v839
          %v2093 = vunpack.c.h.b16 %v839
          %v2094 = vunpack.c.l.b16 %v840
          %v2095 = vunpack.c.h.b16 %v840
          %v2096 = vunpack.c.l.b16 %v841
          %v2097 = vunpack.c.h.b16 %v841
          %v2098 = vunpack.c.l.b16 %v842
          %v2099 = vunpack.c.h.b16 %v842
          %v2100 = vunpack.c.l.b16 %v843
          %v2101 = vunpack.c.h.b16 %v843
          %v2102 = vunpack.c.l.b16 %v844
          %v2103 = vunpack.c.h.b16 %v844
          %v2104 = vunpack.c.l.b16 %v845
          %v2105 = vunpack.c.h.b16 %v845
          %v2106 = vunpack.c.l.b16 %v846
          %v2107 = vunpack.c.h.b16 %v846
          %v2108 = vunpack.c.l.b16 %v847
          %v2109 = vunpack.c.h.b16 %v847
          %v2110 = vunpack.c.l.b16 %v848
          %v2111 = vunpack.c.h.b16 %v848
          %v2112 = vunpack.c.l.b16 %v849
          %v2113 = vunpack.c.h.b16 %v849
          %v2114 = vunpack.c.l.b16 %v850
          %v2115 = vunpack.c.h.b16 %v850
          %v2116 = vunpack.c.l.b16 %v851
          %v2117 = vunpack.c.h.b16 %v851
          %v2118 = vunpack.c.l.b16 %v852
          %v2119 = vunpack.c.h.b16 %v852
          %v2120 = vunpack.c.l.b16 %v853
          %v2121 = vunpack.c.h.b16 %v853
          %v2122 = vunpack.c.l.b16 %v854
          %v2123 = vunpack.c.h.b16 %v854
          %v2124 = vunpack.c.l.b16 %v855
          %v2125 = vunpack.c.h.b16 %v855
          %v2126 = vunpack.c.l.b16 %v856
          %v2127 = vunpack.c.h.b16 %v856
          %v2128 = vunpack.c.l.b16 %v857
          %v2129 = vunpack.c.h.b16 %v857
          %v2130 = vunpack.c.l.b16 %v858
          %v2131 = vunpack.c.h.b16 %v858
          %v2132 = vunpack.c.l.b16 %v859
          %v2133 = vunpack.c.h.b16 %v859
          %v2134 = vunpack.c.l.b16 %v860
          %v2135 = vunpack.c.h.b16 %v860
          %v2136 = vunpack.c.l.b16 %v861
          %v2137 = vunpack.c.h.b16 %v861
          %v2138 = vunpack.c.l.b16 %v862
          %v2139 = vunpack.c.h.b16 %v862
          %v2140 = vunpack.c.l.b16 %v863
          %v2141 = vunpack.c.h.b16 %v863
          %v2142 = vunpack.c.l.b16 %v864
          %v2143 = vunpack.c.h.b16 %v864
          %v2144 = vunpack.c.l.b16 %v865
          %v2145 = vunpack.c.h.b16 %v865
          %v2146 = vunpack.c.l.b16 %v866
          %v2147 = vunpack.c.h.b16 %v866
          %v2148 = vunpack.c.l.b16 %v867
          %v2149 = vunpack.c.h.b16 %v867
          %v2150 = vunpack.c.l.b16 %v868
          %v2151 = vunpack.c.h.b16 %v868
          %v2152 = vunpack.c.l.b16 %v869
          %v2153 = vunpack.c.h.b16 %v869
          %v2154 = vunpack.c.l.b16 %v870
          %v2155 = vunpack.c.h.b16 %v870
          %v2156 = vunpack.c.l.b16 %v871
          %v2157 = vunpack.c.h.b16 %v871
          %v2158 = vunpack.c.l.b16 %v872
          %v2159 = vunpack.c.h.b16 %v872
          %v2160 = vunpack.c.l.b16 %v873
          %v2161 = vunpack.c.h.b16 %v873
          %v2162 = vunpack.c.l.b16 %v874
          %v2163 = vunpack.c.h.b16 %v874
          %v2164 = vunpack.c.l.b16 %v875
          %v2165 = vunpack.c.h.b16 %v875
          %v2166 = vunpack.c.l.b16 %v876
          %v2167 = vunpack.c.h.b16 %v876
          %v2168 = vunpack.c.l.b16 %v877
          %v2169 = vunpack.c.h.b16 %v877
          %v2170 = vunpack.c.l.b16 %v878
          %v2171 = vunpack.c.h.b16 %v878
          %v2172 = vunpack.c.l.b16 %v879
          %v2173 = vunpack.c.h.b16 %v879
          %v2174 = vunpack.c.l.b16 %v880
          %v2175 = vunpack.c.h.b16 %v880
          %v2176 = vunpack.c.l.b16 %v881
          %v2177 = vunpack.c.h.b16 %v881
          %v2178 = vunpack.c.l.b16 %v882
          %v2179 = vunpack.c.h.b16 %v882
          %v2180 = vunpack.c.l.b16 %v883
          %v2181 = vunpack.c.h.b16 %v883
          %v2182 = vunpack.c.l.b16 %v884
          %v2183 = vunpack.c.h.b16 %v884
          %v2184 = vunpack.c.l.b16 %v885
          %v2185 = vunpack.c.h.b16 %v885
          %v2186 = vunpack.c.l.b16 %v886
          %v2187 = vunpack.c.h.b16 %v886
          %v2188 = vunpack.c.l.b16 %v887
          %v2189 = vunpack.c.h.b16 %v887
          %v2190 = vunpack.c.l.b16 %v888
          %v2191 = vunpack.c.h.b16 %v888
          %v2192 = vunpack.c.l.b16 %v889
          %v2193 = vunpack.c.h.b16 %v889
          %v2194 = vunpack.c.l.b16 %v890
          %v2195 = vunpack.c.h.b16 %v890
          %v2196 = vunpack.c.l.b16 %v891
          %v2197 = vunpack.c.h.b16 %v891
          %v2198 = vunpack.c.l.b16 %v892
          %v2199 = vunpack.c.h.b16 %v892
          %v2200 = vunpack.c.l.b16 %v893
          %v2201 = vunpack.c.h.b16 %v893
          %v2202 = vpack.c.b16 %v1596, %v1594
          %v2203 = vpack.c.b16 %v1597, %v1595
          %v2204 = vpack.c.b16 %v1600, %v1598
          %v2205 = vpack.c.b16 %v1601, %v1599
          %v2206 = vpack.c.b16 %v1604, %v1602
          %v2207 = vpack.c.b16 %v1605, %v1603
          %v2208 = vpack.c.b16 %v1608, %v1606
          %v2209 = vpack.c.b16 %v1609, %v1607
          %v2210 = vpack.c.b16 %v1612, %v1610
          %v2211 = vpack.c.b16 %v1613, %v1611
          %v2212 = vpack.c.b16 %v1616, %v1614
          %v2213 = vpack.c.b16 %v1617, %v1615
          %v2214 = vpack.c.b16 %v1620, %v1618
          %v2215 = vpack.c.b16 %v1621, %v1619
          %v2216 = vpack.c.b16 %v1624, %v1622
          %v2217 = vpack.c.b16 %v1625, %v1623
          %v2218 = vpack.c.b16 %v1628, %v1626
          %v2219 = vpack.c.b16 %v1629, %v1627
          %v2220 = vpack.c.b16 %v1632, %v1630
          %v2221 = vpack.c.b16 %v1633, %v1631
          %v2222 = vpack.c.b16 %v1636, %v1634
          %v2223 = vpack.c.b16 %v1637, %v1635
          %v2224 = vpack.c.b16 %v1640, %v1638
          %v2225 = vpack.c.b16 %v1641, %v1639
          %v2226 = vpack.c.b16 %v1644, %v1642
          %v2227 = vpack.c.b16 %v1645, %v1643
          %v2228 = vpack.c.b16 %v1648, %v1646
          %v2229 = vpack.c.b16 %v1649, %v1647
          %v2230 = vpack.c.b16 %v1652, %v1650
          %v2231 = vpack.c.b16 %v1653, %v1651
          %v2232 = vpack.c.b16 %v1656, %v1654
          %v2233 = vpack.c.b16 %v1657, %v1655
          %v2234 = vpack.c.b16 %v1660, %v1658
          %v2235 = vpack.c.b16 %v1661, %v1659
          %v2236 = vpack.c.b16 %v1664, %v1662
          %v2237 = vpack.c.b16 %v1665, %v1663
          %v2238 = vpack.c.b16 %v1668, %v1666
          %v2239 = vpack.c.b16 %v1669, %v1667
          %v2240 = vpack.c.b16 %v1672, %v1670
          %v2241 = vpack.c.b16 %v1673, %v1671
          %v2242 = vpack.c.b16 %v1676, %v1674
          %v2243 = vpack.c.b16 %v1677, %v1675
          %v2244 = vpack.c.b16 %v1680, %v1678
          %v2245 = vpack.c.b16 %v1681, %v1679
          %v2246 = vpack.c.b16 %v1684, %v1682
          %v2247 = vpack.c.b16 %v1685, %v1683
          %v2248 = vpack.c.b16 %v1688, %v1686
          %v2249 = vpack.c.b16 %v1689, %v1687
          %v2250 = vpack.c.b16 %v1692, %v1690
          %v2251 = vpack.c.b16 %v1693, %v1691
          %v2252 = vpack.c.b16 %v1696, %v1694
          %v2253 = vpack.c.b16 %v1697, %v1695
          %v2254 = vpack.c.b16 %v1700, %v1698
          %v2255 = vpack.c.b16 %v1701, %v1699
          %v2256 = vpack.c.b16 %v1704, %v1702
          %v2257 = vpack.c.b16 %v1705, %v1703
          %v2258 = vpack.c.b16 %v1708, %v1706
          %v2259 = vpack.c.b16 %v1709, %v1707
          %v2260 = vpack.c.b16 %v1712, %v1710
          %v2261 = vpack.c.b16 %v1713, %v1711
          %v2262 = vpack.c.b16 %v1716, %v1714
          %v2263 = vpack.c.b16 %v1717, %v1715
          %v2264 = vpack.c.b16 %v1720, %v1718
          %v2265 = vpack.c.b16 %v1721, %v1719
          %v2266 = vpack.c.b16 %v1724, %v1722
          %v2267 = vpack.c.b16 %v1725, %v1723
          %v2268 = vpack.c.b16 %v1728, %v1726
          %v2269 = vpack.c.b16 %v1729, %v1727
          %v2270 = vpack.c.b16 %v1732, %v1730
          %v2271 = vpack.c.b16 %v1733, %v1731
          %v2272 = vpack.c.b16 %v1736, %v1734
          %v2273 = vpack.c.b16 %v1737, %v1735
          %v2274 = vpack.c.b16 %v1740, %v1738
          %v2275 = vpack.c.b16 %v1741, %v1739
          %v2276 = vpack.c.b16 %v1744, %v1742
          %v2277 = vpack.c.b16 %v1745, %v1743
          %v2278 = vpack.c.b16 %v1748, %v1746
          %v2279 = vpack.c.b16 %v1749, %v1747
          %v2280 = vpack.c.b16 %v1752, %v1750
          %v2281 = vpack.c.b16 %v1753, %v1751
          %v2282 = vpack.c.b16 %v1756, %v1754
          %v2283 = vpack.c.b16 %v1757, %v1755
          %v2284 = vpack.c.b16 %v1760, %v1758
          %v2285 = vpack.c.b16 %v1761, %v1759
          %v2286 = vpack.c.b16 %v1764, %v1762
          %v2287 = vpack.c.b16 %v1765, %v1763
          %v2288 = vpack.c.b16 %v1768, %v1766
          %v2289 = vpack.c.b16 %v1769, %v1767
          %v2290 = vpack.c.b16 %v1772, %v1770
          %v2291 = vpack.c.b16 %v1773, %v1771
          %v2292 = vpack.c.b16 %v1776, %v1774
          %v2293 = vpack.c.b16 %v1777, %v1775
          %v2294 = vpack.c.b16 %v1780, %v1778
          %v2295 = vpack.c.b16 %v1781, %v1779
          %v2296 = vpack.c.b16 %v1784, %v1782
          %v2297 = vpack.c.b16 %v1785, %v1783
          %v2298 = vpack.c.b16 %v1788, %v1786
          %v2299 = vpack.c.b16 %v1789, %v1787
          %v2300 = vpack.c.b16 %v1792, %v1790
          %v2301 = vpack.c.b16 %v1793, %v1791
          %v2302 = vpack.c.b16 %v1796, %v1794
          %v2303 = vpack.c.b16 %v1797, %v1795
          %v2304 = vpack.c.b16 %v1800, %v1798
          %v2305 = vpack.c.b16 %v1801, %v1799
          %v2306 = vpack.c.b16 %v1804, %v1802
          %v2307 = vpack.c.b16 %v1805, %v1803
          %v2308 = vpack.c.b16 %v1808, %v1806
          %v2309 = vpack.c.b16 %v1809, %v1807
          %v2310 = vpack.c.b16 %v1812, %v1810
          %v2311 = vpack.c.b16 %v1813, %v1811
          %v2312 = vpack.c.b16 %v1816, %v1814
          %v2313 = vpack.c.b16 %v1817, %v1815
          %v2314 = vpack.c.b16 %v1820, %v1818
          %v2315 = vpack.c.b16 %v1821, %v1819
          %v2316 = vpack.c.b16 %v1824, %v1822
          %v2317 = vpack.c.b16 %v1825, %v1823
          %v2318 = vpack.c.b16 %v1828, %v1826
          %v2319 = vpack.c.b16 %v1829, %v1827
          %v2320 = vpack.c.b16 %v1832, %v1830
          %v2321 = vpack.c.b16 %v1833, %v1831
          %v2322 = vpack.c.b16 %v1836, %v1834
          %v2323 = vpack.c.b16 %v1837, %v1835
          %v2324 = vpack.c.b16 %v1840, %v1838
          %v2325 = vpack.c.b16 %v1841, %v1839
          %v2326 = vpack.c.b16 %v1844, %v1842
          %v2327 = vpack.c.b16 %v1845, %v1843
          %v2328 = vpack.c.b16 %v1848, %v1846
          %v2329 = vpack.c.b16 %v1849, %v1847
          %v2330 = vpack.c.b16 %v1852, %v1850
          %v2331 = vpack.c.b16 %v1853, %v1851
          %v2332 = vpack.c.b16 %v1856, %v1854
          %v2333 = vpack.c.b16 %v1857, %v1855
          %v2334 = vpack.c.b16 %v1860, %v1858
          %v2335 = vpack.c.b16 %v1861, %v1859
          %v2336 = vpack.c.b16 %v1864, %v1862
          %v2337 = vpack.c.b16 %v1865, %v1863
          %v2338 = vpack.c.b16 %v1868, %v1866
          %v2339 = vpack.c.b16 %v1869, %v1867
          %v2340 = vpack.c.b16 %v1872, %v1870
          %v2341 = vpack.c.b16 %v1873, %v1871
          %v2342 = vpack.c.b16 %v1876, %v1874
          %v2343 = vpack.c.b16 %v1877, %v1875
          %v2344 = vpack.c.b16 %v1880, %v1878
          %v2345 = vpack.c.b16 %v1881, %v1879
          %v2346 = vpack.c.b16 %v1884, %v1882
          %v2347 = vpack.c.b16 %v1885, %v1883
          %v2348 = vpack.c.b16 %v1888, %v1886
          %v2349 = vpack.c.b16 %v1889, %v1887
          %v2350 = vpack.c.b16 %v1892, %v1890
          %v2351 = vpack.c.b16 %v1893, %v1891
          %v2352 = vpack.c.b16 %v1896, %v1894
          %v2353 = vpack.c.b16 %v1897, %v1895
          %v2354 = vpack.c.b16 %v1900, %v1898
          %v2355 = vpack.c.b16 %v1901, %v1899
          %v2356 = vpack.c.b16 %v1904, %v1902
          %v2357 = vpack.c.b16 %v1905, %v1903
          %v2358 = vpack.c.b16 %v1908, %v1906
          %v2359 = vpack.c.b16 %v1909, %v1907
          %v2360 = vpack.c.b16 %v1912, %v1910
          %v2361 = vpack.c.b16 %v1913, %v1911
          %v2362 = vpack.c.b16 %v1916, %v1914
          %v2363 = vpack.c.b16 %v1917, %v1915
          %v2364 = vpack.c.b16 %v1920, %v1918
          %v2365 = vpack.c.b16 %v1921, %v1919
          %v2366 = vpack.c.b16 %v1924, %v1922
          %v2367 = vpack.c.b16 %v1925, %v1923
          %v2368 = vpack.c.b16 %v1928, %v1926
          %v2369 = vpack.c.b16 %v1929, %v1927
          %v2370 = vpack.c.b16 %v1932, %v1930
          %v2371 = vpack.c.b16 %v1933, %v1931
          %v2372 = vpack.c.b16 %v1936, %v1934
          %v2373 = vpack.c.b16 %v1937, %v1935
          %v2374 = vpack.c.b16 %v1940, %v1938
          %v2375 = vpack.c.b16 %v1941, %v1939
          %v2376 = vpack.c.b16 %v1944, %v1942
          %v2377 = vpack.c.b16 %v1945, %v1943
          %v2378 = vpack.c.b16 %v1948, %v1946
          %v2379 = vpack.c.b16 %v1949, %v1947
          %v2380 = vpack.c.b16 %v1952, %v1950
          %v2381 = vpack.c.b16 %v1953, %v1951
          %v2382 = vpack.c.b16 %v1956, %v1954
          %v2383 = vpack.c.b16 %v1957, %v1955
          %v2384 = vpack.c.b16 %v1960, %v1958
          %v2385 = vpack.c.b16 %v1961, %v1959
          %v2386 = vpack.c.b16 %v1964, %v1962
          %v2387 = vpack.c.b16 %v1965, %v1963
          %v2388 = vpack.c.b16 %v1968, %v1966
          %v2389 = vpack.c.b16 %v1969, %v1967
          %v2390 = vpack.c.b16 %v1972, %v1970
          %v2391 = vpack.c.b16 %v1973, %v1971
          %v2392 = vpack.c.b16 %v1976, %v1974
          %v2393 = vpack.c.b16 %v1977, %v1975
          %v2394 = vpack.c.b16 %v1980, %v1978
          %v2395 = vpack.c.b16 %v1981, %v1979
          %v2396 = vpack.c.b16 %v1984, %v1982
          %v2397 = vpack.c.b16 %v1985, %v1983
          %v2398 = vpack.c.b16 %v1988, %v1986
          %v2399 = vpack.c.b16 %v1989, %v1987
          %v2400 = vpack.c.b16 %v1992, %v1990
          %v2401 = vpack.c.b16 %v1993, %v1991
          %v2402 = vpack.c.b16 %v1996, %v1994
          %v2403 = vpack.c.b16 %v1997, %v1995
          %v2404 = vpack.c.b16 %v2000, %v1998
          %v2405 = vpack.c.b16 %v2001, %v1999
          %v2406 = vpack.c.b16 %v2004, %v2002
          %v2407 = vpack.c.b16 %v2005, %v2003
          %v2408 = vpack.c.b16 %v2008, %v2006
          %v2409 = vpack.c.b16 %v2009, %v2007
          %v2410 = vpack.c.b16 %v2012, %v2010
          %v2411 = vpack.c.b16 %v2013, %v2011
          %v2412 = vpack.c.b16 %v2016, %v2014
          %v2413 = vpack.c.b16 %v2017, %v2015
          %v2414 = vpack.c.b16 %v2020, %v2018
          %v2415 = vpack.c.b16 %v2021, %v2019
          %v2416 = vpack.c.b16 %v2024, %v2022
          %v2417 = vpack.c.b16 %v2025, %v2023
          %v2418 = vpack.c.b16 %v2028, %v2026
          %v2419 = vpack.c.b16 %v2029, %v2027
          %v2420 = vpack.c.b16 %v2032, %v2030
          %v2421 = vpack.c.b16 %v2033, %v2031
          %v2422 = vpack.c.b16 %v2036, %v2034
          %v2423 = vpack.c.b16 %v2037, %v2035
          %v2424 = vpack.c.b16 %v2040, %v2038
          %v2425 = vpack.c.b16 %v2041, %v2039
          %v2426 = vpack.c.b16 %v2044, %v2042
          %v2427 = vpack.c.b16 %v2045, %v2043
          %v2428 = vpack.c.b16 %v2048, %v2046
          %v2429 = vpack.c.b16 %v2049, %v2047
          %v2430 = vpack.c.b16 %v2052, %v2050
          %v2431 = vpack.c.b16 %v2053, %v2051
          %v2432 = vpack.c.b16 %v2056, %v2054
          %v2433 = vpack.c.b16 %v2057, %v2055
          %v2434 = vpack.c.b16 %v2060, %v2058
          %v2435 = vpack.c.b16 %v2061, %v2059
          %v2436 = vpack.c.b16 %v2064, %v2062
          %v2437 = vpack.c.b16 %v2065, %v2063
          %v2438 = vpack.c.b16 %v2068, %v2066
          %v2439 = vpack.c.b16 %v2069, %v2067
          %v2440 = vpack.c.b16 %v2072, %v2070
          %v2441 = vpack.c.b16 %v2073, %v2071
          %v2442 = vpack.c.b16 %v2076, %v2074
          %v2443 = vpack.c.b16 %v2077, %v2075
          %v2444 = vpack.c.b16 %v2080, %v2078
          %v2445 = vpack.c.b16 %v2081, %v2079
          %v2446 = vpack.c.b16 %v2084, %v2082
          %v2447 = vpack.c.b16 %v2085, %v2083
          %v2448 = vpack.c.b16 %v2088, %v2086
          %v2449 = vpack.c.b16 %v2089, %v2087
          %v2450 = vpack.c.b16 %v2092, %v2090
          %v2451 = vpack.c.b16 %v2093, %v2091
          %v2452 = vpack.c.b16 %v2096, %v2094
          %v2453 = vpack.c.b16 %v2097, %v2095
          %v2454 = vpack.c.b16 %v2100, %v2098
          %v2455 = vpack.c.b16 %v2101, %v2099
          %v2456 = vpack.c.b16 %v2104, %v2102
          %v2457 = vpack.c.b16 %v2105, %v2103
          %v2458 = vpack.c.b16 %v2108, %v2106
          %v2459 = vpack.c.b16 %v2109, %v2107
          %v2460 = vpack.c.b16 %v2112, %v2110
          %v2461 = vpack.c.b16 %v2113, %v2111
          %v2462 = vpack.c.b16 %v2116, %v2114
          %v2463 = vpack.c.b16 %v2117, %v2115
          %v2464 = vpack.c.b16 %v2120, %v2118
          %v2465 = vpack.c.b16 %v2121, %v2119
          %v2466 = vpack.c.b16 %v2124, %v2122
          %v2467 = vpack.c.b16 %v2125, %v2123
          %v2468 = vpack.c.b16 %v2128, %v2126
          %v2469 = vpack.c.b16 %v2129, %v2127
          %v2470 = vpack.c.b16 %v2132, %v2130
          %v2471 = vpack.c.b16 %v2133, %v2131
          %v2472 = vpack.c.b16 %v2136, %v2134
          %v2473 = vpack.c.b16 %v2137, %v2135
          %v2474 = vpack.c.b16 %v2140, %v2138
          %v2475 = vpack.c.b16 %v2141, %v2139
          %v2476 = vpack.c.b16 %v2144, %v2142
          %v2477 = vpack.c.b16 %v2145, %v2143
          %v2478 = vpack.c.b16 %v2148, %v2146
          %v2479 = vpack.c.b16 %v2149, %v2147
          %v2480 = vpack.c.b16 %v2152, %v2150
          %v2481 = vpack.c.b16 %v2153, %v2151
          %v2482 = vpack.c.b16 %v2156, %v2154
          %v2483 = vpack.c.b16 %v2157, %v2155
          %v2484 = vpack.c.b16 %v2160, %v2158
          %v2485 = vpack.c.b16 %v2161, %v2159
          %v2486 = vpack.c.b16 %v2164, %v2162
          %v2487 = vpack.c.b16 %v2165, %v2163
          %v2488 = vpack.c.b16 %v2168, %v2166
          %v2489 = vpack.c.b16 %v2169, %v2167
          %v2490 = vpack.c.b16 %v2172, %v2170
          %v2491 = vpack.c.b16 %v2173, %v2171
          %v2492 = vpack.c.b16 %v2176, %v2174
          %v2493 = vpack.c.b16 %v2177, %v2175
          %v2494 = vpack.c.b16 %v2180, %v2178
          %v2495 = vpack.c.b16 %v2181, %v2179
          %v2496 = vpack.c.b16 %v2184, %v2182
          %v2497 = vpack.c.b16 %v2185, %v2183
          %v2498 = vpack.c.b16 %v2188, %v2186
          %v2499 = vpack.c.b16 %v2189, %v2187
          %v2500 = vpack.c.b16 %v2192, %v2190
          %v2501 = vpack.c.b16 %v2193, %v2191
          %v2502 = vpack.c.b16 %v2196, %v2194
          %v2503 = vpack.c.b16 %v2197, %v2195
          %v2504 = vpack.c.b16 %v2200, %v2198
          %v2505 = vpack.c.b16 %v2201, %v2199
          %2810 = vmatprep.subr.bf16.mxu0 %v2203
          %2811 = vmatpush1.bf16.msra.mxu0 %v2202
          %2812 = vmatprep.subr.bf16.mxu0 %v2205
          %2813 = vmatpush1.bf16.msra.mxu0 %v2204
          %2814 = vmatprep.subr.bf16.mxu0 %v2207
          %2815 = vmatpush1.bf16.msra.mxu0 %v2206
          %2816 = vmatprep.subr.bf16.mxu0 %v2209
          %2817 = vmatpush1.bf16.msra.mxu0 %v2208
          %2818 = vmatprep.subr.bf16.mxu0 %v2211
          %2819 = vmatpush1.bf16.msra.mxu0 %v2210
          %2820 = vmatprep.subr.bf16.mxu0 %v2213
          %2821 = vmatpush1.bf16.msra.mxu0 %v2212
          %2822 = vmatprep.subr.bf16.mxu0 %v2215
          %2823 = vmatpush1.bf16.msra.mxu0 %v2214
          %2824 = vmatprep.subr.bf16.mxu0 %v2217
          %2825 = vmatpush1.bf16.msra.mxu0 %v2216
          %2826 = vmatprep.subr.bf16.mxu0 %v2219
          %2827 = vmatpush1.bf16.msra.mxu0 %v2218
          %2828 = vmatprep.subr.bf16.mxu0 %v2221
          %2829 = vmatpush1.bf16.msra.mxu0 %v2220
          %2830 = vmatprep.subr.bf16.mxu0 %v2223
          %2831 = vmatpush1.bf16.msra.mxu0 %v2222
          %2832 = vmatprep.subr.bf16.mxu0 %v2225
          %2833 = vmatpush1.bf16.msra.mxu0 %v2224
          %2834 = vmatprep.subr.bf16.mxu0 %v2227
          %2835 = vmatpush1.bf16.msra.mxu0 %v2226
          %2836 = vmatprep.subr.bf16.mxu0 %v2229
          %2837 = vmatpush1.bf16.msra.mxu0 %v2228
          %2838 = vmatprep.subr.bf16.mxu0 %v2231
          %2839 = vmatpush1.bf16.msra.mxu0 %v2230
          %2840 = vmatprep.subr.bf16.mxu0 %v2233
          %2841 = vmatpush1.bf16.msra.mxu0 %v2232
          %2842 = vmatprep.mubr.bf16.mxu0 %v1139
          %2843 = vmatmul.mubr.bf16.gmra.mrb[0].mxu0 %v1138
          %v2844 = vpop.f32.mrb[0].mxu0
          %v2845 = vadd.f32 %v899, %v2844
          %v2846 = vpop.f32.mrb[0].mxu0
          %v2847 = vadd.f32 %v903, %v2846
          %v2848 = vpop.f32.mrb[0].mxu0
          %v2849 = vadd.f32 %v899, %v2848
          %v2850 = vpop.f32.mrb[0].mxu0
          %v2851 = vadd.f32 %v903, %v2850
          %2852 = vmatprep.mubr.bf16.mxu0 %v1158
          %2853 = vmatmul.mubr.bf16.gmra.mrb[0].mxu0 %v1157
          %v2854 = vpop.f32.mrb[0].mxu0
          %v2855 = vadd.f32 %v899, %v2854
          %v2856 = vpop.f32.mrb[0].mxu0
          %v2857 = vadd.f32 %v903, %v2856
          %v2858 = vpop.f32.mrb[0].mxu0
          %v2859 = vadd.f32 %v899, %v2858
          %v2860 = vpop.f32.mrb[0].mxu0
          %v2861 = vadd.f32 %v903, %v2860
          %2862 = vmatprep.mubr.bf16.mxu0 %v1177
          %2863 = vmatmul.mubr.bf16.gmra.mrb[0].mxu0 %v1176
          %v2864 = vpop.f32.mrb[0].mxu0
          %v2865 = vadd.f32 %v899, %v2864
          %v2866 = vpop.f32.mrb[0].mxu0
          %v2867 = vadd.f32 %v903, %v2866
          %v2868 = vpop.f32.mrb[0].mxu0
          %v2869 = vadd.f32 %v899, %v2868
          %v2870 = vpop.f32.mrb[0].mxu0
          %v2871 = vadd.f32 %v903, %v2870
          %2872 = vmatprep.mubr.bf16.mxu0 %v1196
          %2873 = vmatmul.mubr.bf16.gmra.mrb[0].mxu0 %v1195
          %v2874 = vpop.f32.mrb[0].mxu0
          %v2875 = vadd.f32 %v899, %v2874
          %v2876 = vpop.f32.mrb[0].mxu0
          %v2877 = vadd.f32 %v903, %v2876
          %v2878 = vpop.f32.mrb[0].mxu0
          %v2879 = vadd.f32 %v899, %v2878
          %v2880 = vpop.f32.mrb[0].mxu0
          %v2881 = vadd.f32 %v903, %v2880
          %2882 = vdwg.mxu0
          %2883 = vmatprep.subr.bf16.mxu0 %v2235
          %2884 = vmatpush1.bf16.msra.mxu0 %v2234
          %2885 = vmatprep.subr.bf16.mxu0 %v2237
          %2886 = vmatpush1.bf16.msra.mxu0 %v2236
          %2887 = vmatprep.subr.bf16.mxu0 %v2239
          %2888 = vmatpush1.bf16.msra.mxu0 %v2238
          %2889 = vmatprep.subr.bf16.mxu0 %v2241
          %2890 = vmatpush1.bf16.msra.mxu0 %v2240
          %2891 = vmatprep.subr.bf16.mxu0 %v2243
          %2892 = vmatpush1.bf16.msra.mxu0 %v2242
          %2893 = vmatprep.subr.bf16.mxu0 %v2245
          %2894 = vmatpush1.bf16.msra.mxu0 %v2244
          %2895 = vmatprep.subr.bf16.mxu0 %v2247
          %2896 = vmatpush1.bf16.msra.mxu0 %v2246
          %2897 = vmatprep.subr.bf16.mxu0 %v2249
          %2898 = vmatpush1.bf16.msra.mxu0 %v2248
          %2899 = vmatprep.subr.bf16.mxu0 %v2251
          %2900 = vmatpush1.bf16.msra.mxu0 %v2250
          %2901 = vmatprep.subr.bf16.mxu0 %v2253
          %2902 = vmatpush1.bf16.msra.mxu0 %v2252
          %2903 = vmatprep.subr.bf16.mxu0 %v2255
          %2904 = vmatpush1.bf16.msra.mxu0 %v2254
          %2905 = vmatprep.subr.bf16.mxu0 %v2257
          %2906 = vmatpush1.bf16.msra.mxu0 %v2256
          %2907 = vmatprep.subr.bf16.mxu0 %v2259
          %2908 = vmatpush1.bf16.msra.mxu0 %v2258
          %2909 = vmatprep.subr.bf16.mxu0 %v2261
          %2910 = vmatpush1.bf16.msra.mxu0 %v2260
          %2911 = vmatprep.subr.bf16.mxu0 %v2263
          %2912 = vmatpush1.bf16.msra.mxu0 %v2262
          %2913 = vmatprep.subr.bf16.mxu0 %v2265
          %2914 = vmatpush1.bf16.msra.mxu0 %v2264
          %2915 = vmatprep.mubr.bf16.mxu0 %v1141
          %2916 = vmatmul.mubr.bf16.gmra.mrb[0].mxu0 %v1140
          %v2917 = vpop.f32.mrb[0].mxu0
          %v2918 = vadd.f32 %v2845, %v2917
          %v2919 = vpop.f32.mrb[0].mxu0
          %v2920 = vadd.f32 %v2847, %v2919
          %v2921 = vpop.f32.mrb[0].mxu0
          %v2922 = vadd.f32 %v2849, %v2921
          %v2923 = vpop.f32.mrb[0].mxu0
          %v2924 = vadd.f32 %v2851, %v2923
          %2925 = vmatprep.mubr.bf16.mxu0 %v1160
          %2926 = vmatmul.mubr.bf16.gmra.mrb[0].mxu0 %v1159
          %v2927 = vpop.f32.mrb[0].mxu0
          %v2928 = vadd.f32 %v2855, %v2927
          %v2929 = vpop.f32.mrb[0].mxu0
          %v2930 = vadd.f32 %v2857, %v2929
          %v2931 = vpop.f32.mrb[0].mxu0
          %v2932 = vadd.f32 %v2859, %v2931
          %v2933 = vpop.f32.mrb[0].mxu0
          %v2934 = vadd.f32 %v2861, %v2933
          %2935 = vmatprep.mubr.bf16.mxu0 %v1179
          %2936 = vmatmul.mubr.bf16.gmra.mrb[0].mxu0 %v1178
          %v2937 = vpop.f32.mrb[0].mxu0
          %v2938 = vadd.f32 %v2865, %v2937
          %v2939 = vpop.f32.mrb[0].mxu0
          %v2940 = vadd.f32 %v2867, %v2939
          %v2941 = vpop.f32.mrb[0].mxu0
          %v2942 = vadd.f32 %v2869, %v2941
          %v2943 = vpop.f32.mrb[0].mxu0
          %v2944 = vadd.f32 %v2871, %v2943
          %2945 = vmatprep.mubr.bf16.mxu0 %v1198
          %2946 = vmatmul.mubr.bf16.gmra.mrb[0].mxu0 %v1197
          %v2947 = vpop.f32.mrb[0].mxu0
          %v2948 = vadd.f32 %v2875, %v2947
          %v2949 = vpop.f32.mrb[0].mxu0
          %v2950 = vadd.f32 %v2877, %v2949
          %v2951 = vpop.f32.mrb[0].mxu0
          %v2952 = vadd.f32 %v2879, %v2951
          %v2953 = vpop.f32.mrb[0].mxu0
          %v2954 = vadd.f32 %v2881, %v2953
          %2955 = vdwg.mxu0
          %2956 = vmatprep.subr.bf16.mxu0 %v2267
          %2957 = vmatpush1.bf16.msra.mxu0 %v2266
          %2958 = vmatprep.subr.bf16.mxu0 %v2269
          %2959 = vmatpush1.bf16.msra.mxu0 %v2268
          %2960 = vmatprep.subr.bf16.mxu0 %v2271
          %2961 = vmatpush1.bf16.msra.mxu0 %v2270
          %2962 = vmatprep.subr.bf16.mxu0 %v2273
          %2963 = vmatpush1.bf16.msra.mxu0 %v2272
          %2964 = vmatprep.subr.bf16.mxu0 %v2275
          %2965 = vmatpush1.bf16.msra.mxu0 %v2274
          %2966 = vmatprep.subr.bf16.mxu0 %v2277
          %2967 = vmatpush1.bf16.msra.mxu0 %v2276
          %2968 = vmatprep.subr.bf16.mxu0 %v2279
          %2969 = vmatpush1.bf16.msra.mxu0 %v2278
          %2970 = vmatprep.subr.bf16.mxu0 %v2281
          %2971 = vmatpush1.bf16.msra.mxu0 %v2280
          %2972 = vmatprep.subr.bf16.mxu0 %v2283
          %2973 = vmatpush1.bf16.msra.mxu0 %v2282
          %2974 = vmatprep.subr.bf16.mxu0 %v2285
          %2975 = vmatpush1.bf16.msra.mxu0 %v2284
          %2976 = vmatprep.subr.bf16.mxu0 %v2287
          %2977 = vmatpush1.bf16.msra.mxu0 %v2286
          %2978 = vmatprep.subr.bf16.mxu0 %v2289
          %2979 = vmatpush1.bf16.msra.mxu0 %v2288
          %2980 = vmatprep.subr.bf16.mxu0 %v2291
          %2981 = vmatpush1.bf16.msra.mxu0 %v2290
          %2982 = vmatprep.subr.bf16.mxu0 %v2293
          %2983 = vmatpush1.bf16.msra.mxu0 %v2292
          %2984 = vmatprep.subr.bf16.mxu0 %v2295
          %2985 = vmatpush1.bf16.msra.mxu0 %v2294
          %2986 = vmatprep.subr.bf16.mxu0 %v2297
          %2987 = vmatpush1.bf16.msra.mxu0 %v2296
          %2988 = vmatprep.mubr.bf16.mxu0 %v1143
          %2989 = vmatmul.mubr.bf16.gmra.mrb[0].mxu0 %v1142
          %v2990 = vpop.f32.mrb[0].mxu0
          %v2991 = vadd.f32 %v2918, %v2990
          %v2992 = vpop.f32.mrb[0].mxu0
          %v2993 = vadd.f32 %v2920, %v2992
          %v2994 = vpop.f32.mrb[0].mxu0
          %v2995 = vadd.f32 %v2922, %v2994
          %v2996 = vpop.f32.mrb[0].mxu0
          %v2997 = vadd.f32 %v2924, %v2996
          %2998 = vmatprep.mubr.bf16.mxu0 %v1162
          %2999 = vmatmul.mubr.bf16.gmra.mrb[0].mxu0 %v1161
          %v3000 = vpop.f32.mrb[0].mxu0
          %v3001 = vadd.f32 %v2928, %v3000
          %v3002 = vpop.f32.mrb[0].mxu0
          %v3003 = vadd.f32 %v2930, %v3002
          %v3004 = vpop.f32.mrb[0].mxu0
          %v3005 = vadd.f32 %v2932, %v3004
          %v3006 = vpop.f32.mrb[0].mxu0
          %v3007 = vadd.f32 %v2934, %v3006
          %3008 = vmatprep.mubr.bf16.mxu0 %v1181
          %3009 = vmatmul.mubr.bf16.gmra.mrb[0].mxu0 %v1180
          %v3010 = vpop.f32.mrb[0].mxu0
          %v3011 = vadd.f32 %v2938, %v3010
          %v3012 = vpop.f32.mrb[0].mxu0
          %v3013 = vadd.f32 %v2940, %v3012
          %v3014 = vpop.f32.mrb[0].mxu0
          %v3015 = vadd.f32 %v2942, %v3014
          %v3016 = vpop.f32.mrb[0].mxu0
          %v3017 = vadd.f32 %v2944, %v3016
          %3018 = vmatprep.mubr.bf16.mxu0 %v1200
          %3019 = vmatmul.mubr.bf16.gmra.mrb[0].mxu0 %v1199
          %v3020 = vpop.f32.mrb[0].mxu0
          %v3021 = vadd.f32 %v2948, %v3020
          %v3022 = vpop.f32.mrb[0].mxu0
          %v3023 = vadd.f32 %v2950, %v3022
          %v3024 = vpop.f32.mrb[0].mxu0
          %v3025 = vadd.f32 %v2952, %v3024
          %v3026 = vpop.f32.mrb[0].mxu0
          %v3027 = vadd.f32 %v2954, %v3026
          %3028 = vdwg.mxu0
          %3029 = vmatprep.subr.bf16.mxu0 %v2299
          %3030 = vmatpush1.bf16.msra.mxu0 %v2298
          %3031 = vmatprep.subr.bf16.mxu0 %v2301
          %3032 = vmatpush1.bf16.msra.mxu0 %v2300
          %3033 = vmatprep.subr.bf16.mxu0 %v2303
          %3034 = vmatpush1.bf16.msra.mxu0 %v2302
          %3035 = vmatprep.subr.bf16.mxu0 %v2305
          %3036 = vmatpush1.bf16.msra.mxu0 %v2304
          %3037 = vmatprep.subr.bf16.mxu0 %v2307
          %3038 = vmatpush1.bf16.msra.mxu0 %v2306
          %3039 = vmatprep.subr.bf16.mxu0 %v2309
          %3040 = vmatpush1.bf16.msra.mxu0 %v2308
          %3041 = vmatprep.subr.bf16.mxu0 %v2311
          %3042 = vmatpush1.bf16.msra.mxu0 %v2310
          %3043 = vmatprep.subr.bf16.mxu0 %v2313
          %3044 = vmatpush1.bf16.msra.mxu0 %v2312
          %3045 = vmatprep.subr.bf16.mxu0 %v2315
          %3046 = vmatpush1.bf16.msra.mxu0 %v2314
          %3047 = vmatprep.subr.bf16.mxu0 %v2317
          %3048 = vmatpush1.bf16.msra.mxu0 %v2316
          %3049 = vmatprep.subr.bf16.mxu0 %v2319
          %3050 = vmatpush1.bf16.msra.mxu0 %v2318
          %3051 = vmatprep.subr.bf16.mxu0 %v2321
          %3052 = vmatpush1.bf16.msra.mxu0 %v2320
          %3053 = vmatprep.subr.bf16.mxu0 %v2323
          %3054 = vmatpush1.bf16.msra.mxu0 %v2322
          %3055 = vmatprep.subr.bf16.mxu0 %v2325
          %3056 = vmatpush1.bf16.msra.mxu0 %v2324
          %3057 = vmatprep.subr.bf16.mxu0 %v2327
          %3058 = vmatpush1.bf16.msra.mxu0 %v2326
          %3059 = vmatprep.subr.bf16.mxu0 %v2329
          %3060 = vmatpush1.bf16.msra.mxu0 %v2328
          %3061 = vmatprep.mubr.bf16.mxu0 %v1145
          %3062 = vmatmul.mubr.bf16.gmra.mrb[0].mxu0 %v1144
          %v3063 = vpop.f32.mrb[0].mxu0
          %v3064 = vadd.f32 %v2991, %v3063
          %v3065 = vpop.f32.mrb[0].mxu0
          %v3066 = vadd.f32 %v2993, %v3065
          %v3067 = vpop.f32.mrb[0].mxu0
          %v3068 = vadd.f32 %v2995, %v3067
          %v3069 = vpop.f32.mrb[0].mxu0
          %v3070 = vadd.f32 %v2997, %v3069
          %3071 = vmatprep.mubr.bf16.mxu0 %v1164
          %3072 = vmatmul.mubr.bf16.gmra.mrb[0].mxu0 %v1163
          %v3073 = vpop.f32.mrb[0].mxu0
          %v3074 = vadd.f32 %v3001, %v3073
          %v3075 = vpop.f32.mrb[0].mxu0
          %v3076 = vadd.f32 %v3003, %v3075
          %v3077 = vpop.f32.mrb[0].mxu0
          %v3078 = vadd.f32 %v3005, %v3077
          %v3079 = vpop.f32.mrb[0].mxu0
          %v3080 = vadd.f32 %v3007, %v3079
          %3081 = vmatprep.mubr.bf16.mxu0 %v1183
          %3082 = vmatmul.mubr.bf16.gmra.mrb[0].mxu0 %v1182
          %v3083 = vpop.f32.mrb[0].mxu0
          %v3084 = vadd.f32 %v3011, %v3083
          %v3085 = vpop.f32.mrb[0].mxu0
          %v3086 = vadd.f32 %v3013, %v3085
          %v3087 = vpop.f32.mrb[0].mxu0
          %v3088 = vadd.f32 %v3015, %v3087
          %v3089 = vpop.f32.mrb[0].mxu0
          %v3090 = vadd.f32 %v3017, %v3089
          %3091 = vmatprep.mubr.bf16.mxu0 %v1202
          %3092 = vmatmul.mubr.bf16.gmra.mrb[0].mxu0 %v1201
          %v3093 = vpop.f32.mrb[0].mxu0
          %v3094 = vadd.f32 %v3021, %v3093
          %v3095 = vpop.f32.mrb[0].mxu0
          %v3096 = vadd.f32 %v3023, %v3095
          %v3097 = vpop.f32.mrb[0].mxu0
          %v3098 = vadd.f32 %v3025, %v3097
          %v3099 = vpop.f32.mrb[0].mxu0
          %v3100 = vadd.f32 %v3027, %v3099
          %3101 = vdwg.mxu0
          %3102 = vmatprep.subr.bf16.mxu0 %v2331
          %3103 = vmatpush1.bf16.msra.mxu0 %v2330
          %3104 = vmatprep.subr.bf16.mxu0 %v2333
          %3105 = vmatpush1.bf16.msra.mxu0 %v2332
          %3106 = vmatprep.subr.bf16.mxu0 %v2335
          %3107 = vmatpush1.bf16.msra.mxu0 %v2334
          %3108 = vmatprep.subr.bf16.mxu0 %v2337
          %3109 = vmatpush1.bf16.msra.mxu0 %v2336
          %3110 = vmatprep.subr.bf16.mxu0 %v2339
          %3111 = vmatpush1.bf16.msra.mxu0 %v2338
          %3112 = vmatprep.subr.bf16.mxu0 %v2341
          %3113 = vmatpush1.bf16.msra.mxu0 %v2340
          %3114 = vmatprep.subr.bf16.mxu0 %v2343
          %3115 = vmatpush1.bf16.msra.mxu0 %v2342
          %3116 = vmatprep.subr.bf16.mxu0 %v2345
          %3117 = vmatpush1.bf16.msra.mxu0 %v2344
          %3118 = vmatprep.subr.bf16.mxu0 %v2347
          %3119 = vmatpush1.bf16.msra.mxu0 %v2346
          %3120 = vmatprep.subr.bf16.mxu0 %v2349
          %3121 = vmatpush1.bf16.msra.mxu0 %v2348
          %3122 = vmatprep.subr.bf16.mxu0 %v2351
          %3123 = vmatpush1.bf16.msra.mxu0 %v2350
          %3124 = vmatprep.subr.bf16.mxu0 %v2353
          %3125 = vmatpush1.bf16.msra.mxu0 %v2352
          %3126 = vmatprep.subr.bf16.mxu0 %v2355
          %3127 = vmatpush1.bf16.msra.mxu0 %v2354
          %3128 = vmatprep.subr.bf16.mxu0 %v2357
          %3129 = vmatpush1.bf16.msra.mxu0 %v2356
          %3130 = vmatprep.subr.bf16.mxu0 %v2359
          %3131 = vmatpush1.bf16.msra.mxu0 %v2358
          %3132 = vmatprep.subr.bf16.mxu0 %v2361
          %3133 = vmatpush1.bf16.msra.mxu0 %v2360
          %3134 = vmatprep.mubr.bf16.mxu0 %v1147
          %3135 = vmatmul.mubr.bf16.gmra.mrb[0].mxu0 %v1146
          %v3136 = vpop.f32.mrb[0].mxu0
          %v3137 = vadd.f32 %v3064, %v3136
          %v3138 = vpop.f32.mrb[0].mxu0
          %v3139 = vadd.f32 %v3066, %v3138
          %v3140 = vpop.f32.mrb[0].mxu0
          %v3141 = vadd.f32 %v3068, %v3140
          %v3142 = vpop.f32.mrb[0].mxu0
          %v3143 = vadd.f32 %v3070, %v3142
          %3144 = vmatprep.mubr.bf16.mxu0 %v1166
          %3145 = vmatmul.mubr.bf16.gmra.mrb[0].mxu0 %v1165
          %v3146 = vpop.f32.mrb[0].mxu0
          %v3147 = vadd.f32 %v3074, %v3146
          %v3148 = vpop.f32.mrb[0].mxu0
          %v3149 = vadd.f32 %v3076, %v3148
          %v3150 = vpop.f32.mrb[0].mxu0
          %v3151 = vadd.f32 %v3078, %v3150
          %v3152 = vpop.f32.mrb[0].mxu0
          %v3153 = vadd.f32 %v3080, %v3152
          %3154 = vmatprep.mubr.bf16.mxu0 %v1185
          %3155 = vmatmul.mubr.bf16.gmra.mrb[0].mxu0 %v1184
          %v3156 = vpop.f32.mrb[0].mxu0
          %v3157 = vadd.f32 %v3084, %v3156
          %v3158 = vpop.f32.mrb[0].mxu0
          %v3159 = vadd.f32 %v3086, %v3158
          %v3160 = vpop.f32.mrb[0].mxu0
          %v3161 = vadd.f32 %v3088, %v3160
          %v3162 = vpop.f32.mrb[0].mxu0
          %v3163 = vadd.f32 %v3090, %v3162
          %3164 = vmatprep.mubr.bf16.mxu0 %v1204
          %3165 = vmatmul.mubr.bf16.gmra.mrb[0].mxu0 %v1203
          %v3166 = vpop.f32.mrb[0].mxu0
          %v3167 = vadd.f32 %v3094, %v3166
          %v3168 = vpop.f32.mrb[0].mxu0
          %v3169 = vadd.f32 %v3096, %v3168
          %v3170 = vpop.f32.mrb[0].mxu0
          %v3171 = vadd.f32 %v3098, %v3170
          %v3172 = vpop.f32.mrb[0].mxu0
          %v3173 = vadd.f32 %v3100, %v3172
          %3174 = vdwg.mxu0
          %3175 = vmatprep.subr.bf16.mxu0 %v2363
          %3176 = vmatpush1.bf16.msra.mxu0 %v2362
          %3177 = vmatprep.subr.bf16.mxu0 %v2365
          %3178 = vmatpush1.bf16.msra.mxu0 %v2364
          %3179 = vmatprep.subr.bf16.mxu0 %v2367
          %3180 = vmatpush1.bf16.msra.mxu0 %v2366
          %3181 = vmatprep.subr.bf16.mxu0 %v2369
          %3182 = vmatpush1.bf16.msra.mxu0 %v2368
          %3183 = vmatprep.subr.bf16.mxu0 %v2371
          %3184 = vmatpush1.bf16.msra.mxu0 %v2370
          %3185 = vmatprep.subr.bf16.mxu0 %v2373
          %3186 = vmatpush1.bf16.msra.mxu0 %v2372
          %3187 = vmatprep.subr.bf16.mxu0 %v2375
          %3188 = vmatpush1.bf16.msra.mxu0 %v2374
          %3189 = vmatprep.subr.bf16.mxu0 %v2377
          %3190 = vmatpush1.bf16.msra.mxu0 %v2376
          %3191 = vmatprep.subr.bf16.mxu0 %v2379
          %3192 = vmatpush1.bf16.msra.mxu0 %v2378
          %3193 = vmatprep.subr.bf16.mxu0 %v2381
          %3194 = vmatpush1.bf16.msra.mxu0 %v2380
          %3195 = vmatprep.subr.bf16.mxu0 %v2383
          %3196 = vmatpush1.bf16.msra.mxu0 %v2382
          %3197 = vmatprep.subr.bf16.mxu0 %v2385
          %3198 = vmatpush1.bf16.msra.mxu0 %v2384
          %3199 = vmatprep.subr.bf16.mxu0 %v2387
          %3200 = vmatpush1.bf16.msra.mxu0 %v2386
          %3201 = vmatprep.subr.bf16.mxu0 %v2389
          %3202 = vmatpush1.bf16.msra.mxu0 %v2388
          %3203 = vmatprep.subr.bf16.mxu0 %v2391
          %3204 = vmatpush1.bf16.msra.mxu0 %v2390
          %3205 = vmatprep.subr.bf16.mxu0 %v2393
          %3206 = vmatpush1.bf16.msra.mxu0 %v2392
          %3207 = vmatprep.mubr.bf16.mxu0 %v1149
          %3208 = vmatmul.mubr.bf16.gmra.mrb[0].mxu0 %v1148
          %v3209 = vpop.f32.mrb[0].mxu0
          %v3210 = vadd.f32 %v3137, %v3209
          %v3211 = vpop.f32.mrb[0].mxu0
          %v3212 = vadd.f32 %v3139, %v3211
          %v3213 = vpop.f32.mrb[0].mxu0
          %v3214 = vadd.f32 %v3141, %v3213
          %v3215 = vpop.f32.mrb[0].mxu0
          %v3216 = vadd.f32 %v3143, %v3215
          %3217 = vmatprep.mubr.bf16.mxu0 %v1168
          %3218 = vmatmul.mubr.bf16.gmra.mrb[0].mxu0 %v1167
          %v3219 = vpop.f32.mrb[0].mxu0
          %v3220 = vadd.f32 %v3147, %v3219
          %v3221 = vpop.f32.mrb[0].mxu0
          %v3222 = vadd.f32 %v3149, %v3221
          %v3223 = vpop.f32.mrb[0].mxu0
          %v3224 = vadd.f32 %v3151, %v3223
          %v3225 = vpop.f32.mrb[0].mxu0
          %v3226 = vadd.f32 %v3153, %v3225
          %3227 = vmatprep.mubr.bf16.mxu0 %v1187
          %3228 = vmatmul.mubr.bf16.gmra.mrb[0].mxu0 %v1186
          %v3229 = vpop.f32.mrb[0].mxu0
          %v3230 = vadd.f32 %v3157, %v3229
          %v3231 = vpop.f32.mrb[0].mxu0
          %v3232 = vadd.f32 %v3159, %v3231
          %v3233 = vpop.f32.mrb[0].mxu0
          %v3234 = vadd.f32 %v3161, %v3233
          %v3235 = vpop.f32.mrb[0].mxu0
          %v3236 = vadd.f32 %v3163, %v3235
          %3237 = vmatprep.mubr.bf16.mxu0 %v1206
          %3238 = vmatmul.mubr.bf16.gmra.mrb[0].mxu0 %v1205
          %v3239 = vpop.f32.mrb[0].mxu0
          %v3240 = vadd.f32 %v3167, %v3239
          %v3241 = vpop.f32.mrb[0].mxu0
          %v3242 = vadd.f32 %v3169, %v3241
          %v3243 = vpop.f32.mrb[0].mxu0
          %v3244 = vadd.f32 %v3171, %v3243
          %v3245 = vpop.f32.mrb[0].mxu0
          %v3246 = vadd.f32 %v3173, %v3245
          %3247 = vdwg.mxu0
          %3248 = vmatprep.subr.bf16.mxu0 %v2395
          %3249 = vmatpush1.bf16.msra.mxu0 %v2394
          %3250 = vmatprep.subr.bf16.mxu0 %v2397
          %3251 = vmatpush1.bf16.msra.mxu0 %v2396
          %3252 = vmatprep.subr.bf16.mxu0 %v2399
          %3253 = vmatpush1.bf16.msra.mxu0 %v2398
          %3254 = vmatprep.subr.bf16.mxu0 %v2401
          %3255 = vmatpush1.bf16.msra.mxu0 %v2400
          %3256 = vmatprep.subr.bf16.mxu0 %v2403
          %3257 = vmatpush1.bf16.msra.mxu0 %v2402
          %3258 = vmatprep.subr.bf16.mxu0 %v2405
          %3259 = vmatpush1.bf16.msra.mxu0 %v2404
          %3260 = vmatprep.subr.bf16.mxu0 %v2407
          %3261 = vmatpush1.bf16.msra.mxu0 %v2406
          %3262 = vmatprep.subr.bf16.mxu0 %v2409
          %3263 = vmatpush1.bf16.msra.mxu0 %v2408
          %3264 = vmatprep.subr.bf16.mxu0 %v2411
          %3265 = vmatpush1.bf16.msra.mxu0 %v2410
          %3266 = vmatprep.subr.bf16.mxu0 %v2413
          %3267 = vmatpush1.bf16.msra.mxu0 %v2412
          %3268 = vmatprep.subr.bf16.mxu0 %v2415
          %3269 = vmatpush1.bf16.msra.mxu0 %v2414
          %3270 = vmatprep.subr.bf16.mxu0 %v2417
          %3271 = vmatpush1.bf16.msra.mxu0 %v2416
          %3272 = vmatprep.subr.bf16.mxu0 %v2419
          %3273 = vmatpush1.bf16.msra.mxu0 %v2418
          %3274 = vmatprep.subr.bf16.mxu0 %v2421
          %3275 = vmatpush1.bf16.msra.mxu0 %v2420
          %3276 = vmatprep.subr.bf16.mxu0 %v2423
          %3277 = vmatpush1.bf16.msra.mxu0 %v2422
          %3278 = vmatprep.subr.bf16.mxu0 %v2425
          %3279 = vmatpush1.bf16.msra.mxu0 %v2424
          %3280 = vmatprep.mubr.bf16.mxu0 %v1151
          %3281 = vmatmul.mubr.bf16.gmra.mrb[0].mxu0 %v1150
          %v3282 = vpop.f32.mrb[0].mxu0
          %v3283 = vadd.f32 %v3210, %v3282
          %v3284 = vpop.f32.mrb[0].mxu0
          %v3285 = vadd.f32 %v3212, %v3284
          %v3286 = vpop.f32.mrb[0].mxu0
          %v3287 = vadd.f32 %v3214, %v3286
          %v3288 = vpop.f32.mrb[0].mxu0
          %v3289 = vadd.f32 %v3216, %v3288
          %3290 = vmatprep.mubr.bf16.mxu0 %v1170
          %3291 = vmatmul.mubr.bf16.gmra.mrb[0].mxu0 %v1169
          %v3292 = vpop.f32.mrb[0].mxu0
          %v3293 = vadd.f32 %v3220, %v3292
          %v3294 = vpop.f32.mrb[0].mxu0
          %v3295 = vadd.f32 %v3222, %v3294
          %v3296 = vpop.f32.mrb[0].mxu0
          %v3297 = vadd.f32 %v3224, %v3296
          %v3298 = vpop.f32.mrb[0].mxu0
          %v3299 = vadd.f32 %v3226, %v3298
          %3300 = vmatprep.mubr.bf16.mxu0 %v1189
          %3301 = vmatmul.mubr.bf16.gmra.mrb[0].mxu0 %v1188
          %v3302 = vpop.f32.mrb[0].mxu0
          %v3303 = vadd.f32 %v3230, %v3302
          %v3304 = vpop.f32.mrb[0].mxu0
          %v3305 = vadd.f32 %v3232, %v3304
          %v3306 = vpop.f32.mrb[0].mxu0
          %v3307 = vadd.f32 %v3234, %v3306
          %v3308 = vpop.f32.mrb[0].mxu0
          %v3309 = vadd.f32 %v3236, %v3308
          %3310 = vmatprep.mubr.bf16.mxu0 %v1208
          %3311 = vmatmul.mubr.bf16.gmra.mrb[0].mxu0 %v1207
          %v3312 = vpop.f32.mrb[0].mxu0
          %v3313 = vadd.f32 %v3240, %v3312
          %v3314 = vpop.f32.mrb[0].mxu0
          %v3315 = vadd.f32 %v3242, %v3314
          %v3316 = vpop.f32.mrb[0].mxu0
          %v3317 = vadd.f32 %v3244, %v3316
          %v3318 = vpop.f32.mrb[0].mxu0
          %v3319 = vadd.f32 %v3246, %v3318
          %3320 = vdwg.mxu0
          %3321 = vmatprep.subr.bf16.mxu0 %v2427
          %3322 = vmatpush1.bf16.msra.mxu0 %v2426
          %3323 = vmatprep.subr.bf16.mxu0 %v2429
          %3324 = vmatpush1.bf16.msra.mxu0 %v2428
          %3325 = vmatprep.subr.bf16.mxu0 %v2431
          %3326 = vmatpush1.bf16.msra.mxu0 %v2430
          %3327 = vmatprep.subr.bf16.mxu0 %v2433
          %3328 = vmatpush1.bf16.msra.mxu0 %v2432
          %3329 = vmatprep.subr.bf16.mxu0 %v2435
          %3330 = vmatpush1.bf16.msra.mxu0 %v2434
          %3331 = vmatprep.subr.bf16.mxu0 %v2437
          %3332 = vmatpush1.bf16.msra.mxu0 %v2436
          %3333 = vmatprep.subr.bf16.mxu0 %v2439
          %3334 = vmatpush1.bf16.msra.mxu0 %v2438
          %3335 = vmatprep.subr.bf16.mxu0 %v2441
          %3336 = vmatpush1.bf16.msra.mxu0 %v2440
          %3337 = vmatprep.subr.bf16.mxu0 %v2443
          %3338 = vmatpush1.bf16.msra.mxu0 %v2442
          %3339 = vmatprep.subr.bf16.mxu0 %v2445
          %3340 = vmatpush1.bf16.msra.mxu0 %v2444
          %3341 = vmatprep.subr.bf16.mxu0 %v2447
          %3342 = vmatpush1.bf16.msra.mxu0 %v2446
          %3343 = vmatprep.subr.bf16.mxu0 %v2449
          %3344 = vmatpush1.bf16.msra.mxu0 %v2448
          %3345 = vmatprep.subr.bf16.mxu0 %v2451
          %3346 = vmatpush1.bf16.msra.mxu0 %v2450
          %3347 = vmatprep.subr.bf16.mxu0 %v2453
          %3348 = vmatpush1.bf16.msra.mxu0 %v2452
          %3349 = vmatprep.subr.bf16.mxu0 %v2455
          %3350 = vmatpush1.bf16.msra.mxu0 %v2454
          %3351 = vmatprep.subr.bf16.mxu0 %v2457
          %3352 = vmatpush1.bf16.msra.mxu0 %v2456
          %3353 = vmatprep.mubr.bf16.mxu0 %v1153
          %3354 = vmatmul.mubr.bf16.gmra.mrb[0].mxu0 %v1152
          %v3355 = vpop.f32.mrb[0].mxu0
          %v3356 = vadd.f32 %v3283, %v3355
          %v3357 = vpop.f32.mrb[0].mxu0
          %v3358 = vadd.f32 %v3285, %v3357
          %v3359 = vpop.f32.mrb[0].mxu0
          %v3360 = vadd.f32 %v3287, %v3359
          %v3361 = vpop.f32.mrb[0].mxu0
          %v3362 = vadd.f32 %v3289, %v3361
          %3363 = vmatprep.mubr.bf16.mxu0 %v1172
          %3364 = vmatmul.mubr.bf16.gmra.mrb[0].mxu0 %v1171
          %v3365 = vpop.f32.mrb[0].mxu0
          %v3366 = vadd.f32 %v3293, %v3365
          %v3367 = vpop.f32.mrb[0].mxu0
          %v3368 = vadd.f32 %v3295, %v3367
          %v3369 = vpop.f32.mrb[0].mxu0
          %v3370 = vadd.f32 %v3297, %v3369
          %v3371 = vpop.f32.mrb[0].mxu0
          %v3372 = vadd.f32 %v3299, %v3371
          %3373 = vmatprep.mubr.bf16.mxu0 %v1191
          %3374 = vmatmul.mubr.bf16.gmra.mrb[0].mxu0 %v1190
          %v3375 = vpop.f32.mrb[0].mxu0
          %v3376 = vadd.f32 %v3303, %v3375
          %v3377 = vpop.f32.mrb[0].mxu0
          %v3378 = vadd.f32 %v3305, %v3377
          %v3379 = vpop.f32.mrb[0].mxu0
          %v3380 = vadd.f32 %v3307, %v3379
          %v3381 = vpop.f32.mrb[0].mxu0
          %v3382 = vadd.f32 %v3309, %v3381
          %3383 = vmatprep.mubr.bf16.mxu0 %v1210
          %3384 = vmatmul.mubr.bf16.gmra.mrb[0].mxu0 %v1209
          %v3385 = vpop.f32.mrb[0].mxu0
          %v3386 = vadd.f32 %v3313, %v3385
          %v3387 = vpop.f32.mrb[0].mxu0
          %v3388 = vadd.f32 %v3315, %v3387
          %v3389 = vpop.f32.mrb[0].mxu0
          %v3390 = vadd.f32 %v3317, %v3389
          %v3391 = vpop.f32.mrb[0].mxu0
          %v3392 = vadd.f32 %v3319, %v3391
          %3393 = vdwg.mxu0
          %3394 = vmatprep.subr.bf16.mxu0 %v2459
          %3395 = vmatpush1.bf16.msra.mxu0 %v2458
          %3396 = vmatprep.subr.bf16.mxu0 %v2461
          %3397 = vmatpush1.bf16.msra.mxu0 %v2460
          %3398 = vmatprep.subr.bf16.mxu0 %v2463
          %3399 = vmatpush1.bf16.msra.mxu0 %v2462
          %3400 = vmatprep.subr.bf16.mxu0 %v2465
          %3401 = vmatpush1.bf16.msra.mxu0 %v2464
          %3402 = vmatprep.subr.bf16.mxu0 %v2467
          %3403 = vmatpush1.bf16.msra.mxu0 %v2466
          %3404 = vmatprep.subr.bf16.mxu0 %v2469
          %3405 = vmatpush1.bf16.msra.mxu0 %v2468
          %3406 = vmatprep.subr.bf16.mxu0 %v2471
          %3407 = vmatpush1.bf16.msra.mxu0 %v2470
          %3408 = vmatprep.subr.bf16.mxu0 %v2473
          %3409 = vmatpush1.bf16.msra.mxu0 %v2472
          %3410 = vmatprep.subr.bf16.mxu0 %v2475
          %3411 = vmatpush1.bf16.msra.mxu0 %v2474
          %3412 = vmatprep.subr.bf16.mxu0 %v2477
          %3413 = vmatpush1.bf16.msra.mxu0 %v2476
          %3414 = vmatprep.subr.bf16.mxu0 %v2479
          %3415 = vmatpush1.bf16.msra.mxu0 %v2478
          %3416 = vmatprep.subr.bf16.mxu0 %v2481
          %3417 = vmatpush1.bf16.msra.mxu0 %v2480
          %3418 = vmatprep.subr.bf16.mxu0 %v2483
          %3419 = vmatpush1.bf16.msra.mxu0 %v2482
          %3420 = vmatprep.subr.bf16.mxu0 %v2485
          %3421 = vmatpush1.bf16.msra.mxu0 %v2484
          %3422 = vmatprep.subr.bf16.mxu0 %v2487
          %3423 = vmatpush1.bf16.msra.mxu0 %v2486
          %3424 = vmatprep.subr.bf16.mxu0 %v2489
          %3425 = vmatpush1.bf16.msra.mxu0 %v2488
          %3426 = vmatprep.mubr.bf16.mxu0 %v1155
          %3427 = vmatmul.mubr.bf16.gmra.mrb[0].mxu0 %v1154
          %v3428 = vpop.f32.mrb[0].mxu0
          %v3429 = vadd.f32 %v3356, %v3428
          %v3430 = vpop.f32.mrb[0].mxu0
          %v3431 = vadd.f32 %v3358, %v3430
          %v3432 = vpop.f32.mrb[0].mxu0
          %v3433 = vadd.f32 %v3360, %v3432
          %v3434 = vpop.f32.mrb[0].mxu0
          %v3435 = vadd.f32 %v3362, %v3434
          %3436 = vmatprep.mubr.bf16.mxu0 %v1174
          %3437 = vmatmul.mubr.bf16.gmra.mrb[0].mxu0 %v1173
          %v3438 = vpop.f32.mrb[0].mxu0
          %v3439 = vadd.f32 %v3366, %v3438
          %v3440 = vpop.f32.mrb[0].mxu0
          %v3441 = vadd.f32 %v3368, %v3440
          %v3442 = vpop.f32.mrb[0].mxu0
          %v3443 = vadd.f32 %v3370, %v3442
          %v3444 = vpop.f32.mrb[0].mxu0
          %v3445 = vadd.f32 %v3372, %v3444
          %3446 = vmatprep.mubr.bf16.mxu0 %v1193
          %3447 = vmatmul.mubr.bf16.gmra.mrb[0].mxu0 %v1192
          %v3448 = vpop.f32.mrb[0].mxu0
          %v3449 = vadd.f32 %v3376, %v3448
          %v3450 = vpop.f32.mrb[0].mxu0
          %v3451 = vadd.f32 %v3378, %v3450
          %v3452 = vpop.f32.mrb[0].mxu0
          %v3453 = vadd.f32 %v3380, %v3452
          %v3454 = vpop.f32.mrb[0].mxu0
          %v3455 = vadd.f32 %v3382, %v3454
          %3456 = vmatprep.mubr.bf16.mxu0 %v1212
          %3457 = vmatmul.mubr.bf16.gmra.mrb[0].mxu0 %v1211
          %v3458 = vpop.f32.mrb[0].mxu0
          %v3459 = vadd.f32 %v3386, %v3458
          %v3460 = vpop.f32.mrb[0].mxu0
          %v3461 = vadd.f32 %v3388, %v3460
          %v3462 = vpop.f32.mrb[0].mxu0
          %v3463 = vadd.f32 %v3390, %v3462
          %v3464 = vpop.f32.mrb[0].mxu0
          %v3465 = vadd.f32 %v3392, %v3464
          %3466 = vdwg.mxu0
          %3467 = vmatprep.subr.bf16.mxu0 %v2491
          %3468 = vmatpush1.bf16.msra.mxu0 %v2490
          %3469 = vmatprep.subr.bf16.mxu0 %v2493
          %3470 = vmatpush1.bf16.msra.mxu0 %v2492
          %3471 = vmatprep.subr.bf16.mxu0 %v2495
          %3472 = vmatpush1.bf16.msra.mxu0 %v2494
          %3473 = vmatprep.subr.bf16.mxu0 %v2497
          %3474 = vmatpush1.bf16.msra.mxu0 %v2496
          %3475 = vmatprep.subr.bf16.mxu0 %v2499
          %3476 = vmatpush1.bf16.msra.mxu0 %v2498
          %3477 = vmatprep.subr.bf16.mxu0 %v2501
          %3478 = vmatpush1.bf16.msra.mxu0 %v2500
          %3479 = vmatprep.subr.bf16.mxu0 %v2503
          %3480 = vmatpush1.bf16.msra.mxu0 %v2502
          %3481 = vmatprep.subr.bf16.mxu0 %v2505
          %3482 = vmatpush1.bf16.msra.mxu0 %v2504
          %3483 = vmatprep.subr.bf16.mxu0 0
          %3484 = vmatpush1.bf16.msra.mxu0 0
          %3485 = vmatprep.subr.bf16.mxu0 0
          %3486 = vmatpush1.bf16.msra.mxu0 0
          %3487 = vmatprep.subr.bf16.mxu0 0
          %3488 = vmatpush1.bf16.msra.mxu0 0
          %3489 = vmatprep.subr.bf16.mxu0 0
          %3490 = vmatpush1.bf16.msra.mxu0 0
          %3491 = vmatprep.subr.bf16.mxu0 0
          %3492 = vmatpush1.bf16.msra.mxu0 0
          %3493 = vmatprep.subr.bf16.mxu0 0
          %3494 = vmatpush1.bf16.msra.mxu0 0
          %3495 = vmatprep.subr.bf16.mxu0 0
          %3496 = vmatpush1.bf16.msra.mxu0 0
          %3497 = vmatprep.subr.bf16.mxu0 0
          %3498 = vmatpush1.bf16.msra.mxu0 0
          %3499 = vmatprep.mubr.bf16.mxu0 0
          %3500 = vmatmul.mubr.bf16.gmra.mrb[0].mxu0 %v1156
          %v3501 = vpop.f32.mrb[0].mxu0
          %v3502 = vadd.f32 %v3429, %v3501
          %v3503 = vpop.f32.mrb[0].mxu0
          %v3504 = vadd.f32 %v3431, %v3503
          %v3505 = vpop.f32.mrb[0].mxu0
          %v3506 = vadd.f32 %v3433, %v3505
          %v3507 = vpop.f32.mrb[0].mxu0
          %v3508 = vadd.f32 %v3435, %v3507
          %3509 = vmatprep.mubr.bf16.mxu0 0
          %3510 = vmatmul.mubr.bf16.gmra.mrb[0].mxu0 %v1175
          %v3511 = vpop.f32.mrb[0].mxu0
          %v3512 = vadd.f32 %v3439, %v3511
          %v3513 = vpop.f32.mrb[0].mxu0
          %v3514 = vadd.f32 %v3441, %v3513
          %v3515 = vpop.f32.mrb[0].mxu0
          %v3516 = vadd.f32 %v3443, %v3515
          %v3517 = vpop.f32.mrb[0].mxu0
          %v3518 = vadd.f32 %v3445, %v3517
          %3519 = vmatprep.mubr.bf16.mxu0 0
          %3520 = vmatmul.mubr.bf16.gmra.mrb[0].mxu0 %v1194
          %v3521 = vpop.f32.mrb[0].mxu0
          %v3522 = vadd.f32 %v3449, %v3521
          %v3523 = vpop.f32.mrb[0].mxu0
          %v3524 = vadd.f32 %v3451, %v3523
          %v3525 = vpop.f32.mrb[0].mxu0
          %v3526 = vadd.f32 %v3453, %v3525
          %v3527 = vpop.f32.mrb[0].mxu0
          %v3528 = vadd.f32 %v3455, %v3527
          %3529 = vmatprep.mubr.bf16.mxu0 0
          %3530 = vmatmul.mubr.bf16.gmra.mrb[0].mxu0 %v1213
          %v3531 = vpop.f32.mrb[0].mxu0
          %v3532 = vadd.f32 %v3459, %v3531
          %v3533 = vpop.f32.mrb[0].mxu0
          %v3534 = vadd.f32 %v3461, %v3533
          %v3535 = vpop.f32.mrb[0].mxu0
          %v3536 = vadd.f32 %v3463, %v3535
          %v3537 = vpop.f32.mrb[0].mxu0
          %v3538 = vadd.f32 %v3465, %v3537
          %3539 = vdwg.mxu0
          %v3540 = vpack.c.bf16 %v3506, %v3502
          %v3541 = vpack.c.bf16 %v3508, %v3504
          %v3542 = vpack.c.bf16 %v3516, %v3512
          %v3543 = vpack.c.bf16 %v3518, %v3514
          %v3544 = vpack.c.bf16 %v3526, %v3522
          %v3545 = vpack.c.bf16 %v3528, %v3524
          %v3546 = vpack.c.bf16 %v3536, %v3532
          %v3547 = vpack.c.bf16 %v3538, %v3534
          %3548 = vst [vmem:[#allocation2] sm:$0xff] %v3540
          %3549 = vst [vmem:[#allocation2 + $0x8] sm:$0xff] %v3541
          %3550 = vst [vmem:[#allocation2 + $0x10] sm:$0xff] %v3542
          %3551 = vst [vmem:[#allocation2 + $0x18] sm:$0xff] %v3543
          %3552 = vst [vmem:[#allocation2 + $0x20] sm:$0xff] %v3544
          %3553 = vst [vmem:[#allocation2 + $0x28] sm:$0xff] %v3545
          %3554 = vst [vmem:[#allocation2 + $0x30] sm:$0xff] %v3546
          %3555 = vst [vmem:[#allocation2 + $0x38] sm:$0xff] %v3547
        $region88: #{tpu_custom_call.1} parent=51 // pred_fallthru
          _
        %v3556 = vld [vmem:[%s446] sm:$0xf]
        %v3557 = vld [vmem:[%s446 + $0x4] sm:$0xf]
        %v3558 = vld [vmem:[%s446 + $0x8] sm:$0xf]
        %v3559 = vld [vmem:[%s446 + $0xc] sm:$0xf]
        %v3560 = vld [vmem:[%s446 + $0x10] sm:$0xf]
        %v3561 = vld [vmem:[%s446 + $0x14] sm:$0xf]
        %v3562 = vld [vmem:[%s446 + $0x18] sm:$0xf]
        %v3563 = vld [vmem:[%s446 + $0x1c] sm:$0xf]
        %v3564 = vld [vmem:[#allocation2] sm:$0xff]
        %v3565 = vld [vmem:[#allocation2 + $0x8] sm:$0xff]
        %v3566 = vld [vmem:[#allocation2 + $0x10] sm:$0xff]
        %v3567 = vld [vmem:[#allocation2 + $0x18] sm:$0xff]
        %v3568 = vld [vmem:[#allocation2 + $0x20] sm:$0xff]
        %v3569 = vld [vmem:[#allocation2 + $0x28] sm:$0xff]
        %v3570 = vld [vmem:[#allocation2 + $0x30] sm:$0xff]
        %v3571 = vld [vmem:[#allocation2 + $0x38] sm:$0xff]
        %v3580 = vunpack.c.l.b16 %v3556
        %v3581 = vunpack.c.l.b16 %v3557
        %v3582 = vunpack.c.l.b16 %v3558
        %v3583 = vunpack.c.l.b16 %v3559
        %v3584 = vunpack.c.l.b16 %v3560
        %v3585 = vunpack.c.l.b16 %v3561
        %v3586 = vunpack.c.l.b16 %v3562
        %v3587 = vunpack.c.l.b16 %v3563
        %v3588 = vpack.c.b16 %v3581, %v3580
        %v3589 = vpack.c.b16 %v3583, %v3582
        %v3590 = vpack.c.b16 %v3585, %v3584
        %v3591 = vpack.c.b16 %v3587, %v3586
        %vm3592 = vcmask 523264
        %v3594 = vsel %vm3592, %v3588, 0
        %v3597 = vsel %vm3592, %v3589, 0
        %v3600 = vsel %vm3592, %v3590, 0
        %v3603 = vsel %vm3592, %v3591, 0
        %3605 = vmatprep.subr.bf16.mxu0 %v3565
        %3606 = vmatpush1.bf16.msra.mxu0 %v3564
        %3607 = vmatprep.subr.bf16.mxu0 %v3567
        %3608 = vmatpush1.bf16.msra.mxu0 %v3566
        %3609 = vmatprep.subr.bf16.mxu0 %v3569
        %3610 = vmatpush1.bf16.msra.mxu0 %v3568
        %3611 = vmatprep.subr.bf16.mxu0 %v3571
        %3612 = vmatpush1.bf16.msra.mxu0 %v3570
        %3613 = vmatprep.subr.bf16.mxu0 0
        %3614 = vmatpush1.bf16.msra.mxu0 0
        %3615 = vmatprep.subr.bf16.mxu0 0
        %3616 = vmatpush1.bf16.msra.mxu0 0
        %3617 = vmatprep.subr.bf16.mxu0 0
        %3618 = vmatpush1.bf16.msra.mxu0 0
        %3619 = vmatprep.subr.bf16.mxu0 0
        %3620 = vmatpush1.bf16.msra.mxu0 0
        %3621 = vmatprep.subr.bf16.mxu0 0
        %3622 = vmatpush1.bf16.msra.mxu0 0
        %3623 = vmatprep.subr.bf16.mxu0 0
        %3624 = vmatpush1.bf16.msra.mxu0 0
        %3625 = vmatprep.subr.bf16.mxu0 0
        %3626 = vmatpush1.bf16.msra.mxu0 0
        %3627 = vmatprep.subr.bf16.mxu0 0
        %3628 = vmatpush1.bf16.msra.mxu0 0
        %3629 = vmatprep.subr.bf16.mxu0 0
        %3630 = vmatpush1.bf16.msra.mxu0 0
        %3631 = vmatprep.subr.bf16.mxu0 0
        %3632 = vmatpush1.bf16.msra.mxu0 0
        %3633 = vmatprep.subr.bf16.mxu0 0
        %3634 = vmatpush1.bf16.msra.mxu0 0
        %3635 = vmatprep.subr.bf16.mxu0 0
        %3636 = vmatpush1.bf16.msra.mxu0 0
        %3637 = vmatprep.mubr.bf16.mxu0 0
        %3638 = vmatmul.mubr.bf16.gmra.mrb[0].mxu0 %v3594
        %v3639 = vpop.f32.mrb[0].mxu0
        %v3640 = vadd.f32 0.0, %v3639
        %v3641 = vpop.f32.mrb[0].mxu0
        %v3642 = vadd.f32 0.0, %v3641
        %v3643 = vpop.f32.mrb[0].mxu0
        %v3644 = vadd.f32 0.0, %v3643
        %v3645 = vpop.f32.mrb[0].mxu0
        %v3646 = vadd.f32 0.0, %v3645
        %3647 = vmatprep.mubr.bf16.mxu0 0
        %3648 = vmatmul.mubr.bf16.gmra.mrb[0].mxu0 %v3597
        %v3649 = vpop.f32.mrb[0].mxu0
        %v3650 = vadd.f32 0.0, %v3649
        %v3651 = vpop.f32.mrb[0].mxu0
        %v3652 = vadd.f32 0.0, %v3651
        %v3653 = vpop.f32.mrb[0].mxu0
        %v3654 = vadd.f32 0.0, %v3653
        %v3655 = vpop.f32.mrb[0].mxu0
        %v3656 = vadd.f32 0.0, %v3655
        %3657 = vmatprep.mubr.bf16.mxu0 0
        %3658 = vmatmul.mubr.bf16.gmra.mrb[0].mxu0 %v3600
        %v3659 = vpop.f32.mrb[0].mxu0
        %v3660 = vadd.f32 0.0, %v3659
        %v3661 = vpop.f32.mrb[0].mxu0
        %v3662 = vadd.f32 0.0, %v3661
        %v3663 = vpop.f32.mrb[0].mxu0
        %v3664 = vadd.f32 0.0, %v3663
        %v3665 = vpop.f32.mrb[0].mxu0
        %v3666 = vadd.f32 0.0, %v3665
        %3667 = vmatprep.mubr.bf16.mxu0 0
        %3668 = vmatmul.mubr.bf16.gmra.mrb[0].mxu0 %v3603
        %v3669 = vpop.f32.mrb[0].mxu0
        %v3670 = vadd.f32 0.0, %v3669
        %v3671 = vpop.f32.mrb[0].mxu0
        %v3672 = vadd.f32 0.0, %v3671
        %v3673 = vpop.f32.mrb[0].mxu0
        %v3674 = vadd.f32 0.0, %v3673
        %v3675 = vpop.f32.mrb[0].mxu0
        %v3676 = vadd.f32 0.0, %v3675
        %3677 = vdwg.mxu0
        %v3678 = vmul.f32 %v3640, 0.25
        %v3679 = vmul.f32 %v3642, 0.25
        %v3680 = vmul.f32 %v3644, 0.25
        %v3681 = vmul.f32 %v3646, 0.25
        %v3682 = vmul.f32 %v3650, 0.25
        %v3683 = vmul.f32 %v3652, 0.25
        %v3684 = vmul.f32 %v3654, 0.25
        %v3685 = vmul.f32 %v3656, 0.25
        %v3686 = vmul.f32 %v3660, 0.25
        %v3687 = vmul.f32 %v3662, 0.25
        %v3688 = vmul.f32 %v3664, 0.25
        %v3689 = vmul.f32 %v3666, 0.25
        %v3690 = vmul.f32 %v3670, 0.25
        %v3691 = vmul.f32 %v3672, 0.25
        %v3692 = vmul.f32 %v3674, 0.25
        %v3693 = vmul.f32 %v3676, 0.25
        %v3694 = vmax.f32 %v3640, %v3678
        %v3695 = vmax.f32 %v3642, %v3679
        %v3696 = vmax.f32 %v3644, %v3680
        %v3697 = vmax.f32 %v3646, %v3681
        %v3698 = vmax.f32 %v3650, %v3682
        %v3699 = vmax.f32 %v3652, %v3683
        %v3700 = vmax.f32 %v3654, %v3684
        %v3701 = vmax.f32 %v3656, %v3685
        %v3702 = vmax.f32 %v3660, %v3686
        %v3703 = vmax.f32 %v3662, %v3687
        %v3704 = vmax.f32 %v3664, %v3688
        %v3705 = vmax.f32 %v3666, %v3689
        %v3706 = vmax.f32 %v3670, %v3690
        %v3707 = vmax.f32 %v3672, %v3691
        %v3708 = vmax.f32 %v3674, %v3692
        %v3709 = vmax.f32 %v3676, %v3693
        %3710 = vst [vmem:[%s494] sm:$0xff] %v3694
        %3711 = vst [vmem:[%s494 + $0x8] sm:$0xff] %v3695
        %3712 = vst [vmem:[%s494 + $0x10] sm:$0xff] %v3696
        %3713 = vst [vmem:[%s494 + $0x18] sm:$0xff] %v3697
        %3714 = vst [vmem:[%s494 + $0x20] sm:$0xff] %v3698
        %3715 = vst [vmem:[%s494 + $0x28] sm:$0xff] %v3699
        %3716 = vst [vmem:[%s494 + $0x30] sm:$0xff] %v3700
        %3717 = vst [vmem:[%s494 + $0x38] sm:$0xff] %v3701
        %3718 = vst [vmem:[%s494 + $0x40] sm:$0xff] %v3702
        %3719 = vst [vmem:[%s494 + $0x48] sm:$0xff] %v3703
        %3720 = vst [vmem:[%s494 + $0x50] sm:$0xff] %v3704
        %3721 = vst [vmem:[%s494 + $0x58] sm:$0xff] %v3705
        %3722 = vst [vmem:[%s494 + $0x60] sm:$0xff] %v3706
        %3723 = vst [vmem:[%s494 + $0x68] sm:$0xff] %v3707
        %3724 = vst [vmem:[%s494 + $0x70] sm:$0xff] %v3708
        %3725 = vst [vmem:[%s494 + $0x78] sm:$0xff] %v3709
        %v3726 = vpack.c.bf16 %v3696, %v3694
        %v3727 = vpack.c.bf16 %v3697, %v3695
        %v3728 = vpack.c.bf16 %v3700, %v3698
        %v3729 = vpack.c.bf16 %v3701, %v3699
        %v3730 = vpack.c.bf16 %v3704, %v3702
        %v3731 = vpack.c.bf16 %v3705, %v3703
        %v3732 = vpack.c.bf16 %v3708, %v3706
        %v3733 = vpack.c.bf16 %v3709, %v3707
        %v3734 = vld [vmem:[#allocation11] sm:$0xf]
        %v3735 = vld [vmem:[#allocation11 + $0x4] sm:$0xf]
        %v3736 = vld [vmem:[#allocation11 + $0x8] sm:$0xf]
        %v3737 = vld [vmem:[#allocation11 + $0xc] sm:$0xf]
        %v3738 = vld [vmem:[#allocation11 + $0x10] sm:$0xf]
        %v3739 = vld [vmem:[#allocation11 + $0x14] sm:$0xf]
        %v3740 = vld [vmem:[#allocation11 + $0x18] sm:$0xf]
        %v3741 = vld [vmem:[#allocation11 + $0x1c] sm:$0xf]
        %v3742 = vld [vmem:[#allocation11 + $0x20] sm:$0xf]
        %v3743 = vld [vmem:[#allocation11 + $0x24] sm:$0xf]
        %v3744 = vld [vmem:[#allocation11 + $0x28] sm:$0xf]
        %v3745 = vld [vmem:[#allocation11 + $0x2c] sm:$0xf]
        %v3746 = vld [vmem:[#allocation11 + $0x30] sm:$0xf]
        %v3747 = vld [vmem:[#allocation11 + $0x34] sm:$0xf]
        %v3748 = vld [vmem:[#allocation11 + $0x38] sm:$0xf]
        %v3749 = vld [vmem:[#allocation11 + $0x3c] sm:$0xf]
        %v3750 = vld [vmem:[#allocation11 + $0x40] sm:$0xf]
        %v3751 = vld [vmem:[#allocation11 + $0x44] sm:$0xf]
        %v3752 = vld [vmem:[#allocation11 + $0x48] sm:$0xf]
        %v3753 = vld [vmem:[#allocation11 + $0x4c] sm:$0xf]
        %v3754 = vld [vmem:[#allocation11 + $0x50] sm:$0xf]
        %v3755 = vld [vmem:[#allocation11 + $0x54] sm:$0xf]
        %v3756 = vld [vmem:[#allocation11 + $0x58] sm:$0xf]
        %v3757 = vld [vmem:[#allocation11 + $0x5c] sm:$0xf]
        %v3758 = vld [vmem:[#allocation11 + $0x60] sm:$0xf]
        %v3759 = vld [vmem:[#allocation11 + $0x64] sm:$0xf]
        %v3760 = vld [vmem:[#allocation11 + $0x68] sm:$0xf]
        %v3761 = vld [vmem:[#allocation11 + $0x6c] sm:$0xf]
        %v3762 = vld [vmem:[#allocation11 + $0x70] sm:$0xf]
        %v3763 = vld [vmem:[#allocation11 + $0x74] sm:$0xf]
        %v3764 = vld [vmem:[#allocation11 + $0x78] sm:$0xf]
        %v3765 = vld [vmem:[#allocation11 + $0x7c] sm:$0xf]
        %v3766 = vld [vmem:[#allocation12] sm:$0x1]
        %v3768 = vlaneseq
        %v3769 = vshrl.u32 %v3768, 7
        %v3770 = vsub.s32 0, %v3769
        %v3771 = vrot.slane %v3766, %v3770
        %v3805 = vunpack.c.l.b16 %v3734
        %v3806 = vunpack.c.l.b16 %v3735
        %v3807 = vunpack.c.l.b16 %v3736
        %v3808 = vunpack.c.l.b16 %v3737
        %v3809 = vunpack.c.l.b16 %v3738
        %v3810 = vunpack.c.l.b16 %v3739
        %v3811 = vunpack.c.l.b16 %v3740
        %v3812 = vunpack.c.l.b16 %v3741
        %v3813 = vunpack.c.l.b16 %v3742
        %v3814 = vunpack.c.l.b16 %v3743
        %v3815 = vunpack.c.l.b16 %v3744
        %v3816 = vunpack.c.l.b16 %v3745
        %v3817 = vunpack.c.l.b16 %v3746
        %v3818 = vunpack.c.l.b16 %v3747
        %v3819 = vunpack.c.l.b16 %v3748
        %v3820 = vunpack.c.l.b16 %v3749
        %v3821 = vunpack.c.l.b16 %v3750
        %v3822 = vunpack.c.l.b16 %v3751
        %v3823 = vunpack.c.l.b16 %v3752
        %v3824 = vunpack.c.l.b16 %v3753
        %v3825 = vunpack.c.l.b16 %v3754
        %v3826 = vunpack.c.l.b16 %v3755
        %v3827 = vunpack.c.l.b16 %v3756
        %v3828 = vunpack.c.l.b16 %v3757
        %v3829 = vunpack.c.l.b16 %v3758
        %v3830 = vunpack.c.l.b16 %v3759
        %v3831 = vunpack.c.l.b16 %v3760
        %v3832 = vunpack.c.l.b16 %v3761
        %v3833 = vunpack.c.l.b16 %v3762
        %v3834 = vunpack.c.l.b16 %v3763
        %v3835 = vunpack.c.l.b16 %v3764
        %v3836 = vunpack.c.l.b16 %v3765
        %v3837 = vpack.c.b16 %v3806, %v3805
        %v3838 = vpack.c.b16 %v3808, %v3807
        %v3839 = vpack.c.b16 %v3810, %v3809
        %v3840 = vpack.c.b16 %v3812, %v3811
        %v3841 = vpack.c.b16 %v3814, %v3813
        %v3842 = vpack.c.b16 %v3816, %v3815
        %v3843 = vpack.c.b16 %v3818, %v3817
        %v3844 = vpack.c.b16 %v3820, %v3819
        %v3845 = vpack.c.b16 %v3822, %v3821
        %v3846 = vpack.c.b16 %v3824, %v3823
        %v3847 = vpack.c.b16 %v3826, %v3825
        %v3848 = vpack.c.b16 %v3828, %v3827
        %v3849 = vpack.c.b16 %v3830, %v3829
        %v3850 = vpack.c.b16 %v3832, %v3831
        %v3851 = vpack.c.b16 %v3834, %v3833
        %v3852 = vpack.c.b16 %v3836, %v3835
        %3869 = vmatprep.subr.bf16.mxu0 0
        %3870 = vmatpush1.bf16.msra.mxu0 %v3837
        %3871 = vmatprep.subr.bf16.mxu0 0
        %3872 = vmatpush1.bf16.msra.mxu0 %v3838
        %3873 = vmatprep.subr.bf16.mxu0 0
        %3874 = vmatpush1.bf16.msra.mxu0 %v3839
        %3875 = vmatprep.subr.bf16.mxu0 0
        %3876 = vmatpush1.bf16.msra.mxu0 %v3840
        %3877 = vmatprep.subr.bf16.mxu0 0
        %3878 = vmatpush1.bf16.msra.mxu0 %v3841
        %3879 = vmatprep.subr.bf16.mxu0 0
        %3880 = vmatpush1.bf16.msra.mxu0 %v3842
        %3881 = vmatprep.subr.bf16.mxu0 0
        %3882 = vmatpush1.bf16.msra.mxu0 %v3843
        %3883 = vmatprep.subr.bf16.mxu0 0
        %3884 = vmatpush1.bf16.msra.mxu0 %v3844
        %3885 = vmatprep.subr.bf16.mxu0 0
        %3886 = vmatpush1.bf16.msra.mxu0 %v3845
        %3887 = vmatprep.subr.bf16.mxu0 0
        %3888 = vmatpush1.bf16.msra.mxu0 %v3846
        %3889 = vmatprep.subr.bf16.mxu0 0
        %3890 = vmatpush1.bf16.msra.mxu0 %v3847
        %3891 = vmatprep.subr.bf16.mxu0 0
        %3892 = vmatpush1.bf16.msra.mxu0 %v3848
        %3893 = vmatprep.subr.bf16.mxu0 0
        %3894 = vmatpush1.bf16.msra.mxu0 %v3849
        %3895 = vmatprep.subr.bf16.mxu0 0
        %3896 = vmatpush1.bf16.msra.mxu0 %v3850
        %3897 = vmatprep.subr.bf16.mxu0 0
        %3898 = vmatpush1.bf16.msra.mxu0 %v3851
        %3899 = vmatprep.subr.bf16.mxu0 0
        %3900 = vmatpush1.bf16.msra.mxu0 %v3852
        %3901 = vmatprep.mubr.bf16.mxu0 %v3727
        %3902 = vmatmul.mubr.bf16.gmra.mrb[0].mxu0 %v3726
        %v3903 = vpop.f32.mrb[0].mxu0
        %v3904 = vadd.f32 %v3771, %v3903
        %v3905 = vpop.f32.mrb[0].mxu0
        %v3906 = vpop.f32.mrb[0].mxu0
        %v3907 = vadd.f32 %v3771, %v3906
        %v3908 = vpop.f32.mrb[0].mxu0
        %3909 = vmatprep.mubr.bf16.mxu0 %v3729
        %3910 = vmatmul.mubr.bf16.gmra.mrb[0].mxu0 %v3728
        %v3911 = vpop.f32.mrb[0].mxu0
        %v3912 = vadd.f32 %v3771, %v3911
        %v3913 = vpop.f32.mrb[0].mxu0
        %v3914 = vpop.f32.mrb[0].mxu0
        %v3915 = vadd.f32 %v3771, %v3914
        %v3916 = vpop.f32.mrb[0].mxu0
        %3917 = vmatprep.mubr.bf16.mxu0 %v3731
        %3918 = vmatmul.mubr.bf16.gmra.mrb[0].mxu0 %v3730
        %v3919 = vpop.f32.mrb[0].mxu0
        %v3920 = vadd.f32 %v3771, %v3919
        %v3921 = vpop.f32.mrb[0].mxu0
        %v3922 = vpop.f32.mrb[0].mxu0
        %v3923 = vadd.f32 %v3771, %v3922
        %v3924 = vpop.f32.mrb[0].mxu0
        %3925 = vmatprep.mubr.bf16.mxu0 %v3733
        %3926 = vmatmul.mubr.bf16.gmra.mrb[0].mxu0 %v3732
        %v3927 = vpop.f32.mrb[0].mxu0
        %v3928 = vadd.f32 %v3771, %v3927
        %v3929 = vpop.f32.mrb[0].mxu0
        %v3930 = vpop.f32.mrb[0].mxu0
        %v3931 = vadd.f32 %v3771, %v3930
        %v3932 = vpop.f32.mrb[0].mxu0
        %3933 = vdwg.mxu0
        %vm3934 = vcmp.gt.f32.partialorder %v3904, 0.0
        %vm3935 = vcmp.gt.f32.partialorder %v3907, 0.0
        %vm3936 = vcmp.gt.f32.partialorder %v3912, 0.0
        %vm3937 = vcmp.gt.f32.partialorder %v3915, 0.0
        %vm3938 = vcmp.gt.f32.partialorder %v3920, 0.0
        %vm3939 = vcmp.gt.f32.partialorder %v3923, 0.0
        %vm3940 = vcmp.gt.f32.partialorder %v3928, 0.0
        %vm3941 = vcmp.gt.f32.partialorder %v3931, 0.0
        %v3942 = vmin.f32 %v3904, 0.0
        %v3943 = vmin.f32 %v3907, 0.0
        %v3944 = vmin.f32 %v3912, 0.0
        %v3945 = vmin.f32 %v3915, 0.0
        %v3946 = vmin.f32 %v3920, 0.0
        %v3947 = vmin.f32 %v3923, 0.0
        %v3948 = vmin.f32 %v3928, 0.0
        %v3949 = vmin.f32 %v3931, 0.0
        %v3950 = vmul.f32 %v3942, 1.442695
        %v3951 = vpow.pop %v3950
        %v3952 = vmul.f32 %v3943, 1.442695
        %v3953 = vpow.pop %v3952
        %v3954 = vmul.f32 %v3944, 1.442695
        %v3955 = vpow.pop %v3954
        %v3956 = vmul.f32 %v3945, 1.442695
        %v3957 = vpow.pop %v3956
        %v3958 = vmul.f32 %v3946, 1.442695
        %v3959 = vpow.pop %v3958
        %v3960 = vmul.f32 %v3947, 1.442695
        %v3961 = vpow.pop %v3960
        %v3962 = vmul.f32 %v3948, 1.442695
        %v3963 = vpow.pop %v3962
        %v3964 = vmul.f32 %v3949, 1.442695
        %v3965 = vpow.pop %v3964
        %v3966 = vsub.f32 %v3951, 1.0
        %v3967 = vsub.f32 %v3953, 1.0
        %v3968 = vsub.f32 %v3955, 1.0
        %v3969 = vsub.f32 %v3957, 1.0
        %v3970 = vsub.f32 %v3959, 1.0
        %v3971 = vsub.f32 %v3961, 1.0
        %v3972 = vsub.f32 %v3963, 1.0
        %v3973 = vsub.f32 %v3965, 1.0
        %v3974 = vsel %vm3934, %v3904, %v3966
        %v3975 = vsel %vm3935, %v3907, %v3967
        %v3976 = vsel %vm3936, %v3912, %v3968
        %v3977 = vsel %vm3937, %v3915, %v3969
        %v3978 = vsel %vm3938, %v3920, %v3970
        %v3979 = vsel %vm3939, %v3923, %v3971
        %v3980 = vsel %vm3940, %v3928, %v3972
        %v3981 = vsel %vm3941, %v3931, %v3973
        %v3982 = vpack.c.bf16 %v3975, %v3974
        %v3983 = vpack.c.bf16 %v3977, %v3976
        %v3984 = vpack.c.bf16 %v3979, %v3978
        %v3985 = vpack.c.bf16 %v3981, %v3980
        %v3986 = vld [vmem:[#allocation14] sm:$0xff]
        %v3987 = vld [vmem:[#allocation14 + $0x8] sm:$0xff]
        %v3988 = vld [vmem:[#allocation14 + $0x10] sm:$0xff]
        %v3989 = vld [vmem:[#allocation14 + $0x18] sm:$0xff]
        %v3990 = vld [vmem:[#allocation14 + $0x20] sm:$0xff]
        %v3991 = vld [vmem:[#allocation14 + $0x28] sm:$0xff]
        %v3992 = vld [vmem:[#allocation14 + $0x30] sm:$0xff]
        %v3993 = vld [vmem:[#allocation14 + $0x38] sm:$0xff]
        %v3994 = vld [vmem:[#allocation14 + $0x40] sm:$0xff]
        %v3995 = vld [vmem:[#allocation14 + $0x48] sm:$0xff]
        %v3996 = vld [vmem:[#allocation14 + $0x50] sm:$0xff]
        %v3997 = vld [vmem:[#allocation14 + $0x58] sm:$0xff]
        %v3998 = vld [vmem:[#allocation14 + $0x60] sm:$0xff]
        %v3999 = vld [vmem:[#allocation14 + $0x68] sm:$0xff]
        %v4000 = vld [vmem:[#allocation14 + $0x70] sm:$0xff]
        %v4001 = vld [vmem:[#allocation14 + $0x78] sm:$0xff]
        %v4002 = vld [vmem:[#allocation15] sm:$0x3]
        %v4004 = vlaneseq
        %v4005 = vshrl.u32 %v4004, 7
        %v4006 = vsub.s32 0, %v4005
        %v4007 = vrot.slane %v4002, %v4006
        %v4008 = vlaneseq
        %v4009 = vshrl.u32 %v4008, 7
        %v4010 = vsub.s32 1, %v4009
        %v4011 = vrot.slane %v4002, %v4010
        %v4030 = vunpack.c.l.b16 %v3986
        %v4031 = vunpack.c.h.b16 %v3986
        %v4032 = vunpack.c.l.b16 %v3987
        %v4033 = vunpack.c.h.b16 %v3987
        %v4034 = vunpack.c.l.b16 %v3988
        %v4035 = vunpack.c.h.b16 %v3988
        %v4036 = vunpack.c.l.b16 %v3989
        %v4037 = vunpack.c.h.b16 %v3989
        %v4038 = vunpack.c.l.b16 %v3990
        %v4039 = vunpack.c.h.b16 %v3990
        %v4040 = vunpack.c.l.b16 %v3991
        %v4041 = vunpack.c.h.b16 %v3991
        %v4042 = vunpack.c.l.b16 %v3992
        %v4043 = vunpack.c.h.b16 %v3992
        %v4044 = vunpack.c.l.b16 %v3993
        %v4045 = vunpack.c.h.b16 %v3993
        %v4046 = vunpack.c.l.b16 %v3994
        %v4047 = vunpack.c.h.b16 %v3994
        %v4048 = vunpack.c.l.b16 %v3995
        %v4049 = vunpack.c.h.b16 %v3995
        %v4050 = vunpack.c.l.b16 %v3996
        %v4051 = vunpack.c.h.b16 %v3996
        %v4052 = vunpack.c.l.b16 %v3997
        %v4053 = vunpack.c.h.b16 %v3997
        %v4054 = vunpack.c.l.b16 %v3998
        %v4055 = vunpack.c.h.b16 %v3998
        %v4056 = vunpack.c.l.b16 %v3999
        %v4057 = vunpack.c.h.b16 %v3999
        %v4058 = vunpack.c.l.b16 %v4000
        %v4059 = vunpack.c.h.b16 %v4000
        %v4060 = vunpack.c.l.b16 %v4001
        %v4061 = vunpack.c.h.b16 %v4001
        %v4062 = vpack.c.b16 %v4032, %v4030
        %v4063 = vpack.c.b16 %v4033, %v4031
        %v4064 = vpack.c.b16 %v4036, %v4034
        %v4065 = vpack.c.b16 %v4037, %v4035
        %v4066 = vpack.c.b16 %v4040, %v4038
        %v4067 = vpack.c.b16 %v4041, %v4039
        %v4068 = vpack.c.b16 %v4044, %v4042
        %v4069 = vpack.c.b16 %v4045, %v4043
        %v4070 = vpack.c.b16 %v4048, %v4046
        %v4071 = vpack.c.b16 %v4049, %v4047
        %v4072 = vpack.c.b16 %v4052, %v4050
        %v4073 = vpack.c.b16 %v4053, %v4051
        %v4074 = vpack.c.b16 %v4056, %v4054
        %v4075 = vpack.c.b16 %v4057, %v4055
        %v4076 = vpack.c.b16 %v4060, %v4058
        %v4077 = vpack.c.b16 %v4061, %v4059
        %4094 = vmatprep.subr.bf16.mxu0 %v4063
        %4095 = vmatpush1.bf16.msra.mxu0 %v4062
        %4096 = vmatprep.subr.bf16.mxu0 %v4065
        %4097 = vmatpush1.bf16.msra.mxu0 %v4064
        %4098 = vmatprep.subr.bf16.mxu0 %v4067
        %4099 = vmatpush1.bf16.msra.mxu0 %v4066
        %4100 = vmatprep.subr.bf16.mxu0 %v4069
        %4101 = vmatpush1.bf16.msra.mxu0 %v4068
        %4102 = vmatprep.subr.bf16.mxu0 %v4071
        %4103 = vmatpush1.bf16.msra.mxu0 %v4070
        %4104 = vmatprep.subr.bf16.mxu0 %v4073
        %4105 = vmatpush1.bf16.msra.mxu0 %v4072
        %4106 = vmatprep.subr.bf16.mxu0 %v4075
        %4107 = vmatpush1.bf16.msra.mxu0 %v4074
        %4108 = vmatprep.subr.bf16.mxu0 %v4077
        %4109 = vmatpush1.bf16.msra.mxu0 %v4076
        %4110 = vmatprep.subr.bf16.mxu0 0
        %4111 = vmatpush1.bf16.msra.mxu0 0
        %4112 = vmatprep.subr.bf16.mxu0 0
        %4113 = vmatpush1.bf16.msra.mxu0 0
        %4114 = vmatprep.subr.bf16.mxu0 0
        %4115 = vmatpush1.bf16.msra.mxu0 0
        %4116 = vmatprep.subr.bf16.mxu0 0
        %4117 = vmatpush1.bf16.msra.mxu0 0
        %4118 = vmatprep.subr.bf16.mxu0 0
        %4119 = vmatpush1.bf16.msra.mxu0 0
        %4120 = vmatprep.subr.bf16.mxu0 0
        %4121 = vmatpush1.bf16.msra.mxu0 0
        %4122 = vmatprep.subr.bf16.mxu0 0
        %4123 = vmatpush1.bf16.msra.mxu0 0
        %4124 = vmatprep.subr.bf16.mxu0 0
        %4125 = vmatpush1.bf16.msra.mxu0 0
        %4126 = vmatprep.mubr.bf16.mxu0 0
        %4127 = vmatmul.mubr.bf16.gmra.mrb[0].mxu0 %v3982
        %v4128 = vpop.f32.mrb[0].mxu0
        %v4129 = vadd.f32 %v4007, %v4128
        %v4130 = vpop.f32.mrb[0].mxu0
        %v4131 = vadd.f32 %v4011, %v4130
        %v4132 = vpop.f32.mrb[0].mxu0
        %v4133 = vadd.f32 %v4007, %v4132
        %v4134 = vpop.f32.mrb[0].mxu0
        %v4135 = vadd.f32 %v4011, %v4134
        %4136 = vmatprep.mubr.bf16.mxu0 0
        %4137 = vmatmul.mubr.bf16.gmra.mrb[0].mxu0 %v3983
        %v4138 = vpop.f32.mrb[0].mxu0
        %v4139 = vadd.f32 %v4007, %v4138
        %v4140 = vpop.f32.mrb[0].mxu0
        %v4141 = vadd.f32 %v4011, %v4140
        %v4142 = vpop.f32.mrb[0].mxu0
        %v4143 = vadd.f32 %v4007, %v4142
        %v4144 = vpop.f32.mrb[0].mxu0
        %v4145 = vadd.f32 %v4011, %v4144
        %4146 = vmatprep.mubr.bf16.mxu0 0
        %4147 = vmatmul.mubr.bf16.gmra.mrb[0].mxu0 %v3984
        %v4148 = vpop.f32.mrb[0].mxu0
        %v4149 = vadd.f32 %v4007, %v4148
        %v4150 = vpop.f32.mrb[0].mxu0
        %v4151 = vadd.f32 %v4011, %v4150
        %v4152 = vpop.f32.mrb[0].mxu0
        %v4153 = vadd.f32 %v4007, %v4152
        %v4154 = vpop.f32.mrb[0].mxu0
        %v4155 = vadd.f32 %v4011, %v4154
        %4156 = vmatprep.mubr.bf16.mxu0 0
        %4157 = vmatmul.mubr.bf16.gmra.mrb[0].mxu0 %v3985
        %v4158 = vpop.f32.mrb[0].mxu0
        %v4159 = vadd.f32 %v4007, %v4158
        %v4160 = vpop.f32.mrb[0].mxu0
        %v4161 = vadd.f32 %v4011, %v4160
        %v4162 = vpop.f32.mrb[0].mxu0
        %v4163 = vadd.f32 %v4007, %v4162
        %v4164 = vpop.f32.mrb[0].mxu0
        %v4165 = vadd.f32 %v4011, %v4164
        %4166 = vdwg.mxu0
        %4167 = vst [vmem:[%s501] sm:$0xff] %v4129
        %4168 = vst [vmem:[%s501 + $0x8] sm:$0xff] %v4131
        %4169 = vst [vmem:[%s501 + $0x10] sm:$0xff] %v4133
        %4170 = vst [vmem:[%s501 + $0x18] sm:$0xff] %v4135
        %4171 = vst [vmem:[%s501 + $0x20] sm:$0xff] %v4139
        %4172 = vst [vmem:[%s501 + $0x28] sm:$0xff] %v4141
        %4173 = vst [vmem:[%s501 + $0x30] sm:$0xff] %v4143
        %4174 = vst [vmem:[%s501 + $0x38] sm:$0xff] %v4145
        %4175 = vst [vmem:[%s501 + $0x40] sm:$0xff] %v4149
        %4176 = vst [vmem:[%s501 + $0x48] sm:$0xff] %v4151
        %4177 = vst [vmem:[%s501 + $0x50] sm:$0xff] %v4153
        %4178 = vst [vmem:[%s501 + $0x58] sm:$0xff] %v4155
        %4179 = vst [vmem:[%s501 + $0x60] sm:$0xff] %v4159
        %4180 = vst [vmem:[%s501 + $0x68] sm:$0xff] %v4161
        %4181 = vst [vmem:[%s501 + $0x70] sm:$0xff] %v4163
        %4182 = vst [vmem:[%s501 + $0x78] sm:$0xff] %v4165
        %s4183 = sand.u32 %s246, 1
        %s4184 = scalar_lea.sflag [#allocation5], %s4183
        %s4185 = sand.u32 %s246, 1
        %s4186 = smul.addr %s4185, 128
        %s4187 = scalar_lea.vmem [#allocation17], %s4186
        %s4188 = sand.u32 %s274, 1
        %s4189 = scalar_lea.sflag [#allocation19], %s4188
        %s4190 = sand.u32 %s274, 1
        %s4191 = smul.addr %s4190, 128
        %s4192 = scalar_lea.vmem [#allocation18], %s4191
        // Predicated region
        $region89: #{tpu_custom_call.1} parent=51 // pred_check
          %p4193 = pneg %p256
        $region90: #{tpu_custom_call.1} parent=51 // pred_check_branch
          %4195 = sbr.rel (%p4193) target = $region92
        $region91: #{tpu_custom_call.1} parent=51 // pred_region
          %s4196 = smul.u32 8, %s39
          %s4198 = ssub.s32 2048, 2048
          %4199 = vsyncadd %s4184, %s4198
          %s4200 = smul.addr %s4196, 2
          %s4201 = smul.addr %s38, 16
          %s4202 = sadd.s32 %s4200, %s4201
          %s4203 = smul.addr %s4202, 128
          %s4204 = scalar_lea.hbm %s8, %s4203
          %s4205 = sshll.u32 %s4187, 4
          %s4206 = int_to_ptr.vmem [resolvable:$true] %s4205
          %4211 = dma.vmem_to_hbm [thread:$0]  %s4206, 2048, %s4204, %s4184, 256, 256, 16
        $region92: #{tpu_custom_call.1} parent=51 // pred_fallthru
          _
        // Predicated region
        $region93: #{tpu_custom_call.1} parent=51 // pred_check
          %p4212 = pneg %p284
        $region94: #{tpu_custom_call.1} parent=51 // pred_check_branch
          %4214 = sbr.rel (%p4212) target = $region96
        $region95: #{tpu_custom_call.1} parent=51 // pred_region
          %s4215 = smul.u32 8, %s39
          %s4217 = ssub.s32 2048, 2048
          %4218 = vsyncadd %s4189, %s4217
          %s4219 = smul.addr %s4215, 2
          %s4220 = smul.addr %s38, 16
          %s4221 = sadd.s32 %s4219, %s4220
          %s4222 = smul.addr %s4221, 128
          %s4223 = scalar_lea.hbm %s9, %s4222
          %s4224 = sshll.u32 %s4192, 4
          %s4225 = int_to_ptr.vmem [resolvable:$true] %s4224
          %4230 = dma.vmem_to_hbm [thread:$0]  %s4225, 2048, %s4223, %s4189, 256, 256, 16
        $region96: #{tpu_custom_call.1} parent=51 // pred_fallthru
          _
      $region52: #{tpu_custom_call.1} parent=5 // pred_fallthru
        _
      %p4231 = scmp.le.s32.totalorder 2, %s29
      // Predicated region
      $region97: #{tpu_custom_call.1} parent=5 // pred_check
        %p4232 = pneg %p4231
      $region98: #{tpu_custom_call.1} parent=5 // pred_check_branch
        %4234 = sbr.rel (%p4232) target = $region100
      $region99: #{tpu_custom_call.1} parent=5 // pred_region
        %s4235 = ssub.s32 %s29, 2
        // Predicated region
        $region101: #{tpu_custom_call.1} parent=99 // pred_check
          %p4236 = pneg %p262
        $region102: #{tpu_custom_call.1} parent=99 // pred_check_branch
          %4238 = sbr.rel (%p4236) target = $region104
        $region103: #{tpu_custom_call.1} parent=99 // pred_region
          %s4239 = sand.u32 %s247, 1
          %s4240 = scalar_lea.sflag [#allocation5], %s4239
          %s4241 = sand.u32 %s247, 1
          %s4242 = smul.addr %s4241, 128
          %s4243 = scalar_lea.vmem [#allocation17], %s4242
          %4244 = dma.done %s4240, 2048
        $region104: #{tpu_custom_call.1} parent=99 // pred_fallthru
          _
        // Predicated region
        $region105: #{tpu_custom_call.1} parent=99 // pred_check
          %p4245 = pneg %p290
        $region106: #{tpu_custom_call.1} parent=99 // pred_check_branch
          %4247 = sbr.rel (%p4245) target = $region108
        $region107: #{tpu_custom_call.1} parent=99 // pred_region
          %s4248 = sand.u32 %s275, 1
          %s4249 = scalar_lea.sflag [#allocation19], %s4248
          %s4250 = sand.u32 %s275, 1
          %s4251 = smul.addr %s4250, 128
          %s4252 = scalar_lea.vmem [#allocation18], %s4251
          %4253 = dma.done %s4249, 2048
        $region108: #{tpu_custom_call.1} parent=99 // pred_fallthru
          _
      $region100: #{tpu_custom_call.1} parent=5 // pred_fallthru
        _
    $region6: #{tpu_custom_call.1} parent=1 // loop_footer
      %s33 = sadd.s32 1, %s29
    $region7: #{tpu_custom_call.1} parent=1 // loop_footer_branch
      %28 = sbr.rel target = $region3
    $region8: #{tpu_custom_call.1} parent=1 // loop_exit
      _
    %4254 = vsyncpa [#allocation4], 1
    %s4255 = scalar_lea.sflag [#allocation4], 1
    %4256 = vsyncpa %s4255, 1
    %4257 = vsyncpa [#allocation7], 1
    %4258 = vsyncpa [#allocation10], 1
    %s4259 = scalar_lea.sflag [#allocation10], 1
    %4260 = vsyncpa %s4259, 1
    %4261 = vsyncpa [#allocation13], 1
    %4262 = vsyncpa [#allocation16], 1
    %4263 = vsyncpa [#allocation5], 1
    %s4264 = scalar_lea.sflag [#allocation5], 1
    %4265 = vsyncpa %s4264, 1
    %4266 = vsyncpa [#allocation19], 1
    %s4267 = scalar_lea.sflag [#allocation19], 1
    %4268 = vsyncpa %s4267, 1

// kernel: tpu_custom_call.1
$region0: #{tpu_custom_call.1}
  #allocation0 [shape = 'u32[]', space=smem, size = 0x4, offset = 0x4, fixed_abs, tag = 'smem constant byte address 0x4 - core index']
  #allocation1 [shape = 'u32[144,128]{1,0:T(1,128)}', space=vmem, size = 0x12000, scoped, tag = 'internal scratch']
  #allocation2 [shape = 'bf16[64,256]{1,0:T(16,128)(2,1)}', space=vmem, size = 0x8000, scoped, tag = 'scratch operand']
  %s0 = inlined_call_operand.hbm [shape: bf16[2,64,2432], index: 0, kind: input, shape index: {}]
  %s1 = inlined_call_operand.hbm [shape: bf16[2,2432,256], index: 1, kind: input, shape index: {}]
  %s2 = inlined_call_operand.hbm [shape: f32[2,1,256], index: 2, kind: input, shape index: {}]
  %s3 = inlined_call_operand.hbm [shape: bf16[2,64,64], index: 3, kind: input, shape index: {}]
  %s4 = inlined_call_operand.hbm [shape: bf16[256,128], index: 4, kind: input, shape index: {}]
  %s5 = inlined_call_operand.hbm [shape: f32[1,128], index: 5, kind: input, shape index: {}]
  %s6 = inlined_call_operand.hbm [shape: bf16[128,256], index: 6, kind: input, shape index: {}]
  %s7 = inlined_call_operand.hbm [shape: f32[1,256], index: 7, kind: input, shape index: {}]
  %s8 = inlined_call_operand.hbm [shape: f32[2,64,256], index: 8, kind: output, shape index: {0}]
  %s9 = inlined_call_operand.hbm [shape: f32[2,64,256], index: 9, kind: output, shape index: {1}]
  %10 = xla_tuple %s8, %s9
  %s11 = sld [smem:[#allocation0]]
  $region109: #{tpu_custom_call.1} parent=0
    _
  %s13 = ssub.s32 1, %s11
  %s14 = scalar_select 0, %s13, %s11
  $region1: #{tpu_custom_call.1} parent=0
    #allocation3 [shape = 'u8[622592]{0}', space=vmem, size = 0x98000, scoped, tag = 'input window, operand 0']
    #allocation4 [shape = 's32[2]{0}', space=sflag, size = 0x8, scoped, tag = 'scoped memory for tpu_custom_call.1']
    #allocation5 [shape = 's32[2]{0}', space=sflag, size = 0x8, scoped, tag = 'scoped memory for tpu_custom_call.1']
    #allocation6 [shape = 'u8[2490368]{0}', space=vmem, size = 0x260000, scoped, tag = 'input window, operand 1']
    #allocation7 [shape = 's32[2]{0}', space=sflag, size = 0x8, scoped, tag = 'scoped memory for tpu_custom_call.1']
    #allocation8 [shape = 'u8[2048]{0}', space=vmem, size = 0x800, scoped, tag = 'input window, operand 2']
    #allocation9 [shape = 'u8[32768]{0}', space=vmem, size = 0x8000, scoped, tag = 'input window, operand 3']
    #allocation10 [shape = 's32[2]{0}', space=sflag, size = 0x8, scoped, tag = 'scoped memory for tpu_custom_call.1']
    #allocation11 [shape = 'u8[65536]{0}', space=vmem, size = 0x10000, scoped, tag = 'input window, operand 4, single buffered']
    #allocation12 [shape = 'u8[512]{0}', space=vmem, size = 0x400, scoped, tag = 'input window, operand 5, single buffered']
    #allocation13 [shape = 's32[1]{0}', space=sflag, size = 0x4, scoped, tag = 'scoped memory for tpu_custom_call.1']
    #allocation14 [shape = 'u8[65536]{0}', space=vmem, size = 0x10000, scoped, tag = 'input window, operand 6, single buffered']
    #allocation15 [shape = 'u8[1024]{0}', space=vmem, size = 0x400, scoped, tag = 'input window, operand 7, single buffered']
    #allocation16 [shape = 's32[1]{0}', space=sflag, size = 0x4, scoped, tag = 'scoped memory for tpu_custom_call.1']
    #allocation17 [shape = 'u8[131072]{0}', space=vmem, size = 0x20000, scoped, tag = 'output window, operand 0']
    #allocation18 [shape = 'u8[131072]{0}', space=vmem, size = 0x20000, scoped, tag = 'output window, operand 1']
    #allocation19 [shape = 's32[2]{0}', space=sflag, size = 0x8, scoped, tag = 'scoped memory for tpu_custom_call.1']
    %15 = vsyncpa [#allocation4], 0
    %s16 = scalar_lea.sflag [#allocation4], 1
    %17 = vsyncpa %s16, 0
    %18 = vsyncpa [#allocation7], 0
    %s19 = scalar_lea.sflag [#allocation7], 1
    %20 = vsyncpa %s19, 0
    %21 = vsyncpa [#allocation10], 0
    %s22 = scalar_lea.sflag [#allocation10], 1
    %23 = vsyncpa %s22, 0
    %24 = vsyncpa [#allocation13], 0
    %25 = vsyncpa [#allocation16], 0
    %26 = vsyncpa [#allocation5], 0
    %s27 = scalar_lea.sflag [#allocation5], 1
    %28 = vsyncpa %s27, 0
    %29 = vsyncpa [#allocation19], 0
    %s30 = scalar_lea.sflag [#allocation19], 1
    %31 = vsyncpa %s30, 0
    loop: start=0, step=1, limit=4
    $region2: #{tpu_custom_call.1} parent=1 // loop_pre_header
      _
    $region3: #{tpu_custom_call.1} parent=1 // loop_header
      %s33 = sphi 0, %s37
      %p34 = scmp.ge.s32.totalorder %s33, 4
      %s40 = sphi 0, %s52
      %s41 = sphi 0, %s48
      %s42 = sphi 0, %s40
      %s43 = sphi 0, %s41
      %s44 = sphi 0, %s42
      %s45 = sphi 0, %s43
      %s55 = sphi 0, %s57
      %s58 = sphi 0, %s55
      %s59 = sphi 0, %s58
      %s75 = sphi 0, %s59
      %s81 = sphi 0, %s83
      %s84 = sphi 0, %s81
      %s85 = sphi 0, %s84
      %s101 = sphi 0, %s85
      %s107 = sphi 0, %s109
      %s110 = sphi 0, %s107
      %s111 = sphi 0, %s110
      %s127 = sphi 0, %s111
      %s135 = sphi 0, %s137
      %s138 = sphi 0, %s135
      %s139 = sphi 0, %s138
      %s155 = sphi 0, %s139
      %s159 = sphi 0, %s159
      %s161 = sphi 0, %s159
      %s162 = sphi 0, %s161
      %s176 = sphi 0, %s162
      %s180 = sphi 0, %s180
      %s182 = sphi 0, %s180
      %s183 = sphi 0, %s182
      %s197 = sphi 0, %s183
      %s201 = sphi 0, %s201
      %s203 = sphi 0, %s201
      %s204 = sphi 0, %s203
      %s218 = sphi 0, %s204
      %s222 = sphi 0, %s222
      %s224 = sphi 0, %s222
      %s225 = sphi 0, %s224
      %s239 = sphi 0, %s225
      %s247 = sphi 0, %s249
      %s250 = sphi 0, %s247
      %s251 = sphi 0, %s250
      %s267 = sphi 0, %s251
      %s275 = sphi 0, %s277
      %s278 = sphi 0, %s275
      %s279 = sphi 0, %s278
      %s295 = sphi 0, %s279
    $region4: #{tpu_custom_call.1} parent=1 // loop_header_branch
      %36 = sbr.rel (%p34) target = $region8
    $region5: #{tpu_custom_call.1} parent=1 // loop_body
      %s38 = ssub.s32 %s33, 1
      %s39 = ssub.s32 %s33, 2
      %s46 = sadd.s32 1, %s41
      %p47 = scmp.ge.s32.totalorder %s46, 1
      %s48 = scalar_select %p47, 0, %s46
      %s49 = sadd.s32 1, %s40
      %s50 = scalar_select %p47, %s49, %s40
      %p51 = scmp.ge.s32.totalorder %s50, 2
      %s52 = scalar_select %p51, 0, %s50
      %s53 = ssub.s32 %s40, %s52
      %p54 = scmp.eq.s32.totalorder %s53, 0
      %s56 = sadd.s32 %s55, 1
      %s57 = scalar_select %p54, %s55, %s56
      %p60 = pneg %p54
      %p61 = scmp.eq.s32.totalorder %s33, 1
      %p62 = por %p60, %p61
      %p63 = scmp.ne.s32.totalorder %s55, %s58
      %p64 = scmp.eq.s32.totalorder %s33, 0
      %p65 = por %p63, %p64
      %p66 = scmp.ne.s32.totalorder %s55, %s58
      %p67 = scmp.eq.s32.totalorder %s38, 1
      %p68 = por %p66, %p67
      %p69 = scmp.ne.s32.totalorder %s58, %s59
      %p70 = scmp.eq.s32.totalorder %s38, 0
      %p71 = por %p69, %p70
      %p72 = scmp.ne.s32.totalorder %s58, %s59
      %p73 = scmp.eq.s32.totalorder %s39, 1
      %p74 = por %p72, %p73
      %p76 = scmp.ne.s32.totalorder %s59, %s75
      %p77 = scmp.eq.s32.totalorder %s39, 0
      %p78 = por %p76, %p77
      %s79 = ssub.s32 %s40, %s52
      %p80 = scmp.eq.s32.totalorder %s79, 0
      %s82 = sadd.s32 %s81, 1
      %s83 = scalar_select %p80, %s81, %s82
      %p86 = pneg %p80
      %p87 = scmp.eq.s32.totalorder %s33, 1
      %p88 = por %p86, %p87
      %p89 = scmp.ne.s32.totalorder %s81, %s84
      %p90 = scmp.eq.s32.totalorder %s33, 0
      %p91 = por %p89, %p90
      %p92 = scmp.ne.s32.totalorder %s81, %s84
      %p93 = scmp.eq.s32.totalorder %s38, 1
      %p94 = por %p92, %p93
      %p95 = scmp.ne.s32.totalorder %s84, %s85
      %p96 = scmp.eq.s32.totalorder %s38, 0
      %p97 = por %p95, %p96
      %p98 = scmp.ne.s32.totalorder %s84, %s85
      %p99 = scmp.eq.s32.totalorder %s39, 1
      %p100 = por %p98, %p99
      %p102 = scmp.ne.s32.totalorder %s85, %s101
      %p103 = scmp.eq.s32.totalorder %s39, 0
      %p104 = por %p102, %p103
      %s105 = ssub.s32 %s40, %s52
      %p106 = scmp.eq.s32.totalorder %s105, 0
      %s108 = sadd.s32 %s107, 1
      %s109 = scalar_select %p106, %s107, %s108
      %p112 = pneg %p106
      %p113 = scmp.eq.s32.totalorder %s33, 1
      %p114 = por %p112, %p113
      %p115 = scmp.ne.s32.totalorder %s107, %s110
      %p116 = scmp.eq.s32.totalorder %s33, 0
      %p117 = por %p115, %p116
      %p118 = scmp.ne.s32.totalorder %s107, %s110
      %p119 = scmp.eq.s32.totalorder %s38, 1
      %p120 = por %p118, %p119
      %p121 = scmp.ne.s32.totalorder %s110, %s111
      %p122 = scmp.eq.s32.totalorder %s38, 0
      %p123 = por %p121, %p122
      %p124 = scmp.ne.s32.totalorder %s110, %s111
      %p125 = scmp.eq.s32.totalorder %s39, 1
      %p126 = por %p124, %p125
      %p128 = scmp.ne.s32.totalorder %s111, %s127
      %p129 = scmp.eq.s32.totalorder %s39, 0
      %p130 = por %p128, %p129
      %s131 = ssub.s32 %s40, %s52
      %s132 = ssub.s32 %s41, %s48
      %s133 = sor.u32 %s131, %s132
      %p134 = scmp.eq.s32.totalorder %s133, 0
      %s136 = sadd.s32 %s135, 1
      %s137 = scalar_select %p134, %s135, %s136
      %p140 = pneg %p134
      %p141 = scmp.eq.s32.totalorder %s33, 1
      %p142 = por %p140, %p141
      %p143 = scmp.ne.s32.totalorder %s135, %s138
      %p144 = scmp.eq.s32.totalorder %s33, 0
      %p145 = por %p143, %p144
      %p146 = scmp.ne.s32.totalorder %s135, %s138
      %p147 = scmp.eq.s32.totalorder %s38, 1
      %p148 = por %p146, %p147
      %p149 = scmp.ne.s32.totalorder %s138, %s139
      %p150 = scmp.eq.s32.totalorder %s38, 0
      %p151 = por %p149, %p150
      %p152 = scmp.ne.s32.totalorder %s138, %s139
      %p153 = scmp.eq.s32.totalorder %s39, 1
      %p154 = por %p152, %p153
      %p156 = scmp.ne.s32.totalorder %s139, %s155
      %p157 = scmp.eq.s32.totalorder %s39, 0
      %p158 = por %p156, %p157
      %s160 = sadd.s32 %s159, 1
      %p163 = scmp.eq.s32.totalorder %s33, 1
      %p164 = scmp.ne.s32.totalorder %s159, %s161
      %p165 = scmp.eq.s32.totalorder %s33, 0
      %p166 = por %p164, %p165
      %p167 = scmp.ne.s32.totalorder %s159, %s161
      %p168 = scmp.eq.s32.totalorder %s38, 1
      %p169 = por %p167, %p168
      %p170 = scmp.ne.s32.totalorder %s161, %s162
      %p171 = scmp.eq.s32.totalorder %s38, 0
      %p172 = por %p170, %p171
      %p173 = scmp.ne.s32.totalorder %s161, %s162
      %p174 = scmp.eq.s32.totalorder %s39, 1
      %p175 = por %p173, %p174
      %p177 = scmp.ne.s32.totalorder %s162, %s176
      %p178 = scmp.eq.s32.totalorder %s39, 0
      %p179 = por %p177, %p178
      %s181 = sadd.s32 %s180, 1
      %p184 = scmp.eq.s32.totalorder %s33, 1
      %p185 = scmp.ne.s32.totalorder %s180, %s182
      %p186 = scmp.eq.s32.totalorder %s33, 0
      %p187 = por %p185, %p186
      %p188 = scmp.ne.s32.totalorder %s180, %s182
      %p189 = scmp.eq.s32.totalorder %s38, 1
      %p190 = por %p188, %p189
      %p191 = scmp.ne.s32.totalorder %s182, %s183
      %p192 = scmp.eq.s32.totalorder %s38, 0
      %p193 = por %p191, %p192
      %p194 = scmp.ne.s32.totalorder %s182, %s183
      %p195 = scmp.eq.s32.totalorder %s39, 1
      %p196 = por %p194, %p195
      %p198 = scmp.ne.s32.totalorder %s183, %s197
      %p199 = scmp.eq.s32.totalorder %s39, 0
      %p200 = por %p198, %p199
      %s202 = sadd.s32 %s201, 1
      %p205 = scmp.eq.s32.totalorder %s33, 1
      %p206 = scmp.ne.s32.totalorder %s201, %s203
      %p207 = scmp.eq.s32.totalorder %s33, 0
      %p208 = por %p206, %p207
      %p209 = scmp.ne.s32.totalorder %s201, %s203
      %p210 = scmp.eq.s32.totalorder %s38, 1
      %p211 = por %p209, %p210
      %p212 = scmp.ne.s32.totalorder %s203, %s204
      %p213 = scmp.eq.s32.totalorder %s38, 0
      %p214 = por %p212, %p213
      %p215 = scmp.ne.s32.totalorder %s203, %s204
      %p216 = scmp.eq.s32.totalorder %s39, 1
      %p217 = por %p215, %p216
      %p219 = scmp.ne.s32.totalorder %s204, %s218
      %p220 = scmp.eq.s32.totalorder %s39, 0
      %p221 = por %p219, %p220
      %s223 = sadd.s32 %s222, 1
      %p226 = scmp.eq.s32.totalorder %s33, 1
      %p227 = scmp.ne.s32.totalorder %s222, %s224
      %p228 = scmp.eq.s32.totalorder %s33, 0
      %p229 = por %p227, %p228
      %p230 = scmp.ne.s32.totalorder %s222, %s224
      %p231 = scmp.eq.s32.totalorder %s38, 1
      %p232 = por %p230, %p231
      %p233 = scmp.ne.s32.totalorder %s224, %s225
      %p234 = scmp.eq.s32.totalorder %s38, 0
      %p235 = por %p233, %p234
      %p236 = scmp.ne.s32.totalorder %s224, %s225
      %p237 = scmp.eq.s32.totalorder %s39, 1
      %p238 = por %p236, %p237
      %p240 = scmp.ne.s32.totalorder %s225, %s239
      %p241 = scmp.eq.s32.totalorder %s39, 0
      %p242 = por %p240, %p241
      %s243 = ssub.s32 %s40, %s52
      %s244 = ssub.s32 %s41, %s48
      %s245 = sor.u32 %s243, %s244
      %p246 = scmp.eq.s32.totalorder %s245, 0
      %s248 = sadd.s32 %s247, 1
      %s249 = scalar_select %p246, %s247, %s248
      %p252 = pneg %p246
      %p253 = scmp.eq.s32.totalorder %s33, 1
      %p254 = por %p252, %p253
      %p255 = scmp.ne.s32.totalorder %s247, %s250
      %p256 = scmp.eq.s32.totalorder %s33, 0
      %p257 = por %p255, %p256
      %p258 = scmp.ne.s32.totalorder %s247, %s250
      %p259 = scmp.eq.s32.totalorder %s38, 1
      %p260 = por %p258, %p259
      %p261 = scmp.ne.s32.totalorder %s250, %s251
      %p262 = scmp.eq.s32.totalorder %s38, 0
      %p263 = por %p261, %p262
      %p264 = scmp.ne.s32.totalorder %s250, %s251
      %p265 = scmp.eq.s32.totalorder %s39, 1
      %p266 = por %p264, %p265
      %p268 = scmp.ne.s32.totalorder %s251, %s267
      %p269 = scmp.eq.s32.totalorder %s39, 0
      %p270 = por %p268, %p269
      %s271 = ssub.s32 %s40, %s52
      %s272 = ssub.s32 %s41, %s48
      %s273 = sor.u32 %s271, %s272
      %p274 = scmp.eq.s32.totalorder %s273, 0
      %s276 = sadd.s32 %s275, 1
      %s277 = scalar_select %p274, %s275, %s276
      %p280 = pneg %p274
      %p281 = scmp.eq.s32.totalorder %s33, 1
      %p282 = por %p280, %p281
      %p283 = scmp.ne.s32.totalorder %s275, %s278
      %p284 = scmp.eq.s32.totalorder %s33, 0
      %p285 = por %p283, %p284
      %p286 = scmp.ne.s32.totalorder %s275, %s278
      %p287 = scmp.eq.s32.totalorder %s38, 1
      %p288 = por %p286, %p287
      %p289 = scmp.ne.s32.totalorder %s278, %s279
      %p290 = scmp.eq.s32.totalorder %s38, 0
      %p291 = por %p289, %p290
      %p292 = scmp.ne.s32.totalorder %s278, %s279
      %p293 = scmp.eq.s32.totalorder %s39, 1
      %p294 = por %p292, %p293
      %p296 = scmp.ne.s32.totalorder %s279, %s295
      %p297 = scmp.eq.s32.totalorder %s39, 0
      %p298 = por %p296, %p297
      %p299 = scmp.le.s32.totalorder 1, %s33
      %p300 = scmp.lt.s32.totalorder %s33, 3
      %p301 = pnand %p299, %p300
      %p302 = pneg %p301
      // Predicated region
      $region9: #{tpu_custom_call.1} parent=5 // pred_check
        _
      $region10: #{tpu_custom_call.1} parent=5 // pred_check_branch
        %304 = sbr.rel (%p301) target = $region12
      $region11: #{tpu_custom_call.1} parent=5 // pred_region
        %s305 = ssub.s32 %s33, 1
        // Predicated region
        $region13: #{tpu_custom_call.1} parent=11 // pred_check
          %p306 = pneg %p172
        $region14: #{tpu_custom_call.1} parent=11 // pred_check_branch
          %308 = sbr.rel (%p306) target = $region16
        $region15: #{tpu_custom_call.1} parent=11 // pred_region
          %s310 = ssub.s32 2048, 2048
          %311 = vsyncadd [#allocation10], %s310
          %s312 = sshll.u32 [#allocation11], 4
          %s313 = int_to_ptr.vmem [resolvable:$true] %s312
          %318 = dma.hbm_to_vmem [thread:$0]  %s4, 2048, %s313, [#allocation10], 64, 64, 4
        $region16: #{tpu_custom_call.1} parent=11 // pred_fallthru
          _
        // Predicated region
        $region17: #{tpu_custom_call.1} parent=11 // pred_check
          %p319 = pneg %p193
        $region18: #{tpu_custom_call.1} parent=11 // pred_check_branch
          %321 = sbr.rel (%p319) target = $region20
        $region19: #{tpu_custom_call.1} parent=11 // pred_region
          %s323 = ssub.s32 16, 16
          %324 = vsyncadd [#allocation13], %s323
          %s326 = sshll.u32 [#allocation12], 4
          %s327 = int_to_ptr.vmem [resolvable:$true] %s326
          %329 = dma.hbm_to_vmem [thread:$0]  %s5, 16, %s327, [#allocation13]
        $region20: #{tpu_custom_call.1} parent=11 // pred_fallthru
          _
        // Predicated region
        $region21: #{tpu_custom_call.1} parent=11 // pred_check
          %p330 = pneg %p214
        $region22: #{tpu_custom_call.1} parent=11 // pred_check_branch
          %332 = sbr.rel (%p330) target = $region24
        $region23: #{tpu_custom_call.1} parent=11 // pred_region
          %s334 = ssub.s32 2048, 2048
          %335 = vsyncadd [#allocation13], %s334
          %s336 = sshll.u32 [#allocation14], 4
          %s337 = int_to_ptr.vmem [resolvable:$true] %s336
          %342 = dma.hbm_to_vmem [thread:$0]  %s6, 2048, %s337, [#allocation13], 128, 128, 8
        $region24: #{tpu_custom_call.1} parent=11 // pred_fallthru
          _
        // Predicated region
        $region25: #{tpu_custom_call.1} parent=11 // pred_check
          %p343 = pneg %p235
        $region26: #{tpu_custom_call.1} parent=11 // pred_check_branch
          %345 = sbr.rel (%p343) target = $region28
        $region27: #{tpu_custom_call.1} parent=11 // pred_region
          %s347 = ssub.s32 32, 32
          %348 = vsyncadd [#allocation16], %s347
          %s350 = sshll.u32 [#allocation15], 4
          %s351 = int_to_ptr.vmem [resolvable:$true] %s350
          %353 = dma.hbm_to_vmem [thread:$0]  %s7, 32, %s351, [#allocation16]
        $region28: #{tpu_custom_call.1} parent=11 // pred_fallthru
          _
      $region12: #{tpu_custom_call.1} parent=5 // pred_fallthru
        _
      %p354 = scmp.lt.s32.totalorder %s33, 2
      // Predicated region
      $region29: #{tpu_custom_call.1} parent=5 // pred_check
        %p355 = pneg %p354
      $region30: #{tpu_custom_call.1} parent=5 // pred_check_branch
        %357 = sbr.rel (%p355) target = $region32
      $region31: #{tpu_custom_call.1} parent=5 // pred_region
        // Predicated region
        $region33: #{tpu_custom_call.1} parent=31 // pred_check
          %p358 = pneg %p65
        $region34: #{tpu_custom_call.1} parent=31 // pred_check_branch
          %360 = sbr.rel (%p358) target = $region36
        $region35: #{tpu_custom_call.1} parent=31 // pred_region
          %s361 = sand.u32 %s55, 1
          %s362 = scalar_lea.sflag [#allocation4], %s361
          %s363 = sand.u32 %s55, 1
          %s364 = smul.addr %s363, 608
          %s365 = scalar_lea.vmem [#allocation3], %s364
          %s367 = ssub.s32 9728, 9728
          %368 = vsyncadd %s362, %s367
          %s369 = smul.addr %s40, 152
          %s370 = smul.addr %s369, 64
          %s371 = scalar_lea.hbm %s0, %s370
          %s372 = sshll.u32 %s365, 4
          %s373 = int_to_ptr.vmem [resolvable:$true] %s372
          %378 = dma.hbm_to_vmem [thread:$0]  %s371, 9728, %s373, %s362, 1216, 1216, 76
        $region36: #{tpu_custom_call.1} parent=31 // pred_fallthru
          _
        // Predicated region
        $region37: #{tpu_custom_call.1} parent=31 // pred_check
          %p379 = pneg %p91
        $region38: #{tpu_custom_call.1} parent=31 // pred_check_branch
          %381 = sbr.rel (%p379) target = $region40
        $region39: #{tpu_custom_call.1} parent=31 // pred_region
          %s382 = sand.u32 %s33, 1
          %s383 = scalar_lea.sflag [#allocation7], %s382
          %s384 = sand.u32 %s81, 1
          %s385 = smul.addr %s384, 2432
          %s386 = scalar_lea.vmem [#allocation6], %s385
          %s388 = ssub.s32 38912, 38912
          %389 = vsyncadd %s383, %s388
          %s390 = smul.addr %s40, 608
          %s391 = smul.addr %s390, 64
          %s392 = scalar_lea.hbm %s1, %s391
          %s393 = sshll.u32 %s386, 4
          %s394 = int_to_ptr.vmem [resolvable:$true] %s393
          %399 = dma.hbm_to_vmem [thread:$0]  %s392, 38912, %s394, %s383, 128, 128, 8
        $region40: #{tpu_custom_call.1} parent=31 // pred_fallthru
          _
        // Predicated region
        $region41: #{tpu_custom_call.1} parent=31 // pred_check
          %p400 = pneg %p117
        $region42: #{tpu_custom_call.1} parent=31 // pred_check_branch
          %402 = sbr.rel (%p400) target = $region44
        $region43: #{tpu_custom_call.1} parent=31 // pred_region
          %s403 = sand.u32 %s33, 1
          %s404 = scalar_lea.sflag [#allocation7], %s403
          %s405 = sand.u32 %s107, 1
          %s406 = smul.addr %s405, 2
          %s407 = scalar_lea.vmem [#allocation8], %s406
          %s409 = ssub.s32 32, 32
          %410 = vsyncadd %s404, %s409
          %s411 = smul.addr %s40, 2
          %s412 = smul.addr %s411, 16
          %s413 = scalar_lea.hbm %s2, %s412
          %s415 = sshll.u32 %s407, 4
          %s416 = int_to_ptr.vmem [resolvable:$true] %s415
          %418 = dma.hbm_to_vmem [thread:$0]  %s413, 32, %s416, %s404
        $region44: #{tpu_custom_call.1} parent=31 // pred_fallthru
          _
        // Predicated region
        $region45: #{tpu_custom_call.1} parent=31 // pred_check
          %p419 = pneg %p145
        $region46: #{tpu_custom_call.1} parent=31 // pred_check_branch
          %421 = sbr.rel (%p419) target = $region48
        $region47: #{tpu_custom_call.1} parent=31 // pred_region
          %s422 = sand.u32 %s33, 1
          %s423 = scalar_lea.sflag [#allocation10], %s422
          %s424 = sand.u32 %s135, 1
          %s425 = smul.addr %s424, 32
          %s426 = scalar_lea.vmem [#allocation9], %s425
          %s427 = smul.u32 8, %s41
          %s429 = ssub.s32 512, 512
          %430 = vsyncadd %s423, %s429
          %s431 = smul.addr %s40, 8
          %s432 = sadd.s32 %s427, %s431
          %s433 = smul.addr %s432, 64
          %s434 = scalar_lea.hbm %s3, %s433
          %s435 = sshll.u32 %s426, 4
          %s436 = int_to_ptr.vmem [resolvable:$true] %s435
          %441 = dma.hbm_to_vmem [thread:$0]  %s434, 512, %s436, %s423, 64, 64, 4
        $region48: #{tpu_custom_call.1} parent=31 // pred_fallthru
          _
      $region32: #{tpu_custom_call.1} parent=5 // pred_fallthru
        _
      %p442 = scmp.le.s32.totalorder 1, %s33
      %p443 = scmp.lt.s32.totalorder %s33, 3
      %p444 = pnand %p442, %p443
      %p445 = pneg %p444
      // Predicated region
      $region49: #{tpu_custom_call.1} parent=5 // pred_check
        _
      $region50: #{tpu_custom_call.1} parent=5 // pred_check_branch
        %447 = sbr.rel (%p444) target = $region52
      $region51: #{tpu_custom_call.1} parent=5 // pred_region
        %s448 = ssub.s32 %s33, 1
        %s449 = sand.u32 %s58, 1
        %s450 = scalar_lea.sflag [#allocation4], %s449
        %s451 = sand.u32 %s58, 1
        %s452 = smul.addr %s451, 608
        %s453 = scalar_lea.vmem [#allocation3], %s452
        // Predicated region
        $region53: #{tpu_custom_call.1} parent=51 // pred_check
          %p454 = pneg %p71
        $region54: #{tpu_custom_call.1} parent=51 // pred_check_branch
          %456 = sbr.rel (%p454) target = $region56
        $region55: #{tpu_custom_call.1} parent=51 // pred_region
          %457 = dma.done %s450, 9728
        $region56: #{tpu_custom_call.1} parent=51 // pred_fallthru
          _
        %s458 = sand.u32 %s38, 1
        %s459 = scalar_lea.sflag [#allocation7], %s458
        %s460 = sand.u32 %s84, 1
        %s461 = smul.addr %s460, 2432
        %s462 = scalar_lea.vmem [#allocation6], %s461
        // Predicated region
        $region57: #{tpu_custom_call.1} parent=51 // pred_check
          %p463 = pneg %p97
        $region58: #{tpu_custom_call.1} parent=51 // pred_check_branch
          %465 = sbr.rel (%p463) target = $region60
        $region59: #{tpu_custom_call.1} parent=51 // pred_region
          %466 = dma.done %s459, 38912
        $region60: #{tpu_custom_call.1} parent=51 // pred_fallthru
          _
        %s467 = sand.u32 %s38, 1
        %s468 = scalar_lea.sflag [#allocation7], %s467
        %s469 = sand.u32 %s110, 1
        %s470 = smul.addr %s469, 2
        %s471 = scalar_lea.vmem [#allocation8], %s470
        // Predicated region
        $region61: #{tpu_custom_call.1} parent=51 // pred_check
          %p472 = pneg %p123
        $region62: #{tpu_custom_call.1} parent=51 // pred_check_branch
          %474 = sbr.rel (%p472) target = $region64
        $region63: #{tpu_custom_call.1} parent=51 // pred_region
          %475 = dma.done %s468, 32
        $region64: #{tpu_custom_call.1} parent=51 // pred_fallthru
          _
        %s476 = sand.u32 %s38, 1
        %s477 = scalar_lea.sflag [#allocation10], %s476
        %s478 = sand.u32 %s138, 1
        %s479 = smul.addr %s478, 32
        %s480 = scalar_lea.vmem [#allocation9], %s479
        // Predicated region
        $region65: #{tpu_custom_call.1} parent=51 // pred_check
          %p481 = pneg %p151
        $region66: #{tpu_custom_call.1} parent=51 // pred_check_branch
          %483 = sbr.rel (%p481) target = $region68
        $region67: #{tpu_custom_call.1} parent=51 // pred_region
          %484 = dma.done %s477, 512
        $region68: #{tpu_custom_call.1} parent=51 // pred_fallthru
          _
        // Predicated region
        $region69: #{tpu_custom_call.1} parent=51 // pred_check
          %p485 = pneg %p172
        $region70: #{tpu_custom_call.1} parent=51 // pred_check_branch
          %487 = sbr.rel (%p485) target = $region72
        $region71: #{tpu_custom_call.1} parent=51 // pred_region
          %488 = dma.done [#allocation10], 2048
        $region72: #{tpu_custom_call.1} parent=51 // pred_fallthru
          _
        // Predicated region
        $region73: #{tpu_custom_call.1} parent=51 // pred_check
          %p489 = pneg %p193
        $region74: #{tpu_custom_call.1} parent=51 // pred_check_branch
          %491 = sbr.rel (%p489) target = $region76
        $region75: #{tpu_custom_call.1} parent=51 // pred_region
          %492 = dma.done [#allocation13], 16
        $region76: #{tpu_custom_call.1} parent=51 // pred_fallthru
          _
        // Predicated region
        $region77: #{tpu_custom_call.1} parent=51 // pred_check
          %p493 = pneg %p214
        $region78: #{tpu_custom_call.1} parent=51 // pred_check_branch
          %495 = sbr.rel (%p493) target = $region80
        $region79: #{tpu_custom_call.1} parent=51 // pred_region
          %496 = dma.done [#allocation13], 2048
        $region80: #{tpu_custom_call.1} parent=51 // pred_fallthru
          _
        // Predicated region
        $region81: #{tpu_custom_call.1} parent=51 // pred_check
          %p497 = pneg %p235
        $region82: #{tpu_custom_call.1} parent=51 // pred_check_branch
          %499 = sbr.rel (%p497) target = $region84
        $region83: #{tpu_custom_call.1} parent=51 // pred_region
          %500 = dma.done [#allocation16], 32
        $region84: #{tpu_custom_call.1} parent=51 // pred_fallthru
          _
        %s501 = sand.u32 %s58, 1
        %s502 = scalar_lea.sflag [#allocation4], %s501
        %s503 = sand.u32 %s58, 1
        %s504 = smul.addr %s503, 608
        %s505 = scalar_lea.vmem [#allocation3], %s504
        %p506 = pneg %p71
        %p507 = pneg %p68
        %s508 = sand.u32 %s38, 1
        %s509 = scalar_lea.sflag [#allocation7], %s508
        %s510 = sand.u32 %s84, 1
        %s511 = smul.addr %s510, 2432
        %s512 = scalar_lea.vmem [#allocation6], %s511
        %p513 = pneg %p97
        %p514 = pneg %p94
        %s515 = sand.u32 %s38, 1
        %s516 = scalar_lea.sflag [#allocation7], %s515
        %s517 = sand.u32 %s110, 1
        %s518 = smul.addr %s517, 2
        %s519 = scalar_lea.vmem [#allocation8], %s518
        %p520 = pneg %p123
        %p521 = pneg %p120
        %s522 = sand.u32 %s38, 1
        %s523 = scalar_lea.sflag [#allocation10], %s522
        %s524 = sand.u32 %s138, 1
        %s525 = smul.addr %s524, 32
        %s526 = scalar_lea.vmem [#allocation9], %s525
        %p527 = pneg %p151
        %p528 = pneg %p148
        %p529 = pneg %p172
        %p530 = pneg %p169
        %p531 = pneg %p193
        %p532 = pneg %p190
        %p533 = pneg %p214
        %p534 = pneg %p211
        %p535 = pneg %p235
        %p536 = pneg %p232
        %p537 = pneg %p263
        %p538 = pneg %p260
        %s539 = sand.u32 %s250, 1
        %s540 = scalar_lea.sflag [#allocation5], %s539
        %s541 = sand.u32 %s250, 1
        %s542 = smul.addr %s541, 128
        %s543 = scalar_lea.vmem [#allocation17], %s542
        %p544 = pneg %p291
        %p545 = pneg %p288
        %s546 = sand.u32 %s278, 1
        %s547 = scalar_lea.sflag [#allocation19], %s546
        %s548 = sand.u32 %s278, 1
        %s549 = smul.addr %s548, 128
        %s550 = scalar_lea.vmem [#allocation18], %s549
        %s551 = smul.u32 8, %s43
        %s552 = smul.u32 8, %s43
        %s553 = smul.u32 8, %s43
        %p555 = scmp.eq.s32.totalorder %s43, 0
        // Predicated region
        $region85: #{tpu_custom_call.1} parent=51 // pred_check
          %p556 = pneg %p555
        $region86: #{tpu_custom_call.1} parent=51 // pred_check_branch
          %558 = sbr.rel (%p556) target = $region88
        $region87: #{tpu_custom_call.1} parent=51 // pred_region
          %v559 = vld [vmem:[%s453] sm:$0xff]
          %v560 = vld [vmem:[%s453 + $0x8] sm:$0xff]
          %v561 = vld [vmem:[%s453 + $0x10] sm:$0xff]
          %v562 = vld [vmem:[%s453 + $0x18] sm:$0xff]
          %v563 = vld [vmem:[%s453 + $0x20] sm:$0xff]
          %v564 = vld [vmem:[%s453 + $0x28] sm:$0xff]
          %v565 = vld [vmem:[%s453 + $0x30] sm:$0xff]
          %v566 = vld [vmem:[%s453 + $0x38] sm:$0xff]
          %v567 = vld [vmem:[%s453 + $0x40] sm:$0xff]
          %v568 = vld [vmem:[%s453 + $0x48] sm:$0xf]
          %v569 = vld [vmem:[%s453 + $0x4c] sm:$0xff]
          %v570 = vld [vmem:[%s453 + $0x54] sm:$0xff]
          %v571 = vld [vmem:[%s453 + $0x5c] sm:$0xff]
          %v572 = vld [vmem:[%s453 + $0x64] sm:$0xff]
          %v573 = vld [vmem:[%s453 + $0x6c] sm:$0xff]
          %v574 = vld [vmem:[%s453 + $0x74] sm:$0xff]
          %v575 = vld [vmem:[%s453 + $0x7c] sm:$0xff]
          %v576 = vld [vmem:[%s453 + $0x84] sm:$0xff]
          %v577 = vld [vmem:[%s453 + $0x8c] sm:$0xff]
          %v578 = vld [vmem:[%s453 + $0x94] sm:$0xf]
          %v579 = vld [vmem:[%s453 + $0x98] sm:$0xff]
          %v580 = vld [vmem:[%s453 + $0xa0] sm:$0xff]
          %v581 = vld [vmem:[%s453 + $0xa8] sm:$0xff]
          %v582 = vld [vmem:[%s453 + $0xb0] sm:$0xff]
          %v583 = vld [vmem:[%s453 + $0xb8] sm:$0xff]
          %v584 = vld [vmem:[%s453 + $0xc0] sm:$0xff]
          %v585 = vld [vmem:[%s453 + $0xc8] sm:$0xff]
          %v586 = vld [vmem:[%s453 + $0xd0] sm:$0xff]
          %v587 = vld [vmem:[%s453 + $0xd8] sm:$0xff]
          %v588 = vld [vmem:[%s453 + $0xe0] sm:$0xf]
          %v589 = vld [vmem:[%s453 + $0xe4] sm:$0xff]
          %v590 = vld [vmem:[%s453 + $0xec] sm:$0xff]
          %v591 = vld [vmem:[%s453 + $0xf4] sm:$0xff]
          %v592 = vld [vmem:[%s453 + $0xfc] sm:$0xff]
          %v593 = vld [vmem:[%s453 + $0x104] sm:$0xff]
          %v594 = vld [vmem:[%s453 + $0x10c] sm:$0xff]
          %v595 = vld [vmem:[%s453 + $0x114] sm:$0xff]
          %v596 = vld [vmem:[%s453 + $0x11c] sm:$0xff]
          %v597 = vld [vmem:[%s453 + $0x124] sm:$0xff]
          %v598 = vld [vmem:[%s453 + $0x12c] sm:$0xf]
          %v599 = vld [vmem:[%s453 + $0x130] sm:$0xff]
          %v600 = vld [vmem:[%s453 + $0x138] sm:$0xff]
          %v601 = vld [vmem:[%s453 + $0x140] sm:$0xff]
          %v602 = vld [vmem:[%s453 + $0x148] sm:$0xff]
          %v603 = vld [vmem:[%s453 + $0x150] sm:$0xff]
          %v604 = vld [vmem:[%s453 + $0x158] sm:$0xff]
          %v605 = vld [vmem:[%s453 + $0x160] sm:$0xff]
          %v606 = vld [vmem:[%s453 + $0x168] sm:$0xff]
          %v607 = vld [vmem:[%s453 + $0x170] sm:$0xff]
          %v608 = vld [vmem:[%s453 + $0x178] sm:$0xf]
          %v609 = vld [vmem:[%s453 + $0x17c] sm:$0xff]
          %v610 = vld [vmem:[%s453 + $0x184] sm:$0xff]
          %v611 = vld [vmem:[%s453 + $0x18c] sm:$0xff]
          %v612 = vld [vmem:[%s453 + $0x194] sm:$0xff]
          %v613 = vld [vmem:[%s453 + $0x19c] sm:$0xff]
          %v614 = vld [vmem:[%s453 + $0x1a4] sm:$0xff]
          %v615 = vld [vmem:[%s453 + $0x1ac] sm:$0xff]
          %v616 = vld [vmem:[%s453 + $0x1b4] sm:$0xff]
          %v617 = vld [vmem:[%s453 + $0x1bc] sm:$0xff]
          %v618 = vld [vmem:[%s453 + $0x1c4] sm:$0xf]
          %v619 = vld [vmem:[%s453 + $0x1c8] sm:$0xff]
          %v620 = vld [vmem:[%s453 + $0x1d0] sm:$0xff]
          %v621 = vld [vmem:[%s453 + $0x1d8] sm:$0xff]
          %v622 = vld [vmem:[%s453 + $0x1e0] sm:$0xff]
          %v623 = vld [vmem:[%s453 + $0x1e8] sm:$0xff]
          %v624 = vld [vmem:[%s453 + $0x1f0] sm:$0xff]
          %v625 = vld [vmem:[%s453 + $0x1f8] sm:$0xff]
          %v626 = vld [vmem:[%s453 + $0x200] sm:$0xff]
          %v627 = vld [vmem:[%s453 + $0x208] sm:$0xff]
          %v628 = vld [vmem:[%s453 + $0x210] sm:$0xf]
          %v629 = vld [vmem:[%s453 + $0x214] sm:$0xff]
          %v630 = vld [vmem:[%s453 + $0x21c] sm:$0xff]
          %v631 = vld [vmem:[%s453 + $0x224] sm:$0xff]
          %v632 = vld [vmem:[%s453 + $0x22c] sm:$0xff]
          %v633 = vld [vmem:[%s453 + $0x234] sm:$0xff]
          %v634 = vld [vmem:[%s453 + $0x23c] sm:$0xff]
          %v635 = vld [vmem:[%s453 + $0x244] sm:$0xff]
          %v636 = vld [vmem:[%s453 + $0x24c] sm:$0xff]
          %v637 = vld [vmem:[%s453 + $0x254] sm:$0xff]
          %v638 = vld [vmem:[%s453 + $0x25c] sm:$0xf]
          %v639 = vld [vmem:[%s462] sm:$0xff]
          %v640 = vld [vmem:[%s462 + $0x8] sm:$0xff]
          %v641 = vld [vmem:[%s462 + $0x10] sm:$0xff]
          %v642 = vld [vmem:[%s462 + $0x18] sm:$0xff]
          %v643 = vld [vmem:[%s462 + $0x20] sm:$0xff]
          %v644 = vld [vmem:[%s462 + $0x28] sm:$0xff]
          %v645 = vld [vmem:[%s462 + $0x30] sm:$0xff]
          %v646 = vld [vmem:[%s462 + $0x38] sm:$0xff]
          %v647 = vld [vmem:[%s462 + $0x40] sm:$0xff]
          %v648 = vld [vmem:[%s462 + $0x48] sm:$0xff]
          %v649 = vld [vmem:[%s462 + $0x50] sm:$0xff]
          %v650 = vld [vmem:[%s462 + $0x58] sm:$0xff]
          %v651 = vld [vmem:[%s462 + $0x60] sm:$0xff]
          %v652 = vld [vmem:[%s462 + $0x68] sm:$0xff]
          %v653 = vld [vmem:[%s462 + $0x70] sm:$0xff]
          %v654 = vld [vmem:[%s462 + $0x78] sm:$0xff]
          %v655 = vld [vmem:[%s462 + $0x80] sm:$0xff]
          %v656 = vld [vmem:[%s462 + $0x88] sm:$0xff]
          %v657 = vld [vmem:[%s462 + $0x90] sm:$0xff]
          %v658 = vld [vmem:[%s462 + $0x98] sm:$0xff]
          %v659 = vld [vmem:[%s462 + $0xa0] sm:$0xff]
          %v660 = vld [vmem:[%s462 + $0xa8] sm:$0xff]
          %v661 = vld [vmem:[%s462 + $0xb0] sm:$0xff]
          %v662 = vld [vmem:[%s462 + $0xb8] sm:$0xff]
          %v663 = vld [vmem:[%s462 + $0xc0] sm:$0xff]
          %v664 = vld [vmem:[%s462 + $0xc8] sm:$0xff]
          %v665 = vld [vmem:[%s462 + $0xd0] sm:$0xff]
          %v666 = vld [vmem:[%s462 + $0xd8] sm:$0xff]
          %v667 = vld [vmem:[%s462 + $0xe0] sm:$0xff]
          %v668 = vld [vmem:[%s462 + $0xe8] sm:$0xff]
          %v669 = vld [vmem:[%s462 + $0xf0] sm:$0xff]
          %v670 = vld [vmem:[%s462 + $0xf8] sm:$0xff]
          %v671 = vld [vmem:[%s462 + $0x100] sm:$0xff]
          %v672 = vld [vmem:[%s462 + $0x108] sm:$0xff]
          %v673 = vld [vmem:[%s462 + $0x110] sm:$0xff]
          %v674 = vld [vmem:[%s462 + $0x118] sm:$0xff]
          %v675 = vld [vmem:[%s462 + $0x120] sm:$0xff]
          %v676 = vld [vmem:[%s462 + $0x128] sm:$0xff]
          %v677 = vld [vmem:[%s462 + $0x130] sm:$0xff]
          %v678 = vld [vmem:[%s462 + $0x138] sm:$0xff]
          %v679 = vld [vmem:[%s462 + $0x140] sm:$0xff]
          %v680 = vld [vmem:[%s462 + $0x148] sm:$0xff]
          %v681 = vld [vmem:[%s462 + $0x150] sm:$0xff]
          %v682 = vld [vmem:[%s462 + $0x158] sm:$0xff]
          %v683 = vld [vmem:[%s462 + $0x160] sm:$0xff]
          %v684 = vld [vmem:[%s462 + $0x168] sm:$0xff]
          %v685 = vld [vmem:[%s462 + $0x170] sm:$0xff]
          %v686 = vld [vmem:[%s462 + $0x178] sm:$0xff]
          %v687 = vld [vmem:[%s462 + $0x180] sm:$0xff]
          %v688 = vld [vmem:[%s462 + $0x188] sm:$0xff]
          %v689 = vld [vmem:[%s462 + $0x190] sm:$0xff]
          %v690 = vld [vmem:[%s462 + $0x198] sm:$0xff]
          %v691 = vld [vmem:[%s462 + $0x1a0] sm:$0xff]
          %v692 = vld [vmem:[%s462 + $0x1a8] sm:$0xff]
          %v693 = vld [vmem:[%s462 + $0x1b0] sm:$0xff]
          %v694 = vld [vmem:[%s462 + $0x1b8] sm:$0xff]
          %v695 = vld [vmem:[%s462 + $0x1c0] sm:$0xff]
          %v696 = vld [vmem:[%s462 + $0x1c8] sm:$0xff]
          %v697 = vld [vmem:[%s462 + $0x1d0] sm:$0xff]
          %v698 = vld [vmem:[%s462 + $0x1d8] sm:$0xff]
          %v699 = vld [vmem:[%s462 + $0x1e0] sm:$0xff]
          %v700 = vld [vmem:[%s462 + $0x1e8] sm:$0xff]
          %v701 = vld [vmem:[%s462 + $0x1f0] sm:$0xff]
          %v702 = vld [vmem:[%s462 + $0x1f8] sm:$0xff]
          %v703 = vld [vmem:[%s462 + $0x200] sm:$0xff]
          %v704 = vld [vmem:[%s462 + $0x208] sm:$0xff]
          %v705 = vld [vmem:[%s462 + $0x210] sm:$0xff]
          %v706 = vld [vmem:[%s462 + $0x218] sm:$0xff]
          %v707 = vld [vmem:[%s462 + $0x220] sm:$0xff]
          %v708 = vld [vmem:[%s462 + $0x228] sm:$0xff]
          %v709 = vld [vmem:[%s462 + $0x230] sm:$0xff]
          %v710 = vld [vmem:[%s462 + $0x238] sm:$0xff]
          %v711 = vld [vmem:[%s462 + $0x240] sm:$0xff]
          %v712 = vld [vmem:[%s462 + $0x248] sm:$0xff]
          %v713 = vld [vmem:[%s462 + $0x250] sm:$0xff]
          %v714 = vld [vmem:[%s462 + $0x258] sm:$0xff]
          %v715 = vld [vmem:[%s462 + $0x260] sm:$0xff]
          %v716 = vld [vmem:[%s462 + $0x268] sm:$0xff]
          %v717 = vld [vmem:[%s462 + $0x270] sm:$0xff]
          %v718 = vld [vmem:[%s462 + $0x278] sm:$0xff]
          %v719 = vld [vmem:[%s462 + $0x280] sm:$0xff]
          %v720 = vld [vmem:[%s462 + $0x288] sm:$0xff]
          %v721 = vld [vmem:[%s462 + $0x290] sm:$0xff]
          %v722 = vld [vmem:[%s462 + $0x298] sm:$0xff]
          %v723 = vld [vmem:[%s462 + $0x2a0] sm:$0xff]
          %v724 = vld [vmem:[%s462 + $0x2a8] sm:$0xff]
          %v725 = vld [vmem:[%s462 + $0x2b0] sm:$0xff]
          %v726 = vld [vmem:[%s462 + $0x2b8] sm:$0xff]
          %v727 = vld [vmem:[%s462 + $0x2c0] sm:$0xff]
          %v728 = vld [vmem:[%s462 + $0x2c8] sm:$0xff]
          %v729 = vld [vmem:[%s462 + $0x2d0] sm:$0xff]
          %v730 = vld [vmem:[%s462 + $0x2d8] sm:$0xff]
          %v731 = vld [vmem:[%s462 + $0x2e0] sm:$0xff]
          %v732 = vld [vmem:[%s462 + $0x2e8] sm:$0xff]
          %v733 = vld [vmem:[%s462 + $0x2f0] sm:$0xff]
          %v734 = vld [vmem:[%s462 + $0x2f8] sm:$0xff]
          %v735 = vld [vmem:[%s462 + $0x300] sm:$0xff]
          %v736 = vld [vmem:[%s462 + $0x308] sm:$0xff]
          %v737 = vld [vmem:[%s462 + $0x310] sm:$0xff]
          %v738 = vld [vmem:[%s462 + $0x318] sm:$0xff]
          %v739 = vld [vmem:[%s462 + $0x320] sm:$0xff]
          %v740 = vld [vmem:[%s462 + $0x328] sm:$0xff]
          %v741 = vld [vmem:[%s462 + $0x330] sm:$0xff]
          %v742 = vld [vmem:[%s462 + $0x338] sm:$0xff]
          %v743 = vld [vmem:[%s462 + $0x340] sm:$0xff]
          %v744 = vld [vmem:[%s462 + $0x348] sm:$0xff]
          %v745 = vld [vmem:[%s462 + $0x350] sm:$0xff]
          %v746 = vld [vmem:[%s462 + $0x358] sm:$0xff]
          %v747 = vld [vmem:[%s462 + $0x360] sm:$0xff]
          %v748 = vld [vmem:[%s462 + $0x368] sm:$0xff]
          %v749 = vld [vmem:[%s462 + $0x370] sm:$0xff]
          %v750 = vld [vmem:[%s462 + $0x378] sm:$0xff]
          %v751 = vld [vmem:[%s462 + $0x380] sm:$0xff]
          %v752 = vld [vmem:[%s462 + $0x388] sm:$0xff]
          %v753 = vld [vmem:[%s462 + $0x390] sm:$0xff]
          %v754 = vld [vmem:[%s462 + $0x398] sm:$0xff]
          %v755 = vld [vmem:[%s462 + $0x3a0] sm:$0xff]
          %v756 = vld [vmem:[%s462 + $0x3a8] sm:$0xff]
          %v757 = vld [vmem:[%s462 + $0x3b0] sm:$0xff]
          %v758 = vld [vmem:[%s462 + $0x3b8] sm:$0xff]
          %v759 = vld [vmem:[%s462 + $0x3c0] sm:$0xff]
          %v760 = vld [vmem:[%s462 + $0x3c8] sm:$0xff]
          %v761 = vld [vmem:[%s462 + $0x3d0] sm:$0xff]
          %v762 = vld [vmem:[%s462 + $0x3d8] sm:$0xff]
          %v763 = vld [vmem:[%s462 + $0x3e0] sm:$0xff]
          %v764 = vld [vmem:[%s462 + $0x3e8] sm:$0xff]
          %v765 = vld [vmem:[%s462 + $0x3f0] sm:$0xff]
          %v766 = vld [vmem:[%s462 + $0x3f8] sm:$0xff]
          %v767 = vld [vmem:[%s462 + $0x400] sm:$0xff]
          %v768 = vld [vmem:[%s462 + $0x408] sm:$0xff]
          %v769 = vld [vmem:[%s462 + $0x410] sm:$0xff]
          %v770 = vld [vmem:[%s462 + $0x418] sm:$0xff]
          %v771 = vld [vmem:[%s462 + $0x420] sm:$0xff]
          %v772 = vld [vmem:[%s462 + $0x428] sm:$0xff]
          %v773 = vld [vmem:[%s462 + $0x430] sm:$0xff]
          %v774 = vld [vmem:[%s462 + $0x438] sm:$0xff]
          %v775 = vld [vmem:[%s462 + $0x440] sm:$0xff]
          %v776 = vld [vmem:[%s462 + $0x448] sm:$0xff]
          %v777 = vld [vmem:[%s462 + $0x450] sm:$0xff]
          %v778 = vld [vmem:[%s462 + $0x458] sm:$0xff]
          %v779 = vld [vmem:[%s462 + $0x460] sm:$0xff]
          %v780 = vld [vmem:[%s462 + $0x468] sm:$0xff]
          %v781 = vld [vmem:[%s462 + $0x470] sm:$0xff]
          %v782 = vld [vmem:[%s462 + $0x478] sm:$0xff]
          %v783 = vld [vmem:[%s462 + $0x480] sm:$0xff]
          %v784 = vld [vmem:[%s462 + $0x488] sm:$0xff]
          %v785 = vld [vmem:[%s462 + $0x490] sm:$0xff]
          %v786 = vld [vmem:[%s462 + $0x498] sm:$0xff]
          %v787 = vld [vmem:[%s462 + $0x4a0] sm:$0xff]
          %v788 = vld [vmem:[%s462 + $0x4a8] sm:$0xff]
          %v789 = vld [vmem:[%s462 + $0x4b0] sm:$0xff]
          %v790 = vld [vmem:[%s462 + $0x4b8] sm:$0xff]
          %v791 = vld [vmem:[%s462 + $0x4c0] sm:$0xff]
          %v792 = vld [vmem:[%s462 + $0x4c8] sm:$0xff]
          %v793 = vld [vmem:[%s462 + $0x4d0] sm:$0xff]
          %v794 = vld [vmem:[%s462 + $0x4d8] sm:$0xff]
          %v795 = vld [vmem:[%s462 + $0x4e0] sm:$0xff]
          %v796 = vld [vmem:[%s462 + $0x4e8] sm:$0xff]
          %v797 = vld [vmem:[%s462 + $0x4f0] sm:$0xff]
          %v798 = vld [vmem:[%s462 + $0x4f8] sm:$0xff]
          %v799 = vld [vmem:[%s462 + $0x500] sm:$0xff]
          %v800 = vld [vmem:[%s462 + $0x508] sm:$0xff]
          %v801 = vld [vmem:[%s462 + $0x510] sm:$0xff]
          %v802 = vld [vmem:[%s462 + $0x518] sm:$0xff]
          %v803 = vld [vmem:[%s462 + $0x520] sm:$0xff]
          %v804 = vld [vmem:[%s462 + $0x528] sm:$0xff]
          %v805 = vld [vmem:[%s462 + $0x530] sm:$0xff]
          %v806 = vld [vmem:[%s462 + $0x538] sm:$0xff]
          %v807 = vld [vmem:[%s462 + $0x540] sm:$0xff]
          %v808 = vld [vmem:[%s462 + $0x548] sm:$0xff]
          %v809 = vld [vmem:[%s462 + $0x550] sm:$0xff]
          %v810 = vld [vmem:[%s462 + $0x558] sm:$0xff]
          %v811 = vld [vmem:[%s462 + $0x560] sm:$0xff]
          %v812 = vld [vmem:[%s462 + $0x568] sm:$0xff]
          %v813 = vld [vmem:[%s462 + $0x570] sm:$0xff]
          %v814 = vld [vmem:[%s462 + $0x578] sm:$0xff]
          %v815 = vld [vmem:[%s462 + $0x580] sm:$0xff]
          %v816 = vld [vmem:[%s462 + $0x588] sm:$0xff]
          %v817 = vld [vmem:[%s462 + $0x590] sm:$0xff]
          %v818 = vld [vmem:[%s462 + $0x598] sm:$0xff]
          %v819 = vld [vmem:[%s462 + $0x5a0] sm:$0xff]
          %v820 = vld [vmem:[%s462 + $0x5a8] sm:$0xff]
          %v821 = vld [vmem:[%s462 + $0x5b0] sm:$0xff]
          %v822 = vld [vmem:[%s462 + $0x5b8] sm:$0xff]
          %v823 = vld [vmem:[%s462 + $0x5c0] sm:$0xff]
          %v824 = vld [vmem:[%s462 + $0x5c8] sm:$0xff]
          %v825 = vld [vmem:[%s462 + $0x5d0] sm:$0xff]
          %v826 = vld [vmem:[%s462 + $0x5d8] sm:$0xff]
          %v827 = vld [vmem:[%s462 + $0x5e0] sm:$0xff]
          %v828 = vld [vmem:[%s462 + $0x5e8] sm:$0xff]
          %v829 = vld [vmem:[%s462 + $0x5f0] sm:$0xff]
          %v830 = vld [vmem:[%s462 + $0x5f8] sm:$0xff]
          %v831 = vld [vmem:[%s462 + $0x600] sm:$0xff]
          %v832 = vld [vmem:[%s462 + $0x608] sm:$0xff]
          %v833 = vld [vmem:[%s462 + $0x610] sm:$0xff]
          %v834 = vld [vmem:[%s462 + $0x618] sm:$0xff]
          %v835 = vld [vmem:[%s462 + $0x620] sm:$0xff]
          %v836 = vld [vmem:[%s462 + $0x628] sm:$0xff]
          %v837 = vld [vmem:[%s462 + $0x630] sm:$0xff]
          %v838 = vld [vmem:[%s462 + $0x638] sm:$0xff]
          %v839 = vld [vmem:[%s462 + $0x640] sm:$0xff]
          %v840 = vld [vmem:[%s462 + $0x648] sm:$0xff]
          %v841 = vld [vmem:[%s462 + $0x650] sm:$0xff]
          %v842 = vld [vmem:[%s462 + $0x658] sm:$0xff]
          %v843 = vld [vmem:[%s462 + $0x660] sm:$0xff]
          %v844 = vld [vmem:[%s462 + $0x668] sm:$0xff]
          %v845 = vld [vmem:[%s462 + $0x670] sm:$0xff]
          %v846 = vld [vmem:[%s462 + $0x678] sm:$0xff]
          %v847 = vld [vmem:[%s462 + $0x680] sm:$0xff]
          %v848 = vld [vmem:[%s462 + $0x688] sm:$0xff]
          %v849 = vld [vmem:[%s462 + $0x690] sm:$0xff]
          %v850 = vld [vmem:[%s462 + $0x698] sm:$0xff]
          %v851 = vld [vmem:[%s462 + $0x6a0] sm:$0xff]
          %v852 = vld [vmem:[%s462 + $0x6a8] sm:$0xff]
          %v853 = vld [vmem:[%s462 + $0x6b0] sm:$0xff]
          %v854 = vld [vmem:[%s462 + $0x6b8] sm:$0xff]
          %v855 = vld [vmem:[%s462 + $0x6c0] sm:$0xff]
          %v856 = vld [vmem:[%s462 + $0x6c8] sm:$0xff]
          %v857 = vld [vmem:[%s462 + $0x6d0] sm:$0xff]
          %v858 = vld [vmem:[%s462 + $0x6d8] sm:$0xff]
          %v859 = vld [vmem:[%s462 + $0x6e0] sm:$0xff]
          %v860 = vld [vmem:[%s462 + $0x6e8] sm:$0xff]
          %v861 = vld [vmem:[%s462 + $0x6f0] sm:$0xff]
          %v862 = vld [vmem:[%s462 + $0x6f8] sm:$0xff]
          %v863 = vld [vmem:[%s462 + $0x700] sm:$0xff]
          %v864 = vld [vmem:[%s462 + $0x708] sm:$0xff]
          %v865 = vld [vmem:[%s462 + $0x710] sm:$0xff]
          %v866 = vld [vmem:[%s462 + $0x718] sm:$0xff]
          %v867 = vld [vmem:[%s462 + $0x720] sm:$0xff]
          %v868 = vld [vmem:[%s462 + $0x728] sm:$0xff]
          %v869 = vld [vmem:[%s462 + $0x730] sm:$0xff]
          %v870 = vld [vmem:[%s462 + $0x738] sm:$0xff]
          %v871 = vld [vmem:[%s462 + $0x740] sm:$0xff]
          %v872 = vld [vmem:[%s462 + $0x748] sm:$0xff]
          %v873 = vld [vmem:[%s462 + $0x750] sm:$0xff]
          %v874 = vld [vmem:[%s462 + $0x758] sm:$0xff]
          %v875 = vld [vmem:[%s462 + $0x760] sm:$0xff]
          %v876 = vld [vmem:[%s462 + $0x768] sm:$0xff]
          %v877 = vld [vmem:[%s462 + $0x770] sm:$0xff]
          %v878 = vld [vmem:[%s462 + $0x778] sm:$0xff]
          %v879 = vld [vmem:[%s462 + $0x780] sm:$0xff]
          %v880 = vld [vmem:[%s462 + $0x788] sm:$0xff]
          %v881 = vld [vmem:[%s462 + $0x790] sm:$0xff]
          %v882 = vld [vmem:[%s462 + $0x798] sm:$0xff]
          %v883 = vld [vmem:[%s462 + $0x7a0] sm:$0xff]
          %v884 = vld [vmem:[%s462 + $0x7a8] sm:$0xff]
          %v885 = vld [vmem:[%s462 + $0x7b0] sm:$0xff]
          %v886 = vld [vmem:[%s462 + $0x7b8] sm:$0xff]
          %v887 = vld [vmem:[%s462 + $0x7c0] sm:$0xff]
          %v888 = vld [vmem:[%s462 + $0x7c8] sm:$0xff]
          %v889 = vld [vmem:[%s462 + $0x7d0] sm:$0xff]
          %v890 = vld [vmem:[%s462 + $0x7d8] sm:$0xff]
          %v891 = vld [vmem:[%s462 + $0x7e0] sm:$0xff]
          %v892 = vld [vmem:[%s462 + $0x7e8] sm:$0xff]
          %v893 = vld [vmem:[%s462 + $0x7f0] sm:$0xff]
          %v894 = vld [vmem:[%s462 + $0x7f8] sm:$0xff]
          %v895 = vld [vmem:[%s462 + $0x800] sm:$0xff]
          %v896 = vld [vmem:[%s462 + $0x808] sm:$0xff]
          %v897 = vld [vmem:[%s462 + $0x810] sm:$0xff]
          %v898 = vld [vmem:[%s462 + $0x818] sm:$0xff]
          %v899 = vld [vmem:[%s462 + $0x820] sm:$0xff]
          %v900 = vld [vmem:[%s462 + $0x828] sm:$0xff]
          %v901 = vld [vmem:[%s462 + $0x830] sm:$0xff]
          %v902 = vld [vmem:[%s462 + $0x838] sm:$0xff]
          %v903 = vld [vmem:[%s462 + $0x840] sm:$0xff]
          %v904 = vld [vmem:[%s462 + $0x848] sm:$0xff]
          %v905 = vld [vmem:[%s462 + $0x850] sm:$0xff]
          %v906 = vld [vmem:[%s462 + $0x858] sm:$0xff]
          %v907 = vld [vmem:[%s462 + $0x860] sm:$0xff]
          %v908 = vld [vmem:[%s462 + $0x868] sm:$0xff]
          %v909 = vld [vmem:[%s462 + $0x870] sm:$0xff]
          %v910 = vld [vmem:[%s462 + $0x878] sm:$0xff]
          %v911 = vld [vmem:[%s462 + $0x880] sm:$0xff]
          %v912 = vld [vmem:[%s462 + $0x888] sm:$0xff]
          %v913 = vld [vmem:[%s462 + $0x890] sm:$0xff]
          %v914 = vld [vmem:[%s462 + $0x898] sm:$0xff]
          %v915 = vld [vmem:[%s462 + $0x8a0] sm:$0xff]
          %v916 = vld [vmem:[%s462 + $0x8a8] sm:$0xff]
          %v917 = vld [vmem:[%s462 + $0x8b0] sm:$0xff]
          %v918 = vld [vmem:[%s462 + $0x8b8] sm:$0xff]
          %v919 = vld [vmem:[%s462 + $0x8c0] sm:$0xff]
          %v920 = vld [vmem:[%s462 + $0x8c8] sm:$0xff]
          %v921 = vld [vmem:[%s462 + $0x8d0] sm:$0xff]
          %v922 = vld [vmem:[%s462 + $0x8d8] sm:$0xff]
          %v923 = vld [vmem:[%s462 + $0x8e0] sm:$0xff]
          %v924 = vld [vmem:[%s462 + $0x8e8] sm:$0xff]
          %v925 = vld [vmem:[%s462 + $0x8f0] sm:$0xff]
          %v926 = vld [vmem:[%s462 + $0x8f8] sm:$0xff]
          %v927 = vld [vmem:[%s462 + $0x900] sm:$0xff]
          %v928 = vld [vmem:[%s462 + $0x908] sm:$0xff]
          %v929 = vld [vmem:[%s462 + $0x910] sm:$0xff]
          %v930 = vld [vmem:[%s462 + $0x918] sm:$0xff]
          %v931 = vld [vmem:[%s462 + $0x920] sm:$0xff]
          %v932 = vld [vmem:[%s462 + $0x928] sm:$0xff]
          %v933 = vld [vmem:[%s462 + $0x930] sm:$0xff]
          %v934 = vld [vmem:[%s462 + $0x938] sm:$0xff]
          %v935 = vld [vmem:[%s462 + $0x940] sm:$0xff]
          %v936 = vld [vmem:[%s462 + $0x948] sm:$0xff]
          %v937 = vld [vmem:[%s462 + $0x950] sm:$0xff]
          %v938 = vld [vmem:[%s462 + $0x958] sm:$0xff]
          %v939 = vld [vmem:[%s462 + $0x960] sm:$0xff]
          %v940 = vld [vmem:[%s462 + $0x968] sm:$0xff]
          %v941 = vld [vmem:[%s462 + $0x970] sm:$0xff]
          %v942 = vld [vmem:[%s462 + $0x978] sm:$0xff]
          %v943 = vld [vmem:[%s471] sm:$0x3]
          %v945 = vlaneseq
          %v946 = vshrl.u32 %v945, 7
          %v947 = vsub.s32 0, %v946
          %v948 = vrot.slane %v943, %v947
          %v949 = vlaneseq
          %v950 = vshrl.u32 %v949, 7
          %v951 = vsub.s32 1, %v950
          %v952 = vrot.slane %v943, %v951
          %v1035 = vunpack.c.l.b16 %v559
          %v1036 = vunpack.c.h.b16 %v559
          %v1037 = vunpack.c.l.b16 %v560
          %v1038 = vunpack.c.h.b16 %v560
          %v1039 = vunpack.c.l.b16 %v561
          %v1040 = vunpack.c.h.b16 %v561
          %v1041 = vunpack.c.l.b16 %v562
          %v1042 = vunpack.c.h.b16 %v562
          %v1043 = vunpack.c.l.b16 %v563
          %v1044 = vunpack.c.h.b16 %v563
          %v1045 = vunpack.c.l.b16 %v564
          %v1046 = vunpack.c.h.b16 %v564
          %v1047 = vunpack.c.l.b16 %v565
          %v1048 = vunpack.c.h.b16 %v565
          %v1049 = vunpack.c.l.b16 %v566
          %v1050 = vunpack.c.h.b16 %v566
          %v1051 = vunpack.c.l.b16 %v567
          %v1052 = vunpack.c.h.b16 %v567
          %v1053 = vunpack.c.l.b16 %v568
          %v1054 = vunpack.c.l.b16 %v569
          %v1055 = vunpack.c.h.b16 %v569
          %v1056 = vunpack.c.l.b16 %v570
          %v1057 = vunpack.c.h.b16 %v570
          %v1058 = vunpack.c.l.b16 %v571
          %v1059 = vunpack.c.h.b16 %v571
          %v1060 = vunpack.c.l.b16 %v572
          %v1061 = vunpack.c.h.b16 %v572
          %v1062 = vunpack.c.l.b16 %v573
          %v1063 = vunpack.c.h.b16 %v573
          %v1064 = vunpack.c.l.b16 %v574
          %v1065 = vunpack.c.h.b16 %v574
          %v1066 = vunpack.c.l.b16 %v575
          %v1067 = vunpack.c.h.b16 %v575
          %v1068 = vunpack.c.l.b16 %v576
          %v1069 = vunpack.c.h.b16 %v576
          %v1070 = vunpack.c.l.b16 %v577
          %v1071 = vunpack.c.h.b16 %v577
          %v1072 = vunpack.c.l.b16 %v578
          %v1073 = vunpack.c.l.b16 %v579
          %v1074 = vunpack.c.h.b16 %v579
          %v1075 = vunpack.c.l.b16 %v580
          %v1076 = vunpack.c.h.b16 %v580
          %v1077 = vunpack.c.l.b16 %v581
          %v1078 = vunpack.c.h.b16 %v581
          %v1079 = vunpack.c.l.b16 %v582
          %v1080 = vunpack.c.h.b16 %v582
          %v1081 = vunpack.c.l.b16 %v583
          %v1082 = vunpack.c.h.b16 %v583
          %v1083 = vunpack.c.l.b16 %v584
          %v1084 = vunpack.c.h.b16 %v584
          %v1085 = vunpack.c.l.b16 %v585
          %v1086 = vunpack.c.h.b16 %v585
          %v1087 = vunpack.c.l.b16 %v586
          %v1088 = vunpack.c.h.b16 %v586
          %v1089 = vunpack.c.l.b16 %v587
          %v1090 = vunpack.c.h.b16 %v587
          %v1091 = vunpack.c.l.b16 %v588
          %v1092 = vunpack.c.l.b16 %v589
          %v1093 = vunpack.c.h.b16 %v589
          %v1094 = vunpack.c.l.b16 %v590
          %v1095 = vunpack.c.h.b16 %v590
          %v1096 = vunpack.c.l.b16 %v591
          %v1097 = vunpack.c.h.b16 %v591
          %v1098 = vunpack.c.l.b16 %v592
          %v1099 = vunpack.c.h.b16 %v592
          %v1100 = vunpack.c.l.b16 %v593
          %v1101 = vunpack.c.h.b16 %v593
          %v1102 = vunpack.c.l.b16 %v594
          %v1103 = vunpack.c.h.b16 %v594
          %v1104 = vunpack.c.l.b16 %v595
          %v1105 = vunpack.c.h.b16 %v595
          %v1106 = vunpack.c.l.b16 %v596
          %v1107 = vunpack.c.h.b16 %v596
          %v1108 = vunpack.c.l.b16 %v597
          %v1109 = vunpack.c.h.b16 %v597
          %v1110 = vunpack.c.l.b16 %v598
          %v1111 = vunpack.c.l.b16 %v599
          %v1112 = vunpack.c.h.b16 %v599
          %v1113 = vunpack.c.l.b16 %v600
          %v1114 = vunpack.c.h.b16 %v600
          %v1115 = vunpack.c.l.b16 %v601
          %v1116 = vunpack.c.h.b16 %v601
          %v1117 = vunpack.c.l.b16 %v602
          %v1118 = vunpack.c.h.b16 %v602
          %v1119 = vunpack.c.l.b16 %v603
          %v1120 = vunpack.c.h.b16 %v603
          %v1121 = vunpack.c.l.b16 %v604
          %v1122 = vunpack.c.h.b16 %v604
          %v1123 = vunpack.c.l.b16 %v605
          %v1124 = vunpack.c.h.b16 %v605
          %v1125 = vunpack.c.l.b16 %v606
          %v1126 = vunpack.c.h.b16 %v606
          %v1127 = vunpack.c.l.b16 %v607
          %v1128 = vunpack.c.h.b16 %v607
          %v1129 = vunpack.c.l.b16 %v608
          %v1130 = vunpack.c.l.b16 %v609
          %v1131 = vunpack.c.h.b16 %v609
          %v1132 = vunpack.c.l.b16 %v610
          %v1133 = vunpack.c.h.b16 %v610
          %v1134 = vunpack.c.l.b16 %v611
          %v1135 = vunpack.c.h.b16 %v611
          %v1136 = vunpack.c.l.b16 %v612
          %v1137 = vunpack.c.h.b16 %v612
          %v1138 = vunpack.c.l.b16 %v613
          %v1139 = vunpack.c.h.b16 %v613
          %v1140 = vunpack.c.l.b16 %v614
          %v1141 = vunpack.c.h.b16 %v614
          %v1142 = vunpack.c.l.b16 %v615
          %v1143 = vunpack.c.h.b16 %v615
          %v1144 = vunpack.c.l.b16 %v616
          %v1145 = vunpack.c.h.b16 %v616
          %v1146 = vunpack.c.l.b16 %v617
          %v1147 = vunpack.c.h.b16 %v617
          %v1148 = vunpack.c.l.b16 %v618
          %v1149 = vunpack.c.l.b16 %v619
          %v1150 = vunpack.c.h.b16 %v619
          %v1151 = vunpack.c.l.b16 %v620
          %v1152 = vunpack.c.h.b16 %v620
          %v1153 = vunpack.c.l.b16 %v621
          %v1154 = vunpack.c.h.b16 %v621
          %v1155 = vunpack.c.l.b16 %v622
          %v1156 = vunpack.c.h.b16 %v622
          %v1157 = vunpack.c.l.b16 %v623
          %v1158 = vunpack.c.h.b16 %v623
          %v1159 = vunpack.c.l.b16 %v624
          %v1160 = vunpack.c.h.b16 %v624
          %v1161 = vunpack.c.l.b16 %v625
          %v1162 = vunpack.c.h.b16 %v625
          %v1163 = vunpack.c.l.b16 %v626
          %v1164 = vunpack.c.h.b16 %v626
          %v1165 = vunpack.c.l.b16 %v627
          %v1166 = vunpack.c.h.b16 %v627
          %v1167 = vunpack.c.l.b16 %v628
          %v1168 = vunpack.c.l.b16 %v629
          %v1169 = vunpack.c.h.b16 %v629
          %v1170 = vunpack.c.l.b16 %v630
          %v1171 = vunpack.c.h.b16 %v630
          %v1172 = vunpack.c.l.b16 %v631
          %v1173 = vunpack.c.h.b16 %v631
          %v1174 = vunpack.c.l.b16 %v632
          %v1175 = vunpack.c.h.b16 %v632
          %v1176 = vunpack.c.l.b16 %v633
          %v1177 = vunpack.c.h.b16 %v633
          %v1178 = vunpack.c.l.b16 %v634
          %v1179 = vunpack.c.h.b16 %v634
          %v1180 = vunpack.c.l.b16 %v635
          %v1181 = vunpack.c.h.b16 %v635
          %v1182 = vunpack.c.l.b16 %v636
          %v1183 = vunpack.c.h.b16 %v636
          %v1184 = vunpack.c.l.b16 %v637
          %v1185 = vunpack.c.h.b16 %v637
          %v1186 = vunpack.c.l.b16 %v638
          %v1187 = vpack.c.b16 %v1054, %v1035
          %v1188 = vpack.c.b16 %v1055, %v1036
          %v1189 = vpack.c.b16 %v1056, %v1037
          %v1190 = vpack.c.b16 %v1057, %v1038
          %v1191 = vpack.c.b16 %v1058, %v1039
          %v1192 = vpack.c.b16 %v1059, %v1040
          %v1193 = vpack.c.b16 %v1060, %v1041
          %v1194 = vpack.c.b16 %v1061, %v1042
          %v1195 = vpack.c.b16 %v1062, %v1043
          %v1196 = vpack.c.b16 %v1063, %v1044
          %v1197 = vpack.c.b16 %v1064, %v1045
          %v1198 = vpack.c.b16 %v1065, %v1046
          %v1199 = vpack.c.b16 %v1066, %v1047
          %v1200 = vpack.c.b16 %v1067, %v1048
          %v1201 = vpack.c.b16 %v1068, %v1049
          %v1202 = vpack.c.b16 %v1069, %v1050
          %v1203 = vpack.c.b16 %v1070, %v1051
          %v1204 = vpack.c.b16 %v1071, %v1052
          %v1205 = vpack.c.b16 %v1072, %v1053
          %v1206 = vpack.c.b16 %v1092, %v1073
          %v1207 = vpack.c.b16 %v1093, %v1074
          %v1208 = vpack.c.b16 %v1094, %v1075
          %v1209 = vpack.c.b16 %v1095, %v1076
          %v1210 = vpack.c.b16 %v1096, %v1077
          %v1211 = vpack.c.b16 %v1097, %v1078
          %v1212 = vpack.c.b16 %v1098, %v1079
          %v1213 = vpack.c.b16 %v1099, %v1080
          %v1214 = vpack.c.b16 %v1100, %v1081
          %v1215 = vpack.c.b16 %v1101, %v1082
          %v1216 = vpack.c.b16 %v1102, %v1083
          %v1217 = vpack.c.b16 %v1103, %v1084
          %v1218 = vpack.c.b16 %v1104, %v1085
          %v1219 = vpack.c.b16 %v1105, %v1086
          %v1220 = vpack.c.b16 %v1106, %v1087
          %v1221 = vpack.c.b16 %v1107, %v1088
          %v1222 = vpack.c.b16 %v1108, %v1089
          %v1223 = vpack.c.b16 %v1109, %v1090
          %v1224 = vpack.c.b16 %v1110, %v1091
          %v1225 = vpack.c.b16 %v1130, %v1111
          %v1226 = vpack.c.b16 %v1131, %v1112
          %v1227 = vpack.c.b16 %v1132, %v1113
          %v1228 = vpack.c.b16 %v1133, %v1114
          %v1229 = vpack.c.b16 %v1134, %v1115
          %v1230 = vpack.c.b16 %v1135, %v1116
          %v1231 = vpack.c.b16 %v1136, %v1117
          %v1232 = vpack.c.b16 %v1137, %v1118
          %v1233 = vpack.c.b16 %v1138, %v1119
          %v1234 = vpack.c.b16 %v1139, %v1120
          %v1235 = vpack.c.b16 %v1140, %v1121
          %v1236 = vpack.c.b16 %v1141, %v1122
          %v1237 = vpack.c.b16 %v1142, %v1123
          %v1238 = vpack.c.b16 %v1143, %v1124
          %v1239 = vpack.c.b16 %v1144, %v1125
          %v1240 = vpack.c.b16 %v1145, %v1126
          %v1241 = vpack.c.b16 %v1146, %v1127
          %v1242 = vpack.c.b16 %v1147, %v1128
          %v1243 = vpack.c.b16 %v1148, %v1129
          %v1244 = vpack.c.b16 %v1168, %v1149
          %v1245 = vpack.c.b16 %v1169, %v1150
          %v1246 = vpack.c.b16 %v1170, %v1151
          %v1247 = vpack.c.b16 %v1171, %v1152
          %v1248 = vpack.c.b16 %v1172, %v1153
          %v1249 = vpack.c.b16 %v1173, %v1154
          %v1250 = vpack.c.b16 %v1174, %v1155
          %v1251 = vpack.c.b16 %v1175, %v1156
          %v1252 = vpack.c.b16 %v1176, %v1157
          %v1253 = vpack.c.b16 %v1177, %v1158
          %v1254 = vpack.c.b16 %v1178, %v1159
          %v1255 = vpack.c.b16 %v1179, %v1160
          %v1256 = vpack.c.b16 %v1180, %v1161
          %v1257 = vpack.c.b16 %v1181, %v1162
          %v1258 = vpack.c.b16 %v1182, %v1163
          %v1259 = vpack.c.b16 %v1183, %v1164
          %v1260 = vpack.c.b16 %v1184, %v1165
          %v1261 = vpack.c.b16 %v1185, %v1166
          %v1262 = vpack.c.b16 %v1186, %v1167
          %v1643 = vunpack.c.l.b16 %v639
          %v1644 = vunpack.c.h.b16 %v639
          %v1645 = vunpack.c.l.b16 %v640
          %v1646 = vunpack.c.h.b16 %v640
          %v1647 = vunpack.c.l.b16 %v641
          %v1648 = vunpack.c.h.b16 %v641
          %v1649 = vunpack.c.l.b16 %v642
          %v1650 = vunpack.c.h.b16 %v642
          %v1651 = vunpack.c.l.b16 %v643
          %v1652 = vunpack.c.h.b16 %v643
          %v1653 = vunpack.c.l.b16 %v644
          %v1654 = vunpack.c.h.b16 %v644
          %v1655 = vunpack.c.l.b16 %v645
          %v1656 = vunpack.c.h.b16 %v645
          %v1657 = vunpack.c.l.b16 %v646
          %v1658 = vunpack.c.h.b16 %v646
          %v1659 = vunpack.c.l.b16 %v647
          %v1660 = vunpack.c.h.b16 %v647
          %v1661 = vunpack.c.l.b16 %v648
          %v1662 = vunpack.c.h.b16 %v648
          %v1663 = vunpack.c.l.b16 %v649
          %v1664 = vunpack.c.h.b16 %v649
          %v1665 = vunpack.c.l.b16 %v650
          %v1666 = vunpack.c.h.b16 %v650
          %v1667 = vunpack.c.l.b16 %v651
          %v1668 = vunpack.c.h.b16 %v651
          %v1669 = vunpack.c.l.b16 %v652
          %v1670 = vunpack.c.h.b16 %v652
          %v1671 = vunpack.c.l.b16 %v653
          %v1672 = vunpack.c.h.b16 %v653
          %v1673 = vunpack.c.l.b16 %v654
          %v1674 = vunpack.c.h.b16 %v654
          %v1675 = vunpack.c.l.b16 %v655
          %v1676 = vunpack.c.h.b16 %v655
          %v1677 = vunpack.c.l.b16 %v656
          %v1678 = vunpack.c.h.b16 %v656
          %v1679 = vunpack.c.l.b16 %v657
          %v1680 = vunpack.c.h.b16 %v657
          %v1681 = vunpack.c.l.b16 %v658
          %v1682 = vunpack.c.h.b16 %v658
          %v1683 = vunpack.c.l.b16 %v659
          %v1684 = vunpack.c.h.b16 %v659
          %v1685 = vunpack.c.l.b16 %v660
          %v1686 = vunpack.c.h.b16 %v660
          %v1687 = vunpack.c.l.b16 %v661
          %v1688 = vunpack.c.h.b16 %v661
          %v1689 = vunpack.c.l.b16 %v662
          %v1690 = vunpack.c.h.b16 %v662
          %v1691 = vunpack.c.l.b16 %v663
          %v1692 = vunpack.c.h.b16 %v663
          %v1693 = vunpack.c.l.b16 %v664
          %v1694 = vunpack.c.h.b16 %v664
          %v1695 = vunpack.c.l.b16 %v665
          %v1696 = vunpack.c.h.b16 %v665
          %v1697 = vunpack.c.l.b16 %v666
          %v1698 = vunpack.c.h.b16 %v666
          %v1699 = vunpack.c.l.b16 %v667
          %v1700 = vunpack.c.h.b16 %v667
          %v1701 = vunpack.c.l.b16 %v668
          %v1702 = vunpack.c.h.b16 %v668
          %v1703 = vunpack.c.l.b16 %v669
          %v1704 = vunpack.c.h.b16 %v669
          %v1705 = vunpack.c.l.b16 %v670
          %v1706 = vunpack.c.h.b16 %v670
          %v1707 = vunpack.c.l.b16 %v671
          %v1708 = vunpack.c.h.b16 %v671
          %v1709 = vunpack.c.l.b16 %v672
          %v1710 = vunpack.c.h.b16 %v672
          %v1711 = vunpack.c.l.b16 %v673
          %v1712 = vunpack.c.h.b16 %v673
          %v1713 = vunpack.c.l.b16 %v674
          %v1714 = vunpack.c.h.b16 %v674
          %v1715 = vunpack.c.l.b16 %v675
          %v1716 = vunpack.c.h.b16 %v675
          %v1717 = vunpack.c.l.b16 %v676
          %v1718 = vunpack.c.h.b16 %v676
          %v1719 = vunpack.c.l.b16 %v677
          %v1720 = vunpack.c.h.b16 %v677
          %v1721 = vunpack.c.l.b16 %v678
          %v1722 = vunpack.c.h.b16 %v678
          %v1723 = vunpack.c.l.b16 %v679
          %v1724 = vunpack.c.h.b16 %v679
          %v1725 = vunpack.c.l.b16 %v680
          %v1726 = vunpack.c.h.b16 %v680
          %v1727 = vunpack.c.l.b16 %v681
          %v1728 = vunpack.c.h.b16 %v681
          %v1729 = vunpack.c.l.b16 %v682
          %v1730 = vunpack.c.h.b16 %v682
          %v1731 = vunpack.c.l.b16 %v683
          %v1732 = vunpack.c.h.b16 %v683
          %v1733 = vunpack.c.l.b16 %v684
          %v1734 = vunpack.c.h.b16 %v684
          %v1735 = vunpack.c.l.b16 %v685
          %v1736 = vunpack.c.h.b16 %v685
          %v1737 = vunpack.c.l.b16 %v686
          %v1738 = vunpack.c.h.b16 %v686
          %v1739 = vunpack.c.l.b16 %v687
          %v1740 = vunpack.c.h.b16 %v687
          %v1741 = vunpack.c.l.b16 %v688
          %v1742 = vunpack.c.h.b16 %v688
          %v1743 = vunpack.c.l.b16 %v689
          %v1744 = vunpack.c.h.b16 %v689
          %v1745 = vunpack.c.l.b16 %v690
          %v1746 = vunpack.c.h.b16 %v690
          %v1747 = vunpack.c.l.b16 %v691
          %v1748 = vunpack.c.h.b16 %v691
          %v1749 = vunpack.c.l.b16 %v692
          %v1750 = vunpack.c.h.b16 %v692
          %v1751 = vunpack.c.l.b16 %v693
          %v1752 = vunpack.c.h.b16 %v693
          %v1753 = vunpack.c.l.b16 %v694
          %v1754 = vunpack.c.h.b16 %v694
          %v1755 = vunpack.c.l.b16 %v695
          %v1756 = vunpack.c.h.b16 %v695
          %v1757 = vunpack.c.l.b16 %v696
          %v1758 = vunpack.c.h.b16 %v696
          %v1759 = vunpack.c.l.b16 %v697
          %v1760 = vunpack.c.h.b16 %v697
          %v1761 = vunpack.c.l.b16 %v698
          %v1762 = vunpack.c.h.b16 %v698
          %v1763 = vunpack.c.l.b16 %v699
          %v1764 = vunpack.c.h.b16 %v699
          %v1765 = vunpack.c.l.b16 %v700
          %v1766 = vunpack.c.h.b16 %v700
          %v1767 = vunpack.c.l.b16 %v701
          %v1768 = vunpack.c.h.b16 %v701
          %v1769 = vunpack.c.l.b16 %v702
          %v1770 = vunpack.c.h.b16 %v702
          %v1771 = vunpack.c.l.b16 %v703
          %v1772 = vunpack.c.h.b16 %v703
          %v1773 = vunpack.c.l.b16 %v704
          %v1774 = vunpack.c.h.b16 %v704
          %v1775 = vunpack.c.l.b16 %v705
          %v1776 = vunpack.c.h.b16 %v705
          %v1777 = vunpack.c.l.b16 %v706
          %v1778 = vunpack.c.h.b16 %v706
          %v1779 = vunpack.c.l.b16 %v707
          %v1780 = vunpack.c.h.b16 %v707
          %v1781 = vunpack.c.l.b16 %v708
          %v1782 = vunpack.c.h.b16 %v708
          %v1783 = vunpack.c.l.b16 %v709
          %v1784 = vunpack.c.h.b16 %v709
          %v1785 = vunpack.c.l.b16 %v710
          %v1786 = vunpack.c.h.b16 %v710
          %v1787 = vunpack.c.l.b16 %v711
          %v1788 = vunpack.c.h.b16 %v711
          %v1789 = vunpack.c.l.b16 %v712
          %v1790 = vunpack.c.h.b16 %v712
          %v1791 = vunpack.c.l.b16 %v713
          %v1792 = vunpack.c.h.b16 %v713
          %v1793 = vunpack.c.l.b16 %v714
          %v1794 = vunpack.c.h.b16 %v714
          %v1795 = vunpack.c.l.b16 %v715
          %v1796 = vunpack.c.h.b16 %v715
          %v1797 = vunpack.c.l.b16 %v716
          %v1798 = vunpack.c.h.b16 %v716
          %v1799 = vunpack.c.l.b16 %v717
          %v1800 = vunpack.c.h.b16 %v717
          %v1801 = vunpack.c.l.b16 %v718
          %v1802 = vunpack.c.h.b16 %v718
          %v1803 = vunpack.c.l.b16 %v719
          %v1804 = vunpack.c.h.b16 %v719
          %v1805 = vunpack.c.l.b16 %v720
          %v1806 = vunpack.c.h.b16 %v720
          %v1807 = vunpack.c.l.b16 %v721
          %v1808 = vunpack.c.h.b16 %v721
          %v1809 = vunpack.c.l.b16 %v722
          %v1810 = vunpack.c.h.b16 %v722
          %v1811 = vunpack.c.l.b16 %v723
          %v1812 = vunpack.c.h.b16 %v723
          %v1813 = vunpack.c.l.b16 %v724
          %v1814 = vunpack.c.h.b16 %v724
          %v1815 = vunpack.c.l.b16 %v725
          %v1816 = vunpack.c.h.b16 %v725
          %v1817 = vunpack.c.l.b16 %v726
          %v1818 = vunpack.c.h.b16 %v726
          %v1819 = vunpack.c.l.b16 %v727
          %v1820 = vunpack.c.h.b16 %v727
          %v1821 = vunpack.c.l.b16 %v728
          %v1822 = vunpack.c.h.b16 %v728
          %v1823 = vunpack.c.l.b16 %v729
          %v1824 = vunpack.c.h.b16 %v729
          %v1825 = vunpack.c.l.b16 %v730
          %v1826 = vunpack.c.h.b16 %v730
          %v1827 = vunpack.c.l.b16 %v731
          %v1828 = vunpack.c.h.b16 %v731
          %v1829 = vunpack.c.l.b16 %v732
          %v1830 = vunpack.c.h.b16 %v732
          %v1831 = vunpack.c.l.b16 %v733
          %v1832 = vunpack.c.h.b16 %v733
          %v1833 = vunpack.c.l.b16 %v734
          %v1834 = vunpack.c.h.b16 %v734
          %v1835 = vunpack.c.l.b16 %v735
          %v1836 = vunpack.c.h.b16 %v735
          %v1837 = vunpack.c.l.b16 %v736
          %v1838 = vunpack.c.h.b16 %v736
          %v1839 = vunpack.c.l.b16 %v737
          %v1840 = vunpack.c.h.b16 %v737
          %v1841 = vunpack.c.l.b16 %v738
          %v1842 = vunpack.c.h.b16 %v738
          %v1843 = vunpack.c.l.b16 %v739
          %v1844 = vunpack.c.h.b16 %v739
          %v1845 = vunpack.c.l.b16 %v740
          %v1846 = vunpack.c.h.b16 %v740
          %v1847 = vunpack.c.l.b16 %v741
          %v1848 = vunpack.c.h.b16 %v741
          %v1849 = vunpack.c.l.b16 %v742
          %v1850 = vunpack.c.h.b16 %v742
          %v1851 = vunpack.c.l.b16 %v743
          %v1852 = vunpack.c.h.b16 %v743
          %v1853 = vunpack.c.l.b16 %v744
          %v1854 = vunpack.c.h.b16 %v744
          %v1855 = vunpack.c.l.b16 %v745
          %v1856 = vunpack.c.h.b16 %v745
          %v1857 = vunpack.c.l.b16 %v746
          %v1858 = vunpack.c.h.b16 %v746
          %v1859 = vunpack.c.l.b16 %v747
          %v1860 = vunpack.c.h.b16 %v747
          %v1861 = vunpack.c.l.b16 %v748
          %v1862 = vunpack.c.h.b16 %v748
          %v1863 = vunpack.c.l.b16 %v749
          %v1864 = vunpack.c.h.b16 %v749
          %v1865 = vunpack.c.l.b16 %v750
          %v1866 = vunpack.c.h.b16 %v750
          %v1867 = vunpack.c.l.b16 %v751
          %v1868 = vunpack.c.h.b16 %v751
          %v1869 = vunpack.c.l.b16 %v752
          %v1870 = vunpack.c.h.b16 %v752
          %v1871 = vunpack.c.l.b16 %v753
          %v1872 = vunpack.c.h.b16 %v753
          %v1873 = vunpack.c.l.b16 %v754
          %v1874 = vunpack.c.h.b16 %v754
          %v1875 = vunpack.c.l.b16 %v755
          %v1876 = vunpack.c.h.b16 %v755
          %v1877 = vunpack.c.l.b16 %v756
          %v1878 = vunpack.c.h.b16 %v756
          %v1879 = vunpack.c.l.b16 %v757
          %v1880 = vunpack.c.h.b16 %v757
          %v1881 = vunpack.c.l.b16 %v758
          %v1882 = vunpack.c.h.b16 %v758
          %v1883 = vunpack.c.l.b16 %v759
          %v1884 = vunpack.c.h.b16 %v759
          %v1885 = vunpack.c.l.b16 %v760
          %v1886 = vunpack.c.h.b16 %v760
          %v1887 = vunpack.c.l.b16 %v761
          %v1888 = vunpack.c.h.b16 %v761
          %v1889 = vunpack.c.l.b16 %v762
          %v1890 = vunpack.c.h.b16 %v762
          %v1891 = vunpack.c.l.b16 %v763
          %v1892 = vunpack.c.h.b16 %v763
          %v1893 = vunpack.c.l.b16 %v764
          %v1894 = vunpack.c.h.b16 %v764
          %v1895 = vunpack.c.l.b16 %v765
          %v1896 = vunpack.c.h.b16 %v765
          %v1897 = vunpack.c.l.b16 %v766
          %v1898 = vunpack.c.h.b16 %v766
          %v1899 = vunpack.c.l.b16 %v767
          %v1900 = vunpack.c.h.b16 %v767
          %v1901 = vunpack.c.l.b16 %v768
          %v1902 = vunpack.c.h.b16 %v768
          %v1903 = vunpack.c.l.b16 %v769
          %v1904 = vunpack.c.h.b16 %v769
          %v1905 = vunpack.c.l.b16 %v770
          %v1906 = vunpack.c.h.b16 %v770
          %v1907 = vunpack.c.l.b16 %v771
          %v1908 = vunpack.c.h.b16 %v771
          %v1909 = vunpack.c.l.b16 %v772
          %v1910 = vunpack.c.h.b16 %v772
          %v1911 = vunpack.c.l.b16 %v773
          %v1912 = vunpack.c.h.b16 %v773
          %v1913 = vunpack.c.l.b16 %v774
          %v1914 = vunpack.c.h.b16 %v774
          %v1915 = vunpack.c.l.b16 %v775
          %v1916 = vunpack.c.h.b16 %v775
          %v1917 = vunpack.c.l.b16 %v776
          %v1918 = vunpack.c.h.b16 %v776
          %v1919 = vunpack.c.l.b16 %v777
          %v1920 = vunpack.c.h.b16 %v777
          %v1921 = vunpack.c.l.b16 %v778
          %v1922 = vunpack.c.h.b16 %v778
          %v1923 = vunpack.c.l.b16 %v779
          %v1924 = vunpack.c.h.b16 %v779
          %v1925 = vunpack.c.l.b16 %v780
          %v1926 = vunpack.c.h.b16 %v780
          %v1927 = vunpack.c.l.b16 %v781
          %v1928 = vunpack.c.h.b16 %v781
          %v1929 = vunpack.c.l.b16 %v782
          %v1930 = vunpack.c.h.b16 %v782
          %v1931 = vunpack.c.l.b16 %v783
          %v1932 = vunpack.c.h.b16 %v783
          %v1933 = vunpack.c.l.b16 %v784
          %v1934 = vunpack.c.h.b16 %v784
          %v1935 = vunpack.c.l.b16 %v785
          %v1936 = vunpack.c.h.b16 %v785
          %v1937 = vunpack.c.l.b16 %v786
          %v1938 = vunpack.c.h.b16 %v786
          %v1939 = vunpack.c.l.b16 %v787
          %v1940 = vunpack.c.h.b16 %v787
          %v1941 = vunpack.c.l.b16 %v788
          %v1942 = vunpack.c.h.b16 %v788
          %v1943 = vunpack.c.l.b16 %v789
          %v1944 = vunpack.c.h.b16 %v789
          %v1945 = vunpack.c.l.b16 %v790
          %v1946 = vunpack.c.h.b16 %v790
          %v1947 = vunpack.c.l.b16 %v791
          %v1948 = vunpack.c.h.b16 %v791
          %v1949 = vunpack.c.l.b16 %v792
          %v1950 = vunpack.c.h.b16 %v792
          %v1951 = vunpack.c.l.b16 %v793
          %v1952 = vunpack.c.h.b16 %v793
          %v1953 = vunpack.c.l.b16 %v794
          %v1954 = vunpack.c.h.b16 %v794
          %v1955 = vunpack.c.l.b16 %v795
          %v1956 = vunpack.c.h.b16 %v795
          %v1957 = vunpack.c.l.b16 %v796
          %v1958 = vunpack.c.h.b16 %v796
          %v1959 = vunpack.c.l.b16 %v797
          %v1960 = vunpack.c.h.b16 %v797
          %v1961 = vunpack.c.l.b16 %v798
          %v1962 = vunpack.c.h.b16 %v798
          %v1963 = vunpack.c.l.b16 %v799
          %v1964 = vunpack.c.h.b16 %v799
          %v1965 = vunpack.c.l.b16 %v800
          %v1966 = vunpack.c.h.b16 %v800
          %v1967 = vunpack.c.l.b16 %v801
          %v1968 = vunpack.c.h.b16 %v801
          %v1969 = vunpack.c.l.b16 %v802
          %v1970 = vunpack.c.h.b16 %v802
          %v1971 = vunpack.c.l.b16 %v803
          %v1972 = vunpack.c.h.b16 %v803
          %v1973 = vunpack.c.l.b16 %v804
          %v1974 = vunpack.c.h.b16 %v804
          %v1975 = vunpack.c.l.b16 %v805
          %v1976 = vunpack.c.h.b16 %v805
          %v1977 = vunpack.c.l.b16 %v806
          %v1978 = vunpack.c.h.b16 %v806
          %v1979 = vunpack.c.l.b16 %v807
          %v1980 = vunpack.c.h.b16 %v807
          %v1981 = vunpack.c.l.b16 %v808
          %v1982 = vunpack.c.h.b16 %v808
          %v1983 = vunpack.c.l.b16 %v809
          %v1984 = vunpack.c.h.b16 %v809
          %v1985 = vunpack.c.l.b16 %v810
          %v1986 = vunpack.c.h.b16 %v810
          %v1987 = vunpack.c.l.b16 %v811
          %v1988 = vunpack.c.h.b16 %v811
          %v1989 = vunpack.c.l.b16 %v812
          %v1990 = vunpack.c.h.b16 %v812
          %v1991 = vunpack.c.l.b16 %v813
          %v1992 = vunpack.c.h.b16 %v813
          %v1993 = vunpack.c.l.b16 %v814
          %v1994 = vunpack.c.h.b16 %v814
          %v1995 = vunpack.c.l.b16 %v815
          %v1996 = vunpack.c.h.b16 %v815
          %v1997 = vunpack.c.l.b16 %v816
          %v1998 = vunpack.c.h.b16 %v816
          %v1999 = vunpack.c.l.b16 %v817
          %v2000 = vunpack.c.h.b16 %v817
          %v2001 = vunpack.c.l.b16 %v818
          %v2002 = vunpack.c.h.b16 %v818
          %v2003 = vunpack.c.l.b16 %v819
          %v2004 = vunpack.c.h.b16 %v819
          %v2005 = vunpack.c.l.b16 %v820
          %v2006 = vunpack.c.h.b16 %v820
          %v2007 = vunpack.c.l.b16 %v821
          %v2008 = vunpack.c.h.b16 %v821
          %v2009 = vunpack.c.l.b16 %v822
          %v2010 = vunpack.c.h.b16 %v822
          %v2011 = vunpack.c.l.b16 %v823
          %v2012 = vunpack.c.h.b16 %v823
          %v2013 = vunpack.c.l.b16 %v824
          %v2014 = vunpack.c.h.b16 %v824
          %v2015 = vunpack.c.l.b16 %v825
          %v2016 = vunpack.c.h.b16 %v825
          %v2017 = vunpack.c.l.b16 %v826
          %v2018 = vunpack.c.h.b16 %v826
          %v2019 = vunpack.c.l.b16 %v827
          %v2020 = vunpack.c.h.b16 %v827
          %v2021 = vunpack.c.l.b16 %v828
          %v2022 = vunpack.c.h.b16 %v828
          %v2023 = vunpack.c.l.b16 %v829
          %v2024 = vunpack.c.h.b16 %v829
          %v2025 = vunpack.c.l.b16 %v830
          %v2026 = vunpack.c.h.b16 %v830
          %v2027 = vunpack.c.l.b16 %v831
          %v2028 = vunpack.c.h.b16 %v831
          %v2029 = vunpack.c.l.b16 %v832
          %v2030 = vunpack.c.h.b16 %v832
          %v2031 = vunpack.c.l.b16 %v833
          %v2032 = vunpack.c.h.b16 %v833
          %v2033 = vunpack.c.l.b16 %v834
          %v2034 = vunpack.c.h.b16 %v834
          %v2035 = vunpack.c.l.b16 %v835
          %v2036 = vunpack.c.h.b16 %v835
          %v2037 = vunpack.c.l.b16 %v836
          %v2038 = vunpack.c.h.b16 %v836
          %v2039 = vunpack.c.l.b16 %v837
          %v2040 = vunpack.c.h.b16 %v837
          %v2041 = vunpack.c.l.b16 %v838
          %v2042 = vunpack.c.h.b16 %v838
          %v2043 = vunpack.c.l.b16 %v839
          %v2044 = vunpack.c.h.b16 %v839
          %v2045 = vunpack.c.l.b16 %v840
          %v2046 = vunpack.c.h.b16 %v840
          %v2047 = vunpack.c.l.b16 %v841
          %v2048 = vunpack.c.h.b16 %v841
          %v2049 = vunpack.c.l.b16 %v842
          %v2050 = vunpack.c.h.b16 %v842
          %v2051 = vunpack.c.l.b16 %v843
          %v2052 = vunpack.c.h.b16 %v843
          %v2053 = vunpack.c.l.b16 %v844
          %v2054 = vunpack.c.h.b16 %v844
          %v2055 = vunpack.c.l.b16 %v845
          %v2056 = vunpack.c.h.b16 %v845
          %v2057 = vunpack.c.l.b16 %v846
          %v2058 = vunpack.c.h.b16 %v846
          %v2059 = vunpack.c.l.b16 %v847
          %v2060 = vunpack.c.h.b16 %v847
          %v2061 = vunpack.c.l.b16 %v848
          %v2062 = vunpack.c.h.b16 %v848
          %v2063 = vunpack.c.l.b16 %v849
          %v2064 = vunpack.c.h.b16 %v849
          %v2065 = vunpack.c.l.b16 %v850
          %v2066 = vunpack.c.h.b16 %v850
          %v2067 = vunpack.c.l.b16 %v851
          %v2068 = vunpack.c.h.b16 %v851
          %v2069 = vunpack.c.l.b16 %v852
          %v2070 = vunpack.c.h.b16 %v852
          %v2071 = vunpack.c.l.b16 %v853
          %v2072 = vunpack.c.h.b16 %v853
          %v2073 = vunpack.c.l.b16 %v854
          %v2074 = vunpack.c.h.b16 %v854
          %v2075 = vunpack.c.l.b16 %v855
          %v2076 = vunpack.c.h.b16 %v855
          %v2077 = vunpack.c.l.b16 %v856
          %v2078 = vunpack.c.h.b16 %v856
          %v2079 = vunpack.c.l.b16 %v857
          %v2080 = vunpack.c.h.b16 %v857
          %v2081 = vunpack.c.l.b16 %v858
          %v2082 = vunpack.c.h.b16 %v858
          %v2083 = vunpack.c.l.b16 %v859
          %v2084 = vunpack.c.h.b16 %v859
          %v2085 = vunpack.c.l.b16 %v860
          %v2086 = vunpack.c.h.b16 %v860
          %v2087 = vunpack.c.l.b16 %v861
          %v2088 = vunpack.c.h.b16 %v861
          %v2089 = vunpack.c.l.b16 %v862
          %v2090 = vunpack.c.h.b16 %v862
          %v2091 = vunpack.c.l.b16 %v863
          %v2092 = vunpack.c.h.b16 %v863
          %v2093 = vunpack.c.l.b16 %v864
          %v2094 = vunpack.c.h.b16 %v864
          %v2095 = vunpack.c.l.b16 %v865
          %v2096 = vunpack.c.h.b16 %v865
          %v2097 = vunpack.c.l.b16 %v866
          %v2098 = vunpack.c.h.b16 %v866
          %v2099 = vunpack.c.l.b16 %v867
          %v2100 = vunpack.c.h.b16 %v867
          %v2101 = vunpack.c.l.b16 %v868
          %v2102 = vunpack.c.h.b16 %v868
          %v2103 = vunpack.c.l.b16 %v869
          %v2104 = vunpack.c.h.b16 %v869
          %v2105 = vunpack.c.l.b16 %v870
          %v2106 = vunpack.c.h.b16 %v870
          %v2107 = vunpack.c.l.b16 %v871
          %v2108 = vunpack.c.h.b16 %v871
          %v2109 = vunpack.c.l.b16 %v872
          %v2110 = vunpack.c.h.b16 %v872
          %v2111 = vunpack.c.l.b16 %v873
          %v2112 = vunpack.c.h.b16 %v873
          %v2113 = vunpack.c.l.b16 %v874
          %v2114 = vunpack.c.h.b16 %v874
          %v2115 = vunpack.c.l.b16 %v875
          %v2116 = vunpack.c.h.b16 %v875
          %v2117 = vunpack.c.l.b16 %v876
          %v2118 = vunpack.c.h.b16 %v876
          %v2119 = vunpack.c.l.b16 %v877
          %v2120 = vunpack.c.h.b16 %v877
          %v2121 = vunpack.c.l.b16 %v878
          %v2122 = vunpack.c.h.b16 %v878
          %v2123 = vunpack.c.l.b16 %v879
          %v2124 = vunpack.c.h.b16 %v879
          %v2125 = vunpack.c.l.b16 %v880
          %v2126 = vunpack.c.h.b16 %v880
          %v2127 = vunpack.c.l.b16 %v881
          %v2128 = vunpack.c.h.b16 %v881
          %v2129 = vunpack.c.l.b16 %v882
          %v2130 = vunpack.c.h.b16 %v882
          %v2131 = vunpack.c.l.b16 %v883
          %v2132 = vunpack.c.h.b16 %v883
          %v2133 = vunpack.c.l.b16 %v884
          %v2134 = vunpack.c.h.b16 %v884
          %v2135 = vunpack.c.l.b16 %v885
          %v2136 = vunpack.c.h.b16 %v885
          %v2137 = vunpack.c.l.b16 %v886
          %v2138 = vunpack.c.h.b16 %v886
          %v2139 = vunpack.c.l.b16 %v887
          %v2140 = vunpack.c.h.b16 %v887
          %v2141 = vunpack.c.l.b16 %v888
          %v2142 = vunpack.c.h.b16 %v888
          %v2143 = vunpack.c.l.b16 %v889
          %v2144 = vunpack.c.h.b16 %v889
          %v2145 = vunpack.c.l.b16 %v890
          %v2146 = vunpack.c.h.b16 %v890
          %v2147 = vunpack.c.l.b16 %v891
          %v2148 = vunpack.c.h.b16 %v891
          %v2149 = vunpack.c.l.b16 %v892
          %v2150 = vunpack.c.h.b16 %v892
          %v2151 = vunpack.c.l.b16 %v893
          %v2152 = vunpack.c.h.b16 %v893
          %v2153 = vunpack.c.l.b16 %v894
          %v2154 = vunpack.c.h.b16 %v894
          %v2155 = vunpack.c.l.b16 %v895
          %v2156 = vunpack.c.h.b16 %v895
          %v2157 = vunpack.c.l.b16 %v896
          %v2158 = vunpack.c.h.b16 %v896
          %v2159 = vunpack.c.l.b16 %v897
          %v2160 = vunpack.c.h.b16 %v897
          %v2161 = vunpack.c.l.b16 %v898
          %v2162 = vunpack.c.h.b16 %v898
          %v2163 = vunpack.c.l.b16 %v899
          %v2164 = vunpack.c.h.b16 %v899
          %v2165 = vunpack.c.l.b16 %v900
          %v2166 = vunpack.c.h.b16 %v900
          %v2167 = vunpack.c.l.b16 %v901
          %v2168 = vunpack.c.h.b16 %v901
          %v2169 = vunpack.c.l.b16 %v902
          %v2170 = vunpack.c.h.b16 %v902
          %v2171 = vunpack.c.l.b16 %v903
          %v2172 = vunpack.c.h.b16 %v903
          %v2173 = vunpack.c.l.b16 %v904
          %v2174 = vunpack.c.h.b16 %v904
          %v2175 = vunpack.c.l.b16 %v905
          %v2176 = vunpack.c.h.b16 %v905
          %v2177 = vunpack.c.l.b16 %v906
          %v2178 = vunpack.c.h.b16 %v906
          %v2179 = vunpack.c.l.b16 %v907
          %v2180 = vunpack.c.h.b16 %v907
          %v2181 = vunpack.c.l.b16 %v908
          %v2182 = vunpack.c.h.b16 %v908
          %v2183 = vunpack.c.l.b16 %v909
          %v2184 = vunpack.c.h.b16 %v909
          %v2185 = vunpack.c.l.b16 %v910
          %v2186 = vunpack.c.h.b16 %v910
          %v2187 = vunpack.c.l.b16 %v911
          %v2188 = vunpack.c.h.b16 %v911
          %v2189 = vunpack.c.l.b16 %v912
          %v2190 = vunpack.c.h.b16 %v912
          %v2191 = vunpack.c.l.b16 %v913
          %v2192 = vunpack.c.h.b16 %v913
          %v2193 = vunpack.c.l.b16 %v914
          %v2194 = vunpack.c.h.b16 %v914
          %v2195 = vunpack.c.l.b16 %v915
          %v2196 = vunpack.c.h.b16 %v915
          %v2197 = vunpack.c.l.b16 %v916
          %v2198 = vunpack.c.h.b16 %v916
          %v2199 = vunpack.c.l.b16 %v917
          %v2200 = vunpack.c.h.b16 %v917
          %v2201 = vunpack.c.l.b16 %v918
          %v2202 = vunpack.c.h.b16 %v918
          %v2203 = vunpack.c.l.b16 %v919
          %v2204 = vunpack.c.h.b16 %v919
          %v2205 = vunpack.c.l.b16 %v920
          %v2206 = vunpack.c.h.b16 %v920
          %v2207 = vunpack.c.l.b16 %v921
          %v2208 = vunpack.c.h.b16 %v921
          %v2209 = vunpack.c.l.b16 %v922
          %v2210 = vunpack.c.h.b16 %v922
          %v2211 = vunpack.c.l.b16 %v923
          %v2212 = vunpack.c.h.b16 %v923
          %v2213 = vunpack.c.l.b16 %v924
          %v2214 = vunpack.c.h.b16 %v924
          %v2215 = vunpack.c.l.b16 %v925
          %v2216 = vunpack.c.h.b16 %v925
          %v2217 = vunpack.c.l.b16 %v926
          %v2218 = vunpack.c.h.b16 %v926
          %v2219 = vunpack.c.l.b16 %v927
          %v2220 = vunpack.c.h.b16 %v927
          %v2221 = vunpack.c.l.b16 %v928
          %v2222 = vunpack.c.h.b16 %v928
          %v2223 = vunpack.c.l.b16 %v929
          %v2224 = vunpack.c.h.b16 %v929
          %v2225 = vunpack.c.l.b16 %v930
          %v2226 = vunpack.c.h.b16 %v930
          %v2227 = vunpack.c.l.b16 %v931
          %v2228 = vunpack.c.h.b16 %v931
          %v2229 = vunpack.c.l.b16 %v932
          %v2230 = vunpack.c.h.b16 %v932
          %v2231 = vunpack.c.l.b16 %v933
          %v2232 = vunpack.c.h.b16 %v933
          %v2233 = vunpack.c.l.b16 %v934
          %v2234 = vunpack.c.h.b16 %v934
          %v2235 = vunpack.c.l.b16 %v935
          %v2236 = vunpack.c.h.b16 %v935
          %v2237 = vunpack.c.l.b16 %v936
          %v2238 = vunpack.c.h.b16 %v936
          %v2239 = vunpack.c.l.b16 %v937
          %v2240 = vunpack.c.h.b16 %v937
          %v2241 = vunpack.c.l.b16 %v938
          %v2242 = vunpack.c.h.b16 %v938
          %v2243 = vunpack.c.l.b16 %v939
          %v2244 = vunpack.c.h.b16 %v939
          %v2245 = vunpack.c.l.b16 %v940
          %v2246 = vunpack.c.h.b16 %v940
          %v2247 = vunpack.c.l.b16 %v941
          %v2248 = vunpack.c.h.b16 %v941
          %v2249 = vunpack.c.l.b16 %v942
          %v2250 = vunpack.c.h.b16 %v942
          %v2251 = vpack.c.b16 %v1645, %v1643
          %v2252 = vpack.c.b16 %v1646, %v1644
          %v2253 = vpack.c.b16 %v1649, %v1647
          %v2254 = vpack.c.b16 %v1650, %v1648
          %v2255 = vpack.c.b16 %v1653, %v1651
          %v2256 = vpack.c.b16 %v1654, %v1652
          %v2257 = vpack.c.b16 %v1657, %v1655
          %v2258 = vpack.c.b16 %v1658, %v1656
          %v2259 = vpack.c.b16 %v1661, %v1659
          %v2260 = vpack.c.b16 %v1662, %v1660
          %v2261 = vpack.c.b16 %v1665, %v1663
          %v2262 = vpack.c.b16 %v1666, %v1664
          %v2263 = vpack.c.b16 %v1669, %v1667
          %v2264 = vpack.c.b16 %v1670, %v1668
          %v2265 = vpack.c.b16 %v1673, %v1671
          %v2266 = vpack.c.b16 %v1674, %v1672
          %v2267 = vpack.c.b16 %v1677, %v1675
          %v2268 = vpack.c.b16 %v1678, %v1676
          %v2269 = vpack.c.b16 %v1681, %v1679
          %v2270 = vpack.c.b16 %v1682, %v1680
          %v2271 = vpack.c.b16 %v1685, %v1683
          %v2272 = vpack.c.b16 %v1686, %v1684
          %v2273 = vpack.c.b16 %v1689, %v1687
          %v2274 = vpack.c.b16 %v1690, %v1688
          %v2275 = vpack.c.b16 %v1693, %v1691
          %v2276 = vpack.c.b16 %v1694, %v1692
          %v2277 = vpack.c.b16 %v1697, %v1695
          %v2278 = vpack.c.b16 %v1698, %v1696
          %v2279 = vpack.c.b16 %v1701, %v1699
          %v2280 = vpack.c.b16 %v1702, %v1700
          %v2281 = vpack.c.b16 %v1705, %v1703
          %v2282 = vpack.c.b16 %v1706, %v1704
          %v2283 = vpack.c.b16 %v1709, %v1707
          %v2284 = vpack.c.b16 %v1710, %v1708
          %v2285 = vpack.c.b16 %v1713, %v1711
          %v2286 = vpack.c.b16 %v1714, %v1712
          %v2287 = vpack.c.b16 %v1717, %v1715
          %v2288 = vpack.c.b16 %v1718, %v1716
          %v2289 = vpack.c.b16 %v1721, %v1719
          %v2290 = vpack.c.b16 %v1722, %v1720
          %v2291 = vpack.c.b16 %v1725, %v1723
          %v2292 = vpack.c.b16 %v1726, %v1724
          %v2293 = vpack.c.b16 %v1729, %v1727
          %v2294 = vpack.c.b16 %v1730, %v1728
          %v2295 = vpack.c.b16 %v1733, %v1731
          %v2296 = vpack.c.b16 %v1734, %v1732
          %v2297 = vpack.c.b16 %v1737, %v1735
          %v2298 = vpack.c.b16 %v1738, %v1736
          %v2299 = vpack.c.b16 %v1741, %v1739
          %v2300 = vpack.c.b16 %v1742, %v1740
          %v2301 = vpack.c.b16 %v1745, %v1743
          %v2302 = vpack.c.b16 %v1746, %v1744
          %v2303 = vpack.c.b16 %v1749, %v1747
          %v2304 = vpack.c.b16 %v1750, %v1748
          %v2305 = vpack.c.b16 %v1753, %v1751
          %v2306 = vpack.c.b16 %v1754, %v1752
          %v2307 = vpack.c.b16 %v1757, %v1755
          %v2308 = vpack.c.b16 %v1758, %v1756
          %v2309 = vpack.c.b16 %v1761, %v1759
          %v2310 = vpack.c.b16 %v1762, %v1760
          %v2311 = vpack.c.b16 %v1765, %v1763
          %v2312 = vpack.c.b16 %v1766, %v1764
          %v2313 = vpack.c.b16 %v1769, %v1767
          %v2314 = vpack.c.b16 %v1770, %v1768
          %v2315 = vpack.c.b16 %v1773, %v1771
          %v2316 = vpack.c.b16 %v1774, %v1772
          %v2317 = vpack.c.b16 %v1777, %v1775
          %v2318 = vpack.c.b16 %v1778, %v1776
          %v2319 = vpack.c.b16 %v1781, %v1779
          %v2320 = vpack.c.b16 %v1782, %v1780
          %v2321 = vpack.c.b16 %v1785, %v1783
          %v2322 = vpack.c.b16 %v1786, %v1784
          %v2323 = vpack.c.b16 %v1789, %v1787
          %v2324 = vpack.c.b16 %v1790, %v1788
          %v2325 = vpack.c.b16 %v1793, %v1791
          %v2326 = vpack.c.b16 %v1794, %v1792
          %v2327 = vpack.c.b16 %v1797, %v1795
          %v2328 = vpack.c.b16 %v1798, %v1796
          %v2329 = vpack.c.b16 %v1801, %v1799
          %v2330 = vpack.c.b16 %v1802, %v1800
          %v2331 = vpack.c.b16 %v1805, %v1803
          %v2332 = vpack.c.b16 %v1806, %v1804
          %v2333 = vpack.c.b16 %v1809, %v1807
          %v2334 = vpack.c.b16 %v1810, %v1808
          %v2335 = vpack.c.b16 %v1813, %v1811
          %v2336 = vpack.c.b16 %v1814, %v1812
          %v2337 = vpack.c.b16 %v1817, %v1815
          %v2338 = vpack.c.b16 %v1818, %v1816
          %v2339 = vpack.c.b16 %v1821, %v1819
          %v2340 = vpack.c.b16 %v1822, %v1820
          %v2341 = vpack.c.b16 %v1825, %v1823
          %v2342 = vpack.c.b16 %v1826, %v1824
          %v2343 = vpack.c.b16 %v1829, %v1827
          %v2344 = vpack.c.b16 %v1830, %v1828
          %v2345 = vpack.c.b16 %v1833, %v1831
          %v2346 = vpack.c.b16 %v1834, %v1832
          %v2347 = vpack.c.b16 %v1837, %v1835
          %v2348 = vpack.c.b16 %v1838, %v1836
          %v2349 = vpack.c.b16 %v1841, %v1839
          %v2350 = vpack.c.b16 %v1842, %v1840
          %v2351 = vpack.c.b16 %v1845, %v1843
          %v2352 = vpack.c.b16 %v1846, %v1844
          %v2353 = vpack.c.b16 %v1849, %v1847
          %v2354 = vpack.c.b16 %v1850, %v1848
          %v2355 = vpack.c.b16 %v1853, %v1851
          %v2356 = vpack.c.b16 %v1854, %v1852
          %v2357 = vpack.c.b16 %v1857, %v1855
          %v2358 = vpack.c.b16 %v1858, %v1856
          %v2359 = vpack.c.b16 %v1861, %v1859
          %v2360 = vpack.c.b16 %v1862, %v1860
          %v2361 = vpack.c.b16 %v1865, %v1863
          %v2362 = vpack.c.b16 %v1866, %v1864
          %v2363 = vpack.c.b16 %v1869, %v1867
          %v2364 = vpack.c.b16 %v1870, %v1868
          %v2365 = vpack.c.b16 %v1873, %v1871
          %v2366 = vpack.c.b16 %v1874, %v1872
          %v2367 = vpack.c.b16 %v1877, %v1875
          %v2368 = vpack.c.b16 %v1878, %v1876
          %v2369 = vpack.c.b16 %v1881, %v1879
          %v2370 = vpack.c.b16 %v1882, %v1880
          %v2371 = vpack.c.b16 %v1885, %v1883
          %v2372 = vpack.c.b16 %v1886, %v1884
          %v2373 = vpack.c.b16 %v1889, %v1887
          %v2374 = vpack.c.b16 %v1890, %v1888
          %v2375 = vpack.c.b16 %v1893, %v1891
          %v2376 = vpack.c.b16 %v1894, %v1892
          %v2377 = vpack.c.b16 %v1897, %v1895
          %v2378 = vpack.c.b16 %v1898, %v1896
          %v2379 = vpack.c.b16 %v1901, %v1899
          %v2380 = vpack.c.b16 %v1902, %v1900
          %v2381 = vpack.c.b16 %v1905, %v1903
          %v2382 = vpack.c.b16 %v1906, %v1904
          %v2383 = vpack.c.b16 %v1909, %v1907
          %v2384 = vpack.c.b16 %v1910, %v1908
          %v2385 = vpack.c.b16 %v1913, %v1911
          %v2386 = vpack.c.b16 %v1914, %v1912
          %v2387 = vpack.c.b16 %v1917, %v1915
          %v2388 = vpack.c.b16 %v1918, %v1916
          %v2389 = vpack.c.b16 %v1921, %v1919
          %v2390 = vpack.c.b16 %v1922, %v1920
          %v2391 = vpack.c.b16 %v1925, %v1923
          %v2392 = vpack.c.b16 %v1926, %v1924
          %v2393 = vpack.c.b16 %v1929, %v1927
          %v2394 = vpack.c.b16 %v1930, %v1928
          %v2395 = vpack.c.b16 %v1933, %v1931
          %v2396 = vpack.c.b16 %v1934, %v1932
          %v2397 = vpack.c.b16 %v1937, %v1935
          %v2398 = vpack.c.b16 %v1938, %v1936
          %v2399 = vpack.c.b16 %v1941, %v1939
          %v2400 = vpack.c.b16 %v1942, %v1940
          %v2401 = vpack.c.b16 %v1945, %v1943
          %v2402 = vpack.c.b16 %v1946, %v1944
          %v2403 = vpack.c.b16 %v1949, %v1947
          %v2404 = vpack.c.b16 %v1950, %v1948
          %v2405 = vpack.c.b16 %v1953, %v1951
          %v2406 = vpack.c.b16 %v1954, %v1952
          %v2407 = vpack.c.b16 %v1957, %v1955
          %v2408 = vpack.c.b16 %v1958, %v1956
          %v2409 = vpack.c.b16 %v1961, %v1959
          %v2410 = vpack.c.b16 %v1962, %v1960
          %v2411 = vpack.c.b16 %v1965, %v1963
          %v2412 = vpack.c.b16 %v1966, %v1964
          %v2413 = vpack.c.b16 %v1969, %v1967
          %v2414 = vpack.c.b16 %v1970, %v1968
          %v2415 = vpack.c.b16 %v1973, %v1971
          %v2416 = vpack.c.b16 %v1974, %v1972
          %v2417 = vpack.c.b16 %v1977, %v1975
          %v2418 = vpack.c.b16 %v1978, %v1976
          %v2419 = vpack.c.b16 %v1981, %v1979
          %v2420 = vpack.c.b16 %v1982, %v1980
          %v2421 = vpack.c.b16 %v1985, %v1983
          %v2422 = vpack.c.b16 %v1986, %v1984
          %v2423 = vpack.c.b16 %v1989, %v1987
          %v2424 = vpack.c.b16 %v1990, %v1988
          %v2425 = vpack.c.b16 %v1993, %v1991
          %v2426 = vpack.c.b16 %v1994, %v1992
          %v2427 = vpack.c.b16 %v1997, %v1995
          %v2428 = vpack.c.b16 %v1998, %v1996
          %v2429 = vpack.c.b16 %v2001, %v1999
          %v2430 = vpack.c.b16 %v2002, %v2000
          %v2431 = vpack.c.b16 %v2005, %v2003
          %v2432 = vpack.c.b16 %v2006, %v2004
          %v2433 = vpack.c.b16 %v2009, %v2007
          %v2434 = vpack.c.b16 %v2010, %v2008
          %v2435 = vpack.c.b16 %v2013, %v2011
          %v2436 = vpack.c.b16 %v2014, %v2012
          %v2437 = vpack.c.b16 %v2017, %v2015
          %v2438 = vpack.c.b16 %v2018, %v2016
          %v2439 = vpack.c.b16 %v2021, %v2019
          %v2440 = vpack.c.b16 %v2022, %v2020
          %v2441 = vpack.c.b16 %v2025, %v2023
          %v2442 = vpack.c.b16 %v2026, %v2024
          %v2443 = vpack.c.b16 %v2029, %v2027
          %v2444 = vpack.c.b16 %v2030, %v2028
          %v2445 = vpack.c.b16 %v2033, %v2031
          %v2446 = vpack.c.b16 %v2034, %v2032
          %v2447 = vpack.c.b16 %v2037, %v2035
          %v2448 = vpack.c.b16 %v2038, %v2036
          %v2449 = vpack.c.b16 %v2041, %v2039
          %v2450 = vpack.c.b16 %v2042, %v2040
          %v2451 = vpack.c.b16 %v2045, %v2043
          %v2452 = vpack.c.b16 %v2046, %v2044
          %v2453 = vpack.c.b16 %v2049, %v2047
          %v2454 = vpack.c.b16 %v2050, %v2048
          %v2455 = vpack.c.b16 %v2053, %v2051
          %v2456 = vpack.c.b16 %v2054, %v2052
          %v2457 = vpack.c.b16 %v2057, %v2055
          %v2458 = vpack.c.b16 %v2058, %v2056
          %v2459 = vpack.c.b16 %v2061, %v2059
          %v2460 = vpack.c.b16 %v2062, %v2060
          %v2461 = vpack.c.b16 %v2065, %v2063
          %v2462 = vpack.c.b16 %v2066, %v2064
          %v2463 = vpack.c.b16 %v2069, %v2067
          %v2464 = vpack.c.b16 %v2070, %v2068
          %v2465 = vpack.c.b16 %v2073, %v2071
          %v2466 = vpack.c.b16 %v2074, %v2072
          %v2467 = vpack.c.b16 %v2077, %v2075
          %v2468 = vpack.c.b16 %v2078, %v2076
          %v2469 = vpack.c.b16 %v2081, %v2079
          %v2470 = vpack.c.b16 %v2082, %v2080
          %v2471 = vpack.c.b16 %v2085, %v2083
          %v2472 = vpack.c.b16 %v2086, %v2084
          %v2473 = vpack.c.b16 %v2089, %v2087
          %v2474 = vpack.c.b16 %v2090, %v2088
          %v2475 = vpack.c.b16 %v2093, %v2091
          %v2476 = vpack.c.b16 %v2094, %v2092
          %v2477 = vpack.c.b16 %v2097, %v2095
          %v2478 = vpack.c.b16 %v2098, %v2096
          %v2479 = vpack.c.b16 %v2101, %v2099
          %v2480 = vpack.c.b16 %v2102, %v2100
          %v2481 = vpack.c.b16 %v2105, %v2103
          %v2482 = vpack.c.b16 %v2106, %v2104
          %v2483 = vpack.c.b16 %v2109, %v2107
          %v2484 = vpack.c.b16 %v2110, %v2108
          %v2485 = vpack.c.b16 %v2113, %v2111
          %v2486 = vpack.c.b16 %v2114, %v2112
          %v2487 = vpack.c.b16 %v2117, %v2115
          %v2488 = vpack.c.b16 %v2118, %v2116
          %v2489 = vpack.c.b16 %v2121, %v2119
          %v2490 = vpack.c.b16 %v2122, %v2120
          %v2491 = vpack.c.b16 %v2125, %v2123
          %v2492 = vpack.c.b16 %v2126, %v2124
          %v2493 = vpack.c.b16 %v2129, %v2127
          %v2494 = vpack.c.b16 %v2130, %v2128
          %v2495 = vpack.c.b16 %v2133, %v2131
          %v2496 = vpack.c.b16 %v2134, %v2132
          %v2497 = vpack.c.b16 %v2137, %v2135
          %v2498 = vpack.c.b16 %v2138, %v2136
          %v2499 = vpack.c.b16 %v2141, %v2139
          %v2500 = vpack.c.b16 %v2142, %v2140
          %v2501 = vpack.c.b16 %v2145, %v2143
          %v2502 = vpack.c.b16 %v2146, %v2144
          %v2503 = vpack.c.b16 %v2149, %v2147
          %v2504 = vpack.c.b16 %v2150, %v2148
          %v2505 = vpack.c.b16 %v2153, %v2151
          %v2506 = vpack.c.b16 %v2154, %v2152
          %v2507 = vpack.c.b16 %v2157, %v2155
          %v2508 = vpack.c.b16 %v2158, %v2156
          %v2509 = vpack.c.b16 %v2161, %v2159
          %v2510 = vpack.c.b16 %v2162, %v2160
          %v2511 = vpack.c.b16 %v2165, %v2163
          %v2512 = vpack.c.b16 %v2166, %v2164
          %v2513 = vpack.c.b16 %v2169, %v2167
          %v2514 = vpack.c.b16 %v2170, %v2168
          %v2515 = vpack.c.b16 %v2173, %v2171
          %v2516 = vpack.c.b16 %v2174, %v2172
          %v2517 = vpack.c.b16 %v2177, %v2175
          %v2518 = vpack.c.b16 %v2178, %v2176
          %v2519 = vpack.c.b16 %v2181, %v2179
          %v2520 = vpack.c.b16 %v2182, %v2180
          %v2521 = vpack.c.b16 %v2185, %v2183
          %v2522 = vpack.c.b16 %v2186, %v2184
          %v2523 = vpack.c.b16 %v2189, %v2187
          %v2524 = vpack.c.b16 %v2190, %v2188
          %v2525 = vpack.c.b16 %v2193, %v2191
          %v2526 = vpack.c.b16 %v2194, %v2192
          %v2527 = vpack.c.b16 %v2197, %v2195
          %v2528 = vpack.c.b16 %v2198, %v2196
          %v2529 = vpack.c.b16 %v2201, %v2199
          %v2530 = vpack.c.b16 %v2202, %v2200
          %v2531 = vpack.c.b16 %v2205, %v2203
          %v2532 = vpack.c.b16 %v2206, %v2204
          %v2533 = vpack.c.b16 %v2209, %v2207
          %v2534 = vpack.c.b16 %v2210, %v2208
          %v2535 = vpack.c.b16 %v2213, %v2211
          %v2536 = vpack.c.b16 %v2214, %v2212
          %v2537 = vpack.c.b16 %v2217, %v2215
          %v2538 = vpack.c.b16 %v2218, %v2216
          %v2539 = vpack.c.b16 %v2221, %v2219
          %v2540 = vpack.c.b16 %v2222, %v2220
          %v2541 = vpack.c.b16 %v2225, %v2223
          %v2542 = vpack.c.b16 %v2226, %v2224
          %v2543 = vpack.c.b16 %v2229, %v2227
          %v2544 = vpack.c.b16 %v2230, %v2228
          %v2545 = vpack.c.b16 %v2233, %v2231
          %v2546 = vpack.c.b16 %v2234, %v2232
          %v2547 = vpack.c.b16 %v2237, %v2235
          %v2548 = vpack.c.b16 %v2238, %v2236
          %v2549 = vpack.c.b16 %v2241, %v2239
          %v2550 = vpack.c.b16 %v2242, %v2240
          %v2551 = vpack.c.b16 %v2245, %v2243
          %v2552 = vpack.c.b16 %v2246, %v2244
          %v2553 = vpack.c.b16 %v2249, %v2247
          %v2554 = vpack.c.b16 %v2250, %v2248
          %2859 = vmatprep.subr.bf16.mxu0 %v2252
          %2860 = vmatpush1.bf16.msra.mxu0 %v2251
          %2861 = vmatprep.subr.bf16.mxu0 %v2254
          %2862 = vmatpush1.bf16.msra.mxu0 %v2253
          %2863 = vmatprep.subr.bf16.mxu0 %v2256
          %2864 = vmatpush1.bf16.msra.mxu0 %v2255
          %2865 = vmatprep.subr.bf16.mxu0 %v2258
          %2866 = vmatpush1.bf16.msra.mxu0 %v2257
          %2867 = vmatprep.subr.bf16.mxu0 %v2260
          %2868 = vmatpush1.bf16.msra.mxu0 %v2259
          %2869 = vmatprep.subr.bf16.mxu0 %v2262
          %2870 = vmatpush1.bf16.msra.mxu0 %v2261
          %2871 = vmatprep.subr.bf16.mxu0 %v2264
          %2872 = vmatpush1.bf16.msra.mxu0 %v2263
          %2873 = vmatprep.subr.bf16.mxu0 %v2266
          %2874 = vmatpush1.bf16.msra.mxu0 %v2265
          %2875 = vmatprep.subr.bf16.mxu0 %v2268
          %2876 = vmatpush1.bf16.msra.mxu0 %v2267
          %2877 = vmatprep.subr.bf16.mxu0 %v2270
          %2878 = vmatpush1.bf16.msra.mxu0 %v2269
          %2879 = vmatprep.subr.bf16.mxu0 %v2272
          %2880 = vmatpush1.bf16.msra.mxu0 %v2271
          %2881 = vmatprep.subr.bf16.mxu0 %v2274
          %2882 = vmatpush1.bf16.msra.mxu0 %v2273
          %2883 = vmatprep.subr.bf16.mxu0 %v2276
          %2884 = vmatpush1.bf16.msra.mxu0 %v2275
          %2885 = vmatprep.subr.bf16.mxu0 %v2278
          %2886 = vmatpush1.bf16.msra.mxu0 %v2277
          %2887 = vmatprep.subr.bf16.mxu0 %v2280
          %2888 = vmatpush1.bf16.msra.mxu0 %v2279
          %2889 = vmatprep.subr.bf16.mxu0 %v2282
          %2890 = vmatpush1.bf16.msra.mxu0 %v2281
          %2891 = vmatprep.mubr.bf16.mxu0 %v1188
          %2892 = vmatmul.mubr.bf16.gmra.mrb[0].mxu0 %v1187
          %v2893 = vpop.f32.mrb[0].mxu0
          %v2894 = vadd.f32 %v948, %v2893
          %v2895 = vpop.f32.mrb[0].mxu0
          %v2896 = vadd.f32 %v952, %v2895
          %v2897 = vpop.f32.mrb[0].mxu0
          %v2898 = vadd.f32 %v948, %v2897
          %v2899 = vpop.f32.mrb[0].mxu0
          %v2900 = vadd.f32 %v952, %v2899
          %2901 = vmatprep.mubr.bf16.mxu0 %v1207
          %2902 = vmatmul.mubr.bf16.gmra.mrb[0].mxu0 %v1206
          %v2903 = vpop.f32.mrb[0].mxu0
          %v2904 = vadd.f32 %v948, %v2903
          %v2905 = vpop.f32.mrb[0].mxu0
          %v2906 = vadd.f32 %v952, %v2905
          %v2907 = vpop.f32.mrb[0].mxu0
          %v2908 = vadd.f32 %v948, %v2907
          %v2909 = vpop.f32.mrb[0].mxu0
          %v2910 = vadd.f32 %v952, %v2909
          %2911 = vmatprep.mubr.bf16.mxu0 %v1226
          %2912 = vmatmul.mubr.bf16.gmra.mrb[0].mxu0 %v1225
          %v2913 = vpop.f32.mrb[0].mxu0
          %v2914 = vadd.f32 %v948, %v2913
          %v2915 = vpop.f32.mrb[0].mxu0
          %v2916 = vadd.f32 %v952, %v2915
          %v2917 = vpop.f32.mrb[0].mxu0
          %v2918 = vadd.f32 %v948, %v2917
          %v2919 = vpop.f32.mrb[0].mxu0
          %v2920 = vadd.f32 %v952, %v2919
          %2921 = vmatprep.mubr.bf16.mxu0 %v1245
          %2922 = vmatmul.mubr.bf16.gmra.mrb[0].mxu0 %v1244
          %v2923 = vpop.f32.mrb[0].mxu0
          %v2924 = vadd.f32 %v948, %v2923
          %v2925 = vpop.f32.mrb[0].mxu0
          %v2926 = vadd.f32 %v952, %v2925
          %v2927 = vpop.f32.mrb[0].mxu0
          %v2928 = vadd.f32 %v948, %v2927
          %v2929 = vpop.f32.mrb[0].mxu0
          %v2930 = vadd.f32 %v952, %v2929
          %2931 = vdwg.mxu0
          %2932 = vmatprep.subr.bf16.mxu0 %v2284
          %2933 = vmatpush1.bf16.msra.mxu0 %v2283
          %2934 = vmatprep.subr.bf16.mxu0 %v2286
          %2935 = vmatpush1.bf16.msra.mxu0 %v2285
          %2936 = vmatprep.subr.bf16.mxu0 %v2288
          %2937 = vmatpush1.bf16.msra.mxu0 %v2287
          %2938 = vmatprep.subr.bf16.mxu0 %v2290
          %2939 = vmatpush1.bf16.msra.mxu0 %v2289
          %2940 = vmatprep.subr.bf16.mxu0 %v2292
          %2941 = vmatpush1.bf16.msra.mxu0 %v2291
          %2942 = vmatprep.subr.bf16.mxu0 %v2294
          %2943 = vmatpush1.bf16.msra.mxu0 %v2293
          %2944 = vmatprep.subr.bf16.mxu0 %v2296
          %2945 = vmatpush1.bf16.msra.mxu0 %v2295
          %2946 = vmatprep.subr.bf16.mxu0 %v2298
          %2947 = vmatpush1.bf16.msra.mxu0 %v2297
          %2948 = vmatprep.subr.bf16.mxu0 %v2300
          %2949 = vmatpush1.bf16.msra.mxu0 %v2299
          %2950 = vmatprep.subr.bf16.mxu0 %v2302
          %2951 = vmatpush1.bf16.msra.mxu0 %v2301
          %2952 = vmatprep.subr.bf16.mxu0 %v2304
          %2953 = vmatpush1.bf16.msra.mxu0 %v2303
          %2954 = vmatprep.subr.bf16.mxu0 %v2306
          %2955 = vmatpush1.bf16.msra.mxu0 %v2305
          %2956 = vmatprep.subr.bf16.mxu0 %v2308
          %2957 = vmatpush1.bf16.msra.mxu0 %v2307
          %2958 = vmatprep.subr.bf16.mxu0 %v2310
          %2959 = vmatpush1.bf16.msra.mxu0 %v2309
          %2960 = vmatprep.subr.bf16.mxu0 %v2312
          %2961 = vmatpush1.bf16.msra.mxu0 %v2311
          %2962 = vmatprep.subr.bf16.mxu0 %v2314
          %2963 = vmatpush1.bf16.msra.mxu0 %v2313
          %2964 = vmatprep.mubr.bf16.mxu0 %v1190
          %2965 = vmatmul.mubr.bf16.gmra.mrb[0].mxu0 %v1189
          %v2966 = vpop.f32.mrb[0].mxu0
          %v2967 = vadd.f32 %v2894, %v2966
          %v2968 = vpop.f32.mrb[0].mxu0
          %v2969 = vadd.f32 %v2896, %v2968
          %v2970 = vpop.f32.mrb[0].mxu0
          %v2971 = vadd.f32 %v2898, %v2970
          %v2972 = vpop.f32.mrb[0].mxu0
          %v2973 = vadd.f32 %v2900, %v2972
          %2974 = vmatprep.mubr.bf16.mxu0 %v1209
          %2975 = vmatmul.mubr.bf16.gmra.mrb[0].mxu0 %v1208
          %v2976 = vpop.f32.mrb[0].mxu0
          %v2977 = vadd.f32 %v2904, %v2976
          %v2978 = vpop.f32.mrb[0].mxu0
          %v2979 = vadd.f32 %v2906, %v2978
          %v2980 = vpop.f32.mrb[0].mxu0
          %v2981 = vadd.f32 %v2908, %v2980
          %v2982 = vpop.f32.mrb[0].mxu0
          %v2983 = vadd.f32 %v2910, %v2982
          %2984 = vmatprep.mubr.bf16.mxu0 %v1228
          %2985 = vmatmul.mubr.bf16.gmra.mrb[0].mxu0 %v1227
          %v2986 = vpop.f32.mrb[0].mxu0
          %v2987 = vadd.f32 %v2914, %v2986
          %v2988 = vpop.f32.mrb[0].mxu0
          %v2989 = vadd.f32 %v2916, %v2988
          %v2990 = vpop.f32.mrb[0].mxu0
          %v2991 = vadd.f32 %v2918, %v2990
          %v2992 = vpop.f32.mrb[0].mxu0
          %v2993 = vadd.f32 %v2920, %v2992
          %2994 = vmatprep.mubr.bf16.mxu0 %v1247
          %2995 = vmatmul.mubr.bf16.gmra.mrb[0].mxu0 %v1246
          %v2996 = vpop.f32.mrb[0].mxu0
          %v2997 = vadd.f32 %v2924, %v2996
          %v2998 = vpop.f32.mrb[0].mxu0
          %v2999 = vadd.f32 %v2926, %v2998
          %v3000 = vpop.f32.mrb[0].mxu0
          %v3001 = vadd.f32 %v2928, %v3000
          %v3002 = vpop.f32.mrb[0].mxu0
          %v3003 = vadd.f32 %v2930, %v3002
          %3004 = vdwg.mxu0
          %3005 = vmatprep.subr.bf16.mxu0 %v2316
          %3006 = vmatpush1.bf16.msra.mxu0 %v2315
          %3007 = vmatprep.subr.bf16.mxu0 %v2318
          %3008 = vmatpush1.bf16.msra.mxu0 %v2317
          %3009 = vmatprep.subr.bf16.mxu0 %v2320
          %3010 = vmatpush1.bf16.msra.mxu0 %v2319
          %3011 = vmatprep.subr.bf16.mxu0 %v2322
          %3012 = vmatpush1.bf16.msra.mxu0 %v2321
          %3013 = vmatprep.subr.bf16.mxu0 %v2324
          %3014 = vmatpush1.bf16.msra.mxu0 %v2323
          %3015 = vmatprep.subr.bf16.mxu0 %v2326
          %3016 = vmatpush1.bf16.msra.mxu0 %v2325
          %3017 = vmatprep.subr.bf16.mxu0 %v2328
          %3018 = vmatpush1.bf16.msra.mxu0 %v2327
          %3019 = vmatprep.subr.bf16.mxu0 %v2330
          %3020 = vmatpush1.bf16.msra.mxu0 %v2329
          %3021 = vmatprep.subr.bf16.mxu0 %v2332
          %3022 = vmatpush1.bf16.msra.mxu0 %v2331
          %3023 = vmatprep.subr.bf16.mxu0 %v2334
          %3024 = vmatpush1.bf16.msra.mxu0 %v2333
          %3025 = vmatprep.subr.bf16.mxu0 %v2336
          %3026 = vmatpush1.bf16.msra.mxu0 %v2335
          %3027 = vmatprep.subr.bf16.mxu0 %v2338
          %3028 = vmatpush1.bf16.msra.mxu0 %v2337
          %3029 = vmatprep.subr.bf16.mxu0 %v2340
          %3030 = vmatpush1.bf16.msra.mxu0 %v2339
          %3031 = vmatprep.subr.bf16.mxu0 %v2342
          %3032 = vmatpush1.bf16.msra.mxu0 %v2341
          %3033 = vmatprep.subr.bf16.mxu0 %v2344
          %3034 = vmatpush1.bf16.msra.mxu0 %v2343
          %3035 = vmatprep.subr.bf16.mxu0 %v2346
          %3036 = vmatpush1.bf16.msra.mxu0 %v2345
          %3037 = vmatprep.mubr.bf16.mxu0 %v1192
          %3038 = vmatmul.mubr.bf16.gmra.mrb[0].mxu0 %v1191
          %v3039 = vpop.f32.mrb[0].mxu0
          %v3040 = vadd.f32 %v2967, %v3039
          %v3041 = vpop.f32.mrb[0].mxu0
          %v3042 = vadd.f32 %v2969, %v3041
          %v3043 = vpop.f32.mrb[0].mxu0
          %v3044 = vadd.f32 %v2971, %v3043
          %v3045 = vpop.f32.mrb[0].mxu0
          %v3046 = vadd.f32 %v2973, %v3045
          %3047 = vmatprep.mubr.bf16.mxu0 %v1211
          %3048 = vmatmul.mubr.bf16.gmra.mrb[0].mxu0 %v1210
          %v3049 = vpop.f32.mrb[0].mxu0
          %v3050 = vadd.f32 %v2977, %v3049
          %v3051 = vpop.f32.mrb[0].mxu0
          %v3052 = vadd.f32 %v2979, %v3051
          %v3053 = vpop.f32.mrb[0].mxu0
          %v3054 = vadd.f32 %v2981, %v3053
          %v3055 = vpop.f32.mrb[0].mxu0
          %v3056 = vadd.f32 %v2983, %v3055
          %3057 = vmatprep.mubr.bf16.mxu0 %v1230
          %3058 = vmatmul.mubr.bf16.gmra.mrb[0].mxu0 %v1229
          %v3059 = vpop.f32.mrb[0].mxu0
          %v3060 = vadd.f32 %v2987, %v3059
          %v3061 = vpop.f32.mrb[0].mxu0
          %v3062 = vadd.f32 %v2989, %v3061
          %v3063 = vpop.f32.mrb[0].mxu0
          %v3064 = vadd.f32 %v2991, %v3063
          %v3065 = vpop.f32.mrb[0].mxu0
          %v3066 = vadd.f32 %v2993, %v3065
          %3067 = vmatprep.mubr.bf16.mxu0 %v1249
          %3068 = vmatmul.mubr.bf16.gmra.mrb[0].mxu0 %v1248
          %v3069 = vpop.f32.mrb[0].mxu0
          %v3070 = vadd.f32 %v2997, %v3069
          %v3071 = vpop.f32.mrb[0].mxu0
          %v3072 = vadd.f32 %v2999, %v3071
          %v3073 = vpop.f32.mrb[0].mxu0
          %v3074 = vadd.f32 %v3001, %v3073
          %v3075 = vpop.f32.mrb[0].mxu0
          %v3076 = vadd.f32 %v3003, %v3075
          %3077 = vdwg.mxu0
          %3078 = vmatprep.subr.bf16.mxu0 %v2348
          %3079 = vmatpush1.bf16.msra.mxu0 %v2347
          %3080 = vmatprep.subr.bf16.mxu0 %v2350
          %3081 = vmatpush1.bf16.msra.mxu0 %v2349
          %3082 = vmatprep.subr.bf16.mxu0 %v2352
          %3083 = vmatpush1.bf16.msra.mxu0 %v2351
          %3084 = vmatprep.subr.bf16.mxu0 %v2354
          %3085 = vmatpush1.bf16.msra.mxu0 %v2353
          %3086 = vmatprep.subr.bf16.mxu0 %v2356
          %3087 = vmatpush1.bf16.msra.mxu0 %v2355
          %3088 = vmatprep.subr.bf16.mxu0 %v2358
          %3089 = vmatpush1.bf16.msra.mxu0 %v2357
          %3090 = vmatprep.subr.bf16.mxu0 %v2360
          %3091 = vmatpush1.bf16.msra.mxu0 %v2359
          %3092 = vmatprep.subr.bf16.mxu0 %v2362
          %3093 = vmatpush1.bf16.msra.mxu0 %v2361
          %3094 = vmatprep.subr.bf16.mxu0 %v2364
          %3095 = vmatpush1.bf16.msra.mxu0 %v2363
          %3096 = vmatprep.subr.bf16.mxu0 %v2366
          %3097 = vmatpush1.bf16.msra.mxu0 %v2365
          %3098 = vmatprep.subr.bf16.mxu0 %v2368
          %3099 = vmatpush1.bf16.msra.mxu0 %v2367
          %3100 = vmatprep.subr.bf16.mxu0 %v2370
          %3101 = vmatpush1.bf16.msra.mxu0 %v2369
          %3102 = vmatprep.subr.bf16.mxu0 %v2372
          %3103 = vmatpush1.bf16.msra.mxu0 %v2371
          %3104 = vmatprep.subr.bf16.mxu0 %v2374
          %3105 = vmatpush1.bf16.msra.mxu0 %v2373
          %3106 = vmatprep.subr.bf16.mxu0 %v2376
          %3107 = vmatpush1.bf16.msra.mxu0 %v2375
          %3108 = vmatprep.subr.bf16.mxu0 %v2378
          %3109 = vmatpush1.bf16.msra.mxu0 %v2377
          %3110 = vmatprep.mubr.bf16.mxu0 %v1194
          %3111 = vmatmul.mubr.bf16.gmra.mrb[0].mxu0 %v1193
          %v3112 = vpop.f32.mrb[0].mxu0
          %v3113 = vadd.f32 %v3040, %v3112
          %v3114 = vpop.f32.mrb[0].mxu0
          %v3115 = vadd.f32 %v3042, %v3114
          %v3116 = vpop.f32.mrb[0].mxu0
          %v3117 = vadd.f32 %v3044, %v3116
          %v3118 = vpop.f32.mrb[0].mxu0
          %v3119 = vadd.f32 %v3046, %v3118
          %3120 = vmatprep.mubr.bf16.mxu0 %v1213
          %3121 = vmatmul.mubr.bf16.gmra.mrb[0].mxu0 %v1212
          %v3122 = vpop.f32.mrb[0].mxu0
          %v3123 = vadd.f32 %v3050, %v3122
          %v3124 = vpop.f32.mrb[0].mxu0
          %v3125 = vadd.f32 %v3052, %v3124
          %v3126 = vpop.f32.mrb[0].mxu0
          %v3127 = vadd.f32 %v3054, %v3126
          %v3128 = vpop.f32.mrb[0].mxu0
          %v3129 = vadd.f32 %v3056, %v3128
          %3130 = vmatprep.mubr.bf16.mxu0 %v1232
          %3131 = vmatmul.mubr.bf16.gmra.mrb[0].mxu0 %v1231
          %v3132 = vpop.f32.mrb[0].mxu0
          %v3133 = vadd.f32 %v3060, %v3132
          %v3134 = vpop.f32.mrb[0].mxu0
          %v3135 = vadd.f32 %v3062, %v3134
          %v3136 = vpop.f32.mrb[0].mxu0
          %v3137 = vadd.f32 %v3064, %v3136
          %v3138 = vpop.f32.mrb[0].mxu0
          %v3139 = vadd.f32 %v3066, %v3138
          %3140 = vmatprep.mubr.bf16.mxu0 %v1251
          %3141 = vmatmul.mubr.bf16.gmra.mrb[0].mxu0 %v1250
          %v3142 = vpop.f32.mrb[0].mxu0
          %v3143 = vadd.f32 %v3070, %v3142
          %v3144 = vpop.f32.mrb[0].mxu0
          %v3145 = vadd.f32 %v3072, %v3144
          %v3146 = vpop.f32.mrb[0].mxu0
          %v3147 = vadd.f32 %v3074, %v3146
          %v3148 = vpop.f32.mrb[0].mxu0
          %v3149 = vadd.f32 %v3076, %v3148
          %3150 = vdwg.mxu0
          %3151 = vmatprep.subr.bf16.mxu0 %v2380
          %3152 = vmatpush1.bf16.msra.mxu0 %v2379
          %3153 = vmatprep.subr.bf16.mxu0 %v2382
          %3154 = vmatpush1.bf16.msra.mxu0 %v2381
          %3155 = vmatprep.subr.bf16.mxu0 %v2384
          %3156 = vmatpush1.bf16.msra.mxu0 %v2383
          %3157 = vmatprep.subr.bf16.mxu0 %v2386
          %3158 = vmatpush1.bf16.msra.mxu0 %v2385
          %3159 = vmatprep.subr.bf16.mxu0 %v2388
          %3160 = vmatpush1.bf16.msra.mxu0 %v2387
          %3161 = vmatprep.subr.bf16.mxu0 %v2390
          %3162 = vmatpush1.bf16.msra.mxu0 %v2389
          %3163 = vmatprep.subr.bf16.mxu0 %v2392
          %3164 = vmatpush1.bf16.msra.mxu0 %v2391
          %3165 = vmatprep.subr.bf16.mxu0 %v2394
          %3166 = vmatpush1.bf16.msra.mxu0 %v2393
          %3167 = vmatprep.subr.bf16.mxu0 %v2396
          %3168 = vmatpush1.bf16.msra.mxu0 %v2395
          %3169 = vmatprep.subr.bf16.mxu0 %v2398
          %3170 = vmatpush1.bf16.msra.mxu0 %v2397
          %3171 = vmatprep.subr.bf16.mxu0 %v2400
          %3172 = vmatpush1.bf16.msra.mxu0 %v2399
          %3173 = vmatprep.subr.bf16.mxu0 %v2402
          %3174 = vmatpush1.bf16.msra.mxu0 %v2401
          %3175 = vmatprep.subr.bf16.mxu0 %v2404
          %3176 = vmatpush1.bf16.msra.mxu0 %v2403
          %3177 = vmatprep.subr.bf16.mxu0 %v2406
          %3178 = vmatpush1.bf16.msra.mxu0 %v2405
          %3179 = vmatprep.subr.bf16.mxu0 %v2408
          %3180 = vmatpush1.bf16.msra.mxu0 %v2407
          %3181 = vmatprep.subr.bf16.mxu0 %v2410
          %3182 = vmatpush1.bf16.msra.mxu0 %v2409
          %3183 = vmatprep.mubr.bf16.mxu0 %v1196
          %3184 = vmatmul.mubr.bf16.gmra.mrb[0].mxu0 %v1195
          %v3185 = vpop.f32.mrb[0].mxu0
          %v3186 = vadd.f32 %v3113, %v3185
          %v3187 = vpop.f32.mrb[0].mxu0
          %v3188 = vadd.f32 %v3115, %v3187
          %v3189 = vpop.f32.mrb[0].mxu0
          %v3190 = vadd.f32 %v3117, %v3189
          %v3191 = vpop.f32.mrb[0].mxu0
          %v3192 = vadd.f32 %v3119, %v3191
          %3193 = vmatprep.mubr.bf16.mxu0 %v1215
          %3194 = vmatmul.mubr.bf16.gmra.mrb[0].mxu0 %v1214
          %v3195 = vpop.f32.mrb[0].mxu0
          %v3196 = vadd.f32 %v3123, %v3195
          %v3197 = vpop.f32.mrb[0].mxu0
          %v3198 = vadd.f32 %v3125, %v3197
          %v3199 = vpop.f32.mrb[0].mxu0
          %v3200 = vadd.f32 %v3127, %v3199
          %v3201 = vpop.f32.mrb[0].mxu0
          %v3202 = vadd.f32 %v3129, %v3201
          %3203 = vmatprep.mubr.bf16.mxu0 %v1234
          %3204 = vmatmul.mubr.bf16.gmra.mrb[0].mxu0 %v1233
          %v3205 = vpop.f32.mrb[0].mxu0
          %v3206 = vadd.f32 %v3133, %v3205
          %v3207 = vpop.f32.mrb[0].mxu0
          %v3208 = vadd.f32 %v3135, %v3207
          %v3209 = vpop.f32.mrb[0].mxu0
          %v3210 = vadd.f32 %v3137, %v3209
          %v3211 = vpop.f32.mrb[0].mxu0
          %v3212 = vadd.f32 %v3139, %v3211
          %3213 = vmatprep.mubr.bf16.mxu0 %v1253
          %3214 = vmatmul.mubr.bf16.gmra.mrb[0].mxu0 %v1252
          %v3215 = vpop.f32.mrb[0].mxu0
          %v3216 = vadd.f32 %v3143, %v3215
          %v3217 = vpop.f32.mrb[0].mxu0
          %v3218 = vadd.f32 %v3145, %v3217
          %v3219 = vpop.f32.mrb[0].mxu0
          %v3220 = vadd.f32 %v3147, %v3219
          %v3221 = vpop.f32.mrb[0].mxu0
          %v3222 = vadd.f32 %v3149, %v3221
          %3223 = vdwg.mxu0
          %3224 = vmatprep.subr.bf16.mxu0 %v2412
          %3225 = vmatpush1.bf16.msra.mxu0 %v2411
          %3226 = vmatprep.subr.bf16.mxu0 %v2414
          %3227 = vmatpush1.bf16.msra.mxu0 %v2413
          %3228 = vmatprep.subr.bf16.mxu0 %v2416
          %3229 = vmatpush1.bf16.msra.mxu0 %v2415
          %3230 = vmatprep.subr.bf16.mxu0 %v2418
          %3231 = vmatpush1.bf16.msra.mxu0 %v2417
          %3232 = vmatprep.subr.bf16.mxu0 %v2420
          %3233 = vmatpush1.bf16.msra.mxu0 %v2419
          %3234 = vmatprep.subr.bf16.mxu0 %v2422
          %3235 = vmatpush1.bf16.msra.mxu0 %v2421
          %3236 = vmatprep.subr.bf16.mxu0 %v2424
          %3237 = vmatpush1.bf16.msra.mxu0 %v2423
          %3238 = vmatprep.subr.bf16.mxu0 %v2426
          %3239 = vmatpush1.bf16.msra.mxu0 %v2425
          %3240 = vmatprep.subr.bf16.mxu0 %v2428
          %3241 = vmatpush1.bf16.msra.mxu0 %v2427
          %3242 = vmatprep.subr.bf16.mxu0 %v2430
          %3243 = vmatpush1.bf16.msra.mxu0 %v2429
          %3244 = vmatprep.subr.bf16.mxu0 %v2432
          %3245 = vmatpush1.bf16.msra.mxu0 %v2431
          %3246 = vmatprep.subr.bf16.mxu0 %v2434
          %3247 = vmatpush1.bf16.msra.mxu0 %v2433
          %3248 = vmatprep.subr.bf16.mxu0 %v2436
          %3249 = vmatpush1.bf16.msra.mxu0 %v2435
          %3250 = vmatprep.subr.bf16.mxu0 %v2438
          %3251 = vmatpush1.bf16.msra.mxu0 %v2437
          %3252 = vmatprep.subr.bf16.mxu0 %v2440
          %3253 = vmatpush1.bf16.msra.mxu0 %v2439
          %3254 = vmatprep.subr.bf16.mxu0 %v2442
          %3255 = vmatpush1.bf16.msra.mxu0 %v2441
          %3256 = vmatprep.mubr.bf16.mxu0 %v1198
          %3257 = vmatmul.mubr.bf16.gmra.mrb[0].mxu0 %v1197
          %v3258 = vpop.f32.mrb[0].mxu0
          %v3259 = vadd.f32 %v3186, %v3258
          %v3260 = vpop.f32.mrb[0].mxu0
          %v3261 = vadd.f32 %v3188, %v3260
          %v3262 = vpop.f32.mrb[0].mxu0
          %v3263 = vadd.f32 %v3190, %v3262
          %v3264 = vpop.f32.mrb[0].mxu0
          %v3265 = vadd.f32 %v3192, %v3264
          %3266 = vmatprep.mubr.bf16.mxu0 %v1217
          %3267 = vmatmul.mubr.bf16.gmra.mrb[0].mxu0 %v1216
          %v3268 = vpop.f32.mrb[0].mxu0
          %v3269 = vadd.f32 %v3196, %v3268
          %v3270 = vpop.f32.mrb[0].mxu0
          %v3271 = vadd.f32 %v3198, %v3270
          %v3272 = vpop.f32.mrb[0].mxu0
          %v3273 = vadd.f32 %v3200, %v3272
          %v3274 = vpop.f32.mrb[0].mxu0
          %v3275 = vadd.f32 %v3202, %v3274
          %3276 = vmatprep.mubr.bf16.mxu0 %v1236
          %3277 = vmatmul.mubr.bf16.gmra.mrb[0].mxu0 %v1235
          %v3278 = vpop.f32.mrb[0].mxu0
          %v3279 = vadd.f32 %v3206, %v3278
          %v3280 = vpop.f32.mrb[0].mxu0
          %v3281 = vadd.f32 %v3208, %v3280
          %v3282 = vpop.f32.mrb[0].mxu0
          %v3283 = vadd.f32 %v3210, %v3282
          %v3284 = vpop.f32.mrb[0].mxu0
          %v3285 = vadd.f32 %v3212, %v3284
          %3286 = vmatprep.mubr.bf16.mxu0 %v1255
          %3287 = vmatmul.mubr.bf16.gmra.mrb[0].mxu0 %v1254
          %v3288 = vpop.f32.mrb[0].mxu0
          %v3289 = vadd.f32 %v3216, %v3288
          %v3290 = vpop.f32.mrb[0].mxu0
          %v3291 = vadd.f32 %v3218, %v3290
          %v3292 = vpop.f32.mrb[0].mxu0
          %v3293 = vadd.f32 %v3220, %v3292
          %v3294 = vpop.f32.mrb[0].mxu0
          %v3295 = vadd.f32 %v3222, %v3294
          %3296 = vdwg.mxu0
          %3297 = vmatprep.subr.bf16.mxu0 %v2444
          %3298 = vmatpush1.bf16.msra.mxu0 %v2443
          %3299 = vmatprep.subr.bf16.mxu0 %v2446
          %3300 = vmatpush1.bf16.msra.mxu0 %v2445
          %3301 = vmatprep.subr.bf16.mxu0 %v2448
          %3302 = vmatpush1.bf16.msra.mxu0 %v2447
          %3303 = vmatprep.subr.bf16.mxu0 %v2450
          %3304 = vmatpush1.bf16.msra.mxu0 %v2449
          %3305 = vmatprep.subr.bf16.mxu0 %v2452
          %3306 = vmatpush1.bf16.msra.mxu0 %v2451
          %3307 = vmatprep.subr.bf16.mxu0 %v2454
          %3308 = vmatpush1.bf16.msra.mxu0 %v2453
          %3309 = vmatprep.subr.bf16.mxu0 %v2456
          %3310 = vmatpush1.bf16.msra.mxu0 %v2455
          %3311 = vmatprep.subr.bf16.mxu0 %v2458
          %3312 = vmatpush1.bf16.msra.mxu0 %v2457
          %3313 = vmatprep.subr.bf16.mxu0 %v2460
          %3314 = vmatpush1.bf16.msra.mxu0 %v2459
          %3315 = vmatprep.subr.bf16.mxu0 %v2462
          %3316 = vmatpush1.bf16.msra.mxu0 %v2461
          %3317 = vmatprep.subr.bf16.mxu0 %v2464
          %3318 = vmatpush1.bf16.msra.mxu0 %v2463
          %3319 = vmatprep.subr.bf16.mxu0 %v2466
          %3320 = vmatpush1.bf16.msra.mxu0 %v2465
          %3321 = vmatprep.subr.bf16.mxu0 %v2468
          %3322 = vmatpush1.bf16.msra.mxu0 %v2467
          %3323 = vmatprep.subr.bf16.mxu0 %v2470
          %3324 = vmatpush1.bf16.msra.mxu0 %v2469
          %3325 = vmatprep.subr.bf16.mxu0 %v2472
          %3326 = vmatpush1.bf16.msra.mxu0 %v2471
          %3327 = vmatprep.subr.bf16.mxu0 %v2474
          %3328 = vmatpush1.bf16.msra.mxu0 %v2473
          %3329 = vmatprep.mubr.bf16.mxu0 %v1200
          %3330 = vmatmul.mubr.bf16.gmra.mrb[0].mxu0 %v1199
          %v3331 = vpop.f32.mrb[0].mxu0
          %v3332 = vadd.f32 %v3259, %v3331
          %v3333 = vpop.f32.mrb[0].mxu0
          %v3334 = vadd.f32 %v3261, %v3333
          %v3335 = vpop.f32.mrb[0].mxu0
          %v3336 = vadd.f32 %v3263, %v3335
          %v3337 = vpop.f32.mrb[0].mxu0
          %v3338 = vadd.f32 %v3265, %v3337
          %3339 = vmatprep.mubr.bf16.mxu0 %v1219
          %3340 = vmatmul.mubr.bf16.gmra.mrb[0].mxu0 %v1218
          %v3341 = vpop.f32.mrb[0].mxu0
          %v3342 = vadd.f32 %v3269, %v3341
          %v3343 = vpop.f32.mrb[0].mxu0
          %v3344 = vadd.f32 %v3271, %v3343
          %v3345 = vpop.f32.mrb[0].mxu0
          %v3346 = vadd.f32 %v3273, %v3345
          %v3347 = vpop.f32.mrb[0].mxu0
          %v3348 = vadd.f32 %v3275, %v3347
          %3349 = vmatprep.mubr.bf16.mxu0 %v1238
          %3350 = vmatmul.mubr.bf16.gmra.mrb[0].mxu0 %v1237
          %v3351 = vpop.f32.mrb[0].mxu0
          %v3352 = vadd.f32 %v3279, %v3351
          %v3353 = vpop.f32.mrb[0].mxu0
          %v3354 = vadd.f32 %v3281, %v3353
          %v3355 = vpop.f32.mrb[0].mxu0
          %v3356 = vadd.f32 %v3283, %v3355
          %v3357 = vpop.f32.mrb[0].mxu0
          %v3358 = vadd.f32 %v3285, %v3357
          %3359 = vmatprep.mubr.bf16.mxu0 %v1257
          %3360 = vmatmul.mubr.bf16.gmra.mrb[0].mxu0 %v1256
          %v3361 = vpop.f32.mrb[0].mxu0
          %v3362 = vadd.f32 %v3289, %v3361
          %v3363 = vpop.f32.mrb[0].mxu0
          %v3364 = vadd.f32 %v3291, %v3363
          %v3365 = vpop.f32.mrb[0].mxu0
          %v3366 = vadd.f32 %v3293, %v3365
          %v3367 = vpop.f32.mrb[0].mxu0
          %v3368 = vadd.f32 %v3295, %v3367
          %3369 = vdwg.mxu0
          %3370 = vmatprep.subr.bf16.mxu0 %v2476
          %3371 = vmatpush1.bf16.msra.mxu0 %v2475
          %3372 = vmatprep.subr.bf16.mxu0 %v2478
          %3373 = vmatpush1.bf16.msra.mxu0 %v2477
          %3374 = vmatprep.subr.bf16.mxu0 %v2480
          %3375 = vmatpush1.bf16.msra.mxu0 %v2479
          %3376 = vmatprep.subr.bf16.mxu0 %v2482
          %3377 = vmatpush1.bf16.msra.mxu0 %v2481
          %3378 = vmatprep.subr.bf16.mxu0 %v2484
          %3379 = vmatpush1.bf16.msra.mxu0 %v2483
          %3380 = vmatprep.subr.bf16.mxu0 %v2486
          %3381 = vmatpush1.bf16.msra.mxu0 %v2485
          %3382 = vmatprep.subr.bf16.mxu0 %v2488
          %3383 = vmatpush1.bf16.msra.mxu0 %v2487
          %3384 = vmatprep.subr.bf16.mxu0 %v2490
          %3385 = vmatpush1.bf16.msra.mxu0 %v2489
          %3386 = vmatprep.subr.bf16.mxu0 %v2492
          %3387 = vmatpush1.bf16.msra.mxu0 %v2491
          %3388 = vmatprep.subr.bf16.mxu0 %v2494
          %3389 = vmatpush1.bf16.msra.mxu0 %v2493
          %3390 = vmatprep.subr.bf16.mxu0 %v2496
          %3391 = vmatpush1.bf16.msra.mxu0 %v2495
          %3392 = vmatprep.subr.bf16.mxu0 %v2498
          %3393 = vmatpush1.bf16.msra.mxu0 %v2497
          %3394 = vmatprep.subr.bf16.mxu0 %v2500
          %3395 = vmatpush1.bf16.msra.mxu0 %v2499
          %3396 = vmatprep.subr.bf16.mxu0 %v2502
          %3397 = vmatpush1.bf16.msra.mxu0 %v2501
          %3398 = vmatprep.subr.bf16.mxu0 %v2504
          %3399 = vmatpush1.bf16.msra.mxu0 %v2503
          %3400 = vmatprep.subr.bf16.mxu0 %v2506
          %3401 = vmatpush1.bf16.msra.mxu0 %v2505
          %3402 = vmatprep.mubr.bf16.mxu0 %v1202
          %3403 = vmatmul.mubr.bf16.gmra.mrb[0].mxu0 %v1201
          %v3404 = vpop.f32.mrb[0].mxu0
          %v3405 = vadd.f32 %v3332, %v3404
          %v3406 = vpop.f32.mrb[0].mxu0
          %v3407 = vadd.f32 %v3334, %v3406
          %v3408 = vpop.f32.mrb[0].mxu0
          %v3409 = vadd.f32 %v3336, %v3408
          %v3410 = vpop.f32.mrb[0].mxu0
          %v3411 = vadd.f32 %v3338, %v3410
          %3412 = vmatprep.mubr.bf16.mxu0 %v1221
          %3413 = vmatmul.mubr.bf16.gmra.mrb[0].mxu0 %v1220
          %v3414 = vpop.f32.mrb[0].mxu0
          %v3415 = vadd.f32 %v3342, %v3414
          %v3416 = vpop.f32.mrb[0].mxu0
          %v3417 = vadd.f32 %v3344, %v3416
          %v3418 = vpop.f32.mrb[0].mxu0
          %v3419 = vadd.f32 %v3346, %v3418
          %v3420 = vpop.f32.mrb[0].mxu0
          %v3421 = vadd.f32 %v3348, %v3420
          %3422 = vmatprep.mubr.bf16.mxu0 %v1240
          %3423 = vmatmul.mubr.bf16.gmra.mrb[0].mxu0 %v1239
          %v3424 = vpop.f32.mrb[0].mxu0
          %v3425 = vadd.f32 %v3352, %v3424
          %v3426 = vpop.f32.mrb[0].mxu0
          %v3427 = vadd.f32 %v3354, %v3426
          %v3428 = vpop.f32.mrb[0].mxu0
          %v3429 = vadd.f32 %v3356, %v3428
          %v3430 = vpop.f32.mrb[0].mxu0
          %v3431 = vadd.f32 %v3358, %v3430
          %3432 = vmatprep.mubr.bf16.mxu0 %v1259
          %3433 = vmatmul.mubr.bf16.gmra.mrb[0].mxu0 %v1258
          %v3434 = vpop.f32.mrb[0].mxu0
          %v3435 = vadd.f32 %v3362, %v3434
          %v3436 = vpop.f32.mrb[0].mxu0
          %v3437 = vadd.f32 %v3364, %v3436
          %v3438 = vpop.f32.mrb[0].mxu0
          %v3439 = vadd.f32 %v3366, %v3438
          %v3440 = vpop.f32.mrb[0].mxu0
          %v3441 = vadd.f32 %v3368, %v3440
          %3442 = vdwg.mxu0
          %3443 = vmatprep.subr.bf16.mxu0 %v2508
          %3444 = vmatpush1.bf16.msra.mxu0 %v2507
          %3445 = vmatprep.subr.bf16.mxu0 %v2510
          %3446 = vmatpush1.bf16.msra.mxu0 %v2509
          %3447 = vmatprep.subr.bf16.mxu0 %v2512
          %3448 = vmatpush1.bf16.msra.mxu0 %v2511
          %3449 = vmatprep.subr.bf16.mxu0 %v2514
          %3450 = vmatpush1.bf16.msra.mxu0 %v2513
          %3451 = vmatprep.subr.bf16.mxu0 %v2516
          %3452 = vmatpush1.bf16.msra.mxu0 %v2515
          %3453 = vmatprep.subr.bf16.mxu0 %v2518
          %3454 = vmatpush1.bf16.msra.mxu0 %v2517
          %3455 = vmatprep.subr.bf16.mxu0 %v2520
          %3456 = vmatpush1.bf16.msra.mxu0 %v2519
          %3457 = vmatprep.subr.bf16.mxu0 %v2522
          %3458 = vmatpush1.bf16.msra.mxu0 %v2521
          %3459 = vmatprep.subr.bf16.mxu0 %v2524
          %3460 = vmatpush1.bf16.msra.mxu0 %v2523
          %3461 = vmatprep.subr.bf16.mxu0 %v2526
          %3462 = vmatpush1.bf16.msra.mxu0 %v2525
          %3463 = vmatprep.subr.bf16.mxu0 %v2528
          %3464 = vmatpush1.bf16.msra.mxu0 %v2527
          %3465 = vmatprep.subr.bf16.mxu0 %v2530
          %3466 = vmatpush1.bf16.msra.mxu0 %v2529
          %3467 = vmatprep.subr.bf16.mxu0 %v2532
          %3468 = vmatpush1.bf16.msra.mxu0 %v2531
          %3469 = vmatprep.subr.bf16.mxu0 %v2534
          %3470 = vmatpush1.bf16.msra.mxu0 %v2533
          %3471 = vmatprep.subr.bf16.mxu0 %v2536
          %3472 = vmatpush1.bf16.msra.mxu0 %v2535
          %3473 = vmatprep.subr.bf16.mxu0 %v2538
          %3474 = vmatpush1.bf16.msra.mxu0 %v2537
          %3475 = vmatprep.mubr.bf16.mxu0 %v1204
          %3476 = vmatmul.mubr.bf16.gmra.mrb[0].mxu0 %v1203
          %v3477 = vpop.f32.mrb[0].mxu0
          %v3478 = vadd.f32 %v3405, %v3477
          %v3479 = vpop.f32.mrb[0].mxu0
          %v3480 = vadd.f32 %v3407, %v3479
          %v3481 = vpop.f32.mrb[0].mxu0
          %v3482 = vadd.f32 %v3409, %v3481
          %v3483 = vpop.f32.mrb[0].mxu0
          %v3484 = vadd.f32 %v3411, %v3483
          %3485 = vmatprep.mubr.bf16.mxu0 %v1223
          %3486 = vmatmul.mubr.bf16.gmra.mrb[0].mxu0 %v1222
          %v3487 = vpop.f32.mrb[0].mxu0
          %v3488 = vadd.f32 %v3415, %v3487
          %v3489 = vpop.f32.mrb[0].mxu0
          %v3490 = vadd.f32 %v3417, %v3489
          %v3491 = vpop.f32.mrb[0].mxu0
          %v3492 = vadd.f32 %v3419, %v3491
          %v3493 = vpop.f32.mrb[0].mxu0
          %v3494 = vadd.f32 %v3421, %v3493
          %3495 = vmatprep.mubr.bf16.mxu0 %v1242
          %3496 = vmatmul.mubr.bf16.gmra.mrb[0].mxu0 %v1241
          %v3497 = vpop.f32.mrb[0].mxu0
          %v3498 = vadd.f32 %v3425, %v3497
          %v3499 = vpop.f32.mrb[0].mxu0
          %v3500 = vadd.f32 %v3427, %v3499
          %v3501 = vpop.f32.mrb[0].mxu0
          %v3502 = vadd.f32 %v3429, %v3501
          %v3503 = vpop.f32.mrb[0].mxu0
          %v3504 = vadd.f32 %v3431, %v3503
          %3505 = vmatprep.mubr.bf16.mxu0 %v1261
          %3506 = vmatmul.mubr.bf16.gmra.mrb[0].mxu0 %v1260
          %v3507 = vpop.f32.mrb[0].mxu0
          %v3508 = vadd.f32 %v3435, %v3507
          %v3509 = vpop.f32.mrb[0].mxu0
          %v3510 = vadd.f32 %v3437, %v3509
          %v3511 = vpop.f32.mrb[0].mxu0
          %v3512 = vadd.f32 %v3439, %v3511
          %v3513 = vpop.f32.mrb[0].mxu0
          %v3514 = vadd.f32 %v3441, %v3513
          %3515 = vdwg.mxu0
          %3516 = vmatprep.subr.bf16.mxu0 %v2540
          %3517 = vmatpush1.bf16.msra.mxu0 %v2539
          %3518 = vmatprep.subr.bf16.mxu0 %v2542
          %3519 = vmatpush1.bf16.msra.mxu0 %v2541
          %3520 = vmatprep.subr.bf16.mxu0 %v2544
          %3521 = vmatpush1.bf16.msra.mxu0 %v2543
          %3522 = vmatprep.subr.bf16.mxu0 %v2546
          %3523 = vmatpush1.bf16.msra.mxu0 %v2545
          %3524 = vmatprep.subr.bf16.mxu0 %v2548
          %3525 = vmatpush1.bf16.msra.mxu0 %v2547
          %3526 = vmatprep.subr.bf16.mxu0 %v2550
          %3527 = vmatpush1.bf16.msra.mxu0 %v2549
          %3528 = vmatprep.subr.bf16.mxu0 %v2552
          %3529 = vmatpush1.bf16.msra.mxu0 %v2551
          %3530 = vmatprep.subr.bf16.mxu0 %v2554
          %3531 = vmatpush1.bf16.msra.mxu0 %v2553
          %3532 = vmatprep.subr.bf16.mxu0 0
          %3533 = vmatpush1.bf16.msra.mxu0 0
          %3534 = vmatprep.subr.bf16.mxu0 0
          %3535 = vmatpush1.bf16.msra.mxu0 0
          %3536 = vmatprep.subr.bf16.mxu0 0
          %3537 = vmatpush1.bf16.msra.mxu0 0
          %3538 = vmatprep.subr.bf16.mxu0 0
          %3539 = vmatpush1.bf16.msra.mxu0 0
          %3540 = vmatprep.subr.bf16.mxu0 0
          %3541 = vmatpush1.bf16.msra.mxu0 0
          %3542 = vmatprep.subr.bf16.mxu0 0
          %3543 = vmatpush1.bf16.msra.mxu0 0
          %3544 = vmatprep.subr.bf16.mxu0 0
          %3545 = vmatpush1.bf16.msra.mxu0 0
          %3546 = vmatprep.subr.bf16.mxu0 0
          %3547 = vmatpush1.bf16.msra.mxu0 0
          %3548 = vmatprep.mubr.bf16.mxu0 0
          %3549 = vmatmul.mubr.bf16.gmra.mrb[0].mxu0 %v1205
          %v3550 = vpop.f32.mrb[0].mxu0
          %v3551 = vadd.f32 %v3478, %v3550
          %v3552 = vpop.f32.mrb[0].mxu0
          %v3553 = vadd.f32 %v3480, %v3552
          %v3554 = vpop.f32.mrb[0].mxu0
          %v3555 = vadd.f32 %v3482, %v3554
          %v3556 = vpop.f32.mrb[0].mxu0
          %v3557 = vadd.f32 %v3484, %v3556
          %3558 = vmatprep.mubr.bf16.mxu0 0
          %3559 = vmatmul.mubr.bf16.gmra.mrb[0].mxu0 %v1224
          %v3560 = vpop.f32.mrb[0].mxu0
          %v3561 = vadd.f32 %v3488, %v3560
          %v3562 = vpop.f32.mrb[0].mxu0
          %v3563 = vadd.f32 %v3490, %v3562
          %v3564 = vpop.f32.mrb[0].mxu0
          %v3565 = vadd.f32 %v3492, %v3564
          %v3566 = vpop.f32.mrb[0].mxu0
          %v3567 = vadd.f32 %v3494, %v3566
          %3568 = vmatprep.mubr.bf16.mxu0 0
          %3569 = vmatmul.mubr.bf16.gmra.mrb[0].mxu0 %v1243
          %v3570 = vpop.f32.mrb[0].mxu0
          %v3571 = vadd.f32 %v3498, %v3570
          %v3572 = vpop.f32.mrb[0].mxu0
          %v3573 = vadd.f32 %v3500, %v3572
          %v3574 = vpop.f32.mrb[0].mxu0
          %v3575 = vadd.f32 %v3502, %v3574
          %v3576 = vpop.f32.mrb[0].mxu0
          %v3577 = vadd.f32 %v3504, %v3576
          %3578 = vmatprep.mubr.bf16.mxu0 0
          %3579 = vmatmul.mubr.bf16.gmra.mrb[0].mxu0 %v1262
          %v3580 = vpop.f32.mrb[0].mxu0
          %v3581 = vadd.f32 %v3508, %v3580
          %v3582 = vpop.f32.mrb[0].mxu0
          %v3583 = vadd.f32 %v3510, %v3582
          %v3584 = vpop.f32.mrb[0].mxu0
          %v3585 = vadd.f32 %v3512, %v3584
          %v3586 = vpop.f32.mrb[0].mxu0
          %v3587 = vadd.f32 %v3514, %v3586
          %3588 = vdwg.mxu0
          %v3589 = vpack.c.bf16 %v3555, %v3551
          %v3590 = vpack.c.bf16 %v3557, %v3553
          %v3591 = vpack.c.bf16 %v3565, %v3561
          %v3592 = vpack.c.bf16 %v3567, %v3563
          %v3593 = vpack.c.bf16 %v3575, %v3571
          %v3594 = vpack.c.bf16 %v3577, %v3573
          %v3595 = vpack.c.bf16 %v3585, %v3581
          %v3596 = vpack.c.bf16 %v3587, %v3583
          %3597 = vst [vmem:[#allocation2] sm:$0xff] %v3589
          %3598 = vst [vmem:[#allocation2 + $0x8] sm:$0xff] %v3590
          %3599 = vst [vmem:[#allocation2 + $0x10] sm:$0xff] %v3591
          %3600 = vst [vmem:[#allocation2 + $0x18] sm:$0xff] %v3592
          %3601 = vst [vmem:[#allocation2 + $0x20] sm:$0xff] %v3593
          %3602 = vst [vmem:[#allocation2 + $0x28] sm:$0xff] %v3594
          %3603 = vst [vmem:[#allocation2 + $0x30] sm:$0xff] %v3595
          %3604 = vst [vmem:[#allocation2 + $0x38] sm:$0xff] %v3596
        $region88: #{tpu_custom_call.1} parent=51 // pred_fallthru
          _
        %v3605 = vld [vmem:[%s480] sm:$0xf]
        %v3606 = vld [vmem:[%s480 + $0x4] sm:$0xf]
        %v3607 = vld [vmem:[%s480 + $0x8] sm:$0xf]
        %v3608 = vld [vmem:[%s480 + $0xc] sm:$0xf]
        %v3609 = vld [vmem:[%s480 + $0x10] sm:$0xf]
        %v3610 = vld [vmem:[%s480 + $0x14] sm:$0xf]
        %v3611 = vld [vmem:[%s480 + $0x18] sm:$0xf]
        %v3612 = vld [vmem:[%s480 + $0x1c] sm:$0xf]
        %v3613 = vld [vmem:[#allocation2] sm:$0xff]
        %v3614 = vld [vmem:[#allocation2 + $0x8] sm:$0xff]
        %v3615 = vld [vmem:[#allocation2 + $0x10] sm:$0xff]
        %v3616 = vld [vmem:[#allocation2 + $0x18] sm:$0xff]
        %v3617 = vld [vmem:[#allocation2 + $0x20] sm:$0xff]
        %v3618 = vld [vmem:[#allocation2 + $0x28] sm:$0xff]
        %v3619 = vld [vmem:[#allocation2 + $0x30] sm:$0xff]
        %v3620 = vld [vmem:[#allocation2 + $0x38] sm:$0xff]
        %v3629 = vunpack.c.l.b16 %v3605
        %v3630 = vunpack.c.l.b16 %v3606
        %v3631 = vunpack.c.l.b16 %v3607
        %v3632 = vunpack.c.l.b16 %v3608
        %v3633 = vunpack.c.l.b16 %v3609
        %v3634 = vunpack.c.l.b16 %v3610
        %v3635 = vunpack.c.l.b16 %v3611
        %v3636 = vunpack.c.l.b16 %v3612
        %v3637 = vpack.c.b16 %v3630, %v3629
        %v3638 = vpack.c.b16 %v3632, %v3631
        %v3639 = vpack.c.b16 %v3634, %v3633
        %v3640 = vpack.c.b16 %v3636, %v3635
        %vm3641 = vcmask 523264
        %v3643 = vsel %vm3641, %v3637, 0
        %v3646 = vsel %vm3641, %v3638, 0
        %v3649 = vsel %vm3641, %v3639, 0
        %v3652 = vsel %vm3641, %v3640, 0
        %3654 = vmatprep.subr.bf16.mxu0 %v3614
        %3655 = vmatpush1.bf16.msra.mxu0 %v3613
        %3656 = vmatprep.subr.bf16.mxu0 %v3616
        %3657 = vmatpush1.bf16.msra.mxu0 %v3615
        %3658 = vmatprep.subr.bf16.mxu0 %v3618
        %3659 = vmatpush1.bf16.msra.mxu0 %v3617
        %3660 = vmatprep.subr.bf16.mxu0 %v3620
        %3661 = vmatpush1.bf16.msra.mxu0 %v3619
        %3662 = vmatprep.subr.bf16.mxu0 0
        %3663 = vmatpush1.bf16.msra.mxu0 0
        %3664 = vmatprep.subr.bf16.mxu0 0
        %3665 = vmatpush1.bf16.msra.mxu0 0
        %3666 = vmatprep.subr.bf16.mxu0 0
        %3667 = vmatpush1.bf16.msra.mxu0 0
        %3668 = vmatprep.subr.bf16.mxu0 0
        %3669 = vmatpush1.bf16.msra.mxu0 0
        %3670 = vmatprep.subr.bf16.mxu0 0
        %3671 = vmatpush1.bf16.msra.mxu0 0
        %3672 = vmatprep.subr.bf16.mxu0 0
        %3673 = vmatpush1.bf16.msra.mxu0 0
        %3674 = vmatprep.subr.bf16.mxu0 0
        %3675 = vmatpush1.bf16.msra.mxu0 0
        %3676 = vmatprep.subr.bf16.mxu0 0
        %3677 = vmatpush1.bf16.msra.mxu0 0
        %3678 = vmatprep.subr.bf16.mxu0 0
        %3679 = vmatpush1.bf16.msra.mxu0 0
        %3680 = vmatprep.subr.bf16.mxu0 0
        %3681 = vmatpush1.bf16.msra.mxu0 0
        %3682 = vmatprep.subr.bf16.mxu0 0
        %3683 = vmatpush1.bf16.msra.mxu0 0
        %3684 = vmatprep.subr.bf16.mxu0 0
        %3685 = vmatpush1.bf16.msra.mxu0 0
        %3686 = vmatprep.mubr.bf16.mxu0 0
        %3687 = vmatmul.mubr.bf16.gmra.mrb[0].mxu0 %v3643
        %v3688 = vpop.f32.mrb[0].mxu0
        %v3689 = vadd.f32 0.0, %v3688
        %v3690 = vpop.f32.mrb[0].mxu0
        %v3691 = vadd.f32 0.0, %v3690
        %v3692 = vpop.f32.mrb[0].mxu0
        %v3693 = vadd.f32 0.0, %v3692
        %v3694 = vpop.f32.mrb[0].mxu0
        %v3695 = vadd.f32 0.0, %v3694
        %3696 = vmatprep.mubr.bf16.mxu0 0
        %3697 = vmatmul.mubr.bf16.gmra.mrb[0].mxu0 %v3646
        %v3698 = vpop.f32.mrb[0].mxu0
        %v3699 = vadd.f32 0.0, %v3698
        %v3700 = vpop.f32.mrb[0].mxu0
        %v3701 = vadd.f32 0.0, %v3700
        %v3702 = vpop.f32.mrb[0].mxu0
        %v3703 = vadd.f32 0.0, %v3702
        %v3704 = vpop.f32.mrb[0].mxu0
        %v3705 = vadd.f32 0.0, %v3704
        %3706 = vmatprep.mubr.bf16.mxu0 0
        %3707 = vmatmul.mubr.bf16.gmra.mrb[0].mxu0 %v3649
        %v3708 = vpop.f32.mrb[0].mxu0
        %v3709 = vadd.f32 0.0, %v3708
        %v3710 = vpop.f32.mrb[0].mxu0
        %v3711 = vadd.f32 0.0, %v3710
        %v3712 = vpop.f32.mrb[0].mxu0
        %v3713 = vadd.f32 0.0, %v3712
        %v3714 = vpop.f32.mrb[0].mxu0
        %v3715 = vadd.f32 0.0, %v3714
        %3716 = vmatprep.mubr.bf16.mxu0 0
        %3717 = vmatmul.mubr.bf16.gmra.mrb[0].mxu0 %v3652
        %v3718 = vpop.f32.mrb[0].mxu0
        %v3719 = vadd.f32 0.0, %v3718
        %v3720 = vpop.f32.mrb[0].mxu0
        %v3721 = vadd.f32 0.0, %v3720
        %v3722 = vpop.f32.mrb[0].mxu0
        %v3723 = vadd.f32 0.0, %v3722
        %v3724 = vpop.f32.mrb[0].mxu0
        %v3725 = vadd.f32 0.0, %v3724
        %3726 = vdwg.mxu0
        %v3727 = vmul.f32 %v3689, 0.25
        %v3728 = vmul.f32 %v3691, 0.25
        %v3729 = vmul.f32 %v3693, 0.25
        %v3730 = vmul.f32 %v3695, 0.25
        %v3731 = vmul.f32 %v3699, 0.25
        %v3732 = vmul.f32 %v3701, 0.25
        %v3733 = vmul.f32 %v3703, 0.25
        %v3734 = vmul.f32 %v3705, 0.25
        %v3735 = vmul.f32 %v3709, 0.25
        %v3736 = vmul.f32 %v3711, 0.25
        %v3737 = vmul.f32 %v3713, 0.25
        %v3738 = vmul.f32 %v3715, 0.25
        %v3739 = vmul.f32 %v3719, 0.25
        %v3740 = vmul.f32 %v3721, 0.25
        %v3741 = vmul.f32 %v3723, 0.25
        %v3742 = vmul.f32 %v3725, 0.25
        %v3743 = vmax.f32 %v3689, %v3727
        %v3744 = vmax.f32 %v3691, %v3728
        %v3745 = vmax.f32 %v3693, %v3729
        %v3746 = vmax.f32 %v3695, %v3730
        %v3747 = vmax.f32 %v3699, %v3731
        %v3748 = vmax.f32 %v3701, %v3732
        %v3749 = vmax.f32 %v3703, %v3733
        %v3750 = vmax.f32 %v3705, %v3734
        %v3751 = vmax.f32 %v3709, %v3735
        %v3752 = vmax.f32 %v3711, %v3736
        %v3753 = vmax.f32 %v3713, %v3737
        %v3754 = vmax.f32 %v3715, %v3738
        %v3755 = vmax.f32 %v3719, %v3739
        %v3756 = vmax.f32 %v3721, %v3740
        %v3757 = vmax.f32 %v3723, %v3741
        %v3758 = vmax.f32 %v3725, %v3742
        %3759 = vst [vmem:[%s543] sm:$0xff] %v3743
        %3760 = vst [vmem:[%s543 + $0x8] sm:$0xff] %v3744
        %3761 = vst [vmem:[%s543 + $0x10] sm:$0xff] %v3745
        %3762 = vst [vmem:[%s543 + $0x18] sm:$0xff] %v3746
        %3763 = vst [vmem:[%s543 + $0x20] sm:$0xff] %v3747
        %3764 = vst [vmem:[%s543 + $0x28] sm:$0xff] %v3748
        %3765 = vst [vmem:[%s543 + $0x30] sm:$0xff] %v3749
        %3766 = vst [vmem:[%s543 + $0x38] sm:$0xff] %v3750
        %3767 = vst [vmem:[%s543 + $0x40] sm:$0xff] %v3751
        %3768 = vst [vmem:[%s543 + $0x48] sm:$0xff] %v3752
        %3769 = vst [vmem:[%s543 + $0x50] sm:$0xff] %v3753
        %3770 = vst [vmem:[%s543 + $0x58] sm:$0xff] %v3754
        %3771 = vst [vmem:[%s543 + $0x60] sm:$0xff] %v3755
        %3772 = vst [vmem:[%s543 + $0x68] sm:$0xff] %v3756
        %3773 = vst [vmem:[%s543 + $0x70] sm:$0xff] %v3757
        %3774 = vst [vmem:[%s543 + $0x78] sm:$0xff] %v3758
        %v3775 = vpack.c.bf16 %v3745, %v3743
        %v3776 = vpack.c.bf16 %v3746, %v3744
        %v3777 = vpack.c.bf16 %v3749, %v3747
        %v3778 = vpack.c.bf16 %v3750, %v3748
        %v3779 = vpack.c.bf16 %v3753, %v3751
        %v3780 = vpack.c.bf16 %v3754, %v3752
        %v3781 = vpack.c.bf16 %v3757, %v3755
        %v3782 = vpack.c.bf16 %v3758, %v3756
        %v3783 = vld [vmem:[#allocation11] sm:$0xf]
        %v3784 = vld [vmem:[#allocation11 + $0x4] sm:$0xf]
        %v3785 = vld [vmem:[#allocation11 + $0x8] sm:$0xf]
        %v3786 = vld [vmem:[#allocation11 + $0xc] sm:$0xf]
        %v3787 = vld [vmem:[#allocation11 + $0x10] sm:$0xf]
        %v3788 = vld [vmem:[#allocation11 + $0x14] sm:$0xf]
        %v3789 = vld [vmem:[#allocation11 + $0x18] sm:$0xf]
        %v3790 = vld [vmem:[#allocation11 + $0x1c] sm:$0xf]
        %v3791 = vld [vmem:[#allocation11 + $0x20] sm:$0xf]
        %v3792 = vld [vmem:[#allocation11 + $0x24] sm:$0xf]
        %v3793 = vld [vmem:[#allocation11 + $0x28] sm:$0xf]
        %v3794 = vld [vmem:[#allocation11 + $0x2c] sm:$0xf]
        %v3795 = vld [vmem:[#allocation11 + $0x30] sm:$0xf]
        %v3796 = vld [vmem:[#allocation11 + $0x34] sm:$0xf]
        %v3797 = vld [vmem:[#allocation11 + $0x38] sm:$0xf]
        %v3798 = vld [vmem:[#allocation11 + $0x3c] sm:$0xf]
        %v3799 = vld [vmem:[#allocation11 + $0x40] sm:$0xf]
        %v3800 = vld [vmem:[#allocation11 + $0x44] sm:$0xf]
        %v3801 = vld [vmem:[#allocation11 + $0x48] sm:$0xf]
        %v3802 = vld [vmem:[#allocation11 + $0x4c] sm:$0xf]
        %v3803 = vld [vmem:[#allocation11 + $0x50] sm:$0xf]
        %v3804 = vld [vmem:[#allocation11 + $0x54] sm:$0xf]
        %v3805 = vld [vmem:[#allocation11 + $0x58] sm:$0xf]
        %v3806 = vld [vmem:[#allocation11 + $0x5c] sm:$0xf]
        %v3807 = vld [vmem:[#allocation11 + $0x60] sm:$0xf]
        %v3808 = vld [vmem:[#allocation11 + $0x64] sm:$0xf]
        %v3809 = vld [vmem:[#allocation11 + $0x68] sm:$0xf]
        %v3810 = vld [vmem:[#allocation11 + $0x6c] sm:$0xf]
        %v3811 = vld [vmem:[#allocation11 + $0x70] sm:$0xf]
        %v3812 = vld [vmem:[#allocation11 + $0x74] sm:$0xf]
        %v3813 = vld [vmem:[#allocation11 + $0x78] sm:$0xf]
        %v3814 = vld [vmem:[#allocation11 + $0x7c] sm:$0xf]
        %v3815 = vld [vmem:[#allocation12] sm:$0x1]
        %v3817 = vlaneseq
        %v3818 = vshrl.u32 %v3817, 7
        %v3819 = vsub.s32 0, %v3818
        %v3820 = vrot.slane %v3815, %v3819
        %v3854 = vunpack.c.l.b16 %v3783
        %v3855 = vunpack.c.l.b16 %v3784
        %v3856 = vunpack.c.l.b16 %v3785
        %v3857 = vunpack.c.l.b16 %v3786
        %v3858 = vunpack.c.l.b16 %v3787
        %v3859 = vunpack.c.l.b16 %v3788
        %v3860 = vunpack.c.l.b16 %v3789
        %v3861 = vunpack.c.l.b16 %v3790
        %v3862 = vunpack.c.l.b16 %v3791
        %v3863 = vunpack.c.l.b16 %v3792
        %v3864 = vunpack.c.l.b16 %v3793
        %v3865 = vunpack.c.l.b16 %v3794
        %v3866 = vunpack.c.l.b16 %v3795
        %v3867 = vunpack.c.l.b16 %v3796
        %v3868 = vunpack.c.l.b16 %v3797
        %v3869 = vunpack.c.l.b16 %v3798
        %v3870 = vunpack.c.l.b16 %v3799
        %v3871 = vunpack.c.l.b16 %v3800
        %v3872 = vunpack.c.l.b16 %v3801
        %v3873 = vunpack.c.l.b16 %v3802
        %v3874 = vunpack.c.l.b16 %v3803
        %v3875 = vunpack.c.l.b16 %v3804
        %v3876 = vunpack.c.l.b16 %v3805
        %v3877 = vunpack.c.l.b16 %v3806
        %v3878 = vunpack.c.l.b16 %v3807
        %v3879 = vunpack.c.l.b16 %v3808
        %v3880 = vunpack.c.l.b16 %v3809
        %v3881 = vunpack.c.l.b16 %v3810
        %v3882 = vunpack.c.l.b16 %v3811
        %v3883 = vunpack.c.l.b16 %v3812
        %v3884 = vunpack.c.l.b16 %v3813
        %v3885 = vunpack.c.l.b16 %v3814
        %v3886 = vpack.c.b16 %v3855, %v3854
        %v3887 = vpack.c.b16 %v3857, %v3856
        %v3888 = vpack.c.b16 %v3859, %v3858
        %v3889 = vpack.c.b16 %v3861, %v3860
        %v3890 = vpack.c.b16 %v3863, %v3862
        %v3891 = vpack.c.b16 %v3865, %v3864
        %v3892 = vpack.c.b16 %v3867, %v3866
        %v3893 = vpack.c.b16 %v3869, %v3868
        %v3894 = vpack.c.b16 %v3871, %v3870
        %v3895 = vpack.c.b16 %v3873, %v3872
        %v3896 = vpack.c.b16 %v3875, %v3874
        %v3897 = vpack.c.b16 %v3877, %v3876
        %v3898 = vpack.c.b16 %v3879, %v3878
        %v3899 = vpack.c.b16 %v3881, %v3880
        %v3900 = vpack.c.b16 %v3883, %v3882
        %v3901 = vpack.c.b16 %v3885, %v3884
        %3918 = vmatprep.subr.bf16.mxu0 0
        %3919 = vmatpush1.bf16.msra.mxu0 %v3886
        %3920 = vmatprep.subr.bf16.mxu0 0
        %3921 = vmatpush1.bf16.msra.mxu0 %v3887
        %3922 = vmatprep.subr.bf16.mxu0 0
        %3923 = vmatpush1.bf16.msra.mxu0 %v3888
        %3924 = vmatprep.subr.bf16.mxu0 0
        %3925 = vmatpush1.bf16.msra.mxu0 %v3889
        %3926 = vmatprep.subr.bf16.mxu0 0
        %3927 = vmatpush1.bf16.msra.mxu0 %v3890
        %3928 = vmatprep.subr.bf16.mxu0 0
        %3929 = vmatpush1.bf16.msra.mxu0 %v3891
        %3930 = vmatprep.subr.bf16.mxu0 0
        %3931 = vmatpush1.bf16.msra.mxu0 %v3892
        %3932 = vmatprep.subr.bf16.mxu0 0
        %3933 = vmatpush1.bf16.msra.mxu0 %v3893
        %3934 = vmatprep.subr.bf16.mxu0 0
        %3935 = vmatpush1.bf16.msra.mxu0 %v3894
        %3936 = vmatprep.subr.bf16.mxu0 0
        %3937 = vmatpush1.bf16.msra.mxu0 %v3895
        %3938 = vmatprep.subr.bf16.mxu0 0
        %3939 = vmatpush1.bf16.msra.mxu0 %v3896
        %3940 = vmatprep.subr.bf16.mxu0 0
        %3941 = vmatpush1.bf16.msra.mxu0 %v3897
        %3942 = vmatprep.subr.bf16.mxu0 0
        %3943 = vmatpush1.bf16.msra.mxu0 %v3898
        %3944 = vmatprep.subr.bf16.mxu0 0
        %3945 = vmatpush1.bf16.msra.mxu0 %v3899
        %3946 = vmatprep.subr.bf16.mxu0 0
        %3947 = vmatpush1.bf16.msra.mxu0 %v3900
        %3948 = vmatprep.subr.bf16.mxu0 0
        %3949 = vmatpush1.bf16.msra.mxu0 %v3901
        %3950 = vmatprep.mubr.bf16.mxu0 %v3776
        %3951 = vmatmul.mubr.bf16.gmra.mrb[0].mxu0 %v3775
        %v3952 = vpop.f32.mrb[0].mxu0
        %v3953 = vadd.f32 %v3820, %v3952
        %v3954 = vpop.f32.mrb[0].mxu0
        %v3955 = vpop.f32.mrb[0].mxu0
        %v3956 = vadd.f32 %v3820, %v3955
        %v3957 = vpop.f32.mrb[0].mxu0
        %3958 = vmatprep.mubr.bf16.mxu0 %v3778
        %3959 = vmatmul.mubr.bf16.gmra.mrb[0].mxu0 %v3777
        %v3960 = vpop.f32.mrb[0].mxu0
        %v3961 = vadd.f32 %v3820, %v3960
        %v3962 = vpop.f32.mrb[0].mxu0
        %v3963 = vpop.f32.mrb[0].mxu0
        %v3964 = vadd.f32 %v3820, %v3963
        %v3965 = vpop.f32.mrb[0].mxu0
        %3966 = vmatprep.mubr.bf16.mxu0 %v3780
        %3967 = vmatmul.mubr.bf16.gmra.mrb[0].mxu0 %v3779
        %v3968 = vpop.f32.mrb[0].mxu0
        %v3969 = vadd.f32 %v3820, %v3968
        %v3970 = vpop.f32.mrb[0].mxu0
        %v3971 = vpop.f32.mrb[0].mxu0
        %v3972 = vadd.f32 %v3820, %v3971
        %v3973 = vpop.f32.mrb[0].mxu0
        %3974 = vmatprep.mubr.bf16.mxu0 %v3782
        %3975 = vmatmul.mubr.bf16.gmra.mrb[0].mxu0 %v3781
        %v3976 = vpop.f32.mrb[0].mxu0
        %v3977 = vadd.f32 %v3820, %v3976
        %v3978 = vpop.f32.mrb[0].mxu0
        %v3979 = vpop.f32.mrb[0].mxu0
        %v3980 = vadd.f32 %v3820, %v3979
        %v3981 = vpop.f32.mrb[0].mxu0
        %3982 = vdwg.mxu0
        %vm3983 = vcmp.gt.f32.partialorder %v3953, 0.0
        %vm3984 = vcmp.gt.f32.partialorder %v3956, 0.0
        %vm3985 = vcmp.gt.f32.partialorder %v3961, 0.0
        %vm3986 = vcmp.gt.f32.partialorder %v3964, 0.0
        %vm3987 = vcmp.gt.f32.partialorder %v3969, 0.0
        %vm3988 = vcmp.gt.f32.partialorder %v3972, 0.0
        %vm3989 = vcmp.gt.f32.partialorder %v3977, 0.0
        %vm3990 = vcmp.gt.f32.partialorder %v3980, 0.0
        %v3991 = vmin.f32 %v3953, 0.0
        %v3992 = vmin.f32 %v3956, 0.0
        %v3993 = vmin.f32 %v3961, 0.0
        %v3994 = vmin.f32 %v3964, 0.0
        %v3995 = vmin.f32 %v3969, 0.0
        %v3996 = vmin.f32 %v3972, 0.0
        %v3997 = vmin.f32 %v3977, 0.0
        %v3998 = vmin.f32 %v3980, 0.0
        %v3999 = vmul.f32 %v3991, 1.442695
        %v4000 = vpow.pop %v3999
        %v4001 = vmul.f32 %v3992, 1.442695
        %v4002 = vpow.pop %v4001
        %v4003 = vmul.f32 %v3993, 1.442695
        %v4004 = vpow.pop %v4003
        %v4005 = vmul.f32 %v3994, 1.442695
        %v4006 = vpow.pop %v4005
        %v4007 = vmul.f32 %v3995, 1.442695
        %v4008 = vpow.pop %v4007
        %v4009 = vmul.f32 %v3996, 1.442695
        %v4010 = vpow.pop %v4009
        %v4011 = vmul.f32 %v3997, 1.442695
        %v4012 = vpow.pop %v4011
        %v4013 = vmul.f32 %v3998, 1.442695
        %v4014 = vpow.pop %v4013
        %v4015 = vsub.f32 %v4000, 1.0
        %v4016 = vsub.f32 %v4002, 1.0
        %v4017 = vsub.f32 %v4004, 1.0
        %v4018 = vsub.f32 %v4006, 1.0
        %v4019 = vsub.f32 %v4008, 1.0
        %v4020 = vsub.f32 %v4010, 1.0
        %v4021 = vsub.f32 %v4012, 1.0
        %v4022 = vsub.f32 %v4014, 1.0
        %v4023 = vsel %vm3983, %v3953, %v4015
        %v4024 = vsel %vm3984, %v3956, %v4016
        %v4025 = vsel %vm3985, %v3961, %v4017
        %v4026 = vsel %vm3986, %v3964, %v4018
        %v4027 = vsel %vm3987, %v3969, %v4019
        %v4028 = vsel %vm3988, %v3972, %v4020
        %v4029 = vsel %vm3989, %v3977, %v4021
        %v4030 = vsel %vm3990, %v3980, %v4022
        %v4031 = vpack.c.bf16 %v4024, %v4023
        %v4032 = vpack.c.bf16 %v4026, %v4025
        %v4033 = vpack.c.bf16 %v4028, %v4027
        %v4034 = vpack.c.bf16 %v4030, %v4029
        %v4035 = vld [vmem:[#allocation14] sm:$0xff]
        %v4036 = vld [vmem:[#allocation14 + $0x8] sm:$0xff]
        %v4037 = vld [vmem:[#allocation14 + $0x10] sm:$0xff]
        %v4038 = vld [vmem:[#allocation14 + $0x18] sm:$0xff]
        %v4039 = vld [vmem:[#allocation14 + $0x20] sm:$0xff]
        %v4040 = vld [vmem:[#allocation14 + $0x28] sm:$0xff]
        %v4041 = vld [vmem:[#allocation14 + $0x30] sm:$0xff]
        %v4042 = vld [vmem:[#allocation14 + $0x38] sm:$0xff]
        %v4043 = vld [vmem:[#allocation14 + $0x40] sm:$0xff]
        %v4044 = vld [vmem:[#allocation14 + $0x48] sm:$0xff]
        %v4045 = vld [vmem:[#allocation14 + $0x50] sm:$0xff]
        %v4046 = vld [vmem:[#allocation14 + $0x58] sm:$0xff]
        %v4047 = vld [vmem:[#allocation14 + $0x60] sm:$0xff]
        %v4048 = vld [vmem:[#allocation14 + $0x68] sm:$0xff]
        %v4049 = vld [vmem:[#allocation14 + $0x70] sm:$0xff]
        %v4050 = vld [vmem:[#allocation14 + $0x78] sm:$0xff]
        %v4051 = vld [vmem:[#allocation15] sm:$0x3]
        %v4053 = vlaneseq
        %v4054 = vshrl.u32 %v4053, 7
        %v4055 = vsub.s32 0, %v4054
        %v4056 = vrot.slane %v4051, %v4055
        %v4057 = vlaneseq
        %v4058 = vshrl.u32 %v4057, 7
        %v4059 = vsub.s32 1, %v4058
        %v4060 = vrot.slane %v4051, %v4059
        %v4079 = vunpack.c.l.b16 %v4035
        %v4080 = vunpack.c.h.b16 %v4035
        %v4081 = vunpack.c.l.b16 %v4036
        %v4082 = vunpack.c.h.b16 %v4036
        %v4083 = vunpack.c.l.b16 %v4037
        %v4084 = vunpack.c.h.b16 %v4037
        %v4085 = vunpack.c.l.b16 %v4038
        %v4086 = vunpack.c.h.b16 %v4038
        %v4087 = vunpack.c.l.b16 %v4039
        %v4088 = vunpack.c.h.b16 %v4039
        %v4089 = vunpack.c.l.b16 %v4040
        %v4090 = vunpack.c.h.b16 %v4040
        %v4091 = vunpack.c.l.b16 %v4041
        %v4092 = vunpack.c.h.b16 %v4041
        %v4093 = vunpack.c.l.b16 %v4042
        %v4094 = vunpack.c.h.b16 %v4042
        %v4095 = vunpack.c.l.b16 %v4043
        %v4096 = vunpack.c.h.b16 %v4043
        %v4097 = vunpack.c.l.b16 %v4044
        %v4098 = vunpack.c.h.b16 %v4044
        %v4099 = vunpack.c.l.b16 %v4045
        %v4100 = vunpack.c.h.b16 %v4045
        %v4101 = vunpack.c.l.b16 %v4046
        %v4102 = vunpack.c.h.b16 %v4046
        %v4103 = vunpack.c.l.b16 %v4047
        %v4104 = vunpack.c.h.b16 %v4047
        %v4105 = vunpack.c.l.b16 %v4048
        %v4106 = vunpack.c.h.b16 %v4048
        %v4107 = vunpack.c.l.b16 %v4049
        %v4108 = vunpack.c.h.b16 %v4049
        %v4109 = vunpack.c.l.b16 %v4050
        %v4110 = vunpack.c.h.b16 %v4050
        %v4111 = vpack.c.b16 %v4081, %v4079
        %v4112 = vpack.c.b16 %v4082, %v4080
        %v4113 = vpack.c.b16 %v4085, %v4083
        %v4114 = vpack.c.b16 %v4086, %v4084
        %v4115 = vpack.c.b16 %v4089, %v4087
        %v4116 = vpack.c.b16 %v4090, %v4088
        %v4117 = vpack.c.b16 %v4093, %v4091
        %v4118 = vpack.c.b16 %v4094, %v4092
        %v4119 = vpack.c.b16 %v4097, %v4095
        %v4120 = vpack.c.b16 %v4098, %v4096
        %v4121 = vpack.c.b16 %v4101, %v4099
        %v4122 = vpack.c.b16 %v4102, %v4100
        %v4123 = vpack.c.b16 %v4105, %v4103
        %v4124 = vpack.c.b16 %v4106, %v4104
        %v4125 = vpack.c.b16 %v4109, %v4107
        %v4126 = vpack.c.b16 %v4110, %v4108
        %4143 = vmatprep.subr.bf16.mxu0 %v4112
        %4144 = vmatpush1.bf16.msra.mxu0 %v4111
        %4145 = vmatprep.subr.bf16.mxu0 %v4114
        %4146 = vmatpush1.bf16.msra.mxu0 %v4113
        %4147 = vmatprep.subr.bf16.mxu0 %v4116
        %4148 = vmatpush1.bf16.msra.mxu0 %v4115
        %4149 = vmatprep.subr.bf16.mxu0 %v4118
        %4150 = vmatpush1.bf16.msra.mxu0 %v4117
        %4151 = vmatprep.subr.bf16.mxu0 %v4120
        %4152 = vmatpush1.bf16.msra.mxu0 %v4119
        %4153 = vmatprep.subr.bf16.mxu0 %v4122
        %4154 = vmatpush1.bf16.msra.mxu0 %v4121
        %4155 = vmatprep.subr.bf16.mxu0 %v4124
        %4156 = vmatpush1.bf16.msra.mxu0 %v4123
        %4157 = vmatprep.subr.bf16.mxu0 %v4126
        %4158 = vmatpush1.bf16.msra.mxu0 %v4125
        %4159 = vmatprep.subr.bf16.mxu0 0
        %4160 = vmatpush1.bf16.msra.mxu0 0
        %4161 = vmatprep.subr.bf16.mxu0 0
        %4162 = vmatpush1.bf16.msra.mxu0 0
        %4163 = vmatprep.subr.bf16.mxu0 0
        %4164 = vmatpush1.bf16.msra.mxu0 0
        %4165 = vmatprep.subr.bf16.mxu0 0
        %4166 = vmatpush1.bf16.msra.mxu0 0
        %4167 = vmatprep.subr.bf16.mxu0 0
        %4168 = vmatpush1.bf16.msra.mxu0 0
        %4169 = vmatprep.subr.bf16.mxu0 0
        %4170 = vmatpush1.bf16.msra.mxu0 0
        %4171 = vmatprep.subr.bf16.mxu0 0
        %4172 = vmatpush1.bf16.msra.mxu0 0
        %4173 = vmatprep.subr.bf16.mxu0 0
        %4174 = vmatpush1.bf16.msra.mxu0 0
        %4175 = vmatprep.mubr.bf16.mxu0 0
        %4176 = vmatmul.mubr.bf16.gmra.mrb[0].mxu0 %v4031
        %v4177 = vpop.f32.mrb[0].mxu0
        %v4178 = vadd.f32 %v4056, %v4177
        %v4179 = vpop.f32.mrb[0].mxu0
        %v4180 = vadd.f32 %v4060, %v4179
        %v4181 = vpop.f32.mrb[0].mxu0
        %v4182 = vadd.f32 %v4056, %v4181
        %v4183 = vpop.f32.mrb[0].mxu0
        %v4184 = vadd.f32 %v4060, %v4183
        %4185 = vmatprep.mubr.bf16.mxu0 0
        %4186 = vmatmul.mubr.bf16.gmra.mrb[0].mxu0 %v4032
        %v4187 = vpop.f32.mrb[0].mxu0
        %v4188 = vadd.f32 %v4056, %v4187
        %v4189 = vpop.f32.mrb[0].mxu0
        %v4190 = vadd.f32 %v4060, %v4189
        %v4191 = vpop.f32.mrb[0].mxu0
        %v4192 = vadd.f32 %v4056, %v4191
        %v4193 = vpop.f32.mrb[0].mxu0
        %v4194 = vadd.f32 %v4060, %v4193
        %4195 = vmatprep.mubr.bf16.mxu0 0
        %4196 = vmatmul.mubr.bf16.gmra.mrb[0].mxu0 %v4033
        %v4197 = vpop.f32.mrb[0].mxu0
        %v4198 = vadd.f32 %v4056, %v4197
        %v4199 = vpop.f32.mrb[0].mxu0
        %v4200 = vadd.f32 %v4060, %v4199
        %v4201 = vpop.f32.mrb[0].mxu0
        %v4202 = vadd.f32 %v4056, %v4201
        %v4203 = vpop.f32.mrb[0].mxu0
        %v4204 = vadd.f32 %v4060, %v4203
        %4205 = vmatprep.mubr.bf16.mxu0 0
        %4206 = vmatmul.mubr.bf16.gmra.mrb[0].mxu0 %v4034
        %v4207 = vpop.f32.mrb[0].mxu0
        %v4208 = vadd.f32 %v4056, %v4207
        %v4209 = vpop.f32.mrb[0].mxu0
        %v4210 = vadd.f32 %v4060, %v4209
        %v4211 = vpop.f32.mrb[0].mxu0
        %v4212 = vadd.f32 %v4056, %v4211
        %v4213 = vpop.f32.mrb[0].mxu0
        %v4214 = vadd.f32 %v4060, %v4213
        %4215 = vdwg.mxu0
        %4216 = vst [vmem:[%s550] sm:$0xff] %v4178
        %4217 = vst [vmem:[%s550 + $0x8] sm:$0xff] %v4180
        %4218 = vst [vmem:[%s550 + $0x10] sm:$0xff] %v4182
        %4219 = vst [vmem:[%s550 + $0x18] sm:$0xff] %v4184
        %4220 = vst [vmem:[%s550 + $0x20] sm:$0xff] %v4188
        %4221 = vst [vmem:[%s550 + $0x28] sm:$0xff] %v4190
        %4222 = vst [vmem:[%s550 + $0x30] sm:$0xff] %v4192
        %4223 = vst [vmem:[%s550 + $0x38] sm:$0xff] %v4194
        %4224 = vst [vmem:[%s550 + $0x40] sm:$0xff] %v4198
        %4225 = vst [vmem:[%s550 + $0x48] sm:$0xff] %v4200
        %4226 = vst [vmem:[%s550 + $0x50] sm:$0xff] %v4202
        %4227 = vst [vmem:[%s550 + $0x58] sm:$0xff] %v4204
        %4228 = vst [vmem:[%s550 + $0x60] sm:$0xff] %v4208
        %4229 = vst [vmem:[%s550 + $0x68] sm:$0xff] %v4210
        %4230 = vst [vmem:[%s550 + $0x70] sm:$0xff] %v4212
        %4231 = vst [vmem:[%s550 + $0x78] sm:$0xff] %v4214
        %s4232 = sand.u32 %s250, 1
        %s4233 = scalar_lea.sflag [#allocation5], %s4232
        %s4234 = sand.u32 %s250, 1
        %s4235 = smul.addr %s4234, 128
        %s4236 = scalar_lea.vmem [#allocation17], %s4235
        %s4237 = sand.u32 %s278, 1
        %s4238 = scalar_lea.sflag [#allocation19], %s4237
        %s4239 = sand.u32 %s278, 1
        %s4240 = smul.addr %s4239, 128
        %s4241 = scalar_lea.vmem [#allocation18], %s4240
        // Predicated region
        $region89: #{tpu_custom_call.1} parent=51 // pred_check
          %p4242 = pneg %p260
        $region90: #{tpu_custom_call.1} parent=51 // pred_check_branch
          %4244 = sbr.rel (%p4242) target = $region92
        $region91: #{tpu_custom_call.1} parent=51 // pred_region
          %s4245 = smul.u32 8, %s43
          %s4247 = ssub.s32 2048, 2048
          %4248 = vsyncadd %s4233, %s4247
          %s4249 = smul.addr %s4245, 2
          %s4250 = smul.addr %s42, 16
          %s4251 = sadd.s32 %s4249, %s4250
          %s4252 = smul.addr %s4251, 128
          %s4253 = scalar_lea.hbm %s8, %s4252
          %s4254 = sshll.u32 %s4236, 4
          %s4255 = int_to_ptr.vmem [resolvable:$true] %s4254
          %4260 = dma.vmem_to_hbm [thread:$0]  %s4255, 2048, %s4253, %s4233, 256, 256, 16
        $region92: #{tpu_custom_call.1} parent=51 // pred_fallthru
          _
        // Predicated region
        $region93: #{tpu_custom_call.1} parent=51 // pred_check
          %p4261 = pneg %p288
        $region94: #{tpu_custom_call.1} parent=51 // pred_check_branch
          %4263 = sbr.rel (%p4261) target = $region96
        $region95: #{tpu_custom_call.1} parent=51 // pred_region
          %s4264 = smul.u32 8, %s43
          %s4266 = ssub.s32 2048, 2048
          %4267 = vsyncadd %s4238, %s4266
          %s4268 = smul.addr %s4264, 2
          %s4269 = smul.addr %s42, 16
          %s4270 = sadd.s32 %s4268, %s4269
          %s4271 = smul.addr %s4270, 128
          %s4272 = scalar_lea.hbm %s9, %s4271
          %s4273 = sshll.u32 %s4241, 4
          %s4274 = int_to_ptr.vmem [resolvable:$true] %s4273
          %4279 = dma.vmem_to_hbm [thread:$0]  %s4274, 2048, %s4272, %s4238, 256, 256, 16
        $region96: #{tpu_custom_call.1} parent=51 // pred_fallthru
          _
      $region52: #{tpu_custom_call.1} parent=5 // pred_fallthru
        _
      %p4280 = scmp.le.s32.totalorder 2, %s33
      // Predicated region
      $region97: #{tpu_custom_call.1} parent=5 // pred_check
        %p4281 = pneg %p4280
      $region98: #{tpu_custom_call.1} parent=5 // pred_check_branch
        %4283 = sbr.rel (%p4281) target = $region100
      $region99: #{tpu_custom_call.1} parent=5 // pred_region
        %s4284 = ssub.s32 %s33, 2
        // Predicated region
        $region101: #{tpu_custom_call.1} parent=99 // pred_check
          %p4285 = pneg %p266
        $region102: #{tpu_custom_call.1} parent=99 // pred_check_branch
          %4287 = sbr.rel (%p4285) target = $region104
        $region103: #{tpu_custom_call.1} parent=99 // pred_region
          %s4288 = sand.u32 %s251, 1
          %s4289 = scalar_lea.sflag [#allocation5], %s4288
          %s4290 = sand.u32 %s251, 1
          %s4291 = smul.addr %s4290, 128
          %s4292 = scalar_lea.vmem [#allocation17], %s4291
          %4293 = dma.done %s4289, 2048
        $region104: #{tpu_custom_call.1} parent=99 // pred_fallthru
          _
        // Predicated region
        $region105: #{tpu_custom_call.1} parent=99 // pred_check
          %p4294 = pneg %p294
        $region106: #{tpu_custom_call.1} parent=99 // pred_check_branch
          %4296 = sbr.rel (%p4294) target = $region108
        $region107: #{tpu_custom_call.1} parent=99 // pred_region
          %s4297 = sand.u32 %s279, 1
          %s4298 = scalar_lea.sflag [#allocation19], %s4297
          %s4299 = sand.u32 %s279, 1
          %s4300 = smul.addr %s4299, 128
          %s4301 = scalar_lea.vmem [#allocation18], %s4300
          %4302 = dma.done %s4298, 2048
        $region108: #{tpu_custom_call.1} parent=99 // pred_fallthru
          _
      $region100: #{tpu_custom_call.1} parent=5 // pred_fallthru
        _
    $region6: #{tpu_custom_call.1} parent=1 // loop_footer
      %s37 = sadd.s32 1, %s33
    $region7: #{tpu_custom_call.1} parent=1 // loop_footer_branch
      %32 = sbr.rel target = $region3
    $region8: #{tpu_custom_call.1} parent=1 // loop_exit
      _
    %4303 = vsyncpa [#allocation4], 1
    %s4304 = scalar_lea.sflag [#allocation4], 1
    %4305 = vsyncpa %s4304, 1
    %4306 = vsyncpa [#allocation7], 1
    %s4307 = scalar_lea.sflag [#allocation7], 1
    %4308 = vsyncpa %s4307, 1
    %4309 = vsyncpa [#allocation10], 1
    %s4310 = scalar_lea.sflag [#allocation10], 1
    %4311 = vsyncpa %s4310, 1
    %4312 = vsyncpa [#allocation13], 1
    %4313 = vsyncpa [#allocation16], 1
    %4314 = vsyncpa [#allocation5], 1
    %s4315 = scalar_lea.sflag [#allocation5], 1
    %4316 = vsyncpa %s4315, 1
    %4317 = vsyncpa [#allocation19], 1
    %s4318 = scalar_lea.sflag [#allocation19], 1
    %4319 = vsyncpa %s4318, 1

</llo_original>
